<compile_context>
chip_gen: v6e
topology: v6e:2x2x1
jax: 0.10.0
libtpu: 0.0.40
codegen_flags: <defaults>
</compile_context>

<pallas_src>
import jax
import jax.numpy as jnp
from jax.experimental import pallas as pl
from jax.experimental.pallas import tpu as pltpu  # noqa: F401  (TPU backend assumed)

# ---------------- small T5 config (synthetic, deterministic init) ------------
VOCAB = 64            # config['tokenizer_length']
VPAD = 128            # vocab padded to a full 128-lane tile for the store path
D_MODEL = 32
D_KV = 8
N_HEADS = 4
INNER = N_HEADS * D_KV
D_FF = 64
N_LAYERS = 2
REL_BUCKETS = 8
REL_MAX_DIST = 16
EPS = 1e-6
NEG_INF = -1e9


# ---------------- in-kernel helpers (traced inline) --------------------------
def _rms(x, w):
    """T5 RMSNorm in f32: x * rsqrt(mean(x^2) + eps) * w ;  w: (1, D)."""
    var = jnp.mean(x * x, axis=-1, keepdims=True)
    return x * jax.lax.rsqrt(var + EPS) * w


def _attn(nq, nkv, wq, wk, wv, wo, bias):
    """Multi-head attention on flattened (B*T, D) activations, all f32.

    nq   : (Mq, D) normed query-side activations
    nkv  : (Mk, D) normed key/value-side activations
    wq/wk/wv : (D, H*d_kv) merged projections;  wo : (H*d_kv, D)
    bias : (H, Mq, Mk) per-head additive bias, or (1, Mq, Mk) head-shared mask
    """
    q = jnp.dot(nq, wq, preferred_element_type=jnp.float32)    # (Mq, H*dkv)
    k = jnp.dot(nkv, wk, preferred_element_type=jnp.float32)   # (Mk, H*dkv)
    v = jnp.dot(nkv, wv, preferred_element_type=jnp.float32)   # (Mk, H*dkv)
    per_head_bias = bias.shape[0] == N_HEADS
    ctx_parts = []
    for h in range(N_HEADS):                                   # static, unrolled
        sl = slice(h * D_KV, (h + 1) * D_KV)
        # T5 attention: NO 1/sqrt(dk) scaling; contract on last dims (no .T)
        s = jax.lax.dot_general(q[:, sl], k[:, sl],
                                (((1,), (1,)), ((), ())),
                                preferred_element_type=jnp.float32)  # (Mq, Mk)
        s = s + (bias[h] if per_head_bias else bias[0])
        s = s - jnp.max(s, axis=-1, keepdims=True)
        p = jnp.exp(s)
        p = p * pl.reciprocal(jnp.sum(p, axis=-1, keepdims=True), approx=True)
        ctx_parts.append(jnp.dot(p, v[:, sl],
                                 preferred_element_type=jnp.float32))  # (Mq, dkv)
    ctx = jnp.concatenate(ctx_parts, axis=-1)                  # (Mq, H*dkv)
    return jnp.dot(ctx, wo, preferred_element_type=jnp.float32)  # (Mq, D)


# ---------------- the single fused forward kernel -----------------------------
def _t5_forward_kernel(
        # activations / labels / biases
        x_ref, y_ref, labels_ref, enc_bias_ref, dec_bias_ref, cross_mask_ref,
        # encoder stacked weights (leading dim = layer)
        e_ln1_ref, e_wq_ref, e_wk_ref, e_wv_ref, e_wo_ref,
        e_ln2_ref, e_wi_ref, e_wf_ref,
        enc_fln_ref,
        # decoder stacked weights (leading dim = layer)
        d_ln1_ref, d_swq_ref, d_swk_ref, d_swv_ref, d_swo_ref,
        d_ln2_ref, d_cwq_ref, d_cwk_ref, d_cwv_ref, d_cwo_ref,
        d_ln3_ref, d_wi_ref, d_wf_ref,
        dec_fln_ref,
        lm_ref,
        # outputs
        logits_ref, loss_ref):
    enc_bias = enc_bias_ref[...]      # (H, Me, Me)
    dec_bias = dec_bias_ref[...]      # (H, Md, Md)
    cross_bias = cross_mask_ref[...]  # (1, Md, Me)

    # ------------------------------ encoder stack -----------------------------
    x = x_ref[...]                                             # (Me, D) f32
    for l in range(N_LAYERS):                                  # static unroll
        n = _rms(x, e_ln1_ref[l])
        x = x + _attn(n, n, e_wq_ref[l], e_wk_ref[l], e_wv_ref[l],
                      e_wo_ref[l], enc_bias)
        n = _rms(x, e_ln2_ref[l])
        h = jnp.maximum(jnp.dot(n, e_wi_ref[l],
                                preferred_element_type=jnp.float32), 0.0)
        x = x + jnp.dot(h, e_wf_ref[l], preferred_element_type=jnp.float32)
    enc = _rms(x, enc_fln_ref[...])                            # (Me, D)

    # ------------------------------ decoder stack -----------------------------
    y = y_ref[...]                                             # (Md, D) f32
    for l in range(N_LAYERS):
        n = _rms(y, d_ln1_ref[l])
        y = y + _attn(n, n, d_swq_ref[l], d_swk_ref[l], d_swv_ref[l],
                      d_swo_ref[l], dec_bias)
        n = _rms(y, d_ln2_ref[l])
        y = y + _attn(n, enc, d_cwq_ref[l], d_cwk_ref[l], d_cwv_ref[l],
                      d_cwo_ref[l], cross_bias)
        n = _rms(y, d_ln3_ref[l])
        h = jnp.maximum(jnp.dot(n, d_wi_ref[l],
                                preferred_element_type=jnp.float32), 0.0)
        y = y + jnp.dot(h, d_wf_ref[l], preferred_element_type=jnp.float32)

    # ---------- final RMSNorm + tied LM head (vocab padded to 128 lanes) ------
    n = _rms(y, dec_fln_ref[...]) * (D_MODEL ** -0.5)          # T5 tied-emb scaling
    logits = jnp.dot(n, lm_ref[...], preferred_element_type=jnp.float32)  # (Md, VPAD)
    logits_ref[...] = logits                                   # lane-dense store

    # ---------- CrossEntropyLoss(ignore_index=-100), pad columns masked -------
    labels = labels_ref[...]                                   # (Md, 1) i32
    col = jax.lax.broadcasted_iota(jnp.int32, logits.shape, 1)
    masked = jnp.where(col < VOCAB, logits, NEG_INF)           # kill pad columns
    m = jnp.max(masked, axis=-1, keepdims=True)
    lse = jnp.log(jnp.sum(jnp.exp(masked - m), axis=-1, keepdims=True)) + m
    tgt = jnp.sum(jnp.where(col == labels, logits, 0.0), axis=-1, keepdims=True)
    valid = (labels != -100).astype(jnp.float32)               # ignore_index=-100
    per_tok = (lse - tgt) * valid
    total = jnp.sum(per_tok, axis=(0, 1), keepdims=True)
    count = jnp.sum(valid, axis=(0, 1), keepdims=True)
    loss_ref[...] = total / jnp.maximum(count, 1.0)            # guard all-ignored


# ---------------- T5 relative position bias (tiny integer glue, plain JAX) ---
def _rel_pos_bucket(rel_pos, bidirectional, num_buckets, max_distance):
    ret = jnp.zeros_like(rel_pos)
    if bidirectional:
        num_buckets //= 2
        ret = ret + (rel_pos > 0).astype(jnp.int32) * num_buckets
        rel_pos = jnp.abs(rel_pos)
    else:
        rel_pos = -jnp.minimum(rel_pos, 0)
    max_exact = num_buckets // 2
    is_small = rel_pos < max_exact
    rp_f = jnp.maximum(rel_pos.astype(jnp.float32), 1.0)
    large = max_exact + (
        jnp.log(rp_f / max_exact) / jnp.log(max_distance / max_exact)
        * (num_buckets - max_exact)
    ).astype(jnp.int32)
    large = jnp.minimum(large, num_buckets - 1)
    return ret + jnp.where(is_small, rel_pos, large)


def position_bias(rel_weight, tq, tk, bidirectional):
    ctx = jnp.arange(tq)[:, None]
    mem = jnp.arange(tk)[None, :]
    buckets = _rel_pos_bucket(mem - ctx, bidirectional, REL_BUCKETS, REL_MAX_DIST)
    values = rel_weight[buckets]              # (tq, tk, H)
    return jnp.transpose(values, (2, 0, 1))   # (H, tq, tk)


def _batch_mask(b, tq, tk):
    """(b*tq, b*tk) additive mask: 0 within a batch element, -1e9 across."""
    bq = jnp.arange(b * tq) // tq
    bk = jnp.arange(b * tk) // tk
    return jnp.where(bq[:, None] == bk[None, :], 0.0, NEG_INF).astype(jnp.float32)


# ---------------- full forward (one pallas_call) -------------------------------
def seq2seq_t5_forward(params, input_ids, labels):
    B, Te = input_ids.shape
    Td = labels.shape[1]
    Me, Md = B * Te, B * Td

    # ---- embeddings (gathers stay in host JAX) ----
    x = jnp.take(params['shared'], input_ids, axis=0).reshape(Me, D_MODEL)
    # decoder inputs: shift right, start token 0, -100 -> pad(0)
    dec_ids = jnp.concatenate(
        [jnp.zeros((B, 1), labels.dtype), labels[:, :-1]], axis=1)
    dec_ids = jnp.where(dec_ids == -100, 0, dec_ids)
    y = jnp.take(params['shared'], dec_ids, axis=0).reshape(Md, D_MODEL)

    # ---- biases, built once per forward (not per layer) ----
    enc_rel = position_bias(params['enc_rel_bias'], Te, Te, True)      # (H,Te,Te)
    enc_bias = jnp.tile(enc_rel, (1, B, B)) + _batch_mask(B, Te, Te)[None]
    dec_rel = position_bias(params['dec_rel_bias'], Td, Td, False)     # (H,Td,Td)
    causal = jnp.where(jnp.arange(Td)[:, None] >= jnp.arange(Td)[None, :],
                       0.0, NEG_INF).astype(jnp.float32)
    dec_bias = (jnp.tile(dec_rel + causal[None], (1, B, B))
                + _batch_mask(B, Td, Td)[None])                        # (H,Md,Md)
    cross_mask = _batch_mask(B, Td, Te)[None]                          # (1,Md,Me)

    labels2d = labels.reshape(Md, 1).astype(jnp.int32)

    e, d = params['enc'], params['dec']
    logits, loss = pl.pallas_call(
        _t5_forward_kernel,
        out_shape=(jax.ShapeDtypeStruct((Md, VPAD), jnp.float32),
                   jax.ShapeDtypeStruct((1, 1), jnp.float32)),
    )(x, y, labels2d, enc_bias, dec_bias, cross_mask,
      e['ln1'], e['wq'], e['wk'], e['wv'], e['wo'], e['ln2'], e['wi'], e['wf'],
      params['enc_final_ln'],
      d['ln1'], d['swq'], d['swk'], d['swv'], d['swo'],
      d['ln2'], d['cwq'], d['cwk'], d['cwv'], d['cwo'],
      d['ln3'], d['wi'], d['wf'],
      params['dec_final_ln'],
      params['lm_head'])

    return logits[:, :VOCAB].reshape(B, Td, VOCAB), loss[0, 0]


# ---------------- deterministic parameter init (all f32) ----------------------
def init_params(key):
    keys = iter(jax.random.split(key, 32))

    def nrm(shape, scale=0.05):
        return jax.random.normal(next(keys), shape, dtype=jnp.float32) * scale

    ones = lambda shape: jnp.ones(shape, jnp.float32)

    shared = nrm((VOCAB, D_MODEL), 1.0)                 # f32 embedding table
    # tied LM head, pre-transposed once, zero-padded to 128 lanes
    lm_head = jnp.zeros((D_MODEL, VPAD), jnp.float32).at[:, :VOCAB].set(shared.T)

    enc = dict(
        ln1=ones((N_LAYERS, 1, D_MODEL)),
        wq=nrm((N_LAYERS, D_MODEL, INNER)),
        wk=nrm((N_LAYERS, D_MODEL, INNER)),
        wv=nrm((N_LAYERS, D_MODEL, INNER)),
        wo=nrm((N_LAYERS, INNER, D_MODEL)),
        ln2=ones((N_LAYERS, 1, D_MODEL)),
        wi=nrm((N_LAYERS, D_MODEL, D_FF)),
        wf=nrm((N_LAYERS, D_FF, D_MODEL)),
    )
    dec = dict(
        ln1=ones((N_LAYERS, 1, D_MODEL)),
        swq=nrm((N_LAYERS, D_MODEL, INNER)),
        swk=nrm((N_LAYERS, D_MODEL, INNER)),
        swv=nrm((N_LAYERS, D_MODEL, INNER)),
        swo=nrm((N_LAYERS, INNER, D_MODEL)),
        ln2=ones((N_LAYERS, 1, D_MODEL)),
        cwq=nrm((N_LAYERS, D_MODEL, INNER)),
        cwk=nrm((N_LAYERS, D_MODEL, INNER)),
        cwv=nrm((N_LAYERS, D_MODEL, INNER)),
        cwo=nrm((N_LAYERS, INNER, D_MODEL)),
        ln3=ones((N_LAYERS, 1, D_MODEL)),
        wi=nrm((N_LAYERS, D_MODEL, D_FF)),
        wf=nrm((N_LAYERS, D_FF, D_MODEL)),
    )
    return dict(
        shared=shared,
        lm_head=lm_head,
        enc_rel_bias=nrm((REL_BUCKETS, N_HEADS), 0.1),
        dec_rel_bias=nrm((REL_BUCKETS, N_HEADS), 0.1),
        enc_final_ln=ones((1, D_MODEL)),
        dec_final_ln=ones((1, D_MODEL)),
        enc=enc,
        dec=dec,
    )


if __name__ == "__main__":
    key = jax.random.PRNGKey(0)
    pkey, ikey, lkey = jax.random.split(key, 3)
    params = init_params(pkey)

    B, T = 2, 8
    input_ids = jax.random.randint(ikey, (B, T), 0, VOCAB, dtype=jnp.int32)
    labels = jax.random.randint(lkey, (B, T), 0, VOCAB, dtype=jnp.int32)
    labels = labels.at[:, -2:].set(-100)   # exercise ignore_index=-100

    fwd = jax.jit(seq2seq_t5_forward)
    logits, loss = fwd(params, input_ids, labels)
    jax.block_until_ready((logits, loss))
    assert logits.shape == (B, T, VOCAB)
    assert jnp.isfinite(loss)
    print("KERNEL_OK")
</pallas_src>

<mosaic_0001>
module attributes {stable_mosaic.version = 11 : i64} {
  func.func @_t5_forward_kernel(%arg0: memref<16x32xf32, #tpu.memory_space<vmem>>, %arg1: memref<16x32xf32, #tpu.memory_space<vmem>>, %arg2: memref<16x1xi32, #tpu.memory_space<vmem>>, %arg3: memref<4x16x16xf32, #tpu.memory_space<vmem>>, %arg4: memref<4x16x16xf32, #tpu.memory_space<vmem>>, %arg5: memref<1x16x16xf32, #tpu.memory_space<vmem>>, %arg6: memref<2x1x32xf32, #tpu.memory_space<vmem>>, %arg7: memref<2x32x32xf32, #tpu.memory_space<vmem>>, %arg8: memref<2x32x32xf32, #tpu.memory_space<vmem>>, %arg9: memref<2x32x32xf32, #tpu.memory_space<vmem>>, %arg10: memref<2x32x32xf32, #tpu.memory_space<vmem>>, %arg11: memref<2x1x32xf32, #tpu.memory_space<vmem>>, %arg12: memref<2x32x64xf32, #tpu.memory_space<vmem>>, %arg13: memref<2x64x32xf32, #tpu.memory_space<vmem>>, %arg14: memref<1x32xf32, #tpu.memory_space<vmem>>, %arg15: memref<2x1x32xf32, #tpu.memory_space<vmem>>, %arg16: memref<2x32x32xf32, #tpu.memory_space<vmem>>, %arg17: memref<2x32x32xf32, #tpu.memory_space<vmem>>, %arg18: memref<2x32x32xf32, #tpu.memory_space<vmem>>, %arg19: memref<2x32x32xf32, #tpu.memory_space<vmem>>, %arg20: memref<2x1x32xf32, #tpu.memory_space<vmem>>, %arg21: memref<2x32x32xf32, #tpu.memory_space<vmem>>, %arg22: memref<2x32x32xf32, #tpu.memory_space<vmem>>, %arg23: memref<2x32x32xf32, #tpu.memory_space<vmem>>, %arg24: memref<2x32x32xf32, #tpu.memory_space<vmem>>, %arg25: memref<2x1x32xf32, #tpu.memory_space<vmem>>, %arg26: memref<2x32x64xf32, #tpu.memory_space<vmem>>, %arg27: memref<2x64x32xf32, #tpu.memory_space<vmem>>, %arg28: memref<1x32xf32, #tpu.memory_space<vmem>>, %arg29: memref<32x128xf32, #tpu.memory_space<vmem>>, %arg30: memref<16x128xf32, #tpu.memory_space<vmem>>, %arg31: memref<1x1xf32, #tpu.memory_space<vmem>>) attributes {dimension_semantics = [], scalar_prefetch = 0 : i64, scratch_operands = 0 : i64, tpu.core_type = #tpu.core_type<tc>} {
    %c0 = arith.constant 0 : index
    %c0_0 = arith.constant 0 : index
    %c0_1 = arith.constant 0 : index
    %0 = vector.load %arg3[%c0, %c0_0, %c0_1] : memref<4x16x16xf32, #tpu.memory_space<vmem>>, vector<4x16x16xf32>
    %c0_2 = arith.constant 0 : index
    %c0_3 = arith.constant 0 : index
    %c0_4 = arith.constant 0 : index
    %1 = vector.load %arg4[%c0_2, %c0_3, %c0_4] : memref<4x16x16xf32, #tpu.memory_space<vmem>>, vector<4x16x16xf32>
    %c0_5 = arith.constant 0 : index
    %c0_6 = arith.constant 0 : index
    %c0_7 = arith.constant 0 : index
    %2 = vector.load %arg5[%c0_5, %c0_6, %c0_7] : memref<1x16x16xf32, #tpu.memory_space<vmem>>, vector<1x16x16xf32>
    %c0_8 = arith.constant 0 : index
    %c0_9 = arith.constant 0 : index
    %3 = vector.load %arg0[%c0_8, %c0_9] : memref<16x32xf32, #tpu.memory_space<vmem>>, vector<16x32xf32>
    %c0_10 = arith.constant 0 : index
    %c0_11 = arith.constant 0 : index
    %c0_12 = arith.constant 0 : index
    %4 = vector.load %arg6[%c0_10, %c0_11, %c0_12] : memref<2x1x32xf32, #tpu.memory_space<vmem>>, vector<1x1x32xf32>
    %5 = vector.shape_cast %4 : vector<1x1x32xf32> to vector<1x32xf32>
    %6 = arith.mulf %3, %3 : vector<16x32xf32>
    %cst = arith.constant dense<0.000000e+00> : vector<16xf32>
    %7 = vector.multi_reduction <add>, %6, %cst [1] : vector<16x32xf32> to vector<16xf32>
    %8 = vector.shape_cast %7 : vector<16xf32> to vector<16x1xf32>
    %cst_13 = arith.constant 3.200000e+01 : f32
    %9 = vector.broadcast %cst_13 : f32 to vector<16x1xf32>
    %10 = arith.divf %8, %9 : vector<16x1xf32>
    %cst_14 = arith.constant 9.99999997E-7 : f32
    %11 = vector.broadcast %cst_14 : f32 to vector<16x1xf32>
    %12 = arith.addf %10, %11 : vector<16x1xf32>
    %13 = math.rsqrt %12 : vector<16x1xf32>
    %14 = vector.broadcast %13 : vector<16x1xf32> to vector<16x32xf32>
    %15 = arith.mulf %3, %14 : vector<16x32xf32>
    %16 = vector.broadcast %5 : vector<1x32xf32> to vector<16x32xf32>
    %17 = arith.mulf %15, %16 : vector<16x32xf32>
    %c0_15 = arith.constant 0 : index
    %c0_16 = arith.constant 0 : index
    %c0_17 = arith.constant 0 : index
    %18 = vector.load %arg7[%c0_15, %c0_16, %c0_17] : memref<2x32x32xf32, #tpu.memory_space<vmem>>, vector<1x32x32xf32>
    %19 = vector.shape_cast %18 : vector<1x32x32xf32> to vector<32x32xf32>
    %c0_18 = arith.constant 0 : index
    %c0_19 = arith.constant 0 : index
    %c0_20 = arith.constant 0 : index
    %20 = vector.load %arg8[%c0_18, %c0_19, %c0_20] : memref<2x32x32xf32, #tpu.memory_space<vmem>>, vector<1x32x32xf32>
    %21 = vector.shape_cast %20 : vector<1x32x32xf32> to vector<32x32xf32>
    %c0_21 = arith.constant 0 : index
    %c0_22 = arith.constant 0 : index
    %c0_23 = arith.constant 0 : index
    %22 = vector.load %arg9[%c0_21, %c0_22, %c0_23] : memref<2x32x32xf32, #tpu.memory_space<vmem>>, vector<1x32x32xf32>
    %23 = vector.shape_cast %22 : vector<1x32x32xf32> to vector<32x32xf32>
    %c0_24 = arith.constant 0 : index
    %c0_25 = arith.constant 0 : index
    %c0_26 = arith.constant 0 : index
    %24 = vector.load %arg10[%c0_24, %c0_25, %c0_26] : memref<2x32x32xf32, #tpu.memory_space<vmem>>, vector<1x32x32xf32>
    %25 = vector.shape_cast %24 : vector<1x32x32xf32> to vector<32x32xf32>
    %cst_27 = arith.constant dense<0.000000e+00> : vector<16x32xf32>
    %26 = tpu.matmul %17, %19, %cst_27 {dimension_numbers = #tpu.dot_dimension_numbers<[1], [0], [0], [1], [0, 0, 1, 1], [], []>} : vector<16x32xf32>, vector<32x32xf32>, vector<16x32xf32> -> vector<16x32xf32>
    %cst_28 = arith.constant dense<0.000000e+00> : vector<16x32xf32>
    %27 = tpu.matmul %17, %21, %cst_28 {dimension_numbers = #tpu.dot_dimension_numbers<[1], [0], [0], [1], [0, 0, 1, 1], [], []>} : vector<16x32xf32>, vector<32x32xf32>, vector<16x32xf32> -> vector<16x32xf32>
    %cst_29 = arith.constant dense<0.000000e+00> : vector<16x32xf32>
    %28 = tpu.matmul %17, %23, %cst_29 {dimension_numbers = #tpu.dot_dimension_numbers<[1], [0], [0], [1], [0, 0, 1, 1], [], []>} : vector<16x32xf32>, vector<32x32xf32>, vector<16x32xf32> -> vector<16x32xf32>
    %29 = vector.extract_strided_slice %26 {offsets = [0, 0], sizes = [16, 8], strides = [1, 1]} : vector<16x32xf32> to vector<16x8xf32>
    %30 = vector.extract_strided_slice %27 {offsets = [0, 0], sizes = [16, 8], strides = [1, 1]} : vector<16x32xf32> to vector<16x8xf32>
    %cst_30 = arith.constant dense<0.000000e+00> : vector<16x16xf32>
    %31 = tpu.matmul %29, %30, %cst_30 {dimension_numbers = #tpu.dot_dimension_numbers<[1], [1], [0], [0], [0, 0, 1, 0], [], []>} : vector<16x8xf32>, vector<16x8xf32>, vector<16x16xf32> -> vector<16x16xf32>
    %32 = vector.extract_strided_slice %0 {offsets = [0, 0, 0], sizes = [1, 16, 16], strides = [1, 1, 1]} : vector<4x16x16xf32> to vector<1x16x16xf32>
    %33 = vector.shape_cast %32 : vector<1x16x16xf32> to vector<16x16xf32>
    %34 = arith.addf %31, %33 : vector<16x16xf32>
    %cst_31 = arith.constant dense<0xFF800000> : vector<16xf32>
    %35 = vector.multi_reduction <maximumf>, %34, %cst_31 [1] : vector<16x16xf32> to vector<16xf32>
    %36 = vector.shape_cast %35 : vector<16xf32> to vector<16x1xf32>
    %37 = vector.broadcast %36 : vector<16x1xf32> to vector<16x16xf32>
    %38 = arith.subf %34, %37 : vector<16x16xf32>
    %39 = math.exp %38 : vector<16x16xf32>
    %cst_32 = arith.constant dense<0.000000e+00> : vector<16xf32>
    %40 = vector.multi_reduction <add>, %39, %cst_32 [1] : vector<16x16xf32> to vector<16xf32>
    %41 = vector.shape_cast %40 : vector<16xf32> to vector<16x1xf32>
    %42 = tpu.reciprocal %41 {approx = true} : vector<16x1xf32> -> vector<16x1xf32>
    %43 = vector.broadcast %42 : vector<16x1xf32> to vector<16x16xf32>
    %44 = arith.mulf %39, %43 : vector<16x16xf32>
    %45 = vector.extract_strided_slice %28 {offsets = [0, 0], sizes = [16, 8], strides = [1, 1]} : vector<16x32xf32> to vector<16x8xf32>
    %cst_33 = arith.constant dense<0.000000e+00> : vector<16x8xf32>
    %46 = tpu.matmul %44, %45, %cst_33 {dimension_numbers = #tpu.dot_dimension_numbers<[1], [0], [0], [1], [0, 0, 1, 1], [], []>} : vector<16x16xf32>, vector<16x8xf32>, vector<16x8xf32> -> vector<16x8xf32>
    %47 = vector.extract_strided_slice %26 {offsets = [0, 8], sizes = [16, 8], strides = [1, 1]} : vector<16x32xf32> to vector<16x8xf32>
    %48 = vector.extract_strided_slice %27 {offsets = [0, 8], sizes = [16, 8], strides = [1, 1]} : vector<16x32xf32> to vector<16x8xf32>
    %cst_34 = arith.constant dense<0.000000e+00> : vector<16x16xf32>
    %49 = tpu.matmul %47, %48, %cst_34 {dimension_numbers = #tpu.dot_dimension_numbers<[1], [1], [0], [0], [0, 0, 1, 0], [], []>} : vector<16x8xf32>, vector<16x8xf32>, vector<16x16xf32> -> vector<16x16xf32>
    %50 = vector.extract_strided_slice %0 {offsets = [1, 0, 0], sizes = [1, 16, 16], strides = [1, 1, 1]} : vector<4x16x16xf32> to vector<1x16x16xf32>
    %51 = vector.shape_cast %50 : vector<1x16x16xf32> to vector<16x16xf32>
    %52 = arith.addf %49, %51 : vector<16x16xf32>
    %cst_35 = arith.constant dense<0xFF800000> : vector<16xf32>
    %53 = vector.multi_reduction <maximumf>, %52, %cst_35 [1] : vector<16x16xf32> to vector<16xf32>
    %54 = vector.shape_cast %53 : vector<16xf32> to vector<16x1xf32>
    %55 = vector.broadcast %54 : vector<16x1xf32> to vector<16x16xf32>
    %56 = arith.subf %52, %55 : vector<16x16xf32>
    %57 = math.exp %56 : vector<16x16xf32>
    %cst_36 = arith.constant dense<0.000000e+00> : vector<16xf32>
    %58 = vector.multi_reduction <add>, %57, %cst_36 [1] : vector<16x16xf32> to vector<16xf32>
    %59 = vector.shape_cast %58 : vector<16xf32> to vector<16x1xf32>
    %60 = tpu.reciprocal %59 {approx = true} : vector<16x1xf32> -> vector<16x1xf32>
    %61 = vector.broadcast %60 : vector<16x1xf32> to vector<16x16xf32>
    %62 = arith.mulf %57, %61 : vector<16x16xf32>
    %63 = vector.extract_strided_slice %28 {offsets = [0, 8], sizes = [16, 8], strides = [1, 1]} : vector<16x32xf32> to vector<16x8xf32>
    %cst_37 = arith.constant dense<0.000000e+00> : vector<16x8xf32>
    %64 = tpu.matmul %62, %63, %cst_37 {dimension_numbers = #tpu.dot_dimension_numbers<[1], [0], [0], [1], [0, 0, 1, 1], [], []>} : vector<16x16xf32>, vector<16x8xf32>, vector<16x8xf32> -> vector<16x8xf32>
    %65 = vector.extract_strided_slice %26 {offsets = [0, 16], sizes = [16, 8], strides = [1, 1]} : vector<16x32xf32> to vector<16x8xf32>
    %66 = vector.extract_strided_slice %27 {offsets = [0, 16], sizes = [16, 8], strides = [1, 1]} : vector<16x32xf32> to vector<16x8xf32>
    %cst_38 = arith.constant dense<0.000000e+00> : vector<16x16xf32>
    %67 = tpu.matmul %65, %66, %cst_38 {dimension_numbers = #tpu.dot_dimension_numbers<[1], [1], [0], [0], [0, 0, 1, 0], [], []>} : vector<16x8xf32>, vector<16x8xf32>, vector<16x16xf32> -> vector<16x16xf32>
    %68 = vector.extract_strided_slice %0 {offsets = [2, 0, 0], sizes = [1, 16, 16], strides = [1, 1, 1]} : vector<4x16x16xf32> to vector<1x16x16xf32>
    %69 = vector.shape_cast %68 : vector<1x16x16xf32> to vector<16x16xf32>
    %70 = arith.addf %67, %69 : vector<16x16xf32>
    %cst_39 = arith.constant dense<0xFF800000> : vector<16xf32>
    %71 = vector.multi_reduction <maximumf>, %70, %cst_39 [1] : vector<16x16xf32> to vector<16xf32>
    %72 = vector.shape_cast %71 : vector<16xf32> to vector<16x1xf32>
    %73 = vector.broadcast %72 : vector<16x1xf32> to vector<16x16xf32>
    %74 = arith.subf %70, %73 : vector<16x16xf32>
    %75 = math.exp %74 : vector<16x16xf32>
    %cst_40 = arith.constant dense<0.000000e+00> : vector<16xf32>
    %76 = vector.multi_reduction <add>, %75, %cst_40 [1] : vector<16x16xf32> to vector<16xf32>
    %77 = vector.shape_cast %76 : vector<16xf32> to vector<16x1xf32>
    %78 = tpu.reciprocal %77 {approx = true} : vector<16x1xf32> -> vector<16x1xf32>
    %79 = vector.broadcast %78 : vector<16x1xf32> to vector<16x16xf32>
    %80 = arith.mulf %75, %79 : vector<16x16xf32>
    %81 = vector.extract_strided_slice %28 {offsets = [0, 16], sizes = [16, 8], strides = [1, 1]} : vector<16x32xf32> to vector<16x8xf32>
    %cst_41 = arith.constant dense<0.000000e+00> : vector<16x8xf32>
    %82 = tpu.matmul %80, %81, %cst_41 {dimension_numbers = #tpu.dot_dimension_numbers<[1], [0], [0], [1], [0, 0, 1, 1], [], []>} : vector<16x16xf32>, vector<16x8xf32>, vector<16x8xf32> -> vector<16x8xf32>
    %83 = vector.extract_strided_slice %26 {offsets = [0, 24], sizes = [16, 8], strides = [1, 1]} : vector<16x32xf32> to vector<16x8xf32>
    %84 = vector.extract_strided_slice %27 {offsets = [0, 24], sizes = [16, 8], strides = [1, 1]} : vector<16x32xf32> to vector<16x8xf32>
    %cst_42 = arith.constant dense<0.000000e+00> : vector<16x16xf32>
    %85 = tpu.matmul %83, %84, %cst_42 {dimension_numbers = #tpu.dot_dimension_numbers<[1], [1], [0], [0], [0, 0, 1, 0], [], []>} : vector<16x8xf32>, vector<16x8xf32>, vector<16x16xf32> -> vector<16x16xf32>
    %86 = vector.extract_strided_slice %0 {offsets = [3, 0, 0], sizes = [1, 16, 16], strides = [1, 1, 1]} : vector<4x16x16xf32> to vector<1x16x16xf32>
    %87 = vector.shape_cast %86 : vector<1x16x16xf32> to vector<16x16xf32>
    %88 = arith.addf %85, %87 : vector<16x16xf32>
    %cst_43 = arith.constant dense<0xFF800000> : vector<16xf32>
    %89 = vector.multi_reduction <maximumf>, %88, %cst_43 [1] : vector<16x16xf32> to vector<16xf32>
    %90 = vector.shape_cast %89 : vector<16xf32> to vector<16x1xf32>
    %91 = vector.broadcast %90 : vector<16x1xf32> to vector<16x16xf32>
    %92 = arith.subf %88, %91 : vector<16x16xf32>
    %93 = math.exp %92 : vector<16x16xf32>
    %cst_44 = arith.constant dense<0.000000e+00> : vector<16xf32>
    %94 = vector.multi_reduction <add>, %93, %cst_44 [1] : vector<16x16xf32> to vector<16xf32>
    %95 = vector.shape_cast %94 : vector<16xf32> to vector<16x1xf32>
    %96 = tpu.reciprocal %95 {approx = true} : vector<16x1xf32> -> vector<16x1xf32>
    %97 = vector.broadcast %96 : vector<16x1xf32> to vector<16x16xf32>
    %98 = arith.mulf %93, %97 : vector<16x16xf32>
    %99 = vector.extract_strided_slice %28 {offsets = [0, 24], sizes = [16, 8], strides = [1, 1]} : vector<16x32xf32> to vector<16x8xf32>
    %cst_45 = arith.constant dense<0.000000e+00> : vector<16x8xf32>
    %100 = tpu.matmul %98, %99, %cst_45 {dimension_numbers = #tpu.dot_dimension_numbers<[1], [0], [0], [1], [0, 0, 1, 1], [], []>} : vector<16x16xf32>, vector<16x8xf32>, vector<16x8xf32> -> vector<16x8xf32>
    %101 = tpu.concatenate %46, %64, %82, %100 in 1 : vector<16x8xf32>, vector<16x8xf32>, vector<16x8xf32>, vector<16x8xf32> -> vector<16x32xf32>
    %cst_46 = arith.constant dense<0.000000e+00> : vector<16x32xf32>
    %102 = tpu.matmul %101, %25, %cst_46 {dimension_numbers = #tpu.dot_dimension_numbers<[1], [0], [0], [1], [0, 0, 1, 1], [], []>} : vector<16x32xf32>, vector<32x32xf32>, vector<16x32xf32> -> vector<16x32xf32>
    %103 = arith.addf %3, %102 : vector<16x32xf32>
    %c0_47 = arith.constant 0 : index
    %c0_48 = arith.constant 0 : index
    %c0_49 = arith.constant 0 : index
    %104 = vector.load %arg11[%c0_47, %c0_48, %c0_49] : memref<2x1x32xf32, #tpu.memory_space<vmem>>, vector<1x1x32xf32>
    %105 = vector.shape_cast %104 : vector<1x1x32xf32> to vector<1x32xf32>
    %106 = arith.mulf %103, %103 : vector<16x32xf32>
    %cst_50 = arith.constant dense<0.000000e+00> : vector<16xf32>
    %107 = vector.multi_reduction <add>, %106, %cst_50 [1] : vector<16x32xf32> to vector<16xf32>
    %108 = vector.shape_cast %107 : vector<16xf32> to vector<16x1xf32>
    %cst_51 = arith.constant 3.200000e+01 : f32
    %109 = vector.broadcast %cst_51 : f32 to vector<16x1xf32>
    %110 = arith.divf %108, %109 : vector<16x1xf32>
    %cst_52 = arith.constant 9.99999997E-7 : f32
    %111 = vector.broadcast %cst_52 : f32 to vector<16x1xf32>
    %112 = arith.addf %110, %111 : vector<16x1xf32>
    %113 = math.rsqrt %112 : vector<16x1xf32>
    %114 = vector.broadcast %113 : vector<16x1xf32> to vector<16x32xf32>
    %115 = arith.mulf %103, %114 : vector<16x32xf32>
    %116 = vector.broadcast %105 : vector<1x32xf32> to vector<16x32xf32>
    %117 = arith.mulf %115, %116 : vector<16x32xf32>
    %c0_53 = arith.constant 0 : index
    %c0_54 = arith.constant 0 : index
    %c0_55 = arith.constant 0 : index
    %118 = vector.load %arg12[%c0_53, %c0_54, %c0_55] : memref<2x32x64xf32, #tpu.memory_space<vmem>>, vector<1x32x64xf32>
    %119 = vector.shape_cast %118 : vector<1x32x64xf32> to vector<32x64xf32>
    %cst_56 = arith.constant dense<0.000000e+00> : vector<16x64xf32>
    %120 = tpu.matmul %117, %119, %cst_56 {dimension_numbers = #tpu.dot_dimension_numbers<[1], [0], [0], [1], [0, 0, 1, 1], [], []>} : vector<16x32xf32>, vector<32x64xf32>, vector<16x64xf32> -> vector<16x64xf32>
    %cst_57 = arith.constant 0.000000e+00 : f32
    %121 = vector.broadcast %cst_57 : f32 to vector<16x64xf32>
    %122 = arith.maximumf %120, %121 : vector<16x64xf32>
    %c0_58 = arith.constant 0 : index
    %c0_59 = arith.constant 0 : index
    %c0_60 = arith.constant 0 : index
    %123 = vector.load %arg13[%c0_58, %c0_59, %c0_60] : memref<2x64x32xf32, #tpu.memory_space<vmem>>, vector<1x64x32xf32>
    %124 = vector.shape_cast %123 : vector<1x64x32xf32> to vector<64x32xf32>
    %cst_61 = arith.constant dense<0.000000e+00> : vector<16x32xf32>
    %125 = tpu.matmul %122, %124, %cst_61 {dimension_numbers = #tpu.dot_dimension_numbers<[1], [0], [0], [1], [0, 0, 1, 1], [], []>} : vector<16x64xf32>, vector<64x32xf32>, vector<16x32xf32> -> vector<16x32xf32>
    %126 = arith.addf %103, %125 : vector<16x32xf32>
    %c1 = arith.constant 1 : index
    %c0_62 = arith.constant 0 : index
    %c0_63 = arith.constant 0 : index
    %127 = vector.load %arg6[%c1, %c0_62, %c0_63] : memref<2x1x32xf32, #tpu.memory_space<vmem>>, vector<1x1x32xf32>
    %128 = vector.shape_cast %127 : vector<1x1x32xf32> to vector<1x32xf32>
    %129 = arith.mulf %126, %126 : vector<16x32xf32>
    %cst_64 = arith.constant dense<0.000000e+00> : vector<16xf32>
    %130 = vector.multi_reduction <add>, %129, %cst_64 [1] : vector<16x32xf32> to vector<16xf32>
    %131 = vector.shape_cast %130 : vector<16xf32> to vector<16x1xf32>
    %cst_65 = arith.constant 3.200000e+01 : f32
    %132 = vector.broadcast %cst_65 : f32 to vector<16x1xf32>
    %133 = arith.divf %131, %132 : vector<16x1xf32>
    %cst_66 = arith.constant 9.99999997E-7 : f32
    %134 = vector.broadcast %cst_66 : f32 to vector<16x1xf32>
    %135 = arith.addf %133, %134 : vector<16x1xf32>
    %136 = math.rsqrt %135 : vector<16x1xf32>
    %137 = vector.broadcast %136 : vector<16x1xf32> to vector<16x32xf32>
    %138 = arith.mulf %126, %137 : vector<16x32xf32>
    %139 = vector.broadcast %128 : vector<1x32xf32> to vector<16x32xf32>
    %140 = arith.mulf %138, %139 : vector<16x32xf32>
    %c1_67 = arith.constant 1 : index
    %c0_68 = arith.constant 0 : index
    %c0_69 = arith.constant 0 : index
    %141 = vector.load %arg7[%c1_67, %c0_68, %c0_69] : memref<2x32x32xf32, #tpu.memory_space<vmem>>, vector<1x32x32xf32>
    %142 = vector.shape_cast %141 : vector<1x32x32xf32> to vector<32x32xf32>
    %c1_70 = arith.constant 1 : index
    %c0_71 = arith.constant 0 : index
    %c0_72 = arith.constant 0 : index
    %143 = vector.load %arg8[%c1_70, %c0_71, %c0_72] : memref<2x32x32xf32, #tpu.memory_space<vmem>>, vector<1x32x32xf32>
    %144 = vector.shape_cast %143 : vector<1x32x32xf32> to vector<32x32xf32>
    %c1_73 = arith.constant 1 : index
    %c0_74 = arith.constant 0 : index
    %c0_75 = arith.constant 0 : index
    %145 = vector.load %arg9[%c1_73, %c0_74, %c0_75] : memref<2x32x32xf32, #tpu.memory_space<vmem>>, vector<1x32x32xf32>
    %146 = vector.shape_cast %145 : vector<1x32x32xf32> to vector<32x32xf32>
    %c1_76 = arith.constant 1 : index
    %c0_77 = arith.constant 0 : index
    %c0_78 = arith.constant 0 : index
    %147 = vector.load %arg10[%c1_76, %c0_77, %c0_78] : memref<2x32x32xf32, #tpu.memory_space<vmem>>, vector<1x32x32xf32>
    %148 = vector.shape_cast %147 : vector<1x32x32xf32> to vector<32x32xf32>
    %cst_79 = arith.constant dense<0.000000e+00> : vector<16x32xf32>
    %149 = tpu.matmul %140, %142, %cst_79 {dimension_numbers = #tpu.dot_dimension_numbers<[1], [0], [0], [1], [0, 0, 1, 1], [], []>} : vector<16x32xf32>, vector<32x32xf32>, vector<16x32xf32> -> vector<16x32xf32>
    %cst_80 = arith.constant dense<0.000000e+00> : vector<16x32xf32>
    %150 = tpu.matmul %140, %144, %cst_80 {dimension_numbers = #tpu.dot_dimension_numbers<[1], [0], [0], [1], [0, 0, 1, 1], [], []>} : vector<16x32xf32>, vector<32x32xf32>, vector<16x32xf32> -> vector<16x32xf32>
    %cst_81 = arith.constant dense<0.000000e+00> : vector<16x32xf32>
    %151 = tpu.matmul %140, %146, %cst_81 {dimension_numbers = #tpu.dot_dimension_numbers<[1], [0], [0], [1], [0, 0, 1, 1], [], []>} : vector<16x32xf32>, vector<32x32xf32>, vector<16x32xf32> -> vector<16x32xf32>
    %152 = vector.extract_strided_slice %149 {offsets = [0, 0], sizes = [16, 8], strides = [1, 1]} : vector<16x32xf32> to vector<16x8xf32>
    %153 = vector.extract_strided_slice %150 {offsets = [0, 0], sizes = [16, 8], strides = [1, 1]} : vector<16x32xf32> to vector<16x8xf32>
    %cst_82 = arith.constant dense<0.000000e+00> : vector<16x16xf32>
    %154 = tpu.matmul %152, %153, %cst_82 {dimension_numbers = #tpu.dot_dimension_numbers<[1], [1], [0], [0], [0, 0, 1, 0], [], []>} : vector<16x8xf32>, vector<16x8xf32>, vector<16x16xf32> -> vector<16x16xf32>
    %155 = vector.extract_strided_slice %0 {offsets = [0, 0, 0], sizes = [1, 16, 16], strides = [1, 1, 1]} : vector<4x16x16xf32> to vector<1x16x16xf32>
    %156 = vector.shape_cast %155 : vector<1x16x16xf32> to vector<16x16xf32>
    %157 = arith.addf %154, %156 : vector<16x16xf32>
    %cst_83 = arith.constant dense<0xFF800000> : vector<16xf32>
    %158 = vector.multi_reduction <maximumf>, %157, %cst_83 [1] : vector<16x16xf32> to vector<16xf32>
    %159 = vector.shape_cast %158 : vector<16xf32> to vector<16x1xf32>
    %160 = vector.broadcast %159 : vector<16x1xf32> to vector<16x16xf32>
    %161 = arith.subf %157, %160 : vector<16x16xf32>
    %162 = math.exp %161 : vector<16x16xf32>
    %cst_84 = arith.constant dense<0.000000e+00> : vector<16xf32>
    %163 = vector.multi_reduction <add>, %162, %cst_84 [1] : vector<16x16xf32> to vector<16xf32>
    %164 = vector.shape_cast %163 : vector<16xf32> to vector<16x1xf32>
    %165 = tpu.reciprocal %164 {approx = true} : vector<16x1xf32> -> vector<16x1xf32>
    %166 = vector.broadcast %165 : vector<16x1xf32> to vector<16x16xf32>
    %167 = arith.mulf %162, %166 : vector<16x16xf32>
    %168 = vector.extract_strided_slice %151 {offsets = [0, 0], sizes = [16, 8], strides = [1, 1]} : vector<16x32xf32> to vector<16x8xf32>
    %cst_85 = arith.constant dense<0.000000e+00> : vector<16x8xf32>
    %169 = tpu.matmul %167, %168, %cst_85 {dimension_numbers = #tpu.dot_dimension_numbers<[1], [0], [0], [1], [0, 0, 1, 1], [], []>} : vector<16x16xf32>, vector<16x8xf32>, vector<16x8xf32> -> vector<16x8xf32>
    %170 = vector.extract_strided_slice %149 {offsets = [0, 8], sizes = [16, 8], strides = [1, 1]} : vector<16x32xf32> to vector<16x8xf32>
    %171 = vector.extract_strided_slice %150 {offsets = [0, 8], sizes = [16, 8], strides = [1, 1]} : vector<16x32xf32> to vector<16x8xf32>
    %cst_86 = arith.constant dense<0.000000e+00> : vector<16x16xf32>
    %172 = tpu.matmul %170, %171, %cst_86 {dimension_numbers = #tpu.dot_dimension_numbers<[1], [1], [0], [0], [0, 0, 1, 0], [], []>} : vector<16x8xf32>, vector<16x8xf32>, vector<16x16xf32> -> vector<16x16xf32>
    %173 = vector.extract_strided_slice %0 {offsets = [1, 0, 0], sizes = [1, 16, 16], strides = [1, 1, 1]} : vector<4x16x16xf32> to vector<1x16x16xf32>
    %174 = vector.shape_cast %173 : vector<1x16x16xf32> to vector<16x16xf32>
    %175 = arith.addf %172, %174 : vector<16x16xf32>
    %cst_87 = arith.constant dense<0xFF800000> : vector<16xf32>
    %176 = vector.multi_reduction <maximumf>, %175, %cst_87 [1] : vector<16x16xf32> to vector<16xf32>
    %177 = vector.shape_cast %176 : vector<16xf32> to vector<16x1xf32>
    %178 = vector.broadcast %177 : vector<16x1xf32> to vector<16x16xf32>
    %179 = arith.subf %175, %178 : vector<16x16xf32>
    %180 = math.exp %179 : vector<16x16xf32>
    %cst_88 = arith.constant dense<0.000000e+00> : vector<16xf32>
    %181 = vector.multi_reduction <add>, %180, %cst_88 [1] : vector<16x16xf32> to vector<16xf32>
    %182 = vector.shape_cast %181 : vector<16xf32> to vector<16x1xf32>
    %183 = tpu.reciprocal %182 {approx = true} : vector<16x1xf32> -> vector<16x1xf32>
    %184 = vector.broadcast %183 : vector<16x1xf32> to vector<16x16xf32>
    %185 = arith.mulf %180, %184 : vector<16x16xf32>
    %186 = vector.extract_strided_slice %151 {offsets = [0, 8], sizes = [16, 8], strides = [1, 1]} : vector<16x32xf32> to vector<16x8xf32>
    %cst_89 = arith.constant dense<0.000000e+00> : vector<16x8xf32>
    %187 = tpu.matmul %185, %186, %cst_89 {dimension_numbers = #tpu.dot_dimension_numbers<[1], [0], [0], [1], [0, 0, 1, 1], [], []>} : vector<16x16xf32>, vector<16x8xf32>, vector<16x8xf32> -> vector<16x8xf32>
    %188 = vector.extract_strided_slice %149 {offsets = [0, 16], sizes = [16, 8], strides = [1, 1]} : vector<16x32xf32> to vector<16x8xf32>
    %189 = vector.extract_strided_slice %150 {offsets = [0, 16], sizes = [16, 8], strides = [1, 1]} : vector<16x32xf32> to vector<16x8xf32>
    %cst_90 = arith.constant dense<0.000000e+00> : vector<16x16xf32>
    %190 = tpu.matmul %188, %189, %cst_90 {dimension_numbers = #tpu.dot_dimension_numbers<[1], [1], [0], [0], [0, 0, 1, 0], [], []>} : vector<16x8xf32>, vector<16x8xf32>, vector<16x16xf32> -> vector<16x16xf32>
    %191 = vector.extract_strided_slice %0 {offsets = [2, 0, 0], sizes = [1, 16, 16], strides = [1, 1, 1]} : vector<4x16x16xf32> to vector<1x16x16xf32>
    %192 = vector.shape_cast %191 : vector<1x16x16xf32> to vector<16x16xf32>
    %193 = arith.addf %190, %192 : vector<16x16xf32>
    %cst_91 = arith.constant dense<0xFF800000> : vector<16xf32>
    %194 = vector.multi_reduction <maximumf>, %193, %cst_91 [1] : vector<16x16xf32> to vector<16xf32>
    %195 = vector.shape_cast %194 : vector<16xf32> to vector<16x1xf32>
    %196 = vector.broadcast %195 : vector<16x1xf32> to vector<16x16xf32>
    %197 = arith.subf %193, %196 : vector<16x16xf32>
    %198 = math.exp %197 : vector<16x16xf32>
    %cst_92 = arith.constant dense<0.000000e+00> : vector<16xf32>
    %199 = vector.multi_reduction <add>, %198, %cst_92 [1] : vector<16x16xf32> to vector<16xf32>
    %200 = vector.shape_cast %199 : vector<16xf32> to vector<16x1xf32>
    %201 = tpu.reciprocal %200 {approx = true} : vector<16x1xf32> -> vector<16x1xf32>
    %202 = vector.broadcast %201 : vector<16x1xf32> to vector<16x16xf32>
    %203 = arith.mulf %198, %202 : vector<16x16xf32>
    %204 = vector.extract_strided_slice %151 {offsets = [0, 16], sizes = [16, 8], strides = [1, 1]} : vector<16x32xf32> to vector<16x8xf32>
    %cst_93 = arith.constant dense<0.000000e+00> : vector<16x8xf32>
    %205 = tpu.matmul %203, %204, %cst_93 {dimension_numbers = #tpu.dot_dimension_numbers<[1], [0], [0], [1], [0, 0, 1, 1], [], []>} : vector<16x16xf32>, vector<16x8xf32>, vector<16x8xf32> -> vector<16x8xf32>
    %206 = vector.extract_strided_slice %149 {offsets = [0, 24], sizes = [16, 8], strides = [1, 1]} : vector<16x32xf32> to vector<16x8xf32>
    %207 = vector.extract_strided_slice %150 {offsets = [0, 24], sizes = [16, 8], strides = [1, 1]} : vector<16x32xf32> to vector<16x8xf32>
    %cst_94 = arith.constant dense<0.000000e+00> : vector<16x16xf32>
    %208 = tpu.matmul %206, %207, %cst_94 {dimension_numbers = #tpu.dot_dimension_numbers<[1], [1], [0], [0], [0, 0, 1, 0], [], []>} : vector<16x8xf32>, vector<16x8xf32>, vector<16x16xf32> -> vector<16x16xf32>
    %209 = vector.extract_strided_slice %0 {offsets = [3, 0, 0], sizes = [1, 16, 16], strides = [1, 1, 1]} : vector<4x16x16xf32> to vector<1x16x16xf32>
    %210 = vector.shape_cast %209 : vector<1x16x16xf32> to vector<16x16xf32>
    %211 = arith.addf %208, %210 : vector<16x16xf32>
    %cst_95 = arith.constant dense<0xFF800000> : vector<16xf32>
    %212 = vector.multi_reduction <maximumf>, %211, %cst_95 [1] : vector<16x16xf32> to vector<16xf32>
    %213 = vector.shape_cast %212 : vector<16xf32> to vector<16x1xf32>
    %214 = vector.broadcast %213 : vector<16x1xf32> to vector<16x16xf32>
    %215 = arith.subf %211, %214 : vector<16x16xf32>
    %216 = math.exp %215 : vector<16x16xf32>
    %cst_96 = arith.constant dense<0.000000e+00> : vector<16xf32>
    %217 = vector.multi_reduction <add>, %216, %cst_96 [1] : vector<16x16xf32> to vector<16xf32>
    %218 = vector.shape_cast %217 : vector<16xf32> to vector<16x1xf32>
    %219 = tpu.reciprocal %218 {approx = true} : vector<16x1xf32> -> vector<16x1xf32>
    %220 = vector.broadcast %219 : vector<16x1xf32> to vector<16x16xf32>
    %221 = arith.mulf %216, %220 : vector<16x16xf32>
    %222 = vector.extract_strided_slice %151 {offsets = [0, 24], sizes = [16, 8], strides = [1, 1]} : vector<16x32xf32> to vector<16x8xf32>
    %cst_97 = arith.constant dense<0.000000e+00> : vector<16x8xf32>
    %223 = tpu.matmul %221, %222, %cst_97 {dimension_numbers = #tpu.dot_dimension_numbers<[1], [0], [0], [1], [0, 0, 1, 1], [], []>} : vector<16x16xf32>, vector<16x8xf32>, vector<16x8xf32> -> vector<16x8xf32>
    %224 = tpu.concatenate %169, %187, %205, %223 in 1 : vector<16x8xf32>, vector<16x8xf32>, vector<16x8xf32>, vector<16x8xf32> -> vector<16x32xf32>
    %cst_98 = arith.constant dense<0.000000e+00> : vector<16x32xf32>
    %225 = tpu.matmul %224, %148, %cst_98 {dimension_numbers = #tpu.dot_dimension_numbers<[1], [0], [0], [1], [0, 0, 1, 1], [], []>} : vector<16x32xf32>, vector<32x32xf32>, vector<16x32xf32> -> vector<16x32xf32>
    %226 = arith.addf %126, %225 : vector<16x32xf32>
    %c1_99 = arith.constant 1 : index
    %c0_100 = arith.constant 0 : index
    %c0_101 = arith.constant 0 : index
    %227 = vector.load %arg11[%c1_99, %c0_100, %c0_101] : memref<2x1x32xf32, #tpu.memory_space<vmem>>, vector<1x1x32xf32>
    %228 = vector.shape_cast %227 : vector<1x1x32xf32> to vector<1x32xf32>
    %229 = arith.mulf %226, %226 : vector<16x32xf32>
    %cst_102 = arith.constant dense<0.000000e+00> : vector<16xf32>
    %230 = vector.multi_reduction <add>, %229, %cst_102 [1] : vector<16x32xf32> to vector<16xf32>
    %231 = vector.shape_cast %230 : vector<16xf32> to vector<16x1xf32>
    %cst_103 = arith.constant 3.200000e+01 : f32
    %232 = vector.broadcast %cst_103 : f32 to vector<16x1xf32>
    %233 = arith.divf %231, %232 : vector<16x1xf32>
    %cst_104 = arith.constant 9.99999997E-7 : f32
    %234 = vector.broadcast %cst_104 : f32 to vector<16x1xf32>
    %235 = arith.addf %233, %234 : vector<16x1xf32>
    %236 = math.rsqrt %235 : vector<16x1xf32>
    %237 = vector.broadcast %236 : vector<16x1xf32> to vector<16x32xf32>
    %238 = arith.mulf %226, %237 : vector<16x32xf32>
    %239 = vector.broadcast %228 : vector<1x32xf32> to vector<16x32xf32>
    %240 = arith.mulf %238, %239 : vector<16x32xf32>
    %c1_105 = arith.constant 1 : index
    %c0_106 = arith.constant 0 : index
    %c0_107 = arith.constant 0 : index
    %241 = vector.load %arg12[%c1_105, %c0_106, %c0_107] : memref<2x32x64xf32, #tpu.memory_space<vmem>>, vector<1x32x64xf32>
    %242 = vector.shape_cast %241 : vector<1x32x64xf32> to vector<32x64xf32>
    %cst_108 = arith.constant dense<0.000000e+00> : vector<16x64xf32>
    %243 = tpu.matmul %240, %242, %cst_108 {dimension_numbers = #tpu.dot_dimension_numbers<[1], [0], [0], [1], [0, 0, 1, 1], [], []>} : vector<16x32xf32>, vector<32x64xf32>, vector<16x64xf32> -> vector<16x64xf32>
    %cst_109 = arith.constant 0.000000e+00 : f32
    %244 = vector.broadcast %cst_109 : f32 to vector<16x64xf32>
    %245 = arith.maximumf %243, %244 : vector<16x64xf32>
    %c1_110 = arith.constant 1 : index
    %c0_111 = arith.constant 0 : index
    %c0_112 = arith.constant 0 : index
    %246 = vector.load %arg13[%c1_110, %c0_111, %c0_112] : memref<2x64x32xf32, #tpu.memory_space<vmem>>, vector<1x64x32xf32>
    %247 = vector.shape_cast %246 : vector<1x64x32xf32> to vector<64x32xf32>
    %cst_113 = arith.constant dense<0.000000e+00> : vector<16x32xf32>
    %248 = tpu.matmul %245, %247, %cst_113 {dimension_numbers = #tpu.dot_dimension_numbers<[1], [0], [0], [1], [0, 0, 1, 1], [], []>} : vector<16x64xf32>, vector<64x32xf32>, vector<16x32xf32> -> vector<16x32xf32>
    %249 = arith.addf %226, %248 : vector<16x32xf32>
    %c0_114 = arith.constant 0 : index
    %c0_115 = arith.constant 0 : index
    %250 = vector.load %arg14[%c0_114, %c0_115] : memref<1x32xf32, #tpu.memory_space<vmem>>, vector<1x32xf32>
    %251 = arith.mulf %249, %249 : vector<16x32xf32>
    %cst_116 = arith.constant dense<0.000000e+00> : vector<16xf32>
    %252 = vector.multi_reduction <add>, %251, %cst_116 [1] : vector<16x32xf32> to vector<16xf32>
    %253 = vector.shape_cast %252 : vector<16xf32> to vector<16x1xf32>
    %cst_117 = arith.constant 3.200000e+01 : f32
    %254 = vector.broadcast %cst_117 : f32 to vector<16x1xf32>
    %255 = arith.divf %253, %254 : vector<16x1xf32>
    %cst_118 = arith.constant 9.99999997E-7 : f32
    %256 = vector.broadcast %cst_118 : f32 to vector<16x1xf32>
    %257 = arith.addf %255, %256 : vector<16x1xf32>
    %258 = math.rsqrt %257 : vector<16x1xf32>
    %259 = vector.broadcast %258 : vector<16x1xf32> to vector<16x32xf32>
    %260 = arith.mulf %249, %259 : vector<16x32xf32>
    %261 = vector.broadcast %250 : vector<1x32xf32> to vector<16x32xf32>
    %262 = arith.mulf %260, %261 : vector<16x32xf32>
    %c0_119 = arith.constant 0 : index
    %c0_120 = arith.constant 0 : index
    %263 = vector.load %arg1[%c0_119, %c0_120] : memref<16x32xf32, #tpu.memory_space<vmem>>, vector<16x32xf32>
    %c0_121 = arith.constant 0 : index
    %c0_122 = arith.constant 0 : index
    %c0_123 = arith.constant 0 : index
    %264 = vector.load %arg15[%c0_121, %c0_122, %c0_123] : memref<2x1x32xf32, #tpu.memory_space<vmem>>, vector<1x1x32xf32>
    %265 = vector.shape_cast %264 : vector<1x1x32xf32> to vector<1x32xf32>
    %266 = arith.mulf %263, %263 : vector<16x32xf32>
    %cst_124 = arith.constant dense<0.000000e+00> : vector<16xf32>
    %267 = vector.multi_reduction <add>, %266, %cst_124 [1] : vector<16x32xf32> to vector<16xf32>
    %268 = vector.shape_cast %267 : vector<16xf32> to vector<16x1xf32>
    %cst_125 = arith.constant 3.200000e+01 : f32
    %269 = vector.broadcast %cst_125 : f32 to vector<16x1xf32>
    %270 = arith.divf %268, %269 : vector<16x1xf32>
    %cst_126 = arith.constant 9.99999997E-7 : f32
    %271 = vector.broadcast %cst_126 : f32 to vector<16x1xf32>
    %272 = arith.addf %270, %271 : vector<16x1xf32>
    %273 = math.rsqrt %272 : vector<16x1xf32>
    %274 = vector.broadcast %273 : vector<16x1xf32> to vector<16x32xf32>
    %275 = arith.mulf %263, %274 : vector<16x32xf32>
    %276 = vector.broadcast %265 : vector<1x32xf32> to vector<16x32xf32>
    %277 = arith.mulf %275, %276 : vector<16x32xf32>
    %c0_127 = arith.constant 0 : index
    %c0_128 = arith.constant 0 : index
    %c0_129 = arith.constant 0 : index
    %278 = vector.load %arg16[%c0_127, %c0_128, %c0_129] : memref<2x32x32xf32, #tpu.memory_space<vmem>>, vector<1x32x32xf32>
    %279 = vector.shape_cast %278 : vector<1x32x32xf32> to vector<32x32xf32>
    %c0_130 = arith.constant 0 : index
    %c0_131 = arith.constant 0 : index
    %c0_132 = arith.constant 0 : index
    %280 = vector.load %arg17[%c0_130, %c0_131, %c0_132] : memref<2x32x32xf32, #tpu.memory_space<vmem>>, vector<1x32x32xf32>
    %281 = vector.shape_cast %280 : vector<1x32x32xf32> to vector<32x32xf32>
    %c0_133 = arith.constant 0 : index
    %c0_134 = arith.constant 0 : index
    %c0_135 = arith.constant 0 : index
    %282 = vector.load %arg18[%c0_133, %c0_134, %c0_135] : memref<2x32x32xf32, #tpu.memory_space<vmem>>, vector<1x32x32xf32>
    %283 = vector.shape_cast %282 : vector<1x32x32xf32> to vector<32x32xf32>
    %c0_136 = arith.constant 0 : index
    %c0_137 = arith.constant 0 : index
    %c0_138 = arith.constant 0 : index
    %284 = vector.load %arg19[%c0_136, %c0_137, %c0_138] : memref<2x32x32xf32, #tpu.memory_space<vmem>>, vector<1x32x32xf32>
    %285 = vector.shape_cast %284 : vector<1x32x32xf32> to vector<32x32xf32>
    %cst_139 = arith.constant dense<0.000000e+00> : vector<16x32xf32>
    %286 = tpu.matmul %277, %279, %cst_139 {dimension_numbers = #tpu.dot_dimension_numbers<[1], [0], [0], [1], [0, 0, 1, 1], [], []>} : vector<16x32xf32>, vector<32x32xf32>, vector<16x32xf32> -> vector<16x32xf32>
    %cst_140 = arith.constant dense<0.000000e+00> : vector<16x32xf32>
    %287 = tpu.matmul %277, %281, %cst_140 {dimension_numbers = #tpu.dot_dimension_numbers<[1], [0], [0], [1], [0, 0, 1, 1], [], []>} : vector<16x32xf32>, vector<32x32xf32>, vector<16x32xf32> -> vector<16x32xf32>
    %cst_141 = arith.constant dense<0.000000e+00> : vector<16x32xf32>
    %288 = tpu.matmul %277, %283, %cst_141 {dimension_numbers = #tpu.dot_dimension_numbers<[1], [0], [0], [1], [0, 0, 1, 1], [], []>} : vector<16x32xf32>, vector<32x32xf32>, vector<16x32xf32> -> vector<16x32xf32>
    %289 = vector.extract_strided_slice %286 {offsets = [0, 0], sizes = [16, 8], strides = [1, 1]} : vector<16x32xf32> to vector<16x8xf32>
    %290 = vector.extract_strided_slice %287 {offsets = [0, 0], sizes = [16, 8], strides = [1, 1]} : vector<16x32xf32> to vector<16x8xf32>
    %cst_142 = arith.constant dense<0.000000e+00> : vector<16x16xf32>
    %291 = tpu.matmul %289, %290, %cst_142 {dimension_numbers = #tpu.dot_dimension_numbers<[1], [1], [0], [0], [0, 0, 1, 0], [], []>} : vector<16x8xf32>, vector<16x8xf32>, vector<16x16xf32> -> vector<16x16xf32>
    %292 = vector.extract_strided_slice %1 {offsets = [0, 0, 0], sizes = [1, 16, 16], strides = [1, 1, 1]} : vector<4x16x16xf32> to vector<1x16x16xf32>
    %293 = vector.shape_cast %292 : vector<1x16x16xf32> to vector<16x16xf32>
    %294 = arith.addf %291, %293 : vector<16x16xf32>
    %cst_143 = arith.constant dense<0xFF800000> : vector<16xf32>
    %295 = vector.multi_reduction <maximumf>, %294, %cst_143 [1] : vector<16x16xf32> to vector<16xf32>
    %296 = vector.shape_cast %295 : vector<16xf32> to vector<16x1xf32>
    %297 = vector.broadcast %296 : vector<16x1xf32> to vector<16x16xf32>
    %298 = arith.subf %294, %297 : vector<16x16xf32>
    %299 = math.exp %298 : vector<16x16xf32>
    %cst_144 = arith.constant dense<0.000000e+00> : vector<16xf32>
    %300 = vector.multi_reduction <add>, %299, %cst_144 [1] : vector<16x16xf32> to vector<16xf32>
    %301 = vector.shape_cast %300 : vector<16xf32> to vector<16x1xf32>
    %302 = tpu.reciprocal %301 {approx = true} : vector<16x1xf32> -> vector<16x1xf32>
    %303 = vector.broadcast %302 : vector<16x1xf32> to vector<16x16xf32>
    %304 = arith.mulf %299, %303 : vector<16x16xf32>
    %305 = vector.extract_strided_slice %288 {offsets = [0, 0], sizes = [16, 8], strides = [1, 1]} : vector<16x32xf32> to vector<16x8xf32>
    %cst_145 = arith.constant dense<0.000000e+00> : vector<16x8xf32>
    %306 = tpu.matmul %304, %305, %cst_145 {dimension_numbers = #tpu.dot_dimension_numbers<[1], [0], [0], [1], [0, 0, 1, 1], [], []>} : vector<16x16xf32>, vector<16x8xf32>, vector<16x8xf32> -> vector<16x8xf32>
    %307 = vector.extract_strided_slice %286 {offsets = [0, 8], sizes = [16, 8], strides = [1, 1]} : vector<16x32xf32> to vector<16x8xf32>
    %308 = vector.extract_strided_slice %287 {offsets = [0, 8], sizes = [16, 8], strides = [1, 1]} : vector<16x32xf32> to vector<16x8xf32>
    %cst_146 = arith.constant dense<0.000000e+00> : vector<16x16xf32>
    %309 = tpu.matmul %307, %308, %cst_146 {dimension_numbers = #tpu.dot_dimension_numbers<[1], [1], [0], [0], [0, 0, 1, 0], [], []>} : vector<16x8xf32>, vector<16x8xf32>, vector<16x16xf32> -> vector<16x16xf32>
    %310 = vector.extract_strided_slice %1 {offsets = [1, 0, 0], sizes = [1, 16, 16], strides = [1, 1, 1]} : vector<4x16x16xf32> to vector<1x16x16xf32>
    %311 = vector.shape_cast %310 : vector<1x16x16xf32> to vector<16x16xf32>
    %312 = arith.addf %309, %311 : vector<16x16xf32>
    %cst_147 = arith.constant dense<0xFF800000> : vector<16xf32>
    %313 = vector.multi_reduction <maximumf>, %312, %cst_147 [1] : vector<16x16xf32> to vector<16xf32>
    %314 = vector.shape_cast %313 : vector<16xf32> to vector<16x1xf32>
    %315 = vector.broadcast %314 : vector<16x1xf32> to vector<16x16xf32>
    %316 = arith.subf %312, %315 : vector<16x16xf32>
    %317 = math.exp %316 : vector<16x16xf32>
    %cst_148 = arith.constant dense<0.000000e+00> : vector<16xf32>
    %318 = vector.multi_reduction <add>, %317, %cst_148 [1] : vector<16x16xf32> to vector<16xf32>
    %319 = vector.shape_cast %318 : vector<16xf32> to vector<16x1xf32>
    %320 = tpu.reciprocal %319 {approx = true} : vector<16x1xf32> -> vector<16x1xf32>
    %321 = vector.broadcast %320 : vector<16x1xf32> to vector<16x16xf32>
    %322 = arith.mulf %317, %321 : vector<16x16xf32>
    %323 = vector.extract_strided_slice %288 {offsets = [0, 8], sizes = [16, 8], strides = [1, 1]} : vector<16x32xf32> to vector<16x8xf32>
    %cst_149 = arith.constant dense<0.000000e+00> : vector<16x8xf32>
    %324 = tpu.matmul %322, %323, %cst_149 {dimension_numbers = #tpu.dot_dimension_numbers<[1], [0], [0], [1], [0, 0, 1, 1], [], []>} : vector<16x16xf32>, vector<16x8xf32>, vector<16x8xf32> -> vector<16x8xf32>
    %325 = vector.extract_strided_slice %286 {offsets = [0, 16], sizes = [16, 8], strides = [1, 1]} : vector<16x32xf32> to vector<16x8xf32>
    %326 = vector.extract_strided_slice %287 {offsets = [0, 16], sizes = [16, 8], strides = [1, 1]} : vector<16x32xf32> to vector<16x8xf32>
    %cst_150 = arith.constant dense<0.000000e+00> : vector<16x16xf32>
    %327 = tpu.matmul %325, %326, %cst_150 {dimension_numbers = #tpu.dot_dimension_numbers<[1], [1], [0], [0], [0, 0, 1, 0], [], []>} : vector<16x8xf32>, vector<16x8xf32>, vector<16x16xf32> -> vector<16x16xf32>
    %328 = vector.extract_strided_slice %1 {offsets = [2, 0, 0], sizes = [1, 16, 16], strides = [1, 1, 1]} : vector<4x16x16xf32> to vector<1x16x16xf32>
    %329 = vector.shape_cast %328 : vector<1x16x16xf32> to vector<16x16xf32>
    %330 = arith.addf %327, %329 : vector<16x16xf32>
    %cst_151 = arith.constant dense<0xFF800000> : vector<16xf32>
    %331 = vector.multi_reduction <maximumf>, %330, %cst_151 [1] : vector<16x16xf32> to vector<16xf32>
    %332 = vector.shape_cast %331 : vector<16xf32> to vector<16x1xf32>
    %333 = vector.broadcast %332 : vector<16x1xf32> to vector<16x16xf32>
    %334 = arith.subf %330, %333 : vector<16x16xf32>
    %335 = math.exp %334 : vector<16x16xf32>
    %cst_152 = arith.constant dense<0.000000e+00> : vector<16xf32>
    %336 = vector.multi_reduction <add>, %335, %cst_152 [1] : vector<16x16xf32> to vector<16xf32>
    %337 = vector.shape_cast %336 : vector<16xf32> to vector<16x1xf32>
    %338 = tpu.reciprocal %337 {approx = true} : vector<16x1xf32> -> vector<16x1xf32>
    %339 = vector.broadcast %338 : vector<16x1xf32> to vector<16x16xf32>
    %340 = arith.mulf %335, %339 : vector<16x16xf32>
    %341 = vector.extract_strided_slice %288 {offsets = [0, 16], sizes = [16, 8], strides = [1, 1]} : vector<16x32xf32> to vector<16x8xf32>
    %cst_153 = arith.constant dense<0.000000e+00> : vector<16x8xf32>
    %342 = tpu.matmul %340, %341, %cst_153 {dimension_numbers = #tpu.dot_dimension_numbers<[1], [0], [0], [1], [0, 0, 1, 1], [], []>} : vector<16x16xf32>, vector<16x8xf32>, vector<16x8xf32> -> vector<16x8xf32>
    %343 = vector.extract_strided_slice %286 {offsets = [0, 24], sizes = [16, 8], strides = [1, 1]} : vector<16x32xf32> to vector<16x8xf32>
    %344 = vector.extract_strided_slice %287 {offsets = [0, 24], sizes = [16, 8], strides = [1, 1]} : vector<16x32xf32> to vector<16x8xf32>
    %cst_154 = arith.constant dense<0.000000e+00> : vector<16x16xf32>
    %345 = tpu.matmul %343, %344, %cst_154 {dimension_numbers = #tpu.dot_dimension_numbers<[1], [1], [0], [0], [0, 0, 1, 0], [], []>} : vector<16x8xf32>, vector<16x8xf32>, vector<16x16xf32> -> vector<16x16xf32>
    %346 = vector.extract_strided_slice %1 {offsets = [3, 0, 0], sizes = [1, 16, 16], strides = [1, 1, 1]} : vector<4x16x16xf32> to vector<1x16x16xf32>
    %347 = vector.shape_cast %346 : vector<1x16x16xf32> to vector<16x16xf32>
    %348 = arith.addf %345, %347 : vector<16x16xf32>
    %cst_155 = arith.constant dense<0xFF800000> : vector<16xf32>
    %349 = vector.multi_reduction <maximumf>, %348, %cst_155 [1] : vector<16x16xf32> to vector<16xf32>
    %350 = vector.shape_cast %349 : vector<16xf32> to vector<16x1xf32>
    %351 = vector.broadcast %350 : vector<16x1xf32> to vector<16x16xf32>
    %352 = arith.subf %348, %351 : vector<16x16xf32>
    %353 = math.exp %352 : vector<16x16xf32>
    %cst_156 = arith.constant dense<0.000000e+00> : vector<16xf32>
    %354 = vector.multi_reduction <add>, %353, %cst_156 [1] : vector<16x16xf32> to vector<16xf32>
    %355 = vector.shape_cast %354 : vector<16xf32> to vector<16x1xf32>
    %356 = tpu.reciprocal %355 {approx = true} : vector<16x1xf32> -> vector<16x1xf32>
    %357 = vector.broadcast %356 : vector<16x1xf32> to vector<16x16xf32>
    %358 = arith.mulf %353, %357 : vector<16x16xf32>
    %359 = vector.extract_strided_slice %288 {offsets = [0, 24], sizes = [16, 8], strides = [1, 1]} : vector<16x32xf32> to vector<16x8xf32>
    %cst_157 = arith.constant dense<0.000000e+00> : vector<16x8xf32>
    %360 = tpu.matmul %358, %359, %cst_157 {dimension_numbers = #tpu.dot_dimension_numbers<[1], [0], [0], [1], [0, 0, 1, 1], [], []>} : vector<16x16xf32>, vector<16x8xf32>, vector<16x8xf32> -> vector<16x8xf32>
    %361 = tpu.concatenate %306, %324, %342, %360 in 1 : vector<16x8xf32>, vector<16x8xf32>, vector<16x8xf32>, vector<16x8xf32> -> vector<16x32xf32>
    %cst_158 = arith.constant dense<0.000000e+00> : vector<16x32xf32>
    %362 = tpu.matmul %361, %285, %cst_158 {dimension_numbers = #tpu.dot_dimension_numbers<[1], [0], [0], [1], [0, 0, 1, 1], [], []>} : vector<16x32xf32>, vector<32x32xf32>, vector<16x32xf32> -> vector<16x32xf32>
    %363 = arith.addf %263, %362 : vector<16x32xf32>
    %c0_159 = arith.constant 0 : index
    %c0_160 = arith.constant 0 : index
    %c0_161 = arith.constant 0 : index
    %364 = vector.load %arg20[%c0_159, %c0_160, %c0_161] : memref<2x1x32xf32, #tpu.memory_space<vmem>>, vector<1x1x32xf32>
    %365 = vector.shape_cast %364 : vector<1x1x32xf32> to vector<1x32xf32>
    %366 = arith.mulf %363, %363 : vector<16x32xf32>
    %cst_162 = arith.constant dense<0.000000e+00> : vector<16xf32>
    %367 = vector.multi_reduction <add>, %366, %cst_162 [1] : vector<16x32xf32> to vector<16xf32>
    %368 = vector.shape_cast %367 : vector<16xf32> to vector<16x1xf32>
    %cst_163 = arith.constant 3.200000e+01 : f32
    %369 = vector.broadcast %cst_163 : f32 to vector<16x1xf32>
    %370 = arith.divf %368, %369 : vector<16x1xf32>
    %cst_164 = arith.constant 9.99999997E-7 : f32
    %371 = vector.broadcast %cst_164 : f32 to vector<16x1xf32>
    %372 = arith.addf %370, %371 : vector<16x1xf32>
    %373 = math.rsqrt %372 : vector<16x1xf32>
    %374 = vector.broadcast %373 : vector<16x1xf32> to vector<16x32xf32>
    %375 = arith.mulf %363, %374 : vector<16x32xf32>
    %376 = vector.broadcast %365 : vector<1x32xf32> to vector<16x32xf32>
    %377 = arith.mulf %375, %376 : vector<16x32xf32>
    %c0_165 = arith.constant 0 : index
    %c0_166 = arith.constant 0 : index
    %c0_167 = arith.constant 0 : index
    %378 = vector.load %arg21[%c0_165, %c0_166, %c0_167] : memref<2x32x32xf32, #tpu.memory_space<vmem>>, vector<1x32x32xf32>
    %379 = vector.shape_cast %378 : vector<1x32x32xf32> to vector<32x32xf32>
    %c0_168 = arith.constant 0 : index
    %c0_169 = arith.constant 0 : index
    %c0_170 = arith.constant 0 : index
    %380 = vector.load %arg22[%c0_168, %c0_169, %c0_170] : memref<2x32x32xf32, #tpu.memory_space<vmem>>, vector<1x32x32xf32>
    %381 = vector.shape_cast %380 : vector<1x32x32xf32> to vector<32x32xf32>
    %c0_171 = arith.constant 0 : index
    %c0_172 = arith.constant 0 : index
    %c0_173 = arith.constant 0 : index
    %382 = vector.load %arg23[%c0_171, %c0_172, %c0_173] : memref<2x32x32xf32, #tpu.memory_space<vmem>>, vector<1x32x32xf32>
    %383 = vector.shape_cast %382 : vector<1x32x32xf32> to vector<32x32xf32>
    %c0_174 = arith.constant 0 : index
    %c0_175 = arith.constant 0 : index
    %c0_176 = arith.constant 0 : index
    %384 = vector.load %arg24[%c0_174, %c0_175, %c0_176] : memref<2x32x32xf32, #tpu.memory_space<vmem>>, vector<1x32x32xf32>
    %385 = vector.shape_cast %384 : vector<1x32x32xf32> to vector<32x32xf32>
    %cst_177 = arith.constant dense<0.000000e+00> : vector<16x32xf32>
    %386 = tpu.matmul %377, %379, %cst_177 {dimension_numbers = #tpu.dot_dimension_numbers<[1], [0], [0], [1], [0, 0, 1, 1], [], []>} : vector<16x32xf32>, vector<32x32xf32>, vector<16x32xf32> -> vector<16x32xf32>
    %cst_178 = arith.constant dense<0.000000e+00> : vector<16x32xf32>
    %387 = tpu.matmul %262, %381, %cst_178 {dimension_numbers = #tpu.dot_dimension_numbers<[1], [0], [0], [1], [0, 0, 1, 1], [], []>} : vector<16x32xf32>, vector<32x32xf32>, vector<16x32xf32> -> vector<16x32xf32>
    %cst_179 = arith.constant dense<0.000000e+00> : vector<16x32xf32>
    %388 = tpu.matmul %262, %383, %cst_179 {dimension_numbers = #tpu.dot_dimension_numbers<[1], [0], [0], [1], [0, 0, 1, 1], [], []>} : vector<16x32xf32>, vector<32x32xf32>, vector<16x32xf32> -> vector<16x32xf32>
    %389 = vector.extract_strided_slice %386 {offsets = [0, 0], sizes = [16, 8], strides = [1, 1]} : vector<16x32xf32> to vector<16x8xf32>
    %390 = vector.extract_strided_slice %387 {offsets = [0, 0], sizes = [16, 8], strides = [1, 1]} : vector<16x32xf32> to vector<16x8xf32>
    %cst_180 = arith.constant dense<0.000000e+00> : vector<16x16xf32>
    %391 = tpu.matmul %389, %390, %cst_180 {dimension_numbers = #tpu.dot_dimension_numbers<[1], [1], [0], [0], [0, 0, 1, 0], [], []>} : vector<16x8xf32>, vector<16x8xf32>, vector<16x16xf32> -> vector<16x16xf32>
    %392 = vector.shape_cast %2 : vector<1x16x16xf32> to vector<16x16xf32>
    %393 = arith.addf %391, %392 : vector<16x16xf32>
    %cst_181 = arith.constant dense<0xFF800000> : vector<16xf32>
    %394 = vector.multi_reduction <maximumf>, %393, %cst_181 [1] : vector<16x16xf32> to vector<16xf32>
    %395 = vector.shape_cast %394 : vector<16xf32> to vector<16x1xf32>
    %396 = vector.broadcast %395 : vector<16x1xf32> to vector<16x16xf32>
    %397 = arith.subf %393, %396 : vector<16x16xf32>
    %398 = math.exp %397 : vector<16x16xf32>
    %cst_182 = arith.constant dense<0.000000e+00> : vector<16xf32>
    %399 = vector.multi_reduction <add>, %398, %cst_182 [1] : vector<16x16xf32> to vector<16xf32>
    %400 = vector.shape_cast %399 : vector<16xf32> to vector<16x1xf32>
    %401 = tpu.reciprocal %400 {approx = true} : vector<16x1xf32> -> vector<16x1xf32>
    %402 = vector.broadcast %401 : vector<16x1xf32> to vector<16x16xf32>
    %403 = arith.mulf %398, %402 : vector<16x16xf32>
    %404 = vector.extract_strided_slice %388 {offsets = [0, 0], sizes = [16, 8], strides = [1, 1]} : vector<16x32xf32> to vector<16x8xf32>
    %cst_183 = arith.constant dense<0.000000e+00> : vector<16x8xf32>
    %405 = tpu.matmul %403, %404, %cst_183 {dimension_numbers = #tpu.dot_dimension_numbers<[1], [0], [0], [1], [0, 0, 1, 1], [], []>} : vector<16x16xf32>, vector<16x8xf32>, vector<16x8xf32> -> vector<16x8xf32>
    %406 = vector.extract_strided_slice %386 {offsets = [0, 8], sizes = [16, 8], strides = [1, 1]} : vector<16x32xf32> to vector<16x8xf32>
    %407 = vector.extract_strided_slice %387 {offsets = [0, 8], sizes = [16, 8], strides = [1, 1]} : vector<16x32xf32> to vector<16x8xf32>
    %cst_184 = arith.constant dense<0.000000e+00> : vector<16x16xf32>
    %408 = tpu.matmul %406, %407, %cst_184 {dimension_numbers = #tpu.dot_dimension_numbers<[1], [1], [0], [0], [0, 0, 1, 0], [], []>} : vector<16x8xf32>, vector<16x8xf32>, vector<16x16xf32> -> vector<16x16xf32>
    %409 = vector.shape_cast %2 : vector<1x16x16xf32> to vector<16x16xf32>
    %410 = arith.addf %408, %409 : vector<16x16xf32>
    %cst_185 = arith.constant dense<0xFF800000> : vector<16xf32>
    %411 = vector.multi_reduction <maximumf>, %410, %cst_185 [1] : vector<16x16xf32> to vector<16xf32>
    %412 = vector.shape_cast %411 : vector<16xf32> to vector<16x1xf32>
    %413 = vector.broadcast %412 : vector<16x1xf32> to vector<16x16xf32>
    %414 = arith.subf %410, %413 : vector<16x16xf32>
    %415 = math.exp %414 : vector<16x16xf32>
    %cst_186 = arith.constant dense<0.000000e+00> : vector<16xf32>
    %416 = vector.multi_reduction <add>, %415, %cst_186 [1] : vector<16x16xf32> to vector<16xf32>
    %417 = vector.shape_cast %416 : vector<16xf32> to vector<16x1xf32>
    %418 = tpu.reciprocal %417 {approx = true} : vector<16x1xf32> -> vector<16x1xf32>
    %419 = vector.broadcast %418 : vector<16x1xf32> to vector<16x16xf32>
    %420 = arith.mulf %415, %419 : vector<16x16xf32>
    %421 = vector.extract_strided_slice %388 {offsets = [0, 8], sizes = [16, 8], strides = [1, 1]} : vector<16x32xf32> to vector<16x8xf32>
    %cst_187 = arith.constant dense<0.000000e+00> : vector<16x8xf32>
    %422 = tpu.matmul %420, %421, %cst_187 {dimension_numbers = #tpu.dot_dimension_numbers<[1], [0], [0], [1], [0, 0, 1, 1], [], []>} : vector<16x16xf32>, vector<16x8xf32>, vector<16x8xf32> -> vector<16x8xf32>
    %423 = vector.extract_strided_slice %386 {offsets = [0, 16], sizes = [16, 8], strides = [1, 1]} : vector<16x32xf32> to vector<16x8xf32>
    %424 = vector.extract_strided_slice %387 {offsets = [0, 16], sizes = [16, 8], strides = [1, 1]} : vector<16x32xf32> to vector<16x8xf32>
    %cst_188 = arith.constant dense<0.000000e+00> : vector<16x16xf32>
    %425 = tpu.matmul %423, %424, %cst_188 {dimension_numbers = #tpu.dot_dimension_numbers<[1], [1], [0], [0], [0, 0, 1, 0], [], []>} : vector<16x8xf32>, vector<16x8xf32>, vector<16x16xf32> -> vector<16x16xf32>
    %426 = vector.shape_cast %2 : vector<1x16x16xf32> to vector<16x16xf32>
    %427 = arith.addf %425, %426 : vector<16x16xf32>
    %cst_189 = arith.constant dense<0xFF800000> : vector<16xf32>
    %428 = vector.multi_reduction <maximumf>, %427, %cst_189 [1] : vector<16x16xf32> to vector<16xf32>
    %429 = vector.shape_cast %428 : vector<16xf32> to vector<16x1xf32>
    %430 = vector.broadcast %429 : vector<16x1xf32> to vector<16x16xf32>
    %431 = arith.subf %427, %430 : vector<16x16xf32>
    %432 = math.exp %431 : vector<16x16xf32>
    %cst_190 = arith.constant dense<0.000000e+00> : vector<16xf32>
    %433 = vector.multi_reduction <add>, %432, %cst_190 [1] : vector<16x16xf32> to vector<16xf32>
    %434 = vector.shape_cast %433 : vector<16xf32> to vector<16x1xf32>
    %435 = tpu.reciprocal %434 {approx = true} : vector<16x1xf32> -> vector<16x1xf32>
    %436 = vector.broadcast %435 : vector<16x1xf32> to vector<16x16xf32>
    %437 = arith.mulf %432, %436 : vector<16x16xf32>
    %438 = vector.extract_strided_slice %388 {offsets = [0, 16], sizes = [16, 8], strides = [1, 1]} : vector<16x32xf32> to vector<16x8xf32>
    %cst_191 = arith.constant dense<0.000000e+00> : vector<16x8xf32>
    %439 = tpu.matmul %437, %438, %cst_191 {dimension_numbers = #tpu.dot_dimension_numbers<[1], [0], [0], [1], [0, 0, 1, 1], [], []>} : vector<16x16xf32>, vector<16x8xf32>, vector<16x8xf32> -> vector<16x8xf32>
    %440 = vector.extract_strided_slice %386 {offsets = [0, 24], sizes = [16, 8], strides = [1, 1]} : vector<16x32xf32> to vector<16x8xf32>
    %441 = vector.extract_strided_slice %387 {offsets = [0, 24], sizes = [16, 8], strides = [1, 1]} : vector<16x32xf32> to vector<16x8xf32>
    %cst_192 = arith.constant dense<0.000000e+00> : vector<16x16xf32>
    %442 = tpu.matmul %440, %441, %cst_192 {dimension_numbers = #tpu.dot_dimension_numbers<[1], [1], [0], [0], [0, 0, 1, 0], [], []>} : vector<16x8xf32>, vector<16x8xf32>, vector<16x16xf32> -> vector<16x16xf32>
    %443 = vector.shape_cast %2 : vector<1x16x16xf32> to vector<16x16xf32>
    %444 = arith.addf %442, %443 : vector<16x16xf32>
    %cst_193 = arith.constant dense<0xFF800000> : vector<16xf32>
    %445 = vector.multi_reduction <maximumf>, %444, %cst_193 [1] : vector<16x16xf32> to vector<16xf32>
    %446 = vector.shape_cast %445 : vector<16xf32> to vector<16x1xf32>
    %447 = vector.broadcast %446 : vector<16x1xf32> to vector<16x16xf32>
    %448 = arith.subf %444, %447 : vector<16x16xf32>
    %449 = math.exp %448 : vector<16x16xf32>
    %cst_194 = arith.constant dense<0.000000e+00> : vector<16xf32>
    %450 = vector.multi_reduction <add>, %449, %cst_194 [1] : vector<16x16xf32> to vector<16xf32>
    %451 = vector.shape_cast %450 : vector<16xf32> to vector<16x1xf32>
    %452 = tpu.reciprocal %451 {approx = true} : vector<16x1xf32> -> vector<16x1xf32>
    %453 = vector.broadcast %452 : vector<16x1xf32> to vector<16x16xf32>
    %454 = arith.mulf %449, %453 : vector<16x16xf32>
    %455 = vector.extract_strided_slice %388 {offsets = [0, 24], sizes = [16, 8], strides = [1, 1]} : vector<16x32xf32> to vector<16x8xf32>
    %cst_195 = arith.constant dense<0.000000e+00> : vector<16x8xf32>
    %456 = tpu.matmul %454, %455, %cst_195 {dimension_numbers = #tpu.dot_dimension_numbers<[1], [0], [0], [1], [0, 0, 1, 1], [], []>} : vector<16x16xf32>, vector<16x8xf32>, vector<16x8xf32> -> vector<16x8xf32>
    %457 = tpu.concatenate %405, %422, %439, %456 in 1 : vector<16x8xf32>, vector<16x8xf32>, vector<16x8xf32>, vector<16x8xf32> -> vector<16x32xf32>
    %cst_196 = arith.constant dense<0.000000e+00> : vector<16x32xf32>
    %458 = tpu.matmul %457, %385, %cst_196 {dimension_numbers = #tpu.dot_dimension_numbers<[1], [0], [0], [1], [0, 0, 1, 1], [], []>} : vector<16x32xf32>, vector<32x32xf32>, vector<16x32xf32> -> vector<16x32xf32>
    %459 = arith.addf %363, %458 : vector<16x32xf32>
    %c0_197 = arith.constant 0 : index
    %c0_198 = arith.constant 0 : index
    %c0_199 = arith.constant 0 : index
    %460 = vector.load %arg25[%c0_197, %c0_198, %c0_199] : memref<2x1x32xf32, #tpu.memory_space<vmem>>, vector<1x1x32xf32>
    %461 = vector.shape_cast %460 : vector<1x1x32xf32> to vector<1x32xf32>
    %462 = arith.mulf %459, %459 : vector<16x32xf32>
    %cst_200 = arith.constant dense<0.000000e+00> : vector<16xf32>
    %463 = vector.multi_reduction <add>, %462, %cst_200 [1] : vector<16x32xf32> to vector<16xf32>
    %464 = vector.shape_cast %463 : vector<16xf32> to vector<16x1xf32>
    %cst_201 = arith.constant 3.200000e+01 : f32
    %465 = vector.broadcast %cst_201 : f32 to vector<16x1xf32>
    %466 = arith.divf %464, %465 : vector<16x1xf32>
    %cst_202 = arith.constant 9.99999997E-7 : f32
    %467 = vector.broadcast %cst_202 : f32 to vector<16x1xf32>
    %468 = arith.addf %466, %467 : vector<16x1xf32>
    %469 = math.rsqrt %468 : vector<16x1xf32>
    %470 = vector.broadcast %469 : vector<16x1xf32> to vector<16x32xf32>
    %471 = arith.mulf %459, %470 : vector<16x32xf32>
    %472 = vector.broadcast %461 : vector<1x32xf32> to vector<16x32xf32>
    %473 = arith.mulf %471, %472 : vector<16x32xf32>
    %c0_203 = arith.constant 0 : index
    %c0_204 = arith.constant 0 : index
    %c0_205 = arith.constant 0 : index
    %474 = vector.load %arg26[%c0_203, %c0_204, %c0_205] : memref<2x32x64xf32, #tpu.memory_space<vmem>>, vector<1x32x64xf32>
    %475 = vector.shape_cast %474 : vector<1x32x64xf32> to vector<32x64xf32>
    %cst_206 = arith.constant dense<0.000000e+00> : vector<16x64xf32>
    %476 = tpu.matmul %473, %475, %cst_206 {dimension_numbers = #tpu.dot_dimension_numbers<[1], [0], [0], [1], [0, 0, 1, 1], [], []>} : vector<16x32xf32>, vector<32x64xf32>, vector<16x64xf32> -> vector<16x64xf32>
    %cst_207 = arith.constant 0.000000e+00 : f32
    %477 = vector.broadcast %cst_207 : f32 to vector<16x64xf32>
    %478 = arith.maximumf %476, %477 : vector<16x64xf32>
    %c0_208 = arith.constant 0 : index
    %c0_209 = arith.constant 0 : index
    %c0_210 = arith.constant 0 : index
    %479 = vector.load %arg27[%c0_208, %c0_209, %c0_210] : memref<2x64x32xf32, #tpu.memory_space<vmem>>, vector<1x64x32xf32>
    %480 = vector.shape_cast %479 : vector<1x64x32xf32> to vector<64x32xf32>
    %cst_211 = arith.constant dense<0.000000e+00> : vector<16x32xf32>
    %481 = tpu.matmul %478, %480, %cst_211 {dimension_numbers = #tpu.dot_dimension_numbers<[1], [0], [0], [1], [0, 0, 1, 1], [], []>} : vector<16x64xf32>, vector<64x32xf32>, vector<16x32xf32> -> vector<16x32xf32>
    %482 = arith.addf %459, %481 : vector<16x32xf32>
    %c1_212 = arith.constant 1 : index
    %c0_213 = arith.constant 0 : index
    %c0_214 = arith.constant 0 : index
    %483 = vector.load %arg15[%c1_212, %c0_213, %c0_214] : memref<2x1x32xf32, #tpu.memory_space<vmem>>, vector<1x1x32xf32>
    %484 = vector.shape_cast %483 : vector<1x1x32xf32> to vector<1x32xf32>
    %485 = arith.mulf %482, %482 : vector<16x32xf32>
    %cst_215 = arith.constant dense<0.000000e+00> : vector<16xf32>
    %486 = vector.multi_reduction <add>, %485, %cst_215 [1] : vector<16x32xf32> to vector<16xf32>
    %487 = vector.shape_cast %486 : vector<16xf32> to vector<16x1xf32>
    %cst_216 = arith.constant 3.200000e+01 : f32
    %488 = vector.broadcast %cst_216 : f32 to vector<16x1xf32>
    %489 = arith.divf %487, %488 : vector<16x1xf32>
    %cst_217 = arith.constant 9.99999997E-7 : f32
    %490 = vector.broadcast %cst_217 : f32 to vector<16x1xf32>
    %491 = arith.addf %489, %490 : vector<16x1xf32>
    %492 = math.rsqrt %491 : vector<16x1xf32>
    %493 = vector.broadcast %492 : vector<16x1xf32> to vector<16x32xf32>
    %494 = arith.mulf %482, %493 : vector<16x32xf32>
    %495 = vector.broadcast %484 : vector<1x32xf32> to vector<16x32xf32>
    %496 = arith.mulf %494, %495 : vector<16x32xf32>
    %c1_218 = arith.constant 1 : index
    %c0_219 = arith.constant 0 : index
    %c0_220 = arith.constant 0 : index
    %497 = vector.load %arg16[%c1_218, %c0_219, %c0_220] : memref<2x32x32xf32, #tpu.memory_space<vmem>>, vector<1x32x32xf32>
    %498 = vector.shape_cast %497 : vector<1x32x32xf32> to vector<32x32xf32>
    %c1_221 = arith.constant 1 : index
    %c0_222 = arith.constant 0 : index
    %c0_223 = arith.constant 0 : index
    %499 = vector.load %arg17[%c1_221, %c0_222, %c0_223] : memref<2x32x32xf32, #tpu.memory_space<vmem>>, vector<1x32x32xf32>
    %500 = vector.shape_cast %499 : vector<1x32x32xf32> to vector<32x32xf32>
    %c1_224 = arith.constant 1 : index
    %c0_225 = arith.constant 0 : index
    %c0_226 = arith.constant 0 : index
    %501 = vector.load %arg18[%c1_224, %c0_225, %c0_226] : memref<2x32x32xf32, #tpu.memory_space<vmem>>, vector<1x32x32xf32>
    %502 = vector.shape_cast %501 : vector<1x32x32xf32> to vector<32x32xf32>
    %c1_227 = arith.constant 1 : index
    %c0_228 = arith.constant 0 : index
    %c0_229 = arith.constant 0 : index
    %503 = vector.load %arg19[%c1_227, %c0_228, %c0_229] : memref<2x32x32xf32, #tpu.memory_space<vmem>>, vector<1x32x32xf32>
    %504 = vector.shape_cast %503 : vector<1x32x32xf32> to vector<32x32xf32>
    %cst_230 = arith.constant dense<0.000000e+00> : vector<16x32xf32>
    %505 = tpu.matmul %496, %498, %cst_230 {dimension_numbers = #tpu.dot_dimension_numbers<[1], [0], [0], [1], [0, 0, 1, 1], [], []>} : vector<16x32xf32>, vector<32x32xf32>, vector<16x32xf32> -> vector<16x32xf32>
    %cst_231 = arith.constant dense<0.000000e+00> : vector<16x32xf32>
    %506 = tpu.matmul %496, %500, %cst_231 {dimension_numbers = #tpu.dot_dimension_numbers<[1], [0], [0], [1], [0, 0, 1, 1], [], []>} : vector<16x32xf32>, vector<32x32xf32>, vector<16x32xf32> -> vector<16x32xf32>
    %cst_232 = arith.constant dense<0.000000e+00> : vector<16x32xf32>
    %507 = tpu.matmul %496, %502, %cst_232 {dimension_numbers = #tpu.dot_dimension_numbers<[1], [0], [0], [1], [0, 0, 1, 1], [], []>} : vector<16x32xf32>, vector<32x32xf32>, vector<16x32xf32> -> vector<16x32xf32>
    %508 = vector.extract_strided_slice %505 {offsets = [0, 0], sizes = [16, 8], strides = [1, 1]} : vector<16x32xf32> to vector<16x8xf32>
    %509 = vector.extract_strided_slice %506 {offsets = [0, 0], sizes = [16, 8], strides = [1, 1]} : vector<16x32xf32> to vector<16x8xf32>
    %cst_233 = arith.constant dense<0.000000e+00> : vector<16x16xf32>
    %510 = tpu.matmul %508, %509, %cst_233 {dimension_numbers = #tpu.dot_dimension_numbers<[1], [1], [0], [0], [0, 0, 1, 0], [], []>} : vector<16x8xf32>, vector<16x8xf32>, vector<16x16xf32> -> vector<16x16xf32>
    %511 = vector.extract_strided_slice %1 {offsets = [0, 0, 0], sizes = [1, 16, 16], strides = [1, 1, 1]} : vector<4x16x16xf32> to vector<1x16x16xf32>
    %512 = vector.shape_cast %511 : vector<1x16x16xf32> to vector<16x16xf32>
    %513 = arith.addf %510, %512 : vector<16x16xf32>
    %cst_234 = arith.constant dense<0xFF800000> : vector<16xf32>
    %514 = vector.multi_reduction <maximumf>, %513, %cst_234 [1] : vector<16x16xf32> to vector<16xf32>
    %515 = vector.shape_cast %514 : vector<16xf32> to vector<16x1xf32>
    %516 = vector.broadcast %515 : vector<16x1xf32> to vector<16x16xf32>
    %517 = arith.subf %513, %516 : vector<16x16xf32>
    %518 = math.exp %517 : vector<16x16xf32>
    %cst_235 = arith.constant dense<0.000000e+00> : vector<16xf32>
    %519 = vector.multi_reduction <add>, %518, %cst_235 [1] : vector<16x16xf32> to vector<16xf32>
    %520 = vector.shape_cast %519 : vector<16xf32> to vector<16x1xf32>
    %521 = tpu.reciprocal %520 {approx = true} : vector<16x1xf32> -> vector<16x1xf32>
    %522 = vector.broadcast %521 : vector<16x1xf32> to vector<16x16xf32>
    %523 = arith.mulf %518, %522 : vector<16x16xf32>
    %524 = vector.extract_strided_slice %507 {offsets = [0, 0], sizes = [16, 8], strides = [1, 1]} : vector<16x32xf32> to vector<16x8xf32>
    %cst_236 = arith.constant dense<0.000000e+00> : vector<16x8xf32>
    %525 = tpu.matmul %523, %524, %cst_236 {dimension_numbers = #tpu.dot_dimension_numbers<[1], [0], [0], [1], [0, 0, 1, 1], [], []>} : vector<16x16xf32>, vector<16x8xf32>, vector<16x8xf32> -> vector<16x8xf32>
    %526 = vector.extract_strided_slice %505 {offsets = [0, 8], sizes = [16, 8], strides = [1, 1]} : vector<16x32xf32> to vector<16x8xf32>
    %527 = vector.extract_strided_slice %506 {offsets = [0, 8], sizes = [16, 8], strides = [1, 1]} : vector<16x32xf32> to vector<16x8xf32>
    %cst_237 = arith.constant dense<0.000000e+00> : vector<16x16xf32>
    %528 = tpu.matmul %526, %527, %cst_237 {dimension_numbers = #tpu.dot_dimension_numbers<[1], [1], [0], [0], [0, 0, 1, 0], [], []>} : vector<16x8xf32>, vector<16x8xf32>, vector<16x16xf32> -> vector<16x16xf32>
    %529 = vector.extract_strided_slice %1 {offsets = [1, 0, 0], sizes = [1, 16, 16], strides = [1, 1, 1]} : vector<4x16x16xf32> to vector<1x16x16xf32>
    %530 = vector.shape_cast %529 : vector<1x16x16xf32> to vector<16x16xf32>
    %531 = arith.addf %528, %530 : vector<16x16xf32>
    %cst_238 = arith.constant dense<0xFF800000> : vector<16xf32>
    %532 = vector.multi_reduction <maximumf>, %531, %cst_238 [1] : vector<16x16xf32> to vector<16xf32>
    %533 = vector.shape_cast %532 : vector<16xf32> to vector<16x1xf32>
    %534 = vector.broadcast %533 : vector<16x1xf32> to vector<16x16xf32>
    %535 = arith.subf %531, %534 : vector<16x16xf32>
    %536 = math.exp %535 : vector<16x16xf32>
    %cst_239 = arith.constant dense<0.000000e+00> : vector<16xf32>
    %537 = vector.multi_reduction <add>, %536, %cst_239 [1] : vector<16x16xf32> to vector<16xf32>
    %538 = vector.shape_cast %537 : vector<16xf32> to vector<16x1xf32>
    %539 = tpu.reciprocal %538 {approx = true} : vector<16x1xf32> -> vector<16x1xf32>
    %540 = vector.broadcast %539 : vector<16x1xf32> to vector<16x16xf32>
    %541 = arith.mulf %536, %540 : vector<16x16xf32>
    %542 = vector.extract_strided_slice %507 {offsets = [0, 8], sizes = [16, 8], strides = [1, 1]} : vector<16x32xf32> to vector<16x8xf32>
    %cst_240 = arith.constant dense<0.000000e+00> : vector<16x8xf32>
    %543 = tpu.matmul %541, %542, %cst_240 {dimension_numbers = #tpu.dot_dimension_numbers<[1], [0], [0], [1], [0, 0, 1, 1], [], []>} : vector<16x16xf32>, vector<16x8xf32>, vector<16x8xf32> -> vector<16x8xf32>
    %544 = vector.extract_strided_slice %505 {offsets = [0, 16], sizes = [16, 8], strides = [1, 1]} : vector<16x32xf32> to vector<16x8xf32>
    %545 = vector.extract_strided_slice %506 {offsets = [0, 16], sizes = [16, 8], strides = [1, 1]} : vector<16x32xf32> to vector<16x8xf32>
    %cst_241 = arith.constant dense<0.000000e+00> : vector<16x16xf32>
    %546 = tpu.matmul %544, %545, %cst_241 {dimension_numbers = #tpu.dot_dimension_numbers<[1], [1], [0], [0], [0, 0, 1, 0], [], []>} : vector<16x8xf32>, vector<16x8xf32>, vector<16x16xf32> -> vector<16x16xf32>
    %547 = vector.extract_strided_slice %1 {offsets = [2, 0, 0], sizes = [1, 16, 16], strides = [1, 1, 1]} : vector<4x16x16xf32> to vector<1x16x16xf32>
    %548 = vector.shape_cast %547 : vector<1x16x16xf32> to vector<16x16xf32>
    %549 = arith.addf %546, %548 : vector<16x16xf32>
    %cst_242 = arith.constant dense<0xFF800000> : vector<16xf32>
    %550 = vector.multi_reduction <maximumf>, %549, %cst_242 [1] : vector<16x16xf32> to vector<16xf32>
    %551 = vector.shape_cast %550 : vector<16xf32> to vector<16x1xf32>
    %552 = vector.broadcast %551 : vector<16x1xf32> to vector<16x16xf32>
    %553 = arith.subf %549, %552 : vector<16x16xf32>
    %554 = math.exp %553 : vector<16x16xf32>
    %cst_243 = arith.constant dense<0.000000e+00> : vector<16xf32>
    %555 = vector.multi_reduction <add>, %554, %cst_243 [1] : vector<16x16xf32> to vector<16xf32>
    %556 = vector.shape_cast %555 : vector<16xf32> to vector<16x1xf32>
    %557 = tpu.reciprocal %556 {approx = true} : vector<16x1xf32> -> vector<16x1xf32>
    %558 = vector.broadcast %557 : vector<16x1xf32> to vector<16x16xf32>
    %559 = arith.mulf %554, %558 : vector<16x16xf32>
    %560 = vector.extract_strided_slice %507 {offsets = [0, 16], sizes = [16, 8], strides = [1, 1]} : vector<16x32xf32> to vector<16x8xf32>
    %cst_244 = arith.constant dense<0.000000e+00> : vector<16x8xf32>
    %561 = tpu.matmul %559, %560, %cst_244 {dimension_numbers = #tpu.dot_dimension_numbers<[1], [0], [0], [1], [0, 0, 1, 1], [], []>} : vector<16x16xf32>, vector<16x8xf32>, vector<16x8xf32> -> vector<16x8xf32>
    %562 = vector.extract_strided_slice %505 {offsets = [0, 24], sizes = [16, 8], strides = [1, 1]} : vector<16x32xf32> to vector<16x8xf32>
    %563 = vector.extract_strided_slice %506 {offsets = [0, 24], sizes = [16, 8], strides = [1, 1]} : vector<16x32xf32> to vector<16x8xf32>
    %cst_245 = arith.constant dense<0.000000e+00> : vector<16x16xf32>
    %564 = tpu.matmul %562, %563, %cst_245 {dimension_numbers = #tpu.dot_dimension_numbers<[1], [1], [0], [0], [0, 0, 1, 0], [], []>} : vector<16x8xf32>, vector<16x8xf32>, vector<16x16xf32> -> vector<16x16xf32>
    %565 = vector.extract_strided_slice %1 {offsets = [3, 0, 0], sizes = [1, 16, 16], strides = [1, 1, 1]} : vector<4x16x16xf32> to vector<1x16x16xf32>
    %566 = vector.shape_cast %565 : vector<1x16x16xf32> to vector<16x16xf32>
    %567 = arith.addf %564, %566 : vector<16x16xf32>
    %cst_246 = arith.constant dense<0xFF800000> : vector<16xf32>
    %568 = vector.multi_reduction <maximumf>, %567, %cst_246 [1] : vector<16x16xf32> to vector<16xf32>
    %569 = vector.shape_cast %568 : vector<16xf32> to vector<16x1xf32>
    %570 = vector.broadcast %569 : vector<16x1xf32> to vector<16x16xf32>
    %571 = arith.subf %567, %570 : vector<16x16xf32>
    %572 = math.exp %571 : vector<16x16xf32>
    %cst_247 = arith.constant dense<0.000000e+00> : vector<16xf32>
    %573 = vector.multi_reduction <add>, %572, %cst_247 [1] : vector<16x16xf32> to vector<16xf32>
    %574 = vector.shape_cast %573 : vector<16xf32> to vector<16x1xf32>
    %575 = tpu.reciprocal %574 {approx = true} : vector<16x1xf32> -> vector<16x1xf32>
    %576 = vector.broadcast %575 : vector<16x1xf32> to vector<16x16xf32>
    %577 = arith.mulf %572, %576 : vector<16x16xf32>
    %578 = vector.extract_strided_slice %507 {offsets = [0, 24], sizes = [16, 8], strides = [1, 1]} : vector<16x32xf32> to vector<16x8xf32>
    %cst_248 = arith.constant dense<0.000000e+00> : vector<16x8xf32>
    %579 = tpu.matmul %577, %578, %cst_248 {dimension_numbers = #tpu.dot_dimension_numbers<[1], [0], [0], [1], [0, 0, 1, 1], [], []>} : vector<16x16xf32>, vector<16x8xf32>, vector<16x8xf32> -> vector<16x8xf32>
    %580 = tpu.concatenate %525, %543, %561, %579 in 1 : vector<16x8xf32>, vector<16x8xf32>, vector<16x8xf32>, vector<16x8xf32> -> vector<16x32xf32>
    %cst_249 = arith.constant dense<0.000000e+00> : vector<16x32xf32>
    %581 = tpu.matmul %580, %504, %cst_249 {dimension_numbers = #tpu.dot_dimension_numbers<[1], [0], [0], [1], [0, 0, 1, 1], [], []>} : vector<16x32xf32>, vector<32x32xf32>, vector<16x32xf32> -> vector<16x32xf32>
    %582 = arith.addf %482, %581 : vector<16x32xf32>
    %c1_250 = arith.constant 1 : index
    %c0_251 = arith.constant 0 : index
    %c0_252 = arith.constant 0 : index
    %583 = vector.load %arg20[%c1_250, %c0_251, %c0_252] : memref<2x1x32xf32, #tpu.memory_space<vmem>>, vector<1x1x32xf32>
    %584 = vector.shape_cast %583 : vector<1x1x32xf32> to vector<1x32xf32>
    %585 = arith.mulf %582, %582 : vector<16x32xf32>
    %cst_253 = arith.constant dense<0.000000e+00> : vector<16xf32>
    %586 = vector.multi_reduction <add>, %585, %cst_253 [1] : vector<16x32xf32> to vector<16xf32>
    %587 = vector.shape_cast %586 : vector<16xf32> to vector<16x1xf32>
    %cst_254 = arith.constant 3.200000e+01 : f32
    %588 = vector.broadcast %cst_254 : f32 to vector<16x1xf32>
    %589 = arith.divf %587, %588 : vector<16x1xf32>
    %cst_255 = arith.constant 9.99999997E-7 : f32
    %590 = vector.broadcast %cst_255 : f32 to vector<16x1xf32>
    %591 = arith.addf %589, %590 : vector<16x1xf32>
    %592 = math.rsqrt %591 : vector<16x1xf32>
    %593 = vector.broadcast %592 : vector<16x1xf32> to vector<16x32xf32>
    %594 = arith.mulf %582, %593 : vector<16x32xf32>
    %595 = vector.broadcast %584 : vector<1x32xf32> to vector<16x32xf32>
    %596 = arith.mulf %594, %595 : vector<16x32xf32>
    %c1_256 = arith.constant 1 : index
    %c0_257 = arith.constant 0 : index
    %c0_258 = arith.constant 0 : index
    %597 = vector.load %arg21[%c1_256, %c0_257, %c0_258] : memref<2x32x32xf32, #tpu.memory_space<vmem>>, vector<1x32x32xf32>
    %598 = vector.shape_cast %597 : vector<1x32x32xf32> to vector<32x32xf32>
    %c1_259 = arith.constant 1 : index
    %c0_260 = arith.constant 0 : index
    %c0_261 = arith.constant 0 : index
    %599 = vector.load %arg22[%c1_259, %c0_260, %c0_261] : memref<2x32x32xf32, #tpu.memory_space<vmem>>, vector<1x32x32xf32>
    %600 = vector.shape_cast %599 : vector<1x32x32xf32> to vector<32x32xf32>
    %c1_262 = arith.constant 1 : index
    %c0_263 = arith.constant 0 : index
    %c0_264 = arith.constant 0 : index
    %601 = vector.load %arg23[%c1_262, %c0_263, %c0_264] : memref<2x32x32xf32, #tpu.memory_space<vmem>>, vector<1x32x32xf32>
    %602 = vector.shape_cast %601 : vector<1x32x32xf32> to vector<32x32xf32>
    %c1_265 = arith.constant 1 : index
    %c0_266 = arith.constant 0 : index
    %c0_267 = arith.constant 0 : index
    %603 = vector.load %arg24[%c1_265, %c0_266, %c0_267] : memref<2x32x32xf32, #tpu.memory_space<vmem>>, vector<1x32x32xf32>
    %604 = vector.shape_cast %603 : vector<1x32x32xf32> to vector<32x32xf32>
    %cst_268 = arith.constant dense<0.000000e+00> : vector<16x32xf32>
    %605 = tpu.matmul %596, %598, %cst_268 {dimension_numbers = #tpu.dot_dimension_numbers<[1], [0], [0], [1], [0, 0, 1, 1], [], []>} : vector<16x32xf32>, vector<32x32xf32>, vector<16x32xf32> -> vector<16x32xf32>
    %cst_269 = arith.constant dense<0.000000e+00> : vector<16x32xf32>
    %606 = tpu.matmul %262, %600, %cst_269 {dimension_numbers = #tpu.dot_dimension_numbers<[1], [0], [0], [1], [0, 0, 1, 1], [], []>} : vector<16x32xf32>, vector<32x32xf32>, vector<16x32xf32> -> vector<16x32xf32>
    %cst_270 = arith.constant dense<0.000000e+00> : vector<16x32xf32>
    %607 = tpu.matmul %262, %602, %cst_270 {dimension_numbers = #tpu.dot_dimension_numbers<[1], [0], [0], [1], [0, 0, 1, 1], [], []>} : vector<16x32xf32>, vector<32x32xf32>, vector<16x32xf32> -> vector<16x32xf32>
    %608 = vector.extract_strided_slice %605 {offsets = [0, 0], sizes = [16, 8], strides = [1, 1]} : vector<16x32xf32> to vector<16x8xf32>
    %609 = vector.extract_strided_slice %606 {offsets = [0, 0], sizes = [16, 8], strides = [1, 1]} : vector<16x32xf32> to vector<16x8xf32>
    %cst_271 = arith.constant dense<0.000000e+00> : vector<16x16xf32>
    %610 = tpu.matmul %608, %609, %cst_271 {dimension_numbers = #tpu.dot_dimension_numbers<[1], [1], [0], [0], [0, 0, 1, 0], [], []>} : vector<16x8xf32>, vector<16x8xf32>, vector<16x16xf32> -> vector<16x16xf32>
    %611 = vector.shape_cast %2 : vector<1x16x16xf32> to vector<16x16xf32>
    %612 = arith.addf %610, %611 : vector<16x16xf32>
    %cst_272 = arith.constant dense<0xFF800000> : vector<16xf32>
    %613 = vector.multi_reduction <maximumf>, %612, %cst_272 [1] : vector<16x16xf32> to vector<16xf32>
    %614 = vector.shape_cast %613 : vector<16xf32> to vector<16x1xf32>
    %615 = vector.broadcast %614 : vector<16x1xf32> to vector<16x16xf32>
    %616 = arith.subf %612, %615 : vector<16x16xf32>
    %617 = math.exp %616 : vector<16x16xf32>
    %cst_273 = arith.constant dense<0.000000e+00> : vector<16xf32>
    %618 = vector.multi_reduction <add>, %617, %cst_273 [1] : vector<16x16xf32> to vector<16xf32>
    %619 = vector.shape_cast %618 : vector<16xf32> to vector<16x1xf32>
    %620 = tpu.reciprocal %619 {approx = true} : vector<16x1xf32> -> vector<16x1xf32>
    %621 = vector.broadcast %620 : vector<16x1xf32> to vector<16x16xf32>
    %622 = arith.mulf %617, %621 : vector<16x16xf32>
    %623 = vector.extract_strided_slice %607 {offsets = [0, 0], sizes = [16, 8], strides = [1, 1]} : vector<16x32xf32> to vector<16x8xf32>
    %cst_274 = arith.constant dense<0.000000e+00> : vector<16x8xf32>
    %624 = tpu.matmul %622, %623, %cst_274 {dimension_numbers = #tpu.dot_dimension_numbers<[1], [0], [0], [1], [0, 0, 1, 1], [], []>} : vector<16x16xf32>, vector<16x8xf32>, vector<16x8xf32> -> vector<16x8xf32>
    %625 = vector.extract_strided_slice %605 {offsets = [0, 8], sizes = [16, 8], strides = [1, 1]} : vector<16x32xf32> to vector<16x8xf32>
    %626 = vector.extract_strided_slice %606 {offsets = [0, 8], sizes = [16, 8], strides = [1, 1]} : vector<16x32xf32> to vector<16x8xf32>
    %cst_275 = arith.constant dense<0.000000e+00> : vector<16x16xf32>
    %627 = tpu.matmul %625, %626, %cst_275 {dimension_numbers = #tpu.dot_dimension_numbers<[1], [1], [0], [0], [0, 0, 1, 0], [], []>} : vector<16x8xf32>, vector<16x8xf32>, vector<16x16xf32> -> vector<16x16xf32>
    %628 = vector.shape_cast %2 : vector<1x16x16xf32> to vector<16x16xf32>
    %629 = arith.addf %627, %628 : vector<16x16xf32>
    %cst_276 = arith.constant dense<0xFF800000> : vector<16xf32>
    %630 = vector.multi_reduction <maximumf>, %629, %cst_276 [1] : vector<16x16xf32> to vector<16xf32>
    %631 = vector.shape_cast %630 : vector<16xf32> to vector<16x1xf32>
    %632 = vector.broadcast %631 : vector<16x1xf32> to vector<16x16xf32>
    %633 = arith.subf %629, %632 : vector<16x16xf32>
    %634 = math.exp %633 : vector<16x16xf32>
    %cst_277 = arith.constant dense<0.000000e+00> : vector<16xf32>
    %635 = vector.multi_reduction <add>, %634, %cst_277 [1] : vector<16x16xf32> to vector<16xf32>
    %636 = vector.shape_cast %635 : vector<16xf32> to vector<16x1xf32>
    %637 = tpu.reciprocal %636 {approx = true} : vector<16x1xf32> -> vector<16x1xf32>
    %638 = vector.broadcast %637 : vector<16x1xf32> to vector<16x16xf32>
    %639 = arith.mulf %634, %638 : vector<16x16xf32>
    %640 = vector.extract_strided_slice %607 {offsets = [0, 8], sizes = [16, 8], strides = [1, 1]} : vector<16x32xf32> to vector<16x8xf32>
    %cst_278 = arith.constant dense<0.000000e+00> : vector<16x8xf32>
    %641 = tpu.matmul %639, %640, %cst_278 {dimension_numbers = #tpu.dot_dimension_numbers<[1], [0], [0], [1], [0, 0, 1, 1], [], []>} : vector<16x16xf32>, vector<16x8xf32>, vector<16x8xf32> -> vector<16x8xf32>
    %642 = vector.extract_strided_slice %605 {offsets = [0, 16], sizes = [16, 8], strides = [1, 1]} : vector<16x32xf32> to vector<16x8xf32>
    %643 = vector.extract_strided_slice %606 {offsets = [0, 16], sizes = [16, 8], strides = [1, 1]} : vector<16x32xf32> to vector<16x8xf32>
    %cst_279 = arith.constant dense<0.000000e+00> : vector<16x16xf32>
    %644 = tpu.matmul %642, %643, %cst_279 {dimension_numbers = #tpu.dot_dimension_numbers<[1], [1], [0], [0], [0, 0, 1, 0], [], []>} : vector<16x8xf32>, vector<16x8xf32>, vector<16x16xf32> -> vector<16x16xf32>
    %645 = vector.shape_cast %2 : vector<1x16x16xf32> to vector<16x16xf32>
    %646 = arith.addf %644, %645 : vector<16x16xf32>
    %cst_280 = arith.constant dense<0xFF800000> : vector<16xf32>
    %647 = vector.multi_reduction <maximumf>, %646, %cst_280 [1] : vector<16x16xf32> to vector<16xf32>
    %648 = vector.shape_cast %647 : vector<16xf32> to vector<16x1xf32>
    %649 = vector.broadcast %648 : vector<16x1xf32> to vector<16x16xf32>
    %650 = arith.subf %646, %649 : vector<16x16xf32>
    %651 = math.exp %650 : vector<16x16xf32>
    %cst_281 = arith.constant dense<0.000000e+00> : vector<16xf32>
    %652 = vector.multi_reduction <add>, %651, %cst_281 [1] : vector<16x16xf32> to vector<16xf32>
    %653 = vector.shape_cast %652 : vector<16xf32> to vector<16x1xf32>
    %654 = tpu.reciprocal %653 {approx = true} : vector<16x1xf32> -> vector<16x1xf32>
    %655 = vector.broadcast %654 : vector<16x1xf32> to vector<16x16xf32>
    %656 = arith.mulf %651, %655 : vector<16x16xf32>
    %657 = vector.extract_strided_slice %607 {offsets = [0, 16], sizes = [16, 8], strides = [1, 1]} : vector<16x32xf32> to vector<16x8xf32>
    %cst_282 = arith.constant dense<0.000000e+00> : vector<16x8xf32>
    %658 = tpu.matmul %656, %657, %cst_282 {dimension_numbers = #tpu.dot_dimension_numbers<[1], [0], [0], [1], [0, 0, 1, 1], [], []>} : vector<16x16xf32>, vector<16x8xf32>, vector<16x8xf32> -> vector<16x8xf32>
    %659 = vector.extract_strided_slice %605 {offsets = [0, 24], sizes = [16, 8], strides = [1, 1]} : vector<16x32xf32> to vector<16x8xf32>
    %660 = vector.extract_strided_slice %606 {offsets = [0, 24], sizes = [16, 8], strides = [1, 1]} : vector<16x32xf32> to vector<16x8xf32>
    %cst_283 = arith.constant dense<0.000000e+00> : vector<16x16xf32>
    %661 = tpu.matmul %659, %660, %cst_283 {dimension_numbers = #tpu.dot_dimension_numbers<[1], [1], [0], [0], [0, 0, 1, 0], [], []>} : vector<16x8xf32>, vector<16x8xf32>, vector<16x16xf32> -> vector<16x16xf32>
    %662 = vector.shape_cast %2 : vector<1x16x16xf32> to vector<16x16xf32>
    %663 = arith.addf %661, %662 : vector<16x16xf32>
    %cst_284 = arith.constant dense<0xFF800000> : vector<16xf32>
    %664 = vector.multi_reduction <maximumf>, %663, %cst_284 [1] : vector<16x16xf32> to vector<16xf32>
    %665 = vector.shape_cast %664 : vector<16xf32> to vector<16x1xf32>
    %666 = vector.broadcast %665 : vector<16x1xf32> to vector<16x16xf32>
    %667 = arith.subf %663, %666 : vector<16x16xf32>
    %668 = math.exp %667 : vector<16x16xf32>
    %cst_285 = arith.constant dense<0.000000e+00> : vector<16xf32>
    %669 = vector.multi_reduction <add>, %668, %cst_285 [1] : vector<16x16xf32> to vector<16xf32>
    %670 = vector.shape_cast %669 : vector<16xf32> to vector<16x1xf32>
    %671 = tpu.reciprocal %670 {approx = true} : vector<16x1xf32> -> vector<16x1xf32>
    %672 = vector.broadcast %671 : vector<16x1xf32> to vector<16x16xf32>
    %673 = arith.mulf %668, %672 : vector<16x16xf32>
    %674 = vector.extract_strided_slice %607 {offsets = [0, 24], sizes = [16, 8], strides = [1, 1]} : vector<16x32xf32> to vector<16x8xf32>
    %cst_286 = arith.constant dense<0.000000e+00> : vector<16x8xf32>
    %675 = tpu.matmul %673, %674, %cst_286 {dimension_numbers = #tpu.dot_dimension_numbers<[1], [0], [0], [1], [0, 0, 1, 1], [], []>} : vector<16x16xf32>, vector<16x8xf32>, vector<16x8xf32> -> vector<16x8xf32>
    %676 = tpu.concatenate %624, %641, %658, %675 in 1 : vector<16x8xf32>, vector<16x8xf32>, vector<16x8xf32>, vector<16x8xf32> -> vector<16x32xf32>
    %cst_287 = arith.constant dense<0.000000e+00> : vector<16x32xf32>
    %677 = tpu.matmul %676, %604, %cst_287 {dimension_numbers = #tpu.dot_dimension_numbers<[1], [0], [0], [1], [0, 0, 1, 1], [], []>} : vector<16x32xf32>, vector<32x32xf32>, vector<16x32xf32> -> vector<16x32xf32>
    %678 = arith.addf %582, %677 : vector<16x32xf32>
    %c1_288 = arith.constant 1 : index
    %c0_289 = arith.constant 0 : index
    %c0_290 = arith.constant 0 : index
    %679 = vector.load %arg25[%c1_288, %c0_289, %c0_290] : memref<2x1x32xf32, #tpu.memory_space<vmem>>, vector<1x1x32xf32>
    %680 = vector.shape_cast %679 : vector<1x1x32xf32> to vector<1x32xf32>
    %681 = arith.mulf %678, %678 : vector<16x32xf32>
    %cst_291 = arith.constant dense<0.000000e+00> : vector<16xf32>
    %682 = vector.multi_reduction <add>, %681, %cst_291 [1] : vector<16x32xf32> to vector<16xf32>
    %683 = vector.shape_cast %682 : vector<16xf32> to vector<16x1xf32>
    %cst_292 = arith.constant 3.200000e+01 : f32
    %684 = vector.broadcast %cst_292 : f32 to vector<16x1xf32>
    %685 = arith.divf %683, %684 : vector<16x1xf32>
    %cst_293 = arith.constant 9.99999997E-7 : f32
    %686 = vector.broadcast %cst_293 : f32 to vector<16x1xf32>
    %687 = arith.addf %685, %686 : vector<16x1xf32>
    %688 = math.rsqrt %687 : vector<16x1xf32>
    %689 = vector.broadcast %688 : vector<16x1xf32> to vector<16x32xf32>
    %690 = arith.mulf %678, %689 : vector<16x32xf32>
    %691 = vector.broadcast %680 : vector<1x32xf32> to vector<16x32xf32>
    %692 = arith.mulf %690, %691 : vector<16x32xf32>
    %c1_294 = arith.constant 1 : index
    %c0_295 = arith.constant 0 : index
    %c0_296 = arith.constant 0 : index
    %693 = vector.load %arg26[%c1_294, %c0_295, %c0_296] : memref<2x32x64xf32, #tpu.memory_space<vmem>>, vector<1x32x64xf32>
    %694 = vector.shape_cast %693 : vector<1x32x64xf32> to vector<32x64xf32>
    %cst_297 = arith.constant dense<0.000000e+00> : vector<16x64xf32>
    %695 = tpu.matmul %692, %694, %cst_297 {dimension_numbers = #tpu.dot_dimension_numbers<[1], [0], [0], [1], [0, 0, 1, 1], [], []>} : vector<16x32xf32>, vector<32x64xf32>, vector<16x64xf32> -> vector<16x64xf32>
    %cst_298 = arith.constant 0.000000e+00 : f32
    %696 = vector.broadcast %cst_298 : f32 to vector<16x64xf32>
    %697 = arith.maximumf %695, %696 : vector<16x64xf32>
    %c1_299 = arith.constant 1 : index
    %c0_300 = arith.constant 0 : index
    %c0_301 = arith.constant 0 : index
    %698 = vector.load %arg27[%c1_299, %c0_300, %c0_301] : memref<2x64x32xf32, #tpu.memory_space<vmem>>, vector<1x64x32xf32>
    %699 = vector.shape_cast %698 : vector<1x64x32xf32> to vector<64x32xf32>
    %cst_302 = arith.constant dense<0.000000e+00> : vector<16x32xf32>
    %700 = tpu.matmul %697, %699, %cst_302 {dimension_numbers = #tpu.dot_dimension_numbers<[1], [0], [0], [1], [0, 0, 1, 1], [], []>} : vector<16x64xf32>, vector<64x32xf32>, vector<16x32xf32> -> vector<16x32xf32>
    %701 = arith.addf %678, %700 : vector<16x32xf32>
    %c0_303 = arith.constant 0 : index
    %c0_304 = arith.constant 0 : index
    %702 = vector.load %arg28[%c0_303, %c0_304] : memref<1x32xf32, #tpu.memory_space<vmem>>, vector<1x32xf32>
    %703 = arith.mulf %701, %701 : vector<16x32xf32>
    %cst_305 = arith.constant dense<0.000000e+00> : vector<16xf32>
    %704 = vector.multi_reduction <add>, %703, %cst_305 [1] : vector<16x32xf32> to vector<16xf32>
    %705 = vector.shape_cast %704 : vector<16xf32> to vector<16x1xf32>
    %cst_306 = arith.constant 3.200000e+01 : f32
    %706 = vector.broadcast %cst_306 : f32 to vector<16x1xf32>
    %707 = arith.divf %705, %706 : vector<16x1xf32>
    %cst_307 = arith.constant 9.99999997E-7 : f32
    %708 = vector.broadcast %cst_307 : f32 to vector<16x1xf32>
    %709 = arith.addf %707, %708 : vector<16x1xf32>
    %710 = math.rsqrt %709 : vector<16x1xf32>
    %711 = vector.broadcast %710 : vector<16x1xf32> to vector<16x32xf32>
    %712 = arith.mulf %701, %711 : vector<16x32xf32>
    %713 = vector.broadcast %702 : vector<1x32xf32> to vector<16x32xf32>
    %714 = arith.mulf %712, %713 : vector<16x32xf32>
    %cst_308 = arith.constant 0.176776692 : f32
    %715 = vector.broadcast %cst_308 : f32 to vector<16x32xf32>
    %716 = arith.mulf %714, %715 : vector<16x32xf32>
    %c0_309 = arith.constant 0 : index
    %c0_310 = arith.constant 0 : index
    %717 = vector.load %arg29[%c0_309, %c0_310] : memref<32x128xf32, #tpu.memory_space<vmem>>, vector<32x128xf32>
    %cst_311 = arith.constant dense<0.000000e+00> : vector<16x128xf32>
    %718 = tpu.matmul %716, %717, %cst_311 {dimension_numbers = #tpu.dot_dimension_numbers<[1], [0], [0], [1], [0, 0, 1, 1], [], []>} : vector<16x32xf32>, vector<32x128xf32>, vector<16x128xf32> -> vector<16x128xf32>
    %c0_312 = arith.constant 0 : index
    %c0_313 = arith.constant 0 : index
    %719 = vector.load %arg30[%c0_312, %c0_313] : memref<16x128xf32, #tpu.memory_space<vmem>>, vector<16x128xf32>
    tpu.vector_store %arg30[%c0_312, %c0_313], %718 {strides = array<i32>} : memref<16x128xf32, #tpu.memory_space<vmem>>, vector<16x128xf32>,
    %c0_314 = arith.constant 0 : index
    %c0_315 = arith.constant 0 : index
    %720 = vector.load %arg2[%c0_314, %c0_315] : memref<16x1xi32, #tpu.memory_space<vmem>>, vector<16x1xi32>
    %721 = tpu.iota {dimensions = array<i32: 1>} : vector<16x128xi32>
    %c64_i32 = arith.constant 64 : i32
    %722 = vector.broadcast %c64_i32 : i32 to vector<16x128xi32>
    %723 = arith.cmpi slt, %721, %722 : vector<16x128xi32>
    %cst_316 = arith.constant -1.000000e+09 : f32
    %724 = vector.broadcast %cst_316 : f32 to vector<16x128xf32>
    %725 = arith.select %723, %718, %724 : vector<16x128xi1>, vector<16x128xf32>
    %cst_317 = arith.constant dense<0xFF800000> : vector<16xf32>
    %726 = vector.multi_reduction <maximumf>, %725, %cst_317 [1] : vector<16x128xf32> to vector<16xf32>
    %727 = vector.shape_cast %726 : vector<16xf32> to vector<16x1xf32>
    %728 = vector.broadcast %727 : vector<16x1xf32> to vector<16x128xf32>
    %729 = arith.subf %725, %728 : vector<16x128xf32>
    %730 = math.exp %729 : vector<16x128xf32>
    %cst_318 = arith.constant dense<0.000000e+00> : vector<16xf32>
    %731 = vector.multi_reduction <add>, %730, %cst_318 [1] : vector<16x128xf32> to vector<16xf32>
    %732 = vector.shape_cast %731 : vector<16xf32> to vector<16x1xf32>
    %733 = math.log %732 : vector<16x1xf32>
    %734 = arith.addf %733, %727 : vector<16x1xf32>
    %735 = vector.broadcast %720 : vector<16x1xi32> to vector<16x128xi32>
    %736 = arith.cmpi eq, %721, %735 : vector<16x128xi32>
    %cst_319 = arith.constant 0.000000e+00 : f32
    %737 = vector.broadcast %cst_319 : f32 to vector<16x128xf32>
    %738 = arith.select %736, %718, %737 : vector<16x128xi1>, vector<16x128xf32>
    %cst_320 = arith.constant dense<0.000000e+00> : vector<16xf32>
    %739 = vector.multi_reduction <add>, %738, %cst_320 [1] : vector<16x128xf32> to vector<16xf32>
    %740 = vector.shape_cast %739 : vector<16xf32> to vector<16x1xf32>
    %c-100_i32 = arith.constant -100 : i32
    %741 = vector.broadcast %c-100_i32 : i32 to vector<16x1xi32>
    %742 = arith.cmpi ne, %720, %741 : vector<16x1xi32>
    %743 = arith.extui %742 : vector<16x1xi1> to vector<16x1xi32>
    %744 = arith.sitofp %743 : vector<16x1xi32> to vector<16x1xf32>
    %745 = arith.subf %734, %740 : vector<16x1xf32>
    %746 = arith.mulf %745, %744 : vector<16x1xf32>
    %747 = vector.shape_cast %746 : vector<16x1xf32> to vector<1x16x1xf32>
    %cst_321 = arith.constant dense<0.000000e+00> : vector<1xf32>
    %748 = vector.multi_reduction <add>, %747, %cst_321 [1, 2] : vector<1x16x1xf32> to vector<1xf32>
    %749 = vector.shape_cast %748 : vector<1xf32> to vector<1x1x1xf32>
    %750 = vector.extract %749[0, 0, 0] : f32 from vector<1x1x1xf32>
    %751 = vector.broadcast %750 : f32 to vector<1x1xf32>
    %752 = vector.shape_cast %744 : vector<16x1xf32> to vector<1x16x1xf32>
    %cst_322 = arith.constant dense<0.000000e+00> : vector<1xf32>
    %753 = vector.multi_reduction <add>, %752, %cst_322 [1, 2] : vector<1x16x1xf32> to vector<1xf32>
    %754 = vector.shape_cast %753 : vector<1xf32> to vector<1x1x1xf32>
    %755 = vector.extract %754[0, 0, 0] : f32 from vector<1x1x1xf32>
    %756 = vector.broadcast %755 : f32 to vector<1x1xf32>
    %cst_323 = arith.constant 1.000000e+00 : f32
    %757 = vector.broadcast %cst_323 : f32 to vector<1x1xf32>
    %758 = arith.maximumf %756, %757 : vector<1x1xf32>
    %759 = arith.divf %751, %758 : vector<1x1xf32>
    %c0_324 = arith.constant 0 : index
    %c0_325 = arith.constant 0 : index
    %760 = vector.load %arg31[%c0_324, %c0_325] : memref<1x1xf32, #tpu.memory_space<vmem>>, vector<1x1xf32>
    tpu.vector_store %arg31[%c0_324, %c0_325], %759 {strides = array<i32>} : memref<1x1xf32, #tpu.memory_space<vmem>>, vector<1x1xf32>,
    return
  }
}

</mosaic_0001>

<llo_original>
// kernel: tile.14
$region0: #{tile.14}
  %s0 = inlined_call_operand.vmem [shape: f32[4,2,8,2,8], index: 0, kind: input, shape index: {}]
  %s1 = inlined_call_operand.vmem [shape: f32[4,16,16], index: 1, kind: output, shape index: {}]
  $region1: #{tile.14} parent=0
    #allocation0 [shape = 'u8[262144]{0}', space=vmem, size = 0x40000, scoped, tag = 'scoped mem for input reshape']
    %s3 = sshll.u32 1, 2
    %s4 = ssub.s32 %s3, 1
    %s5 = smul.addr 2, 63
    %s6 = scalar_lea.vmem %s0, %s5
    %v7 = vld [vmem:[%s6] sm:%s4]
    %s8 = scalar_lea.vmem [#allocation0], 504
    %9 = vst [vmem:[%s8] sm:%s4] %v7
    %s10 = smul.addr 2, 62
    %s11 = scalar_lea.vmem %s0, %s10
    %v12 = vld [vmem:[%s11] sm:%s4]
    %s13 = scalar_lea.vmem [#allocation0], 496
    %14 = vst [vmem:[%s13] sm:%s4] %v12
    %s15 = smul.addr 2, 61
    %s16 = scalar_lea.vmem %s0, %s15
    %v17 = vld [vmem:[%s16] sm:%s4]
    %s18 = scalar_lea.vmem [#allocation0], 488
    %19 = vst [vmem:[%s18] sm:%s4] %v17
    %s20 = smul.addr 2, 60
    %s21 = scalar_lea.vmem %s0, %s20
    %v22 = vld [vmem:[%s21] sm:%s4]
    %s23 = scalar_lea.vmem [#allocation0], 480
    %24 = vst [vmem:[%s23] sm:%s4] %v22
    %s25 = smul.addr 2, 59
    %s26 = scalar_lea.vmem %s0, %s25
    %v27 = vld [vmem:[%s26] sm:%s4]
    %s28 = scalar_lea.vmem [#allocation0], 472
    %29 = vst [vmem:[%s28] sm:%s4] %v27
    %s30 = smul.addr 2, 58
    %s31 = scalar_lea.vmem %s0, %s30
    %v32 = vld [vmem:[%s31] sm:%s4]
    %s33 = scalar_lea.vmem [#allocation0], 464
    %34 = vst [vmem:[%s33] sm:%s4] %v32
    %s35 = smul.addr 2, 57
    %s36 = scalar_lea.vmem %s0, %s35
    %v37 = vld [vmem:[%s36] sm:%s4]
    %s38 = scalar_lea.vmem [#allocation0], 456
    %39 = vst [vmem:[%s38] sm:%s4] %v37
    %s40 = smul.addr 2, 56
    %s41 = scalar_lea.vmem %s0, %s40
    %v42 = vld [vmem:[%s41] sm:%s4]
    %s43 = scalar_lea.vmem [#allocation0], 448
    %44 = vst [vmem:[%s43] sm:%s4] %v42
    %s45 = smul.addr 2, 55
    %s46 = scalar_lea.vmem %s0, %s45
    %v47 = vld [vmem:[%s46] sm:%s4]
    %s48 = scalar_lea.vmem [#allocation0], 440
    %49 = vst [vmem:[%s48] sm:%s4] %v47
    %s50 = smul.addr 2, 54
    %s51 = scalar_lea.vmem %s0, %s50
    %v52 = vld [vmem:[%s51] sm:%s4]
    %s53 = scalar_lea.vmem [#allocation0], 432
    %54 = vst [vmem:[%s53] sm:%s4] %v52
    %s55 = smul.addr 2, 53
    %s56 = scalar_lea.vmem %s0, %s55
    %v57 = vld [vmem:[%s56] sm:%s4]
    %s58 = scalar_lea.vmem [#allocation0], 424
    %59 = vst [vmem:[%s58] sm:%s4] %v57
    %s60 = smul.addr 2, 52
    %s61 = scalar_lea.vmem %s0, %s60
    %v62 = vld [vmem:[%s61] sm:%s4]
    %s63 = scalar_lea.vmem [#allocation0], 416
    %64 = vst [vmem:[%s63] sm:%s4] %v62
    %s65 = smul.addr 2, 51
    %s66 = scalar_lea.vmem %s0, %s65
    %v67 = vld [vmem:[%s66] sm:%s4]
    %s68 = scalar_lea.vmem [#allocation0], 408
    %69 = vst [vmem:[%s68] sm:%s4] %v67
    %s70 = smul.addr 2, 50
    %s71 = scalar_lea.vmem %s0, %s70
    %v72 = vld [vmem:[%s71] sm:%s4]
    %s73 = scalar_lea.vmem [#allocation0], 400
    %74 = vst [vmem:[%s73] sm:%s4] %v72
    %s75 = smul.addr 2, 49
    %s76 = scalar_lea.vmem %s0, %s75
    %v77 = vld [vmem:[%s76] sm:%s4]
    %s78 = scalar_lea.vmem [#allocation0], 392
    %79 = vst [vmem:[%s78] sm:%s4] %v77
    %s80 = smul.addr 2, 48
    %s81 = scalar_lea.vmem %s0, %s80
    %v82 = vld [vmem:[%s81] sm:%s4]
    %s83 = scalar_lea.vmem [#allocation0], 384
    %84 = vst [vmem:[%s83] sm:%s4] %v82
    %s85 = smul.addr 2, 47
    %s86 = scalar_lea.vmem %s0, %s85
    %v87 = vld [vmem:[%s86] sm:%s4]
    %s88 = scalar_lea.vmem [#allocation0], 376
    %89 = vst [vmem:[%s88] sm:%s4] %v87
    %s90 = smul.addr 2, 46
    %s91 = scalar_lea.vmem %s0, %s90
    %v92 = vld [vmem:[%s91] sm:%s4]
    %s93 = scalar_lea.vmem [#allocation0], 368
    %94 = vst [vmem:[%s93] sm:%s4] %v92
    %s95 = smul.addr 2, 45
    %s96 = scalar_lea.vmem %s0, %s95
    %v97 = vld [vmem:[%s96] sm:%s4]
    %s98 = scalar_lea.vmem [#allocation0], 360
    %99 = vst [vmem:[%s98] sm:%s4] %v97
    %s100 = smul.addr 2, 44
    %s101 = scalar_lea.vmem %s0, %s100
    %v102 = vld [vmem:[%s101] sm:%s4]
    %s103 = scalar_lea.vmem [#allocation0], 352
    %104 = vst [vmem:[%s103] sm:%s4] %v102
    %s105 = smul.addr 2, 43
    %s106 = scalar_lea.vmem %s0, %s105
    %v107 = vld [vmem:[%s106] sm:%s4]
    %s108 = scalar_lea.vmem [#allocation0], 344
    %109 = vst [vmem:[%s108] sm:%s4] %v107
    %s110 = smul.addr 2, 42
    %s111 = scalar_lea.vmem %s0, %s110
    %v112 = vld [vmem:[%s111] sm:%s4]
    %s113 = scalar_lea.vmem [#allocation0], 336
    %114 = vst [vmem:[%s113] sm:%s4] %v112
    %s115 = smul.addr 2, 41
    %s116 = scalar_lea.vmem %s0, %s115
    %v117 = vld [vmem:[%s116] sm:%s4]
    %s118 = scalar_lea.vmem [#allocation0], 328
    %119 = vst [vmem:[%s118] sm:%s4] %v117
    %s120 = smul.addr 2, 40
    %s121 = scalar_lea.vmem %s0, %s120
    %v122 = vld [vmem:[%s121] sm:%s4]
    %s123 = scalar_lea.vmem [#allocation0], 320
    %124 = vst [vmem:[%s123] sm:%s4] %v122
    %s125 = smul.addr 2, 39
    %s126 = scalar_lea.vmem %s0, %s125
    %v127 = vld [vmem:[%s126] sm:%s4]
    %s128 = scalar_lea.vmem [#allocation0], 312
    %129 = vst [vmem:[%s128] sm:%s4] %v127
    %s130 = smul.addr 2, 38
    %s131 = scalar_lea.vmem %s0, %s130
    %v132 = vld [vmem:[%s131] sm:%s4]
    %s133 = scalar_lea.vmem [#allocation0], 304
    %134 = vst [vmem:[%s133] sm:%s4] %v132
    %s135 = smul.addr 2, 37
    %s136 = scalar_lea.vmem %s0, %s135
    %v137 = vld [vmem:[%s136] sm:%s4]
    %s138 = scalar_lea.vmem [#allocation0], 296
    %139 = vst [vmem:[%s138] sm:%s4] %v137
    %s140 = smul.addr 2, 36
    %s141 = scalar_lea.vmem %s0, %s140
    %v142 = vld [vmem:[%s141] sm:%s4]
    %s143 = scalar_lea.vmem [#allocation0], 288
    %144 = vst [vmem:[%s143] sm:%s4] %v142
    %s145 = smul.addr 2, 35
    %s146 = scalar_lea.vmem %s0, %s145
    %v147 = vld [vmem:[%s146] sm:%s4]
    %s148 = scalar_lea.vmem [#allocation0], 280
    %149 = vst [vmem:[%s148] sm:%s4] %v147
    %s150 = smul.addr 2, 34
    %s151 = scalar_lea.vmem %s0, %s150
    %v152 = vld [vmem:[%s151] sm:%s4]
    %s153 = scalar_lea.vmem [#allocation0], 272
    %154 = vst [vmem:[%s153] sm:%s4] %v152
    %s155 = smul.addr 2, 33
    %s156 = scalar_lea.vmem %s0, %s155
    %v157 = vld [vmem:[%s156] sm:%s4]
    %s158 = scalar_lea.vmem [#allocation0], 264
    %159 = vst [vmem:[%s158] sm:%s4] %v157
    %s160 = smul.addr 2, 32
    %s161 = scalar_lea.vmem %s0, %s160
    %v162 = vld [vmem:[%s161] sm:%s4]
    %s163 = scalar_lea.vmem [#allocation0], 256
    %164 = vst [vmem:[%s163] sm:%s4] %v162
    %s165 = smul.addr 2, 31
    %s166 = scalar_lea.vmem %s0, %s165
    %v167 = vld [vmem:[%s166] sm:%s4]
    %s168 = scalar_lea.vmem [#allocation0], 248
    %169 = vst [vmem:[%s168] sm:%s4] %v167
    %s170 = smul.addr 2, 30
    %s171 = scalar_lea.vmem %s0, %s170
    %v172 = vld [vmem:[%s171] sm:%s4]
    %s173 = scalar_lea.vmem [#allocation0], 240
    %174 = vst [vmem:[%s173] sm:%s4] %v172
    %s175 = smul.addr 2, 29
    %s176 = scalar_lea.vmem %s0, %s175
    %v177 = vld [vmem:[%s176] sm:%s4]
    %s178 = scalar_lea.vmem [#allocation0], 232
    %179 = vst [vmem:[%s178] sm:%s4] %v177
    %s180 = smul.addr 2, 28
    %s181 = scalar_lea.vmem %s0, %s180
    %v182 = vld [vmem:[%s181] sm:%s4]
    %s183 = scalar_lea.vmem [#allocation0], 224
    %184 = vst [vmem:[%s183] sm:%s4] %v182
    %s185 = smul.addr 2, 27
    %s186 = scalar_lea.vmem %s0, %s185
    %v187 = vld [vmem:[%s186] sm:%s4]
    %s188 = scalar_lea.vmem [#allocation0], 216
    %189 = vst [vmem:[%s188] sm:%s4] %v187
    %s190 = smul.addr 2, 26
    %s191 = scalar_lea.vmem %s0, %s190
    %v192 = vld [vmem:[%s191] sm:%s4]
    %s193 = scalar_lea.vmem [#allocation0], 208
    %194 = vst [vmem:[%s193] sm:%s4] %v192
    %s195 = smul.addr 2, 25
    %s196 = scalar_lea.vmem %s0, %s195
    %v197 = vld [vmem:[%s196] sm:%s4]
    %s198 = scalar_lea.vmem [#allocation0], 200
    %199 = vst [vmem:[%s198] sm:%s4] %v197
    %s200 = smul.addr 2, 24
    %s201 = scalar_lea.vmem %s0, %s200
    %v202 = vld [vmem:[%s201] sm:%s4]
    %s203 = scalar_lea.vmem [#allocation0], 192
    %204 = vst [vmem:[%s203] sm:%s4] %v202
    %s205 = smul.addr 2, 23
    %s206 = scalar_lea.vmem %s0, %s205
    %v207 = vld [vmem:[%s206] sm:%s4]
    %s208 = scalar_lea.vmem [#allocation0], 184
    %209 = vst [vmem:[%s208] sm:%s4] %v207
    %s210 = smul.addr 2, 22
    %s211 = scalar_lea.vmem %s0, %s210
    %v212 = vld [vmem:[%s211] sm:%s4]
    %s213 = scalar_lea.vmem [#allocation0], 176
    %214 = vst [vmem:[%s213] sm:%s4] %v212
    %s215 = smul.addr 2, 21
    %s216 = scalar_lea.vmem %s0, %s215
    %v217 = vld [vmem:[%s216] sm:%s4]
    %s218 = scalar_lea.vmem [#allocation0], 168
    %219 = vst [vmem:[%s218] sm:%s4] %v217
    %s220 = smul.addr 2, 20
    %s221 = scalar_lea.vmem %s0, %s220
    %v222 = vld [vmem:[%s221] sm:%s4]
    %s223 = scalar_lea.vmem [#allocation0], 160
    %224 = vst [vmem:[%s223] sm:%s4] %v222
    %s225 = smul.addr 2, 19
    %s226 = scalar_lea.vmem %s0, %s225
    %v227 = vld [vmem:[%s226] sm:%s4]
    %s228 = scalar_lea.vmem [#allocation0], 152
    %229 = vst [vmem:[%s228] sm:%s4] %v227
    %s230 = smul.addr 2, 18
    %s231 = scalar_lea.vmem %s0, %s230
    %v232 = vld [vmem:[%s231] sm:%s4]
    %s233 = scalar_lea.vmem [#allocation0], 144
    %234 = vst [vmem:[%s233] sm:%s4] %v232
    %s235 = smul.addr 2, 17
    %s236 = scalar_lea.vmem %s0, %s235
    %v237 = vld [vmem:[%s236] sm:%s4]
    %s238 = scalar_lea.vmem [#allocation0], 136
    %239 = vst [vmem:[%s238] sm:%s4] %v237
    %s240 = smul.addr 2, 16
    %s241 = scalar_lea.vmem %s0, %s240
    %v242 = vld [vmem:[%s241] sm:%s4]
    %s243 = scalar_lea.vmem [#allocation0], 128
    %244 = vst [vmem:[%s243] sm:%s4] %v242
    %s245 = smul.addr 2, 15
    %s246 = scalar_lea.vmem %s0, %s245
    %v247 = vld [vmem:[%s246] sm:%s4]
    %s248 = scalar_lea.vmem [#allocation0], 120
    %249 = vst [vmem:[%s248] sm:%s4] %v247
    %s250 = smul.addr 2, 14
    %s251 = scalar_lea.vmem %s0, %s250
    %v252 = vld [vmem:[%s251] sm:%s4]
    %s253 = scalar_lea.vmem [#allocation0], 112
    %254 = vst [vmem:[%s253] sm:%s4] %v252
    %s255 = smul.addr 2, 13
    %s256 = scalar_lea.vmem %s0, %s255
    %v257 = vld [vmem:[%s256] sm:%s4]
    %s258 = scalar_lea.vmem [#allocation0], 104
    %259 = vst [vmem:[%s258] sm:%s4] %v257
    %s260 = smul.addr 2, 12
    %s261 = scalar_lea.vmem %s0, %s260
    %v262 = vld [vmem:[%s261] sm:%s4]
    %s263 = scalar_lea.vmem [#allocation0], 96
    %264 = vst [vmem:[%s263] sm:%s4] %v262
    %s265 = smul.addr 2, 11
    %s266 = scalar_lea.vmem %s0, %s265
    %v267 = vld [vmem:[%s266] sm:%s4]
    %s268 = scalar_lea.vmem [#allocation0], 88
    %269 = vst [vmem:[%s268] sm:%s4] %v267
    %s270 = smul.addr 2, 10
    %s271 = scalar_lea.vmem %s0, %s270
    %v272 = vld [vmem:[%s271] sm:%s4]
    %s273 = scalar_lea.vmem [#allocation0], 80
    %274 = vst [vmem:[%s273] sm:%s4] %v272
    %s275 = smul.addr 2, 9
    %s276 = scalar_lea.vmem %s0, %s275
    %v277 = vld [vmem:[%s276] sm:%s4]
    %s278 = scalar_lea.vmem [#allocation0], 72
    %279 = vst [vmem:[%s278] sm:%s4] %v277
    %s280 = smul.addr 2, 8
    %s281 = scalar_lea.vmem %s0, %s280
    %v282 = vld [vmem:[%s281] sm:%s4]
    %s283 = scalar_lea.vmem [#allocation0], 64
    %284 = vst [vmem:[%s283] sm:%s4] %v282
    %s285 = smul.addr 2, 7
    %s286 = scalar_lea.vmem %s0, %s285
    %v287 = vld [vmem:[%s286] sm:%s4]
    %s288 = scalar_lea.vmem [#allocation0], 56
    %289 = vst [vmem:[%s288] sm:%s4] %v287
    %s290 = smul.addr 2, 6
    %s291 = scalar_lea.vmem %s0, %s290
    %v292 = vld [vmem:[%s291] sm:%s4]
    %s293 = scalar_lea.vmem [#allocation0], 48
    %294 = vst [vmem:[%s293] sm:%s4] %v292
    %s295 = smul.addr 2, 5
    %s296 = scalar_lea.vmem %s0, %s295
    %v297 = vld [vmem:[%s296] sm:%s4]
    %s298 = scalar_lea.vmem [#allocation0], 40
    %299 = vst [vmem:[%s298] sm:%s4] %v297
    %s300 = smul.addr 2, 4
    %s301 = scalar_lea.vmem %s0, %s300
    %v302 = vld [vmem:[%s301] sm:%s4]
    %s303 = scalar_lea.vmem [#allocation0], 32
    %304 = vst [vmem:[%s303] sm:%s4] %v302
    %s305 = smul.addr 2, 3
    %s306 = scalar_lea.vmem %s0, %s305
    %v307 = vld [vmem:[%s306] sm:%s4]
    %s308 = scalar_lea.vmem [#allocation0], 24
    %309 = vst [vmem:[%s308] sm:%s4] %v307
    %s310 = smul.addr 2, 2
    %s311 = scalar_lea.vmem %s0, %s310
    %v312 = vld [vmem:[%s311] sm:%s4]
    %s313 = scalar_lea.vmem [#allocation0], 16
    %314 = vst [vmem:[%s313] sm:%s4] %v312
    %s315 = scalar_lea.vmem %s0, 2
    %v316 = vld [vmem:[%s315] sm:%s4]
    %s317 = scalar_lea.vmem [#allocation0], 8
    %318 = vst [vmem:[%s317] sm:%s4] %v316
    %v319 = vld [vmem:[%s0] sm:%s4]
    %320 = vst [vmem:[#allocation0] sm:%s4] %v319
    %v321 = vld [vmem:[#allocation0] ss:$8 sm:$0xf]
    %v322 = vld [vmem:[#allocation0] ss:$8 sm:$0xf0]
    %vm323 = vcmask 1047556
    %v324 = vsel %vm323, %v322, %v321
    %vm325 = vcmask 64512
    %326 = vst.msk [vmem:[%s1] sm:$0xff] %vm325, %v324
    %s327 = scalar_lea.vmem [#allocation0], 64
    %v328 = vld [vmem:[%s327] ss:$8 sm:$0xf]
    %s329 = scalar_lea.vmem [#allocation0], 64
    %v330 = vld [vmem:[%s329] ss:$8 sm:$0xf0]
    %vm331 = vcmask 1047556
    %v332 = vsel %vm331, %v330, %v328
    %vm333 = vcmask 64512
    %s334 = scalar_lea.vmem %s1, 8
    %335 = vst.msk [vmem:[%s334] sm:$0xff] %vm333, %v332
    %s336 = scalar_lea.vmem [#allocation0], 128
    %v337 = vld [vmem:[%s336] ss:$8 sm:$0xf]
    %s338 = scalar_lea.vmem [#allocation0], 128
    %v339 = vld [vmem:[%s338] ss:$8 sm:$0xf0]
    %vm340 = vcmask 1047556
    %v341 = vsel %vm340, %v339, %v337
    %vm342 = vcmask 64512
    %s343 = scalar_lea.vmem %s1, 16
    %344 = vst.msk [vmem:[%s343] sm:$0xff] %vm342, %v341
    %s345 = scalar_lea.vmem [#allocation0], 192
    %v346 = vld [vmem:[%s345] ss:$8 sm:$0xf]
    %s347 = scalar_lea.vmem [#allocation0], 192
    %v348 = vld [vmem:[%s347] ss:$8 sm:$0xf0]
    %vm349 = vcmask 1047556
    %v350 = vsel %vm349, %v348, %v346
    %vm351 = vcmask 64512
    %s352 = scalar_lea.vmem %s1, 24
    %353 = vst.msk [vmem:[%s352] sm:$0xff] %vm351, %v350
    %s354 = scalar_lea.vmem [#allocation0], 256
    %v355 = vld [vmem:[%s354] ss:$8 sm:$0xf]
    %s356 = scalar_lea.vmem [#allocation0], 256
    %v357 = vld [vmem:[%s356] ss:$8 sm:$0xf0]
    %vm358 = vcmask 1047556
    %v359 = vsel %vm358, %v357, %v355
    %vm360 = vcmask 64512
    %s361 = scalar_lea.vmem %s1, 32
    %362 = vst.msk [vmem:[%s361] sm:$0xff] %vm360, %v359
    %s363 = scalar_lea.vmem [#allocation0], 320
    %v364 = vld [vmem:[%s363] ss:$8 sm:$0xf]
    %s365 = scalar_lea.vmem [#allocation0], 320
    %v366 = vld [vmem:[%s365] ss:$8 sm:$0xf0]
    %vm367 = vcmask 1047556
    %v368 = vsel %vm367, %v366, %v364
    %vm369 = vcmask 64512
    %s370 = scalar_lea.vmem %s1, 40
    %371 = vst.msk [vmem:[%s370] sm:$0xff] %vm369, %v368
    %s372 = scalar_lea.vmem [#allocation0], 384
    %v373 = vld [vmem:[%s372] ss:$8 sm:$0xf]
    %s374 = scalar_lea.vmem [#allocation0], 384
    %v375 = vld [vmem:[%s374] ss:$8 sm:$0xf0]
    %vm376 = vcmask 1047556
    %v377 = vsel %vm376, %v375, %v373
    %vm378 = vcmask 64512
    %s379 = scalar_lea.vmem %s1, 48
    %380 = vst.msk [vmem:[%s379] sm:$0xff] %vm378, %v377
    %s381 = scalar_lea.vmem [#allocation0], 448
    %v382 = vld [vmem:[%s381] ss:$8 sm:$0xf]
    %s383 = scalar_lea.vmem [#allocation0], 448
    %v384 = vld [vmem:[%s383] ss:$8 sm:$0xf0]
    %vm385 = vcmask 1047556
    %v386 = vsel %vm385, %v384, %v382
    %vm387 = vcmask 64512
    %s388 = scalar_lea.vmem %s1, 56
    %389 = vst.msk [vmem:[%s388] sm:$0xff] %vm387, %v386
    %s390 = scalar_lea.vmem [#allocation0], 1
    %v391 = vld [vmem:[%s390] ss:$8 sm:$0xf]
    %s392 = scalar_lea.vmem [#allocation0], 1
    %v393 = vld [vmem:[%s392] ss:$8 sm:$0xf0]
    %vm394 = vcmask 1047556
    %v395 = vsel %vm394, %v393, %v391
    %396 = vrot.lane.b32.xlu0 %v395, 8
    %v397 = vpop.permute.xlu0 %396
    %vm398 = vcmask 130112
    %399 = vst.msk [vmem:[%s1] sm:$0xff] %vm398, %v397
    %s400 = scalar_lea.vmem [#allocation0], 257
    %v401 = vld [vmem:[%s400] ss:$8 sm:$0xf]
    %s402 = scalar_lea.vmem [#allocation0], 257
    %v403 = vld [vmem:[%s402] ss:$8 sm:$0xf0]
    %vm404 = vcmask 1047556
    %v405 = vsel %vm404, %v403, %v401
    %406 = vrot.lane.b32.xlu0 %v405, 8
    %v407 = vpop.permute.xlu0 %406
    %vm408 = vcmask 130112
    %s409 = scalar_lea.vmem %s1, 32
    %410 = vst.msk [vmem:[%s409] sm:$0xff] %vm408, %v407
    %s411 = scalar_lea.vmem [#allocation0], 65
    %v412 = vld [vmem:[%s411] ss:$8 sm:$0xf]
    %s413 = scalar_lea.vmem [#allocation0], 65
    %v414 = vld [vmem:[%s413] ss:$8 sm:$0xf0]
    %vm415 = vcmask 1047556
    %v416 = vsel %vm415, %v414, %v412
    %417 = vrot.lane.b32.xlu0 %v416, 8
    %v418 = vpop.permute.xlu0 %417
    %vm419 = vcmask 130112
    %s420 = scalar_lea.vmem %s1, 8
    %421 = vst.msk [vmem:[%s420] sm:$0xff] %vm419, %v418
    %s422 = scalar_lea.vmem [#allocation0], 321
    %v423 = vld [vmem:[%s422] ss:$8 sm:$0xf]
    %s424 = scalar_lea.vmem [#allocation0], 321
    %v425 = vld [vmem:[%s424] ss:$8 sm:$0xf0]
    %vm426 = vcmask 1047556
    %v427 = vsel %vm426, %v425, %v423
    %428 = vrot.lane.b32.xlu0 %v427, 8
    %v429 = vpop.permute.xlu0 %428
    %vm430 = vcmask 130112
    %s431 = scalar_lea.vmem %s1, 40
    %432 = vst.msk [vmem:[%s431] sm:$0xff] %vm430, %v429
    %s433 = scalar_lea.vmem [#allocation0], 129
    %v434 = vld [vmem:[%s433] ss:$8 sm:$0xf]
    %s435 = scalar_lea.vmem [#allocation0], 129
    %v436 = vld [vmem:[%s435] ss:$8 sm:$0xf0]
    %vm437 = vcmask 1047556
    %v438 = vsel %vm437, %v436, %v434
    %439 = vrot.lane.b32.xlu0 %v438, 8
    %v440 = vpop.permute.xlu0 %439
    %vm441 = vcmask 130112
    %s442 = scalar_lea.vmem %s1, 16
    %443 = vst.msk [vmem:[%s442] sm:$0xff] %vm441, %v440
    %s444 = scalar_lea.vmem [#allocation0], 385
    %v445 = vld [vmem:[%s444] ss:$8 sm:$0xf]
    %s446 = scalar_lea.vmem [#allocation0], 385
    %v447 = vld [vmem:[%s446] ss:$8 sm:$0xf0]
    %vm448 = vcmask 1047556
    %v449 = vsel %vm448, %v447, %v445
    %450 = vrot.lane.b32.xlu0 %v449, 8
    %v451 = vpop.permute.xlu0 %450
    %vm452 = vcmask 130112
    %s453 = scalar_lea.vmem %s1, 48
    %454 = vst.msk [vmem:[%s453] sm:$0xff] %vm452, %v451
    %s455 = scalar_lea.vmem [#allocation0], 193
    %v456 = vld [vmem:[%s455] ss:$8 sm:$0xf]
    %s457 = scalar_lea.vmem [#allocation0], 193
    %v458 = vld [vmem:[%s457] ss:$8 sm:$0xf0]
    %vm459 = vcmask 1047556
    %v460 = vsel %vm459, %v458, %v456
    %461 = vrot.lane.b32.xlu0 %v460, 8
    %v462 = vpop.permute.xlu0 %461
    %vm463 = vcmask 130112
    %s464 = scalar_lea.vmem %s1, 24
    %465 = vst.msk [vmem:[%s464] sm:$0xff] %vm463, %v462
    %s466 = scalar_lea.vmem [#allocation0], 449
    %v467 = vld [vmem:[%s466] ss:$8 sm:$0xf]
    %s468 = scalar_lea.vmem [#allocation0], 449
    %v469 = vld [vmem:[%s468] ss:$8 sm:$0xf0]
    %vm470 = vcmask 1047556
    %v471 = vsel %vm470, %v469, %v467
    %472 = vrot.lane.b32.xlu0 %v471, 8
    %v473 = vpop.permute.xlu0 %472
    %vm474 = vcmask 130112
    %s475 = scalar_lea.vmem %s1, 56
    %476 = vst.msk [vmem:[%s475] sm:$0xff] %vm474, %v473

// kernel: seq2seq_t5_forward.1
$region0: #{seq2seq_t5_forward.1}
  #allocation0 [shape = 'u32[]', space=smem, size = 0x4, offset = 0x4, fixed_abs, tag = 'smem constant byte address 0x4 - core index']
  #allocation1 [shape = 'u32[144,128]{1,0:T(1,128)}', space=vmem, size = 0x12000, scoped, tag = 'internal scratch']
  %s0 = inlined_call_operand.smem [shape: u32[32], index: -1, kind: input, shape index: {}]
  %s1 = sld [smem:[%s0]]
  %s2 = scalar_lea.smem %s0, 1
  %s3 = sld [smem:[%s2]]
  %s4 = scalar_lea.smem %s0, 2
  %s5 = sld [smem:[%s4]]
  %s6 = scalar_lea.smem %s0, 3
  %s7 = sld [smem:[%s6]]
  %s8 = scalar_lea.smem %s0, 4
  %s9 = sld [smem:[%s8]]
  %s10 = scalar_lea.smem %s0, 5
  %s11 = sld [smem:[%s10]]
  %s12 = scalar_lea.smem %s0, 6
  %s13 = sld [smem:[%s12]]
  %s14 = scalar_lea.smem %s0, 7
  %s15 = sld [smem:[%s14]]
  %s16 = scalar_lea.smem %s0, 8
  %s17 = sld [smem:[%s16]]
  %s18 = scalar_lea.smem %s0, 9
  %s19 = sld [smem:[%s18]]
  %s20 = scalar_lea.smem %s0, 10
  %s21 = sld [smem:[%s20]]
  %s22 = scalar_lea.smem %s0, 11
  %s23 = sld [smem:[%s22]]
  %s24 = scalar_lea.smem %s0, 12
  %s25 = sld [smem:[%s24]]
  %s26 = scalar_lea.smem %s0, 13
  %s27 = sld [smem:[%s26]]
  %s28 = scalar_lea.smem %s0, 14
  %s29 = sld [smem:[%s28]]
  %s30 = scalar_lea.smem %s0, 15
  %s31 = sld [smem:[%s30]]
  %s32 = scalar_lea.smem %s0, 16
  %s33 = sld [smem:[%s32]]
  %s34 = scalar_lea.smem %s0, 17
  %s35 = sld [smem:[%s34]]
  %s36 = scalar_lea.smem %s0, 18
  %s37 = sld [smem:[%s36]]
  %s38 = scalar_lea.smem %s0, 19
  %s39 = sld [smem:[%s38]]
  %s40 = scalar_lea.smem %s0, 20
  %s41 = sld [smem:[%s40]]
  %s42 = scalar_lea.smem %s0, 21
  %s43 = sld [smem:[%s42]]
  %s44 = scalar_lea.smem %s0, 22
  %s45 = sld [smem:[%s44]]
  %s46 = scalar_lea.smem %s0, 23
  %s47 = sld [smem:[%s46]]
  %s48 = scalar_lea.smem %s0, 24
  %s49 = sld [smem:[%s48]]
  %s50 = scalar_lea.smem %s0, 25
  %s51 = sld [smem:[%s50]]
  %s52 = scalar_lea.smem %s0, 26
  %s53 = sld [smem:[%s52]]
  %s54 = scalar_lea.smem %s0, 27
  %s55 = sld [smem:[%s54]]
  %s56 = scalar_lea.smem %s0, 28
  %s57 = sld [smem:[%s56]]
  %s58 = scalar_lea.smem %s0, 29
  %s59 = sld [smem:[%s58]]
  %s60 = scalar_lea.smem %s0, 30
  %s61 = sld [smem:[%s60]]
  %s62 = scalar_lea.smem %s0, 31
  %s63 = sld [smem:[%s62]]
  %64 = xla_tuple %s61, %s63
  %s65 = sld [smem:[#allocation0]]
  $region138: #{seq2seq_t5_forward.1} parent=0
    _
  %s67 = ssub.s32 1, %s65
  %s68 = scalar_select 0, %s67, %s65
  $region1: #{seq2seq_t5_forward.1} parent=0
    #allocation2 [shape = 'u8[512]{0}', space=vmem, size = 0x400, scoped, tag = 'output window, operand 1, single buffered']
    #allocation3 [shape = 's32[1]{0}', space=sflag, size = 0x4, scoped, tag = 'scoped memory for seq2seq_t5_forward.1']
    %69 = vsyncpa [#allocation3], 0
    // Predicated region
    $region2: #{seq2seq_t5_forward.1} parent=1 // pred_check
      _
    $region3: #{seq2seq_t5_forward.1} parent=1 // pred_check_branch
      %71 = sbr.rel (0) target = $region5
    $region4: #{seq2seq_t5_forward.1} parent=1 // pred_region
      _
    $region5: #{seq2seq_t5_forward.1} parent=1 // pred_fallthru
      _
    // Predicated region
    $region6: #{seq2seq_t5_forward.1} parent=1 // pred_check
      _
    $region7: #{seq2seq_t5_forward.1} parent=1 // pred_check_branch
      %73 = sbr.rel (0) target = $region9
    $region8: #{seq2seq_t5_forward.1} parent=1 // pred_region
      _
    $region9: #{seq2seq_t5_forward.1} parent=1 // pred_fallthru
      _
    // Predicated region
    $region10: #{seq2seq_t5_forward.1} parent=1 // pred_check
      _
    $region11: #{seq2seq_t5_forward.1} parent=1 // pred_check_branch
      %75 = sbr.rel (0) target = $region13
    $region12: #{seq2seq_t5_forward.1} parent=1 // pred_region
      _
    $region13: #{seq2seq_t5_forward.1} parent=1 // pred_fallthru
      _
    // Predicated region
    $region14: #{seq2seq_t5_forward.1} parent=1 // pred_check
      _
    $region15: #{seq2seq_t5_forward.1} parent=1 // pred_check_branch
      %77 = sbr.rel (0) target = $region17
    $region16: #{seq2seq_t5_forward.1} parent=1 // pred_region
      _
    $region17: #{seq2seq_t5_forward.1} parent=1 // pred_fallthru
      _
    // Predicated region
    $region18: #{seq2seq_t5_forward.1} parent=1 // pred_check
      _
    $region19: #{seq2seq_t5_forward.1} parent=1 // pred_check_branch
      %79 = sbr.rel (0) target = $region21
    $region20: #{seq2seq_t5_forward.1} parent=1 // pred_region
      _
    $region21: #{seq2seq_t5_forward.1} parent=1 // pred_fallthru
      _
    // Predicated region
    $region22: #{seq2seq_t5_forward.1} parent=1 // pred_check
      _
    $region23: #{seq2seq_t5_forward.1} parent=1 // pred_check_branch
      %81 = sbr.rel (0) target = $region25
    $region24: #{seq2seq_t5_forward.1} parent=1 // pred_region
      _
    $region25: #{seq2seq_t5_forward.1} parent=1 // pred_fallthru
      _
    // Predicated region
    $region26: #{seq2seq_t5_forward.1} parent=1 // pred_check
      _
    $region27: #{seq2seq_t5_forward.1} parent=1 // pred_check_branch
      %83 = sbr.rel (0) target = $region29
    $region28: #{seq2seq_t5_forward.1} parent=1 // pred_region
      _
    $region29: #{seq2seq_t5_forward.1} parent=1 // pred_fallthru
      _
    // Predicated region
    $region30: #{seq2seq_t5_forward.1} parent=1 // pred_check
      _
    $region31: #{seq2seq_t5_forward.1} parent=1 // pred_check_branch
      %85 = sbr.rel (0) target = $region33
    $region32: #{seq2seq_t5_forward.1} parent=1 // pred_region
      _
    $region33: #{seq2seq_t5_forward.1} parent=1 // pred_fallthru
      _
    // Predicated region
    $region34: #{seq2seq_t5_forward.1} parent=1 // pred_check
      _
    $region35: #{seq2seq_t5_forward.1} parent=1 // pred_check_branch
      %87 = sbr.rel (0) target = $region37
    $region36: #{seq2seq_t5_forward.1} parent=1 // pred_region
      _
    $region37: #{seq2seq_t5_forward.1} parent=1 // pred_fallthru
      _
    // Predicated region
    $region38: #{seq2seq_t5_forward.1} parent=1 // pred_check
      _
    $region39: #{seq2seq_t5_forward.1} parent=1 // pred_check_branch
      %89 = sbr.rel (0) target = $region41
    $region40: #{seq2seq_t5_forward.1} parent=1 // pred_region
      _
    $region41: #{seq2seq_t5_forward.1} parent=1 // pred_fallthru
      _
    // Predicated region
    $region42: #{seq2seq_t5_forward.1} parent=1 // pred_check
      _
    $region43: #{seq2seq_t5_forward.1} parent=1 // pred_check_branch
      %91 = sbr.rel (0) target = $region45
    $region44: #{seq2seq_t5_forward.1} parent=1 // pred_region
      _
    $region45: #{seq2seq_t5_forward.1} parent=1 // pred_fallthru
      _
    // Predicated region
    $region46: #{seq2seq_t5_forward.1} parent=1 // pred_check
      _
    $region47: #{seq2seq_t5_forward.1} parent=1 // pred_check_branch
      %93 = sbr.rel (0) target = $region49
    $region48: #{seq2seq_t5_forward.1} parent=1 // pred_region
      _
    $region49: #{seq2seq_t5_forward.1} parent=1 // pred_fallthru
      _
    // Predicated region
    $region50: #{seq2seq_t5_forward.1} parent=1 // pred_check
      _
    $region51: #{seq2seq_t5_forward.1} parent=1 // pred_check_branch
      %95 = sbr.rel (0) target = $region53
    $region52: #{seq2seq_t5_forward.1} parent=1 // pred_region
      _
    $region53: #{seq2seq_t5_forward.1} parent=1 // pred_fallthru
      _
    // Predicated region
    $region54: #{seq2seq_t5_forward.1} parent=1 // pred_check
      _
    $region55: #{seq2seq_t5_forward.1} parent=1 // pred_check_branch
      %97 = sbr.rel (0) target = $region57
    $region56: #{seq2seq_t5_forward.1} parent=1 // pred_region
      _
    $region57: #{seq2seq_t5_forward.1} parent=1 // pred_fallthru
      _
    // Predicated region
    $region58: #{seq2seq_t5_forward.1} parent=1 // pred_check
      _
    $region59: #{seq2seq_t5_forward.1} parent=1 // pred_check_branch
      %99 = sbr.rel (0) target = $region61
    $region60: #{seq2seq_t5_forward.1} parent=1 // pred_region
      _
    $region61: #{seq2seq_t5_forward.1} parent=1 // pred_fallthru
      _
    // Predicated region
    $region62: #{seq2seq_t5_forward.1} parent=1 // pred_check
      _
    $region63: #{seq2seq_t5_forward.1} parent=1 // pred_check_branch
      %101 = sbr.rel (0) target = $region65
    $region64: #{seq2seq_t5_forward.1} parent=1 // pred_region
      _
    $region65: #{seq2seq_t5_forward.1} parent=1 // pred_fallthru
      _
    // Predicated region
    $region66: #{seq2seq_t5_forward.1} parent=1 // pred_check
      _
    $region67: #{seq2seq_t5_forward.1} parent=1 // pred_check_branch
      %103 = sbr.rel (0) target = $region69
    $region68: #{seq2seq_t5_forward.1} parent=1 // pred_region
      _
    $region69: #{seq2seq_t5_forward.1} parent=1 // pred_fallthru
      _
    // Predicated region
    $region70: #{seq2seq_t5_forward.1} parent=1 // pred_check
      _
    $region71: #{seq2seq_t5_forward.1} parent=1 // pred_check_branch
      %105 = sbr.rel (0) target = $region73
    $region72: #{seq2seq_t5_forward.1} parent=1 // pred_region
      _
    $region73: #{seq2seq_t5_forward.1} parent=1 // pred_fallthru
      _
    // Predicated region
    $region74: #{seq2seq_t5_forward.1} parent=1 // pred_check
      _
    $region75: #{seq2seq_t5_forward.1} parent=1 // pred_check_branch
      %107 = sbr.rel (0) target = $region77
    $region76: #{seq2seq_t5_forward.1} parent=1 // pred_region
      _
    $region77: #{seq2seq_t5_forward.1} parent=1 // pred_fallthru
      _
    // Predicated region
    $region78: #{seq2seq_t5_forward.1} parent=1 // pred_check
      _
    $region79: #{seq2seq_t5_forward.1} parent=1 // pred_check_branch
      %109 = sbr.rel (0) target = $region81
    $region80: #{seq2seq_t5_forward.1} parent=1 // pred_region
      _
    $region81: #{seq2seq_t5_forward.1} parent=1 // pred_fallthru
      _
    // Predicated region
    $region82: #{seq2seq_t5_forward.1} parent=1 // pred_check
      _
    $region83: #{seq2seq_t5_forward.1} parent=1 // pred_check_branch
      %111 = sbr.rel (0) target = $region85
    $region84: #{seq2seq_t5_forward.1} parent=1 // pred_region
      _
    $region85: #{seq2seq_t5_forward.1} parent=1 // pred_fallthru
      _
    // Predicated region
    $region86: #{seq2seq_t5_forward.1} parent=1 // pred_check
      _
    $region87: #{seq2seq_t5_forward.1} parent=1 // pred_check_branch
      %113 = sbr.rel (0) target = $region89
    $region88: #{seq2seq_t5_forward.1} parent=1 // pred_region
      _
    $region89: #{seq2seq_t5_forward.1} parent=1 // pred_fallthru
      _
    // Predicated region
    $region90: #{seq2seq_t5_forward.1} parent=1 // pred_check
      _
    $region91: #{seq2seq_t5_forward.1} parent=1 // pred_check_branch
      %115 = sbr.rel (0) target = $region93
    $region92: #{seq2seq_t5_forward.1} parent=1 // pred_region
      _
    $region93: #{seq2seq_t5_forward.1} parent=1 // pred_fallthru
      _
    // Predicated region
    $region94: #{seq2seq_t5_forward.1} parent=1 // pred_check
      _
    $region95: #{seq2seq_t5_forward.1} parent=1 // pred_check_branch
      %117 = sbr.rel (0) target = $region97
    $region96: #{seq2seq_t5_forward.1} parent=1 // pred_region
      _
    $region97: #{seq2seq_t5_forward.1} parent=1 // pred_fallthru
      _
    // Predicated region
    $region98: #{seq2seq_t5_forward.1} parent=1 // pred_check
      _
    $region99: #{seq2seq_t5_forward.1} parent=1 // pred_check_branch
      %119 = sbr.rel (0) target = $region101
    $region100: #{seq2seq_t5_forward.1} parent=1 // pred_region
      _
    $region101: #{seq2seq_t5_forward.1} parent=1 // pred_fallthru
      _
    // Predicated region
    $region102: #{seq2seq_t5_forward.1} parent=1 // pred_check
      _
    $region103: #{seq2seq_t5_forward.1} parent=1 // pred_check_branch
      %121 = sbr.rel (0) target = $region105
    $region104: #{seq2seq_t5_forward.1} parent=1 // pred_region
      _
    $region105: #{seq2seq_t5_forward.1} parent=1 // pred_fallthru
      _
    // Predicated region
    $region106: #{seq2seq_t5_forward.1} parent=1 // pred_check
      _
    $region107: #{seq2seq_t5_forward.1} parent=1 // pred_check_branch
      %123 = sbr.rel (0) target = $region109
    $region108: #{seq2seq_t5_forward.1} parent=1 // pred_region
      _
    $region109: #{seq2seq_t5_forward.1} parent=1 // pred_fallthru
      _
    // Predicated region
    $region110: #{seq2seq_t5_forward.1} parent=1 // pred_check
      _
    $region111: #{seq2seq_t5_forward.1} parent=1 // pred_check_branch
      %125 = sbr.rel (0) target = $region113
    $region112: #{seq2seq_t5_forward.1} parent=1 // pred_region
      _
    $region113: #{seq2seq_t5_forward.1} parent=1 // pred_fallthru
      _
    // Predicated region
    $region114: #{seq2seq_t5_forward.1} parent=1 // pred_check
      _
    $region115: #{seq2seq_t5_forward.1} parent=1 // pred_check_branch
      %127 = sbr.rel (0) target = $region117
    $region116: #{seq2seq_t5_forward.1} parent=1 // pred_region
      _
    $region117: #{seq2seq_t5_forward.1} parent=1 // pred_fallthru
      _
    // Predicated region
    $region118: #{seq2seq_t5_forward.1} parent=1 // pred_check
      _
    $region119: #{seq2seq_t5_forward.1} parent=1 // pred_check_branch
      %129 = sbr.rel (0) target = $region121
    $region120: #{seq2seq_t5_forward.1} parent=1 // pred_region
      _
    $region121: #{seq2seq_t5_forward.1} parent=1 // pred_fallthru
      _
    %v130 = vld [vmem:[%s7] sm:$0xff]
    %v131 = vld [vmem:[%s7 + $0x8] sm:$0xff]
    %v132 = vld [vmem:[%s7 + $0x10] sm:$0xff]
    %v133 = vld [vmem:[%s7 + $0x18] sm:$0xff]
    %v134 = vld [vmem:[%s7 + $0x20] sm:$0xff]
    %v135 = vld [vmem:[%s7 + $0x28] sm:$0xff]
    %v136 = vld [vmem:[%s7 + $0x30] sm:$0xff]
    %v137 = vld [vmem:[%s7 + $0x38] sm:$0xff]
    %v138 = vld [vmem:[%s9] sm:$0xff]
    %v139 = vld [vmem:[%s9 + $0x8] sm:$0xff]
    %v140 = vld [vmem:[%s9 + $0x10] sm:$0xff]
    %v141 = vld [vmem:[%s9 + $0x18] sm:$0xff]
    %v142 = vld [vmem:[%s9 + $0x20] sm:$0xff]
    %v143 = vld [vmem:[%s9 + $0x28] sm:$0xff]
    %v144 = vld [vmem:[%s9 + $0x30] sm:$0xff]
    %v145 = vld [vmem:[%s9 + $0x38] sm:$0xff]
    %v146 = vld [vmem:[%s11] sm:$0xff]
    %v147 = vld [vmem:[%s11 + $0x8] sm:$0xff]
    %v148 = vld [vmem:[%s1] sm:$0xff]
    %v149 = vld [vmem:[%s1 + $0x8] sm:$0xff]
    %v150 = vld [vmem:[%s13] sm:$0x1]
    %v151 = vmul.f32 %v148, %v148
    %v152 = vmul.f32 %v149, %v149
    %vm153 = vcmask 261120
    %v154 = vsel %vm153, %v151, 0.0
    %155 = vadd.xlane.f32.xlu0 %v154
    %v156 = vpop.xlane.xlu0 %155
    %v157 = vsel %vm153, %v152, 0.0
    %158 = vadd.xlane.f32.xlu0 %v157
    %v159 = vpop.xlane.xlu0 %158
    %v160 = vrcp.pop 32.0
    %v161 = vmul.f32 %v156, %v160
    %v162 = vmul.f32 %v159, %v160
    %v163 = vadd.f32 %v161, 1e-06
    %v164 = vadd.f32 %v162, 1e-06
    %v165 = vrsqrt.pop %v163
    %v166 = vrsqrt.pop %v164
    %v167 = vmul.f32 %v148, %v165
    %v168 = vmul.f32 %v149, %v166
    %v170 = vlaneseq
    %v171 = vshrl.u32 %v170, 7
    %v172 = vsub.s32 0, %v171
    %v173 = vrot.slane %v150, %v172
    %v175 = vmul.f32 %v167, %v173
    %v176 = vmul.f32 %v168, %v173
    %v177 = vld [vmem:[%s15] sm:$0xff]
    %v178 = vld [vmem:[%s15 + $0x8] sm:$0xff]
    %v179 = vld [vmem:[%s15 + $0x10] sm:$0xff]
    %v180 = vld [vmem:[%s15 + $0x18] sm:$0xff]
    %v181 = vld [vmem:[%s17] sm:$0xff]
    %v182 = vld [vmem:[%s17 + $0x8] sm:$0xff]
    %v183 = vld [vmem:[%s17 + $0x10] sm:$0xff]
    %v184 = vld [vmem:[%s17 + $0x18] sm:$0xff]
    %v185 = vld [vmem:[%s19] sm:$0xff]
    %v186 = vld [vmem:[%s19 + $0x8] sm:$0xff]
    %v187 = vld [vmem:[%s19 + $0x10] sm:$0xff]
    %v188 = vld [vmem:[%s19 + $0x18] sm:$0xff]
    %v189 = vld [vmem:[%s21] sm:$0xff]
    %v190 = vld [vmem:[%s21 + $0x8] sm:$0xff]
    %v191 = vld [vmem:[%s21 + $0x10] sm:$0xff]
    %v192 = vld [vmem:[%s21 + $0x18] sm:$0xff]
    %v194 = vsel %vm153, %v175, 0
    %v197 = vsel %vm153, %v176, 0
    %199 = vmatprep.subr.mxu0 0.0
    %200 = vmatpush1.msra.mxu0 0.0
    %201 = vmatprep.subr.mxu0 0.0
    %202 = vmatpush1.msra.mxu0 0.0
    %203 = vmatprep.subr.mxu0 0.0
    %204 = vmatpush1.msra.mxu0 0.0
    %205 = vmatprep.subr.mxu0 0.0
    %206 = vmatpush1.msra.mxu0 0.0
    %207 = vmatprep.subr.mxu0 0.0
    %208 = vmatpush1.msra.mxu0 0.0
    %209 = vmatprep.subr.mxu0 0.0
    %210 = vmatpush1.msra.mxu0 0.0
    %211 = vmatprep.subr.mxu0 0.0
    %212 = vmatpush1.msra.mxu0 0.0
    %213 = vmatprep.subr.mxu0 0.0
    %214 = vmatpush1.msra.mxu0 0.0
    %215 = vmatprep.subr.mxu0 0.0
    %216 = vmatpush1.msra.mxu0 0.0
    %217 = vmatprep.subr.mxu0 0.0
    %218 = vmatpush1.msra.mxu0 0.0
    %219 = vmatprep.subr.mxu0 0.0
    %220 = vmatpush1.msra.mxu0 0.0
    %221 = vmatprep.subr.mxu0 0.0
    %222 = vmatpush1.msra.mxu0 0.0
    %223 = vmatprep.subr.mxu0 0.0
    %224 = vmatpush1.msra.mxu0 %v180
    %225 = vmatprep.subr.mxu0 0.0
    %226 = vmatpush1.msra.mxu0 %v179
    %227 = vmatprep.subr.mxu0 0.0
    %228 = vmatpush1.msra.mxu0 %v178
    %229 = vmatprep.subr.mxu0 0.0
    %230 = vmatpush1.msra.mxu0 %v177
    %231 = vmatprep.subr.mxu0 0.0
    %232 = vmatpush2.msra.mxu0 0.0
    %233 = vmatprep.subr.mxu0 0.0
    %234 = vmatpush2.msra.mxu0 0.0
    %235 = vmatprep.subr.mxu0 0.0
    %236 = vmatpush2.msra.mxu0 0.0
    %237 = vmatprep.subr.mxu0 0.0
    %238 = vmatpush2.msra.mxu0 0.0
    %239 = vmatprep.subr.mxu0 0.0
    %240 = vmatpush2.msra.mxu0 0.0
    %241 = vmatprep.subr.mxu0 0.0
    %242 = vmatpush2.msra.mxu0 0.0
    %243 = vmatprep.subr.mxu0 0.0
    %244 = vmatpush2.msra.mxu0 0.0
    %245 = vmatprep.subr.mxu0 0.0
    %246 = vmatpush2.msra.mxu0 0.0
    %247 = vmatprep.subr.mxu0 0.0
    %248 = vmatpush2.msra.mxu0 0.0
    %249 = vmatprep.subr.mxu0 0.0
    %250 = vmatpush2.msra.mxu0 0.0
    %251 = vmatprep.subr.mxu0 0.0
    %252 = vmatpush2.msra.mxu0 0.0
    %253 = vmatprep.subr.mxu0 0.0
    %254 = vmatpush2.msra.mxu0 0.0
    %255 = vmatprep.subr.mxu0 0.0
    %256 = vmatpush2.msra.mxu0 0.0
    %257 = vmatprep.subr.mxu0 0.0
    %258 = vmatpush2.msra.mxu0 0.0
    %259 = vmatprep.subr.mxu0 0.0
    %260 = vmatpush2.msra.mxu0 0.0
    %261 = vmatprep.subr.mxu0 0.0
    %262 = vmatpush2.msra.mxu0 0.0
    %263 = vmatprep.mubr.f32.mxu0 0.0
    %264 = vmatmul.mubr.f32.gmra.mxu0 %v194
    %v265 = vpop.f32.mrf.mxu0
    %v266 = vadd.f32 0.0, %v265
    %v267 = vpop.f32.mrf.mxu0
    %268 = vmatprep.mubr.f32.mxu0 0.0
    %269 = vmatmul.mubr.f32.gmra.mxu0 %v197
    %v270 = vpop.f32.mrf.mxu0
    %v271 = vadd.f32 0.0, %v270
    %v272 = vpop.f32.mrf.mxu0
    %273 = vdwg.mxu0
    %274 = vmatprep.subr.mxu0 0.0
    %275 = vmatpush1.msra.mxu0 0.0
    %276 = vmatprep.subr.mxu0 0.0
    %277 = vmatpush1.msra.mxu0 0.0
    %278 = vmatprep.subr.mxu0 0.0
    %279 = vmatpush1.msra.mxu0 0.0
    %280 = vmatprep.subr.mxu0 0.0
    %281 = vmatpush1.msra.mxu0 0.0
    %282 = vmatprep.subr.mxu0 0.0
    %283 = vmatpush1.msra.mxu0 0.0
    %284 = vmatprep.subr.mxu0 0.0
    %285 = vmatpush1.msra.mxu0 0.0
    %286 = vmatprep.subr.mxu0 0.0
    %287 = vmatpush1.msra.mxu0 0.0
    %288 = vmatprep.subr.mxu0 0.0
    %289 = vmatpush1.msra.mxu0 0.0
    %290 = vmatprep.subr.mxu0 0.0
    %291 = vmatpush1.msra.mxu0 0.0
    %292 = vmatprep.subr.mxu0 0.0
    %293 = vmatpush1.msra.mxu0 0.0
    %294 = vmatprep.subr.mxu0 0.0
    %295 = vmatpush1.msra.mxu0 0.0
    %296 = vmatprep.subr.mxu0 0.0
    %297 = vmatpush1.msra.mxu0 0.0
    %298 = vmatprep.subr.mxu0 0.0
    %299 = vmatpush1.msra.mxu0 %v184
    %300 = vmatprep.subr.mxu0 0.0
    %301 = vmatpush1.msra.mxu0 %v183
    %302 = vmatprep.subr.mxu0 0.0
    %303 = vmatpush1.msra.mxu0 %v182
    %304 = vmatprep.subr.mxu0 0.0
    %305 = vmatpush1.msra.mxu0 %v181
    %306 = vmatprep.subr.mxu0 0.0
    %307 = vmatpush2.msra.mxu0 0.0
    %308 = vmatprep.subr.mxu0 0.0
    %309 = vmatpush2.msra.mxu0 0.0
    %310 = vmatprep.subr.mxu0 0.0
    %311 = vmatpush2.msra.mxu0 0.0
    %312 = vmatprep.subr.mxu0 0.0
    %313 = vmatpush2.msra.mxu0 0.0
    %314 = vmatprep.subr.mxu0 0.0
    %315 = vmatpush2.msra.mxu0 0.0
    %316 = vmatprep.subr.mxu0 0.0
    %317 = vmatpush2.msra.mxu0 0.0
    %318 = vmatprep.subr.mxu0 0.0
    %319 = vmatpush2.msra.mxu0 0.0
    %320 = vmatprep.subr.mxu0 0.0
    %321 = vmatpush2.msra.mxu0 0.0
    %322 = vmatprep.subr.mxu0 0.0
    %323 = vmatpush2.msra.mxu0 0.0
    %324 = vmatprep.subr.mxu0 0.0
    %325 = vmatpush2.msra.mxu0 0.0
    %326 = vmatprep.subr.mxu0 0.0
    %327 = vmatpush2.msra.mxu0 0.0
    %328 = vmatprep.subr.mxu0 0.0
    %329 = vmatpush2.msra.mxu0 0.0
    %330 = vmatprep.subr.mxu0 0.0
    %331 = vmatpush2.msra.mxu0 0.0
    %332 = vmatprep.subr.mxu0 0.0
    %333 = vmatpush2.msra.mxu0 0.0
    %334 = vmatprep.subr.mxu0 0.0
    %335 = vmatpush2.msra.mxu0 0.0
    %336 = vmatprep.subr.mxu0 0.0
    %337 = vmatpush2.msra.mxu0 0.0
    %338 = vmatprep.mubr.f32.mxu0 0.0
    %339 = vmatmul.mubr.f32.gmra.mxu0 %v194
    %v340 = vpop.f32.mrf.mxu0
    %v341 = vadd.f32 0.0, %v340
    %v342 = vpop.f32.mrf.mxu0
    %343 = vmatprep.mubr.f32.mxu0 0.0
    %344 = vmatmul.mubr.f32.gmra.mxu0 %v197
    %v345 = vpop.f32.mrf.mxu0
    %v346 = vadd.f32 0.0, %v345
    %v347 = vpop.f32.mrf.mxu0
    %348 = vdwg.mxu0
    %349 = vmatprep.subr.mxu0 0.0
    %350 = vmatpush1.msra.mxu0 0.0
    %351 = vmatprep.subr.mxu0 0.0
    %352 = vmatpush1.msra.mxu0 0.0
    %353 = vmatprep.subr.mxu0 0.0
    %354 = vmatpush1.msra.mxu0 0.0
    %355 = vmatprep.subr.mxu0 0.0
    %356 = vmatpush1.msra.mxu0 0.0
    %357 = vmatprep.subr.mxu0 0.0
    %358 = vmatpush1.msra.mxu0 0.0
    %359 = vmatprep.subr.mxu0 0.0
    %360 = vmatpush1.msra.mxu0 0.0
    %361 = vmatprep.subr.mxu0 0.0
    %362 = vmatpush1.msra.mxu0 0.0
    %363 = vmatprep.subr.mxu0 0.0
    %364 = vmatpush1.msra.mxu0 0.0
    %365 = vmatprep.subr.mxu0 0.0
    %366 = vmatpush1.msra.mxu0 0.0
    %367 = vmatprep.subr.mxu0 0.0
    %368 = vmatpush1.msra.mxu0 0.0
    %369 = vmatprep.subr.mxu0 0.0
    %370 = vmatpush1.msra.mxu0 0.0
    %371 = vmatprep.subr.mxu0 0.0
    %372 = vmatpush1.msra.mxu0 0.0
    %373 = vmatprep.subr.mxu0 0.0
    %374 = vmatpush1.msra.mxu0 %v188
    %375 = vmatprep.subr.mxu0 0.0
    %376 = vmatpush1.msra.mxu0 %v187
    %377 = vmatprep.subr.mxu0 0.0
    %378 = vmatpush1.msra.mxu0 %v186
    %379 = vmatprep.subr.mxu0 0.0
    %380 = vmatpush1.msra.mxu0 %v185
    %381 = vmatprep.subr.mxu0 0.0
    %382 = vmatpush2.msra.mxu0 0.0
    %383 = vmatprep.subr.mxu0 0.0
    %384 = vmatpush2.msra.mxu0 0.0
    %385 = vmatprep.subr.mxu0 0.0
    %386 = vmatpush2.msra.mxu0 0.0
    %387 = vmatprep.subr.mxu0 0.0
    %388 = vmatpush2.msra.mxu0 0.0
    %389 = vmatprep.subr.mxu0 0.0
    %390 = vmatpush2.msra.mxu0 0.0
    %391 = vmatprep.subr.mxu0 0.0
    %392 = vmatpush2.msra.mxu0 0.0
    %393 = vmatprep.subr.mxu0 0.0
    %394 = vmatpush2.msra.mxu0 0.0
    %395 = vmatprep.subr.mxu0 0.0
    %396 = vmatpush2.msra.mxu0 0.0
    %397 = vmatprep.subr.mxu0 0.0
    %398 = vmatpush2.msra.mxu0 0.0
    %399 = vmatprep.subr.mxu0 0.0
    %400 = vmatpush2.msra.mxu0 0.0
    %401 = vmatprep.subr.mxu0 0.0
    %402 = vmatpush2.msra.mxu0 0.0
    %403 = vmatprep.subr.mxu0 0.0
    %404 = vmatpush2.msra.mxu0 0.0
    %405 = vmatprep.subr.mxu0 0.0
    %406 = vmatpush2.msra.mxu0 0.0
    %407 = vmatprep.subr.mxu0 0.0
    %408 = vmatpush2.msra.mxu0 0.0
    %409 = vmatprep.subr.mxu0 0.0
    %410 = vmatpush2.msra.mxu0 0.0
    %411 = vmatprep.subr.mxu0 0.0
    %412 = vmatpush2.msra.mxu0 0.0
    %413 = vmatprep.mubr.f32.mxu0 0.0
    %414 = vmatmul.mubr.f32.gmra.mxu0 %v194
    %v415 = vpop.f32.mrf.mxu0
    %v416 = vadd.f32 0.0, %v415
    %v417 = vpop.f32.mrf.mxu0
    %418 = vmatprep.mubr.f32.mxu0 0.0
    %419 = vmatmul.mubr.f32.gmra.mxu0 %v197
    %v420 = vpop.f32.mrf.mxu0
    %v421 = vadd.f32 0.0, %v420
    %v422 = vpop.f32.mrf.mxu0
    %423 = vdwg.mxu0
    %vm424 = vcmask 64512
    %v426 = vsel %vm424, %v266, 0
    %v429 = vsel %vm424, %v271, 0
    %v432 = vsel %vm424, %v341, 0
    %v435 = vsel %vm424, %v346, 0
    %437 = vmatprep.subr.mxu0 0.0
    %438 = vmatpush1.xpose.msra.mxu0 0.0
    %439 = vmatprep.subr.mxu0 0.0
    %440 = vmatpush1.xpose.msra.mxu0 0.0
    %441 = vmatprep.subr.mxu0 0.0
    %442 = vmatpush1.xpose.msra.mxu0 0.0
    %443 = vmatprep.subr.mxu0 0.0
    %444 = vmatpush1.xpose.msra.mxu0 0.0
    %445 = vmatprep.subr.mxu0 0.0
    %446 = vmatpush1.xpose.msra.mxu0 0.0
    %447 = vmatprep.subr.mxu0 0.0
    %448 = vmatpush1.xpose.msra.mxu0 0.0
    %449 = vmatprep.subr.mxu0 0.0
    %450 = vmatpush1.xpose.msra.mxu0 0.0
    %451 = vmatprep.subr.mxu0 0.0
    %452 = vmatpush1.xpose.msra.mxu0 0.0
    %453 = vmatprep.subr.mxu0 0.0
    %454 = vmatpush1.xpose.msra.mxu0 0.0
    %455 = vmatprep.subr.mxu0 0.0
    %456 = vmatpush1.xpose.msra.mxu0 0.0
    %457 = vmatprep.subr.mxu0 0.0
    %458 = vmatpush1.xpose.msra.mxu0 0.0
    %459 = vmatprep.subr.mxu0 0.0
    %460 = vmatpush1.xpose.msra.mxu0 0.0
    %461 = vmatprep.subr.mxu0 0.0
    %462 = vmatpush1.xpose.msra.mxu0 0.0
    %463 = vmatprep.subr.mxu0 0.0
    %464 = vmatpush1.xpose.msra.mxu0 0.0
    %465 = vmatprep.subr.mxu0 0.0
    %466 = vmatpush1.xpose.msra.mxu0 %v435
    %467 = vmatprep.subr.mxu0 0.0
    %468 = vmatpush1.xpose.msra.mxu0 %v432
    %469 = vmatprep.subr.mxu0 0.0
    %470 = vmatpush2.xpose.msra.mxu0 0.0
    %471 = vmatprep.subr.mxu0 0.0
    %472 = vmatpush2.xpose.msra.mxu0 0.0
    %473 = vmatprep.subr.mxu0 0.0
    %474 = vmatpush2.xpose.msra.mxu0 0.0
    %475 = vmatprep.subr.mxu0 0.0
    %476 = vmatpush2.xpose.msra.mxu0 0.0
    %477 = vmatprep.subr.mxu0 0.0
    %478 = vmatpush2.xpose.msra.mxu0 0.0
    %479 = vmatprep.subr.mxu0 0.0
    %480 = vmatpush2.xpose.msra.mxu0 0.0
    %481 = vmatprep.subr.mxu0 0.0
    %482 = vmatpush2.xpose.msra.mxu0 0.0
    %483 = vmatprep.subr.mxu0 0.0
    %484 = vmatpush2.xpose.msra.mxu0 0.0
    %485 = vmatprep.subr.mxu0 0.0
    %486 = vmatpush2.xpose.msra.mxu0 0.0
    %487 = vmatprep.subr.mxu0 0.0
    %488 = vmatpush2.xpose.msra.mxu0 0.0
    %489 = vmatprep.subr.mxu0 0.0
    %490 = vmatpush2.xpose.msra.mxu0 0.0
    %491 = vmatprep.subr.mxu0 0.0
    %492 = vmatpush2.xpose.msra.mxu0 0.0
    %493 = vmatprep.subr.mxu0 0.0
    %494 = vmatpush2.xpose.msra.mxu0 0.0
    %495 = vmatprep.subr.mxu0 0.0
    %496 = vmatpush2.xpose.msra.mxu0 0.0
    %497 = vmatprep.subr.mxu0 0.0
    %498 = vmatpush2.xpose.msra.mxu0 0.0
    %499 = vmatprep.subr.mxu0 0.0
    %500 = vmatpush2.xpose.msra.mxu0 0.0
    %501 = vmatprep.mubr.f32.mxu0 0.0
    %502 = vmatmul.mubr.f32.gmra.mxu0 %v426
    %v503 = vpop.f32.mrf.mxu0
    %v504 = vadd.f32 %v130, %v503
    %v505 = vpop.f32.mrf.mxu0
    %506 = vmatprep.mubr.f32.mxu0 0.0
    %507 = vmatmul.mubr.f32.gmra.mxu0 %v429
    %v508 = vpop.f32.mrf.mxu0
    %v509 = vadd.f32 %v131, %v508
    %v510 = vpop.f32.mrf.mxu0
    %511 = vdwg.mxu0
    %vm512 = vcmask 130048
    %v513 = vsel %vm512, %v504, -inf
    %514 = vmax.xlane.f32.xlu0 %v513
    %v515 = vpop.xlane.xlu0 %514
    %v516 = vsel %vm512, %v509, -inf
    %517 = vmax.xlane.f32.xlu0 %v516
    %v518 = vpop.xlane.xlu0 %517
    %v519 = vsub.f32 %v504, %v515
    %v520 = vsub.f32 %v509, %v518
    %v521 = vmul.f32 %v519, 1.442695
    %v522 = vpow.pop %v521
    %v523 = vmul.f32 %v520, 1.442695
    %v524 = vpow.pop %v523
    %v525 = vsel %vm512, %v522, 0.0
    %526 = vadd.xlane.f32.xlu0 %v525
    %v527 = vpop.xlane.xlu0 %526
    %v528 = vsel %vm512, %v524, 0.0
    %529 = vadd.xlane.f32.xlu0 %v528
    %v530 = vpop.xlane.xlu0 %529
    %v531 = vrcp.pop %v527
    %v532 = vrcp.pop %v530
    %v533 = vmul.f32 %v522, %v531
    %v534 = vmul.f32 %v524, %v532
    %v536 = vsel %vm512, %v533, 0
    %v539 = vsel %vm512, %v534, 0
    %541 = vmatprep.subr.mxu0 0.0
    %542 = vmatpush1.msra.mxu0 0.0
    %543 = vmatprep.subr.mxu0 0.0
    %544 = vmatpush1.msra.mxu0 0.0
    %545 = vmatprep.subr.mxu0 0.0
    %546 = vmatpush1.msra.mxu0 0.0
    %547 = vmatprep.subr.mxu0 0.0
    %548 = vmatpush1.msra.mxu0 0.0
    %549 = vmatprep.subr.mxu0 0.0
    %550 = vmatpush1.msra.mxu0 0.0
    %551 = vmatprep.subr.mxu0 0.0
    %552 = vmatpush1.msra.mxu0 0.0
    %553 = vmatprep.subr.mxu0 0.0
    %554 = vmatpush1.msra.mxu0 0.0
    %555 = vmatprep.subr.mxu0 0.0
    %556 = vmatpush1.msra.mxu0 0.0
    %557 = vmatprep.subr.mxu0 0.0
    %558 = vmatpush1.msra.mxu0 0.0
    %559 = vmatprep.subr.mxu0 0.0
    %560 = vmatpush1.msra.mxu0 0.0
    %561 = vmatprep.subr.mxu0 0.0
    %562 = vmatpush1.msra.mxu0 0.0
    %563 = vmatprep.subr.mxu0 0.0
    %564 = vmatpush1.msra.mxu0 0.0
    %565 = vmatprep.subr.mxu0 0.0
    %566 = vmatpush1.msra.mxu0 0.0
    %567 = vmatprep.subr.mxu0 0.0
    %568 = vmatpush1.msra.mxu0 0.0
    %569 = vmatprep.subr.mxu0 0.0
    %570 = vmatpush1.msra.mxu0 %v421
    %571 = vmatprep.subr.mxu0 0.0
    %572 = vmatpush1.msra.mxu0 %v416
    %573 = vmatprep.subr.mxu0 0.0
    %574 = vmatpush2.msra.mxu0 0.0
    %575 = vmatprep.subr.mxu0 0.0
    %576 = vmatpush2.msra.mxu0 0.0
    %577 = vmatprep.subr.mxu0 0.0
    %578 = vmatpush2.msra.mxu0 0.0
    %579 = vmatprep.subr.mxu0 0.0
    %580 = vmatpush2.msra.mxu0 0.0
    %581 = vmatprep.subr.mxu0 0.0
    %582 = vmatpush2.msra.mxu0 0.0
    %583 = vmatprep.subr.mxu0 0.0
    %584 = vmatpush2.msra.mxu0 0.0
    %585 = vmatprep.subr.mxu0 0.0
    %586 = vmatpush2.msra.mxu0 0.0
    %587 = vmatprep.subr.mxu0 0.0
    %588 = vmatpush2.msra.mxu0 0.0
    %589 = vmatprep.subr.mxu0 0.0
    %590 = vmatpush2.msra.mxu0 0.0
    %591 = vmatprep.subr.mxu0 0.0
    %592 = vmatpush2.msra.mxu0 0.0
    %593 = vmatprep.subr.mxu0 0.0
    %594 = vmatpush2.msra.mxu0 0.0
    %595 = vmatprep.subr.mxu0 0.0
    %596 = vmatpush2.msra.mxu0 0.0
    %597 = vmatprep.subr.mxu0 0.0
    %598 = vmatpush2.msra.mxu0 0.0
    %599 = vmatprep.subr.mxu0 0.0
    %600 = vmatpush2.msra.mxu0 0.0
    %601 = vmatprep.subr.mxu0 0.0
    %602 = vmatpush2.msra.mxu0 0.0
    %603 = vmatprep.subr.mxu0 0.0
    %604 = vmatpush2.msra.mxu0 0.0
    %605 = vmatprep.mubr.f32.mxu0 0.0
    %606 = vmatmul.mubr.f32.gmra.mxu0 %v536
    %v607 = vpop.f32.mrf.mxu0
    %v608 = vadd.f32 0.0, %v607
    %v609 = vpop.f32.mrf.mxu0
    %610 = vmatprep.mubr.f32.mxu0 0.0
    %611 = vmatmul.mubr.f32.gmra.mxu0 %v539
    %v612 = vpop.f32.mrf.mxu0
    %v613 = vadd.f32 0.0, %v612
    %v614 = vpop.f32.mrf.mxu0
    %615 = vdwg.mxu0
    %616 = vrot.lane.b32.xlu0 %v266, 120
    %v617 = vpop.permute.xlu0 %616
    %618 = vrot.lane.b32.xlu0 %v271, 120
    %v619 = vpop.permute.xlu0 %618
    %620 = vrot.lane.b32.xlu0 %v341, 120
    %v621 = vpop.permute.xlu0 %620
    %622 = vrot.lane.b32.xlu0 %v346, 120
    %v623 = vpop.permute.xlu0 %622
    %v624 = vsel %vm424, %v617, 0
    %v626 = vsel %vm424, %v619, 0
    %v628 = vsel %vm424, %v621, 0
    %v630 = vsel %vm424, %v623, 0
    %632 = vmatprep.subr.mxu0 0.0
    %633 = vmatpush1.xpose.msra.mxu0 0.0
    %634 = vmatprep.subr.mxu0 0.0
    %635 = vmatpush1.xpose.msra.mxu0 0.0
    %636 = vmatprep.subr.mxu0 0.0
    %637 = vmatpush1.xpose.msra.mxu0 0.0
    %638 = vmatprep.subr.mxu0 0.0
    %639 = vmatpush1.xpose.msra.mxu0 0.0
    %640 = vmatprep.subr.mxu0 0.0
    %641 = vmatpush1.xpose.msra.mxu0 0.0
    %642 = vmatprep.subr.mxu0 0.0
    %643 = vmatpush1.xpose.msra.mxu0 0.0
    %644 = vmatprep.subr.mxu0 0.0
    %645 = vmatpush1.xpose.msra.mxu0 0.0
    %646 = vmatprep.subr.mxu0 0.0
    %647 = vmatpush1.xpose.msra.mxu0 0.0
    %648 = vmatprep.subr.mxu0 0.0
    %649 = vmatpush1.xpose.msra.mxu0 0.0
    %650 = vmatprep.subr.mxu0 0.0
    %651 = vmatpush1.xpose.msra.mxu0 0.0
    %652 = vmatprep.subr.mxu0 0.0
    %653 = vmatpush1.xpose.msra.mxu0 0.0
    %654 = vmatprep.subr.mxu0 0.0
    %655 = vmatpush1.xpose.msra.mxu0 0.0
    %656 = vmatprep.subr.mxu0 0.0
    %657 = vmatpush1.xpose.msra.mxu0 0.0
    %658 = vmatprep.subr.mxu0 0.0
    %659 = vmatpush1.xpose.msra.mxu0 0.0
    %660 = vmatprep.subr.mxu0 0.0
    %661 = vmatpush1.xpose.msra.mxu0 %v630
    %662 = vmatprep.subr.mxu0 0.0
    %663 = vmatpush1.xpose.msra.mxu0 %v628
    %664 = vmatprep.subr.mxu0 0.0
    %665 = vmatpush2.xpose.msra.mxu0 0.0
    %666 = vmatprep.subr.mxu0 0.0
    %667 = vmatpush2.xpose.msra.mxu0 0.0
    %668 = vmatprep.subr.mxu0 0.0
    %669 = vmatpush2.xpose.msra.mxu0 0.0
    %670 = vmatprep.subr.mxu0 0.0
    %671 = vmatpush2.xpose.msra.mxu0 0.0
    %672 = vmatprep.subr.mxu0 0.0
    %673 = vmatpush2.xpose.msra.mxu0 0.0
    %674 = vmatprep.subr.mxu0 0.0
    %675 = vmatpush2.xpose.msra.mxu0 0.0
    %676 = vmatprep.subr.mxu0 0.0
    %677 = vmatpush2.xpose.msra.mxu0 0.0
    %678 = vmatprep.subr.mxu0 0.0
    %679 = vmatpush2.xpose.msra.mxu0 0.0
    %680 = vmatprep.subr.mxu0 0.0
    %681 = vmatpush2.xpose.msra.mxu0 0.0
    %682 = vmatprep.subr.mxu0 0.0
    %683 = vmatpush2.xpose.msra.mxu0 0.0
    %684 = vmatprep.subr.mxu0 0.0
    %685 = vmatpush2.xpose.msra.mxu0 0.0
    %686 = vmatprep.subr.mxu0 0.0
    %687 = vmatpush2.xpose.msra.mxu0 0.0
    %688 = vmatprep.subr.mxu0 0.0
    %689 = vmatpush2.xpose.msra.mxu0 0.0
    %690 = vmatprep.subr.mxu0 0.0
    %691 = vmatpush2.xpose.msra.mxu0 0.0
    %692 = vmatprep.subr.mxu0 0.0
    %693 = vmatpush2.xpose.msra.mxu0 0.0
    %694 = vmatprep.subr.mxu0 0.0
    %695 = vmatpush2.xpose.msra.mxu0 0.0
    %696 = vmatprep.mubr.f32.mxu0 0.0
    %697 = vmatmul.mubr.f32.gmra.mxu0 %v624
    %v698 = vpop.f32.mrf.mxu0
    %v699 = vadd.f32 %v132, %v698
    %v700 = vpop.f32.mrf.mxu0
    %701 = vmatprep.mubr.f32.mxu0 0.0
    %702 = vmatmul.mubr.f32.gmra.mxu0 %v626
    %v703 = vpop.f32.mrf.mxu0
    %v704 = vadd.f32 %v133, %v703
    %v705 = vpop.f32.mrf.mxu0
    %706 = vdwg.mxu0
    %v707 = vsel %vm512, %v699, -inf
    %708 = vmax.xlane.f32.xlu0 %v707
    %v709 = vpop.xlane.xlu0 %708
    %v710 = vsel %vm512, %v704, -inf
    %711 = vmax.xlane.f32.xlu0 %v710
    %v712 = vpop.xlane.xlu0 %711
    %v713 = vsub.f32 %v699, %v709
    %v714 = vsub.f32 %v704, %v712
    %v715 = vmul.f32 %v713, 1.442695
    %v716 = vpow.pop %v715
    %v717 = vmul.f32 %v714, 1.442695
    %v718 = vpow.pop %v717
    %v719 = vsel %vm512, %v716, 0.0
    %720 = vadd.xlane.f32.xlu0 %v719
    %v721 = vpop.xlane.xlu0 %720
    %v722 = vsel %vm512, %v718, 0.0
    %723 = vadd.xlane.f32.xlu0 %v722
    %v724 = vpop.xlane.xlu0 %723
    %v725 = vrcp.pop %v721
    %v726 = vrcp.pop %v724
    %v727 = vmul.f32 %v716, %v725
    %v728 = vmul.f32 %v718, %v726
    %731 = vrot.lane.b32.xlu0 %v416, 120
    %v732 = vpop.permute.xlu0 %731
    %733 = vrot.lane.b32.xlu0 %v421, 120
    %v734 = vpop.permute.xlu0 %733
    %v738 = vsel %vm512, %v727, 0
    %v741 = vsel %vm512, %v728, 0
    %743 = vmatprep.subr.mxu0 0.0
    %744 = vmatpush1.msra.mxu0 0.0
    %745 = vmatprep.subr.mxu0 0.0
    %746 = vmatpush1.msra.mxu0 0.0
    %747 = vmatprep.subr.mxu0 0.0
    %748 = vmatpush1.msra.mxu0 0.0
    %749 = vmatprep.subr.mxu0 0.0
    %750 = vmatpush1.msra.mxu0 0.0
    %751 = vmatprep.subr.mxu0 0.0
    %752 = vmatpush1.msra.mxu0 0.0
    %753 = vmatprep.subr.mxu0 0.0
    %754 = vmatpush1.msra.mxu0 0.0
    %755 = vmatprep.subr.mxu0 0.0
    %756 = vmatpush1.msra.mxu0 0.0
    %757 = vmatprep.subr.mxu0 0.0
    %758 = vmatpush1.msra.mxu0 0.0
    %759 = vmatprep.subr.mxu0 0.0
    %760 = vmatpush1.msra.mxu0 0.0
    %761 = vmatprep.subr.mxu0 0.0
    %762 = vmatpush1.msra.mxu0 0.0
    %763 = vmatprep.subr.mxu0 0.0
    %764 = vmatpush1.msra.mxu0 0.0
    %765 = vmatprep.subr.mxu0 0.0
    %766 = vmatpush1.msra.mxu0 0.0
    %767 = vmatprep.subr.mxu0 0.0
    %768 = vmatpush1.msra.mxu0 0.0
    %769 = vmatprep.subr.mxu0 0.0
    %770 = vmatpush1.msra.mxu0 0.0
    %771 = vmatprep.subr.mxu0 0.0
    %772 = vmatpush1.msra.mxu0 %v734
    %773 = vmatprep.subr.mxu0 0.0
    %774 = vmatpush1.msra.mxu0 %v732
    %775 = vmatprep.subr.mxu0 0.0
    %776 = vmatpush2.msra.mxu0 0.0
    %777 = vmatprep.subr.mxu0 0.0
    %778 = vmatpush2.msra.mxu0 0.0
    %779 = vmatprep.subr.mxu0 0.0
    %780 = vmatpush2.msra.mxu0 0.0
    %781 = vmatprep.subr.mxu0 0.0
    %782 = vmatpush2.msra.mxu0 0.0
    %783 = vmatprep.subr.mxu0 0.0
    %784 = vmatpush2.msra.mxu0 0.0
    %785 = vmatprep.subr.mxu0 0.0
    %786 = vmatpush2.msra.mxu0 0.0
    %787 = vmatprep.subr.mxu0 0.0
    %788 = vmatpush2.msra.mxu0 0.0
    %789 = vmatprep.subr.mxu0 0.0
    %790 = vmatpush2.msra.mxu0 0.0
    %791 = vmatprep.subr.mxu0 0.0
    %792 = vmatpush2.msra.mxu0 0.0
    %793 = vmatprep.subr.mxu0 0.0
    %794 = vmatpush2.msra.mxu0 0.0
    %795 = vmatprep.subr.mxu0 0.0
    %796 = vmatpush2.msra.mxu0 0.0
    %797 = vmatprep.subr.mxu0 0.0
    %798 = vmatpush2.msra.mxu0 0.0
    %799 = vmatprep.subr.mxu0 0.0
    %800 = vmatpush2.msra.mxu0 0.0
    %801 = vmatprep.subr.mxu0 0.0
    %802 = vmatpush2.msra.mxu0 0.0
    %803 = vmatprep.subr.mxu0 0.0
    %804 = vmatpush2.msra.mxu0 0.0
    %805 = vmatprep.subr.mxu0 0.0
    %806 = vmatpush2.msra.mxu0 0.0
    %807 = vmatprep.mubr.f32.mxu0 0.0
    %808 = vmatmul.mubr.f32.gmra.mxu0 %v738
    %v809 = vpop.f32.mrf.mxu0
    %v810 = vadd.f32 0.0, %v809
    %v811 = vpop.f32.mrf.mxu0
    %812 = vmatprep.mubr.f32.mxu0 0.0
    %813 = vmatmul.mubr.f32.gmra.mxu0 %v741
    %v814 = vpop.f32.mrf.mxu0
    %v815 = vadd.f32 0.0, %v814
    %v816 = vpop.f32.mrf.mxu0
    %817 = vdwg.mxu0
    %818 = vrot.lane.b32.xlu0 %v266, 112
    %v819 = vpop.permute.xlu0 %818
    %820 = vrot.lane.b32.xlu0 %v271, 112
    %v821 = vpop.permute.xlu0 %820
    %822 = vrot.lane.b32.xlu0 %v341, 112
    %v823 = vpop.permute.xlu0 %822
    %824 = vrot.lane.b32.xlu0 %v346, 112
    %v825 = vpop.permute.xlu0 %824
    %v826 = vsel %vm424, %v819, 0
    %v828 = vsel %vm424, %v821, 0
    %v830 = vsel %vm424, %v823, 0
    %v832 = vsel %vm424, %v825, 0
    %834 = vmatprep.subr.mxu0 0.0
    %835 = vmatpush1.xpose.msra.mxu0 0.0
    %836 = vmatprep.subr.mxu0 0.0
    %837 = vmatpush1.xpose.msra.mxu0 0.0
    %838 = vmatprep.subr.mxu0 0.0
    %839 = vmatpush1.xpose.msra.mxu0 0.0
    %840 = vmatprep.subr.mxu0 0.0
    %841 = vmatpush1.xpose.msra.mxu0 0.0
    %842 = vmatprep.subr.mxu0 0.0
    %843 = vmatpush1.xpose.msra.mxu0 0.0
    %844 = vmatprep.subr.mxu0 0.0
    %845 = vmatpush1.xpose.msra.mxu0 0.0
    %846 = vmatprep.subr.mxu0 0.0
    %847 = vmatpush1.xpose.msra.mxu0 0.0
    %848 = vmatprep.subr.mxu0 0.0
    %849 = vmatpush1.xpose.msra.mxu0 0.0
    %850 = vmatprep.subr.mxu0 0.0
    %851 = vmatpush1.xpose.msra.mxu0 0.0
    %852 = vmatprep.subr.mxu0 0.0
    %853 = vmatpush1.xpose.msra.mxu0 0.0
    %854 = vmatprep.subr.mxu0 0.0
    %855 = vmatpush1.xpose.msra.mxu0 0.0
    %856 = vmatprep.subr.mxu0 0.0
    %857 = vmatpush1.xpose.msra.mxu0 0.0
    %858 = vmatprep.subr.mxu0 0.0
    %859 = vmatpush1.xpose.msra.mxu0 0.0
    %860 = vmatprep.subr.mxu0 0.0
    %861 = vmatpush1.xpose.msra.mxu0 0.0
    %862 = vmatprep.subr.mxu0 0.0
    %863 = vmatpush1.xpose.msra.mxu0 %v832
    %864 = vmatprep.subr.mxu0 0.0
    %865 = vmatpush1.xpose.msra.mxu0 %v830
    %866 = vmatprep.subr.mxu0 0.0
    %867 = vmatpush2.xpose.msra.mxu0 0.0
    %868 = vmatprep.subr.mxu0 0.0
    %869 = vmatpush2.xpose.msra.mxu0 0.0
    %870 = vmatprep.subr.mxu0 0.0
    %871 = vmatpush2.xpose.msra.mxu0 0.0
    %872 = vmatprep.subr.mxu0 0.0
    %873 = vmatpush2.xpose.msra.mxu0 0.0
    %874 = vmatprep.subr.mxu0 0.0
    %875 = vmatpush2.xpose.msra.mxu0 0.0
    %876 = vmatprep.subr.mxu0 0.0
    %877 = vmatpush2.xpose.msra.mxu0 0.0
    %878 = vmatprep.subr.mxu0 0.0
    %879 = vmatpush2.xpose.msra.mxu0 0.0
    %880 = vmatprep.subr.mxu0 0.0
    %881 = vmatpush2.xpose.msra.mxu0 0.0
    %882 = vmatprep.subr.mxu0 0.0
    %883 = vmatpush2.xpose.msra.mxu0 0.0
    %884 = vmatprep.subr.mxu0 0.0
    %885 = vmatpush2.xpose.msra.mxu0 0.0
    %886 = vmatprep.subr.mxu0 0.0
    %887 = vmatpush2.xpose.msra.mxu0 0.0
    %888 = vmatprep.subr.mxu0 0.0
    %889 = vmatpush2.xpose.msra.mxu0 0.0
    %890 = vmatprep.subr.mxu0 0.0
    %891 = vmatpush2.xpose.msra.mxu0 0.0
    %892 = vmatprep.subr.mxu0 0.0
    %893 = vmatpush2.xpose.msra.mxu0 0.0
    %894 = vmatprep.subr.mxu0 0.0
    %895 = vmatpush2.xpose.msra.mxu0 0.0
    %896 = vmatprep.subr.mxu0 0.0
    %897 = vmatpush2.xpose.msra.mxu0 0.0
    %898 = vmatprep.mubr.f32.mxu0 0.0
    %899 = vmatmul.mubr.f32.gmra.mxu0 %v826
    %v900 = vpop.f32.mrf.mxu0
    %v901 = vadd.f32 %v134, %v900
    %v902 = vpop.f32.mrf.mxu0
    %903 = vmatprep.mubr.f32.mxu0 0.0
    %904 = vmatmul.mubr.f32.gmra.mxu0 %v828
    %v905 = vpop.f32.mrf.mxu0
    %v906 = vadd.f32 %v135, %v905
    %v907 = vpop.f32.mrf.mxu0
    %908 = vdwg.mxu0
    %v909 = vsel %vm512, %v901, -inf
    %910 = vmax.xlane.f32.xlu0 %v909
    %v911 = vpop.xlane.xlu0 %910
    %v912 = vsel %vm512, %v906, -inf
    %913 = vmax.xlane.f32.xlu0 %v912
    %v914 = vpop.xlane.xlu0 %913
    %v915 = vsub.f32 %v901, %v911
    %v916 = vsub.f32 %v906, %v914
    %v917 = vmul.f32 %v915, 1.442695
    %v918 = vpow.pop %v917
    %v919 = vmul.f32 %v916, 1.442695
    %v920 = vpow.pop %v919
    %v921 = vsel %vm512, %v918, 0.0
    %922 = vadd.xlane.f32.xlu0 %v921
    %v923 = vpop.xlane.xlu0 %922
    %v924 = vsel %vm512, %v920, 0.0
    %925 = vadd.xlane.f32.xlu0 %v924
    %v926 = vpop.xlane.xlu0 %925
    %v927 = vrcp.pop %v923
    %v928 = vrcp.pop %v926
    %v929 = vmul.f32 %v918, %v927
    %v930 = vmul.f32 %v920, %v928
    %931 = vrot.lane.b32.xlu0 %v416, 112
    %v932 = vpop.permute.xlu0 %931
    %933 = vrot.lane.b32.xlu0 %v421, 112
    %v934 = vpop.permute.xlu0 %933
    %v938 = vsel %vm512, %v929, 0
    %v941 = vsel %vm512, %v930, 0
    %943 = vmatprep.subr.mxu0 0.0
    %944 = vmatpush1.msra.mxu0 0.0
    %945 = vmatprep.subr.mxu0 0.0
    %946 = vmatpush1.msra.mxu0 0.0
    %947 = vmatprep.subr.mxu0 0.0
    %948 = vmatpush1.msra.mxu0 0.0
    %949 = vmatprep.subr.mxu0 0.0
    %950 = vmatpush1.msra.mxu0 0.0
    %951 = vmatprep.subr.mxu0 0.0
    %952 = vmatpush1.msra.mxu0 0.0
    %953 = vmatprep.subr.mxu0 0.0
    %954 = vmatpush1.msra.mxu0 0.0
    %955 = vmatprep.subr.mxu0 0.0
    %956 = vmatpush1.msra.mxu0 0.0
    %957 = vmatprep.subr.mxu0 0.0
    %958 = vmatpush1.msra.mxu0 0.0
    %959 = vmatprep.subr.mxu0 0.0
    %960 = vmatpush1.msra.mxu0 0.0
    %961 = vmatprep.subr.mxu0 0.0
    %962 = vmatpush1.msra.mxu0 0.0
    %963 = vmatprep.subr.mxu0 0.0
    %964 = vmatpush1.msra.mxu0 0.0
    %965 = vmatprep.subr.mxu0 0.0
    %966 = vmatpush1.msra.mxu0 0.0
    %967 = vmatprep.subr.mxu0 0.0
    %968 = vmatpush1.msra.mxu0 0.0
    %969 = vmatprep.subr.mxu0 0.0
    %970 = vmatpush1.msra.mxu0 0.0
    %971 = vmatprep.subr.mxu0 0.0
    %972 = vmatpush1.msra.mxu0 %v934
    %973 = vmatprep.subr.mxu0 0.0
    %974 = vmatpush1.msra.mxu0 %v932
    %975 = vmatprep.subr.mxu0 0.0
    %976 = vmatpush2.msra.mxu0 0.0
    %977 = vmatprep.subr.mxu0 0.0
    %978 = vmatpush2.msra.mxu0 0.0
    %979 = vmatprep.subr.mxu0 0.0
    %980 = vmatpush2.msra.mxu0 0.0
    %981 = vmatprep.subr.mxu0 0.0
    %982 = vmatpush2.msra.mxu0 0.0
    %983 = vmatprep.subr.mxu0 0.0
    %984 = vmatpush2.msra.mxu0 0.0
    %985 = vmatprep.subr.mxu0 0.0
    %986 = vmatpush2.msra.mxu0 0.0
    %987 = vmatprep.subr.mxu0 0.0
    %988 = vmatpush2.msra.mxu0 0.0
    %989 = vmatprep.subr.mxu0 0.0
    %990 = vmatpush2.msra.mxu0 0.0
    %991 = vmatprep.subr.mxu0 0.0
    %992 = vmatpush2.msra.mxu0 0.0
    %993 = vmatprep.subr.mxu0 0.0
    %994 = vmatpush2.msra.mxu0 0.0
    %995 = vmatprep.subr.mxu0 0.0
    %996 = vmatpush2.msra.mxu0 0.0
    %997 = vmatprep.subr.mxu0 0.0
    %998 = vmatpush2.msra.mxu0 0.0
    %999 = vmatprep.subr.mxu0 0.0
    %1000 = vmatpush2.msra.mxu0 0.0
    %1001 = vmatprep.subr.mxu0 0.0
    %1002 = vmatpush2.msra.mxu0 0.0
    %1003 = vmatprep.subr.mxu0 0.0
    %1004 = vmatpush2.msra.mxu0 0.0
    %1005 = vmatprep.subr.mxu0 0.0
    %1006 = vmatpush2.msra.mxu0 0.0
    %1007 = vmatprep.mubr.f32.mxu0 0.0
    %1008 = vmatmul.mubr.f32.gmra.mxu0 %v938
    %v1009 = vpop.f32.mrf.mxu0
    %v1010 = vadd.f32 0.0, %v1009
    %v1011 = vpop.f32.mrf.mxu0
    %1012 = vmatprep.mubr.f32.mxu0 0.0
    %1013 = vmatmul.mubr.f32.gmra.mxu0 %v941
    %v1014 = vpop.f32.mrf.mxu0
    %v1015 = vadd.f32 0.0, %v1014
    %v1016 = vpop.f32.mrf.mxu0
    %1017 = vdwg.mxu0
    %1018 = vrot.lane.b32.xlu0 %v266, 104
    %v1019 = vpop.permute.xlu0 %1018
    %1020 = vrot.lane.b32.xlu0 %v271, 104
    %v1021 = vpop.permute.xlu0 %1020
    %1022 = vrot.lane.b32.xlu0 %v341, 104
    %v1023 = vpop.permute.xlu0 %1022
    %1024 = vrot.lane.b32.xlu0 %v346, 104
    %v1025 = vpop.permute.xlu0 %1024
    %v1026 = vsel %vm424, %v1019, 0
    %v1028 = vsel %vm424, %v1021, 0
    %v1030 = vsel %vm424, %v1023, 0
    %v1032 = vsel %vm424, %v1025, 0
    %1034 = vmatprep.subr.mxu0 0.0
    %1035 = vmatpush1.xpose.msra.mxu0 0.0
    %1036 = vmatprep.subr.mxu0 0.0
    %1037 = vmatpush1.xpose.msra.mxu0 0.0
    %1038 = vmatprep.subr.mxu0 0.0
    %1039 = vmatpush1.xpose.msra.mxu0 0.0
    %1040 = vmatprep.subr.mxu0 0.0
    %1041 = vmatpush1.xpose.msra.mxu0 0.0
    %1042 = vmatprep.subr.mxu0 0.0
    %1043 = vmatpush1.xpose.msra.mxu0 0.0
    %1044 = vmatprep.subr.mxu0 0.0
    %1045 = vmatpush1.xpose.msra.mxu0 0.0
    %1046 = vmatprep.subr.mxu0 0.0
    %1047 = vmatpush1.xpose.msra.mxu0 0.0
    %1048 = vmatprep.subr.mxu0 0.0
    %1049 = vmatpush1.xpose.msra.mxu0 0.0
    %1050 = vmatprep.subr.mxu0 0.0
    %1051 = vmatpush1.xpose.msra.mxu0 0.0
    %1052 = vmatprep.subr.mxu0 0.0
    %1053 = vmatpush1.xpose.msra.mxu0 0.0
    %1054 = vmatprep.subr.mxu0 0.0
    %1055 = vmatpush1.xpose.msra.mxu0 0.0
    %1056 = vmatprep.subr.mxu0 0.0
    %1057 = vmatpush1.xpose.msra.mxu0 0.0
    %1058 = vmatprep.subr.mxu0 0.0
    %1059 = vmatpush1.xpose.msra.mxu0 0.0
    %1060 = vmatprep.subr.mxu0 0.0
    %1061 = vmatpush1.xpose.msra.mxu0 0.0
    %1062 = vmatprep.subr.mxu0 0.0
    %1063 = vmatpush1.xpose.msra.mxu0 %v1032
    %1064 = vmatprep.subr.mxu0 0.0
    %1065 = vmatpush1.xpose.msra.mxu0 %v1030
    %1066 = vmatprep.subr.mxu0 0.0
    %1067 = vmatpush2.xpose.msra.mxu0 0.0
    %1068 = vmatprep.subr.mxu0 0.0
    %1069 = vmatpush2.xpose.msra.mxu0 0.0
    %1070 = vmatprep.subr.mxu0 0.0
    %1071 = vmatpush2.xpose.msra.mxu0 0.0
    %1072 = vmatprep.subr.mxu0 0.0
    %1073 = vmatpush2.xpose.msra.mxu0 0.0
    %1074 = vmatprep.subr.mxu0 0.0
    %1075 = vmatpush2.xpose.msra.mxu0 0.0
    %1076 = vmatprep.subr.mxu0 0.0
    %1077 = vmatpush2.xpose.msra.mxu0 0.0
    %1078 = vmatprep.subr.mxu0 0.0
    %1079 = vmatpush2.xpose.msra.mxu0 0.0
    %1080 = vmatprep.subr.mxu0 0.0
    %1081 = vmatpush2.xpose.msra.mxu0 0.0
    %1082 = vmatprep.subr.mxu0 0.0
    %1083 = vmatpush2.xpose.msra.mxu0 0.0
    %1084 = vmatprep.subr.mxu0 0.0
    %1085 = vmatpush2.xpose.msra.mxu0 0.0
    %1086 = vmatprep.subr.mxu0 0.0
    %1087 = vmatpush2.xpose.msra.mxu0 0.0
    %1088 = vmatprep.subr.mxu0 0.0
    %1089 = vmatpush2.xpose.msra.mxu0 0.0
    %1090 = vmatprep.subr.mxu0 0.0
    %1091 = vmatpush2.xpose.msra.mxu0 0.0
    %1092 = vmatprep.subr.mxu0 0.0
    %1093 = vmatpush2.xpose.msra.mxu0 0.0
    %1094 = vmatprep.subr.mxu0 0.0
    %1095 = vmatpush2.xpose.msra.mxu0 0.0
    %1096 = vmatprep.subr.mxu0 0.0
    %1097 = vmatpush2.xpose.msra.mxu0 0.0
    %1098 = vmatprep.mubr.f32.mxu0 0.0
    %1099 = vmatmul.mubr.f32.gmra.mxu0 %v1026
    %v1100 = vpop.f32.mrf.mxu0
    %v1101 = vadd.f32 %v136, %v1100
    %v1102 = vpop.f32.mrf.mxu0
    %1103 = vmatprep.mubr.f32.mxu0 0.0
    %1104 = vmatmul.mubr.f32.gmra.mxu0 %v1028
    %v1105 = vpop.f32.mrf.mxu0
    %v1106 = vadd.f32 %v137, %v1105
    %v1107 = vpop.f32.mrf.mxu0
    %1108 = vdwg.mxu0
    %v1109 = vsel %vm512, %v1101, -inf
    %1110 = vmax.xlane.f32.xlu0 %v1109
    %v1111 = vpop.xlane.xlu0 %1110
    %v1112 = vsel %vm512, %v1106, -inf
    %1113 = vmax.xlane.f32.xlu0 %v1112
    %v1114 = vpop.xlane.xlu0 %1113
    %v1115 = vsub.f32 %v1101, %v1111
    %v1116 = vsub.f32 %v1106, %v1114
    %v1117 = vmul.f32 %v1115, 1.442695
    %v1118 = vpow.pop %v1117
    %v1119 = vmul.f32 %v1116, 1.442695
    %v1120 = vpow.pop %v1119
    %v1121 = vsel %vm512, %v1118, 0.0
    %1122 = vadd.xlane.f32.xlu0 %v1121
    %v1123 = vpop.xlane.xlu0 %1122
    %v1124 = vsel %vm512, %v1120, 0.0
    %1125 = vadd.xlane.f32.xlu0 %v1124
    %v1126 = vpop.xlane.xlu0 %1125
    %v1127 = vrcp.pop %v1123
    %v1128 = vrcp.pop %v1126
    %v1129 = vmul.f32 %v1118, %v1127
    %v1130 = vmul.f32 %v1120, %v1128
    %1131 = vrot.lane.b32.xlu0 %v416, 104
    %v1132 = vpop.permute.xlu0 %1131
    %1133 = vrot.lane.b32.xlu0 %v421, 104
    %v1134 = vpop.permute.xlu0 %1133
    %v1138 = vsel %vm512, %v1129, 0
    %v1141 = vsel %vm512, %v1130, 0
    %1143 = vmatprep.subr.mxu0 0.0
    %1144 = vmatpush1.msra.mxu0 0.0
    %1145 = vmatprep.subr.mxu0 0.0
    %1146 = vmatpush1.msra.mxu0 0.0
    %1147 = vmatprep.subr.mxu0 0.0
    %1148 = vmatpush1.msra.mxu0 0.0
    %1149 = vmatprep.subr.mxu0 0.0
    %1150 = vmatpush1.msra.mxu0 0.0
    %1151 = vmatprep.subr.mxu0 0.0
    %1152 = vmatpush1.msra.mxu0 0.0
    %1153 = vmatprep.subr.mxu0 0.0
    %1154 = vmatpush1.msra.mxu0 0.0
    %1155 = vmatprep.subr.mxu0 0.0
    %1156 = vmatpush1.msra.mxu0 0.0
    %1157 = vmatprep.subr.mxu0 0.0
    %1158 = vmatpush1.msra.mxu0 0.0
    %1159 = vmatprep.subr.mxu0 0.0
    %1160 = vmatpush1.msra.mxu0 0.0
    %1161 = vmatprep.subr.mxu0 0.0
    %1162 = vmatpush1.msra.mxu0 0.0
    %1163 = vmatprep.subr.mxu0 0.0
    %1164 = vmatpush1.msra.mxu0 0.0
    %1165 = vmatprep.subr.mxu0 0.0
    %1166 = vmatpush1.msra.mxu0 0.0
    %1167 = vmatprep.subr.mxu0 0.0
    %1168 = vmatpush1.msra.mxu0 0.0
    %1169 = vmatprep.subr.mxu0 0.0
    %1170 = vmatpush1.msra.mxu0 0.0
    %1171 = vmatprep.subr.mxu0 0.0
    %1172 = vmatpush1.msra.mxu0 %v1134
    %1173 = vmatprep.subr.mxu0 0.0
    %1174 = vmatpush1.msra.mxu0 %v1132
    %1175 = vmatprep.subr.mxu0 0.0
    %1176 = vmatpush2.msra.mxu0 0.0
    %1177 = vmatprep.subr.mxu0 0.0
    %1178 = vmatpush2.msra.mxu0 0.0
    %1179 = vmatprep.subr.mxu0 0.0
    %1180 = vmatpush2.msra.mxu0 0.0
    %1181 = vmatprep.subr.mxu0 0.0
    %1182 = vmatpush2.msra.mxu0 0.0
    %1183 = vmatprep.subr.mxu0 0.0
    %1184 = vmatpush2.msra.mxu0 0.0
    %1185 = vmatprep.subr.mxu0 0.0
    %1186 = vmatpush2.msra.mxu0 0.0
    %1187 = vmatprep.subr.mxu0 0.0
    %1188 = vmatpush2.msra.mxu0 0.0
    %1189 = vmatprep.subr.mxu0 0.0
    %1190 = vmatpush2.msra.mxu0 0.0
    %1191 = vmatprep.subr.mxu0 0.0
    %1192 = vmatpush2.msra.mxu0 0.0
    %1193 = vmatprep.subr.mxu0 0.0
    %1194 = vmatpush2.msra.mxu0 0.0
    %1195 = vmatprep.subr.mxu0 0.0
    %1196 = vmatpush2.msra.mxu0 0.0
    %1197 = vmatprep.subr.mxu0 0.0
    %1198 = vmatpush2.msra.mxu0 0.0
    %1199 = vmatprep.subr.mxu0 0.0
    %1200 = vmatpush2.msra.mxu0 0.0
    %1201 = vmatprep.subr.mxu0 0.0
    %1202 = vmatpush2.msra.mxu0 0.0
    %1203 = vmatprep.subr.mxu0 0.0
    %1204 = vmatpush2.msra.mxu0 0.0
    %1205 = vmatprep.subr.mxu0 0.0
    %1206 = vmatpush2.msra.mxu0 0.0
    %1207 = vmatprep.mubr.f32.mxu0 0.0
    %1208 = vmatmul.mubr.f32.gmra.mxu0 %v1138
    %v1209 = vpop.f32.mrf.mxu0
    %v1210 = vadd.f32 0.0, %v1209
    %v1211 = vpop.f32.mrf.mxu0
    %1212 = vmatprep.mubr.f32.mxu0 0.0
    %1213 = vmatmul.mubr.f32.gmra.mxu0 %v1141
    %v1214 = vpop.f32.mrf.mxu0
    %v1215 = vadd.f32 0.0, %v1214
    %v1216 = vpop.f32.mrf.mxu0
    %1217 = vdwg.mxu0
    %1220 = vrot.lane.b32.xlu0 %v810, 8
    %v1221 = vpop.permute.xlu0 %1220
    %1222 = vrot.lane.b32.xlu0 %v815, 8
    %v1223 = vpop.permute.xlu0 %1222
    %1228 = vrot.lane.b32.xlu0 %v1010, 16
    %v1229 = vpop.permute.xlu0 %1228
    %1230 = vrot.lane.b32.xlu0 %v1015, 16
    %v1231 = vpop.permute.xlu0 %1230
    %1236 = vrot.lane.b32.xlu0 %v1210, 24
    %v1237 = vpop.permute.xlu0 %1236
    %1238 = vrot.lane.b32.xlu0 %v1215, 24
    %v1239 = vpop.permute.xlu0 %1238
    %v1242 = vsel %vm424, %v608, %v1221
    %v1243 = vsel %vm424, %v613, %v1223
    %v1244 = vsel %vm512, %v1242, %v1229
    %v1245 = vsel %vm512, %v1243, %v1231
    %vm1246 = vcmask 195584
    %v1247 = vsel %vm1246, %v1244, %v1237
    %v1248 = vsel %vm1246, %v1245, %v1239
    %v1250 = vsel %vm153, %v1247, 0
    %v1253 = vsel %vm153, %v1248, 0
    %1255 = vmatprep.subr.mxu0 0.0
    %1256 = vmatpush1.msra.mxu0 0.0
    %1257 = vmatprep.subr.mxu0 0.0
    %1258 = vmatpush1.msra.mxu0 0.0
    %1259 = vmatprep.subr.mxu0 0.0
    %1260 = vmatpush1.msra.mxu0 0.0
    %1261 = vmatprep.subr.mxu0 0.0
    %1262 = vmatpush1.msra.mxu0 0.0
    %1263 = vmatprep.subr.mxu0 0.0
    %1264 = vmatpush1.msra.mxu0 0.0
    %1265 = vmatprep.subr.mxu0 0.0
    %1266 = vmatpush1.msra.mxu0 0.0
    %1267 = vmatprep.subr.mxu0 0.0
    %1268 = vmatpush1.msra.mxu0 0.0
    %1269 = vmatprep.subr.mxu0 0.0
    %1270 = vmatpush1.msra.mxu0 0.0
    %1271 = vmatprep.subr.mxu0 0.0
    %1272 = vmatpush1.msra.mxu0 0.0
    %1273 = vmatprep.subr.mxu0 0.0
    %1274 = vmatpush1.msra.mxu0 0.0
    %1275 = vmatprep.subr.mxu0 0.0
    %1276 = vmatpush1.msra.mxu0 0.0
    %1277 = vmatprep.subr.mxu0 0.0
    %1278 = vmatpush1.msra.mxu0 0.0
    %1279 = vmatprep.subr.mxu0 0.0
    %1280 = vmatpush1.msra.mxu0 %v192
    %1281 = vmatprep.subr.mxu0 0.0
    %1282 = vmatpush1.msra.mxu0 %v191
    %1283 = vmatprep.subr.mxu0 0.0
    %1284 = vmatpush1.msra.mxu0 %v190
    %1285 = vmatprep.subr.mxu0 0.0
    %1286 = vmatpush1.msra.mxu0 %v189
    %1287 = vmatprep.subr.mxu0 0.0
    %1288 = vmatpush2.msra.mxu0 0.0
    %1289 = vmatprep.subr.mxu0 0.0
    %1290 = vmatpush2.msra.mxu0 0.0
    %1291 = vmatprep.subr.mxu0 0.0
    %1292 = vmatpush2.msra.mxu0 0.0
    %1293 = vmatprep.subr.mxu0 0.0
    %1294 = vmatpush2.msra.mxu0 0.0
    %1295 = vmatprep.subr.mxu0 0.0
    %1296 = vmatpush2.msra.mxu0 0.0
    %1297 = vmatprep.subr.mxu0 0.0
    %1298 = vmatpush2.msra.mxu0 0.0
    %1299 = vmatprep.subr.mxu0 0.0
    %1300 = vmatpush2.msra.mxu0 0.0
    %1301 = vmatprep.subr.mxu0 0.0
    %1302 = vmatpush2.msra.mxu0 0.0
    %1303 = vmatprep.subr.mxu0 0.0
    %1304 = vmatpush2.msra.mxu0 0.0
    %1305 = vmatprep.subr.mxu0 0.0
    %1306 = vmatpush2.msra.mxu0 0.0
    %1307 = vmatprep.subr.mxu0 0.0
    %1308 = vmatpush2.msra.mxu0 0.0
    %1309 = vmatprep.subr.mxu0 0.0
    %1310 = vmatpush2.msra.mxu0 0.0
    %1311 = vmatprep.subr.mxu0 0.0
    %1312 = vmatpush2.msra.mxu0 0.0
    %1313 = vmatprep.subr.mxu0 0.0
    %1314 = vmatpush2.msra.mxu0 0.0
    %1315 = vmatprep.subr.mxu0 0.0
    %1316 = vmatpush2.msra.mxu0 0.0
    %1317 = vmatprep.subr.mxu0 0.0
    %1318 = vmatpush2.msra.mxu0 0.0
    %1319 = vmatprep.mubr.f32.mxu0 0.0
    %1320 = vmatmul.mubr.f32.gmra.mxu0 %v1250
    %v1321 = vpop.f32.mrf.mxu0
    %v1322 = vadd.f32 0.0, %v1321
    %v1323 = vpop.f32.mrf.mxu0
    %1324 = vmatprep.mubr.f32.mxu0 0.0
    %1325 = vmatmul.mubr.f32.gmra.mxu0 %v1253
    %v1326 = vpop.f32.mrf.mxu0
    %v1327 = vadd.f32 0.0, %v1326
    %v1328 = vpop.f32.mrf.mxu0
    %1329 = vdwg.mxu0
    %v1330 = vadd.f32 %v148, %v1322
    %v1331 = vadd.f32 %v149, %v1327
    %v1332 = vld [vmem:[%s23] sm:$0x1]
    %v1333 = vmul.f32 %v1330, %v1330
    %v1334 = vmul.f32 %v1331, %v1331
    %v1335 = vsel %vm153, %v1333, 0.0
    %1336 = vadd.xlane.f32.xlu0 %v1335
    %v1337 = vpop.xlane.xlu0 %1336
    %v1338 = vsel %vm153, %v1334, 0.0
    %1339 = vadd.xlane.f32.xlu0 %v1338
    %v1340 = vpop.xlane.xlu0 %1339
    %v1341 = vmul.f32 %v1337, %v160
    %v1342 = vmul.f32 %v1340, %v160
    %v1343 = vadd.f32 %v1341, 1e-06
    %v1344 = vadd.f32 %v1342, 1e-06
    %v1345 = vrsqrt.pop %v1343
    %v1346 = vrsqrt.pop %v1344
    %v1347 = vmul.f32 %v1330, %v1345
    %v1348 = vmul.f32 %v1331, %v1346
    %v1350 = vlaneseq
    %v1351 = vshrl.u32 %v1350, 7
    %v1352 = vsub.s32 0, %v1351
    %v1353 = vrot.slane %v1332, %v1352
    %v1355 = vmul.f32 %v1347, %v1353
    %v1356 = vmul.f32 %v1348, %v1353
    %v1357 = vld [vmem:[%s25] sm:$0xff]
    %v1358 = vld [vmem:[%s25 + $0x8] sm:$0xff]
    %v1359 = vld [vmem:[%s25 + $0x10] sm:$0xff]
    %v1360 = vld [vmem:[%s25 + $0x18] sm:$0xff]
    %v1362 = vsel %vm153, %v1355, 0
    %v1365 = vsel %vm153, %v1356, 0
    %1367 = vmatprep.subr.mxu0 0.0
    %1368 = vmatpush1.msra.mxu0 0.0
    %1369 = vmatprep.subr.mxu0 0.0
    %1370 = vmatpush1.msra.mxu0 0.0
    %1371 = vmatprep.subr.mxu0 0.0
    %1372 = vmatpush1.msra.mxu0 0.0
    %1373 = vmatprep.subr.mxu0 0.0
    %1374 = vmatpush1.msra.mxu0 0.0
    %1375 = vmatprep.subr.mxu0 0.0
    %1376 = vmatpush1.msra.mxu0 0.0
    %1377 = vmatprep.subr.mxu0 0.0
    %1378 = vmatpush1.msra.mxu0 0.0
    %1379 = vmatprep.subr.mxu0 0.0
    %1380 = vmatpush1.msra.mxu0 0.0
    %1381 = vmatprep.subr.mxu0 0.0
    %1382 = vmatpush1.msra.mxu0 0.0
    %1383 = vmatprep.subr.mxu0 0.0
    %1384 = vmatpush1.msra.mxu0 0.0
    %1385 = vmatprep.subr.mxu0 0.0
    %1386 = vmatpush1.msra.mxu0 0.0
    %1387 = vmatprep.subr.mxu0 0.0
    %1388 = vmatpush1.msra.mxu0 0.0
    %1389 = vmatprep.subr.mxu0 0.0
    %1390 = vmatpush1.msra.mxu0 0.0
    %1391 = vmatprep.subr.mxu0 0.0
    %1392 = vmatpush1.msra.mxu0 %v1360
    %1393 = vmatprep.subr.mxu0 0.0
    %1394 = vmatpush1.msra.mxu0 %v1359
    %1395 = vmatprep.subr.mxu0 0.0
    %1396 = vmatpush1.msra.mxu0 %v1358
    %1397 = vmatprep.subr.mxu0 0.0
    %1398 = vmatpush1.msra.mxu0 %v1357
    %1399 = vmatprep.subr.mxu0 0.0
    %1400 = vmatpush2.msra.mxu0 0.0
    %1401 = vmatprep.subr.mxu0 0.0
    %1402 = vmatpush2.msra.mxu0 0.0
    %1403 = vmatprep.subr.mxu0 0.0
    %1404 = vmatpush2.msra.mxu0 0.0
    %1405 = vmatprep.subr.mxu0 0.0
    %1406 = vmatpush2.msra.mxu0 0.0
    %1407 = vmatprep.subr.mxu0 0.0
    %1408 = vmatpush2.msra.mxu0 0.0
    %1409 = vmatprep.subr.mxu0 0.0
    %1410 = vmatpush2.msra.mxu0 0.0
    %1411 = vmatprep.subr.mxu0 0.0
    %1412 = vmatpush2.msra.mxu0 0.0
    %1413 = vmatprep.subr.mxu0 0.0
    %1414 = vmatpush2.msra.mxu0 0.0
    %1415 = vmatprep.subr.mxu0 0.0
    %1416 = vmatpush2.msra.mxu0 0.0
    %1417 = vmatprep.subr.mxu0 0.0
    %1418 = vmatpush2.msra.mxu0 0.0
    %1419 = vmatprep.subr.mxu0 0.0
    %1420 = vmatpush2.msra.mxu0 0.0
    %1421 = vmatprep.subr.mxu0 0.0
    %1422 = vmatpush2.msra.mxu0 0.0
    %1423 = vmatprep.subr.mxu0 0.0
    %1424 = vmatpush2.msra.mxu0 0.0
    %1425 = vmatprep.subr.mxu0 0.0
    %1426 = vmatpush2.msra.mxu0 0.0
    %1427 = vmatprep.subr.mxu0 0.0
    %1428 = vmatpush2.msra.mxu0 0.0
    %1429 = vmatprep.subr.mxu0 0.0
    %1430 = vmatpush2.msra.mxu0 0.0
    %1431 = vmatprep.mubr.f32.mxu0 0.0
    %1432 = vmatmul.mubr.f32.gmra.mxu0 %v1362
    %v1433 = vpop.f32.mrf.mxu0
    %v1434 = vadd.f32 0.0, %v1433
    %v1435 = vpop.f32.mrf.mxu0
    %1436 = vmatprep.mubr.f32.mxu0 0.0
    %1437 = vmatmul.mubr.f32.gmra.mxu0 %v1365
    %v1438 = vpop.f32.mrf.mxu0
    %v1439 = vadd.f32 0.0, %v1438
    %v1440 = vpop.f32.mrf.mxu0
    %1441 = vdwg.mxu0
    %v1442 = vmax.f32 %v1434, 0.0
    %v1443 = vmax.f32 %v1439, 0.0
    %v1444 = vld [vmem:[%s27] sm:$0xff]
    %v1445 = vld [vmem:[%s27 + $0x8] sm:$0xff]
    %v1446 = vld [vmem:[%s27 + $0x10] sm:$0xff]
    %v1447 = vld [vmem:[%s27 + $0x18] sm:$0xff]
    %v1448 = vld [vmem:[%s27 + $0x20] sm:$0xff]
    %v1449 = vld [vmem:[%s27 + $0x28] sm:$0xff]
    %v1450 = vld [vmem:[%s27 + $0x30] sm:$0xff]
    %v1451 = vld [vmem:[%s27 + $0x38] sm:$0xff]
    %vm1452 = vcmask 523264
    %v1454 = vsel %vm1452, %v1442, 0
    %v1457 = vsel %vm1452, %v1443, 0
    %1459 = vmatprep.subr.mxu0 0.0
    %1460 = vmatpush1.msra.mxu0 0.0
    %1461 = vmatprep.subr.mxu0 0.0
    %1462 = vmatpush1.msra.mxu0 0.0
    %1463 = vmatprep.subr.mxu0 0.0
    %1464 = vmatpush1.msra.mxu0 0.0
    %1465 = vmatprep.subr.mxu0 0.0
    %1466 = vmatpush1.msra.mxu0 0.0
    %1467 = vmatprep.subr.mxu0 0.0
    %1468 = vmatpush1.msra.mxu0 0.0
    %1469 = vmatprep.subr.mxu0 0.0
    %1470 = vmatpush1.msra.mxu0 0.0
    %1471 = vmatprep.subr.mxu0 0.0
    %1472 = vmatpush1.msra.mxu0 0.0
    %1473 = vmatprep.subr.mxu0 0.0
    %1474 = vmatpush1.msra.mxu0 0.0
    %1475 = vmatprep.subr.mxu0 0.0
    %1476 = vmatpush1.msra.mxu0 %v1451
    %1477 = vmatprep.subr.mxu0 0.0
    %1478 = vmatpush1.msra.mxu0 %v1450
    %1479 = vmatprep.subr.mxu0 0.0
    %1480 = vmatpush1.msra.mxu0 %v1449
    %1481 = vmatprep.subr.mxu0 0.0
    %1482 = vmatpush1.msra.mxu0 %v1448
    %1483 = vmatprep.subr.mxu0 0.0
    %1484 = vmatpush1.msra.mxu0 %v1447
    %1485 = vmatprep.subr.mxu0 0.0
    %1486 = vmatpush1.msra.mxu0 %v1446
    %1487 = vmatprep.subr.mxu0 0.0
    %1488 = vmatpush1.msra.mxu0 %v1445
    %1489 = vmatprep.subr.mxu0 0.0
    %1490 = vmatpush1.msra.mxu0 %v1444
    %1491 = vmatprep.subr.mxu0 0.0
    %1492 = vmatpush2.msra.mxu0 0.0
    %1493 = vmatprep.subr.mxu0 0.0
    %1494 = vmatpush2.msra.mxu0 0.0
    %1495 = vmatprep.subr.mxu0 0.0
    %1496 = vmatpush2.msra.mxu0 0.0
    %1497 = vmatprep.subr.mxu0 0.0
    %1498 = vmatpush2.msra.mxu0 0.0
    %1499 = vmatprep.subr.mxu0 0.0
    %1500 = vmatpush2.msra.mxu0 0.0
    %1501 = vmatprep.subr.mxu0 0.0
    %1502 = vmatpush2.msra.mxu0 0.0
    %1503 = vmatprep.subr.mxu0 0.0
    %1504 = vmatpush2.msra.mxu0 0.0
    %1505 = vmatprep.subr.mxu0 0.0
    %1506 = vmatpush2.msra.mxu0 0.0
    %1507 = vmatprep.subr.mxu0 0.0
    %1508 = vmatpush2.msra.mxu0 0.0
    %1509 = vmatprep.subr.mxu0 0.0
    %1510 = vmatpush2.msra.mxu0 0.0
    %1511 = vmatprep.subr.mxu0 0.0
    %1512 = vmatpush2.msra.mxu0 0.0
    %1513 = vmatprep.subr.mxu0 0.0
    %1514 = vmatpush2.msra.mxu0 0.0
    %1515 = vmatprep.subr.mxu0 0.0
    %1516 = vmatpush2.msra.mxu0 0.0
    %1517 = vmatprep.subr.mxu0 0.0
    %1518 = vmatpush2.msra.mxu0 0.0
    %1519 = vmatprep.subr.mxu0 0.0
    %1520 = vmatpush2.msra.mxu0 0.0
    %1521 = vmatprep.subr.mxu0 0.0
    %1522 = vmatpush2.msra.mxu0 0.0
    %1523 = vmatprep.mubr.f32.mxu0 0.0
    %1524 = vmatmul.mubr.f32.gmra.mxu0 %v1454
    %v1525 = vpop.f32.mrf.mxu0
    %v1526 = vadd.f32 0.0, %v1525
    %v1527 = vpop.f32.mrf.mxu0
    %1528 = vmatprep.mubr.f32.mxu0 0.0
    %1529 = vmatmul.mubr.f32.gmra.mxu0 %v1457
    %v1530 = vpop.f32.mrf.mxu0
    %v1531 = vadd.f32 0.0, %v1530
    %v1532 = vpop.f32.mrf.mxu0
    %1533 = vdwg.mxu0
    %v1534 = vadd.f32 %v1330, %v1526
    %v1535 = vadd.f32 %v1331, %v1531
    %s1536 = scalar_lea.vmem %s13, 1
    %v1537 = vld [vmem:[%s1536] sm:$0x1]
    %v1538 = vmul.f32 %v1534, %v1534
    %v1539 = vmul.f32 %v1535, %v1535
    %v1540 = vsel %vm153, %v1538, 0.0
    %1541 = vadd.xlane.f32.xlu0 %v1540
    %v1542 = vpop.xlane.xlu0 %1541
    %v1543 = vsel %vm153, %v1539, 0.0
    %1544 = vadd.xlane.f32.xlu0 %v1543
    %v1545 = vpop.xlane.xlu0 %1544
    %v1546 = vmul.f32 %v1542, %v160
    %v1547 = vmul.f32 %v1545, %v160
    %v1548 = vadd.f32 %v1546, 1e-06
    %v1549 = vadd.f32 %v1547, 1e-06
    %v1550 = vrsqrt.pop %v1548
    %v1551 = vrsqrt.pop %v1549
    %v1552 = vmul.f32 %v1534, %v1550
    %v1553 = vmul.f32 %v1535, %v1551
    %v1555 = vlaneseq
    %v1556 = vshrl.u32 %v1555, 7
    %v1557 = vsub.s32 0, %v1556
    %v1558 = vrot.slane %v1537, %v1557
    %v1560 = vmul.f32 %v1552, %v1558
    %v1561 = vmul.f32 %v1553, %v1558
    %s1562 = scalar_lea.vmem %s15, 32
    %v1563 = vld [vmem:[%s1562] sm:$0xff]
    %v1564 = vld [vmem:[%s1562 + $0x8] sm:$0xff]
    %v1565 = vld [vmem:[%s1562 + $0x10] sm:$0xff]
    %v1566 = vld [vmem:[%s1562 + $0x18] sm:$0xff]
    %s1567 = scalar_lea.vmem %s17, 32
    %v1568 = vld [vmem:[%s1567] sm:$0xff]
    %v1569 = vld [vmem:[%s1567 + $0x8] sm:$0xff]
    %v1570 = vld [vmem:[%s1567 + $0x10] sm:$0xff]
    %v1571 = vld [vmem:[%s1567 + $0x18] sm:$0xff]
    %s1572 = scalar_lea.vmem %s19, 32
    %v1573 = vld [vmem:[%s1572] sm:$0xff]
    %v1574 = vld [vmem:[%s1572 + $0x8] sm:$0xff]
    %v1575 = vld [vmem:[%s1572 + $0x10] sm:$0xff]
    %v1576 = vld [vmem:[%s1572 + $0x18] sm:$0xff]
    %s1577 = scalar_lea.vmem %s21, 32
    %v1578 = vld [vmem:[%s1577] sm:$0xff]
    %v1579 = vld [vmem:[%s1577 + $0x8] sm:$0xff]
    %v1580 = vld [vmem:[%s1577 + $0x10] sm:$0xff]
    %v1581 = vld [vmem:[%s1577 + $0x18] sm:$0xff]
    %v1583 = vsel %vm153, %v1560, 0
    %v1586 = vsel %vm153, %v1561, 0
    %1588 = vmatprep.subr.mxu0 0.0
    %1589 = vmatpush1.msra.mxu0 0.0
    %1590 = vmatprep.subr.mxu0 0.0
    %1591 = vmatpush1.msra.mxu0 0.0
    %1592 = vmatprep.subr.mxu0 0.0
    %1593 = vmatpush1.msra.mxu0 0.0
    %1594 = vmatprep.subr.mxu0 0.0
    %1595 = vmatpush1.msra.mxu0 0.0
    %1596 = vmatprep.subr.mxu0 0.0
    %1597 = vmatpush1.msra.mxu0 0.0
    %1598 = vmatprep.subr.mxu0 0.0
    %1599 = vmatpush1.msra.mxu0 0.0
    %1600 = vmatprep.subr.mxu0 0.0
    %1601 = vmatpush1.msra.mxu0 0.0
    %1602 = vmatprep.subr.mxu0 0.0
    %1603 = vmatpush1.msra.mxu0 0.0
    %1604 = vmatprep.subr.mxu0 0.0
    %1605 = vmatpush1.msra.mxu0 0.0
    %1606 = vmatprep.subr.mxu0 0.0
    %1607 = vmatpush1.msra.mxu0 0.0
    %1608 = vmatprep.subr.mxu0 0.0
    %1609 = vmatpush1.msra.mxu0 0.0
    %1610 = vmatprep.subr.mxu0 0.0
    %1611 = vmatpush1.msra.mxu0 0.0
    %1612 = vmatprep.subr.mxu0 0.0
    %1613 = vmatpush1.msra.mxu0 %v1566
    %1614 = vmatprep.subr.mxu0 0.0
    %1615 = vmatpush1.msra.mxu0 %v1565
    %1616 = vmatprep.subr.mxu0 0.0
    %1617 = vmatpush1.msra.mxu0 %v1564
    %1618 = vmatprep.subr.mxu0 0.0
    %1619 = vmatpush1.msra.mxu0 %v1563
    %1620 = vmatprep.subr.mxu0 0.0
    %1621 = vmatpush2.msra.mxu0 0.0
    %1622 = vmatprep.subr.mxu0 0.0
    %1623 = vmatpush2.msra.mxu0 0.0
    %1624 = vmatprep.subr.mxu0 0.0
    %1625 = vmatpush2.msra.mxu0 0.0
    %1626 = vmatprep.subr.mxu0 0.0
    %1627 = vmatpush2.msra.mxu0 0.0
    %1628 = vmatprep.subr.mxu0 0.0
    %1629 = vmatpush2.msra.mxu0 0.0
    %1630 = vmatprep.subr.mxu0 0.0
    %1631 = vmatpush2.msra.mxu0 0.0
    %1632 = vmatprep.subr.mxu0 0.0
    %1633 = vmatpush2.msra.mxu0 0.0
    %1634 = vmatprep.subr.mxu0 0.0
    %1635 = vmatpush2.msra.mxu0 0.0
    %1636 = vmatprep.subr.mxu0 0.0
    %1637 = vmatpush2.msra.mxu0 0.0
    %1638 = vmatprep.subr.mxu0 0.0
    %1639 = vmatpush2.msra.mxu0 0.0
    %1640 = vmatprep.subr.mxu0 0.0
    %1641 = vmatpush2.msra.mxu0 0.0
    %1642 = vmatprep.subr.mxu0 0.0
    %1643 = vmatpush2.msra.mxu0 0.0
    %1644 = vmatprep.subr.mxu0 0.0
    %1645 = vmatpush2.msra.mxu0 0.0
    %1646 = vmatprep.subr.mxu0 0.0
    %1647 = vmatpush2.msra.mxu0 0.0
    %1648 = vmatprep.subr.mxu0 0.0
    %1649 = vmatpush2.msra.mxu0 0.0
    %1650 = vmatprep.subr.mxu0 0.0
    %1651 = vmatpush2.msra.mxu0 0.0
    %1652 = vmatprep.mubr.f32.mxu0 0.0
    %1653 = vmatmul.mubr.f32.gmra.mxu0 %v1583
    %v1654 = vpop.f32.mrf.mxu0
    %v1655 = vadd.f32 0.0, %v1654
    %v1656 = vpop.f32.mrf.mxu0
    %1657 = vmatprep.mubr.f32.mxu0 0.0
    %1658 = vmatmul.mubr.f32.gmra.mxu0 %v1586
    %v1659 = vpop.f32.mrf.mxu0
    %v1660 = vadd.f32 0.0, %v1659
    %v1661 = vpop.f32.mrf.mxu0
    %1662 = vdwg.mxu0
    %1663 = vmatprep.subr.mxu0 0.0
    %1664 = vmatpush1.msra.mxu0 0.0
    %1665 = vmatprep.subr.mxu0 0.0
    %1666 = vmatpush1.msra.mxu0 0.0
    %1667 = vmatprep.subr.mxu0 0.0
    %1668 = vmatpush1.msra.mxu0 0.0
    %1669 = vmatprep.subr.mxu0 0.0
    %1670 = vmatpush1.msra.mxu0 0.0
    %1671 = vmatprep.subr.mxu0 0.0
    %1672 = vmatpush1.msra.mxu0 0.0
    %1673 = vmatprep.subr.mxu0 0.0
    %1674 = vmatpush1.msra.mxu0 0.0
    %1675 = vmatprep.subr.mxu0 0.0
    %1676 = vmatpush1.msra.mxu0 0.0
    %1677 = vmatprep.subr.mxu0 0.0
    %1678 = vmatpush1.msra.mxu0 0.0
    %1679 = vmatprep.subr.mxu0 0.0
    %1680 = vmatpush1.msra.mxu0 0.0
    %1681 = vmatprep.subr.mxu0 0.0
    %1682 = vmatpush1.msra.mxu0 0.0
    %1683 = vmatprep.subr.mxu0 0.0
    %1684 = vmatpush1.msra.mxu0 0.0
    %1685 = vmatprep.subr.mxu0 0.0
    %1686 = vmatpush1.msra.mxu0 0.0
    %1687 = vmatprep.subr.mxu0 0.0
    %1688 = vmatpush1.msra.mxu0 %v1571
    %1689 = vmatprep.subr.mxu0 0.0
    %1690 = vmatpush1.msra.mxu0 %v1570
    %1691 = vmatprep.subr.mxu0 0.0
    %1692 = vmatpush1.msra.mxu0 %v1569
    %1693 = vmatprep.subr.mxu0 0.0
    %1694 = vmatpush1.msra.mxu0 %v1568
    %1695 = vmatprep.subr.mxu0 0.0
    %1696 = vmatpush2.msra.mxu0 0.0
    %1697 = vmatprep.subr.mxu0 0.0
    %1698 = vmatpush2.msra.mxu0 0.0
    %1699 = vmatprep.subr.mxu0 0.0
    %1700 = vmatpush2.msra.mxu0 0.0
    %1701 = vmatprep.subr.mxu0 0.0
    %1702 = vmatpush2.msra.mxu0 0.0
    %1703 = vmatprep.subr.mxu0 0.0
    %1704 = vmatpush2.msra.mxu0 0.0
    %1705 = vmatprep.subr.mxu0 0.0
    %1706 = vmatpush2.msra.mxu0 0.0
    %1707 = vmatprep.subr.mxu0 0.0
    %1708 = vmatpush2.msra.mxu0 0.0
    %1709 = vmatprep.subr.mxu0 0.0
    %1710 = vmatpush2.msra.mxu0 0.0
    %1711 = vmatprep.subr.mxu0 0.0
    %1712 = vmatpush2.msra.mxu0 0.0
    %1713 = vmatprep.subr.mxu0 0.0
    %1714 = vmatpush2.msra.mxu0 0.0
    %1715 = vmatprep.subr.mxu0 0.0
    %1716 = vmatpush2.msra.mxu0 0.0
    %1717 = vmatprep.subr.mxu0 0.0
    %1718 = vmatpush2.msra.mxu0 0.0
    %1719 = vmatprep.subr.mxu0 0.0
    %1720 = vmatpush2.msra.mxu0 0.0
    %1721 = vmatprep.subr.mxu0 0.0
    %1722 = vmatpush2.msra.mxu0 0.0
    %1723 = vmatprep.subr.mxu0 0.0
    %1724 = vmatpush2.msra.mxu0 0.0
    %1725 = vmatprep.subr.mxu0 0.0
    %1726 = vmatpush2.msra.mxu0 0.0
    %1727 = vmatprep.mubr.f32.mxu0 0.0
    %1728 = vmatmul.mubr.f32.gmra.mxu0 %v1583
    %v1729 = vpop.f32.mrf.mxu0
    %v1730 = vadd.f32 0.0, %v1729
    %v1731 = vpop.f32.mrf.mxu0
    %1732 = vmatprep.mubr.f32.mxu0 0.0
    %1733 = vmatmul.mubr.f32.gmra.mxu0 %v1586
    %v1734 = vpop.f32.mrf.mxu0
    %v1735 = vadd.f32 0.0, %v1734
    %v1736 = vpop.f32.mrf.mxu0
    %1737 = vdwg.mxu0
    %1738 = vmatprep.subr.mxu0 0.0
    %1739 = vmatpush1.msra.mxu0 0.0
    %1740 = vmatprep.subr.mxu0 0.0
    %1741 = vmatpush1.msra.mxu0 0.0
    %1742 = vmatprep.subr.mxu0 0.0
    %1743 = vmatpush1.msra.mxu0 0.0
    %1744 = vmatprep.subr.mxu0 0.0
    %1745 = vmatpush1.msra.mxu0 0.0
    %1746 = vmatprep.subr.mxu0 0.0
    %1747 = vmatpush1.msra.mxu0 0.0
    %1748 = vmatprep.subr.mxu0 0.0
    %1749 = vmatpush1.msra.mxu0 0.0
    %1750 = vmatprep.subr.mxu0 0.0
    %1751 = vmatpush1.msra.mxu0 0.0
    %1752 = vmatprep.subr.mxu0 0.0
    %1753 = vmatpush1.msra.mxu0 0.0
    %1754 = vmatprep.subr.mxu0 0.0
    %1755 = vmatpush1.msra.mxu0 0.0
    %1756 = vmatprep.subr.mxu0 0.0
    %1757 = vmatpush1.msra.mxu0 0.0
    %1758 = vmatprep.subr.mxu0 0.0
    %1759 = vmatpush1.msra.mxu0 0.0
    %1760 = vmatprep.subr.mxu0 0.0
    %1761 = vmatpush1.msra.mxu0 0.0
    %1762 = vmatprep.subr.mxu0 0.0
    %1763 = vmatpush1.msra.mxu0 %v1576
    %1764 = vmatprep.subr.mxu0 0.0
    %1765 = vmatpush1.msra.mxu0 %v1575
    %1766 = vmatprep.subr.mxu0 0.0
    %1767 = vmatpush1.msra.mxu0 %v1574
    %1768 = vmatprep.subr.mxu0 0.0
    %1769 = vmatpush1.msra.mxu0 %v1573
    %1770 = vmatprep.subr.mxu0 0.0
    %1771 = vmatpush2.msra.mxu0 0.0
    %1772 = vmatprep.subr.mxu0 0.0
    %1773 = vmatpush2.msra.mxu0 0.0
    %1774 = vmatprep.subr.mxu0 0.0
    %1775 = vmatpush2.msra.mxu0 0.0
    %1776 = vmatprep.subr.mxu0 0.0
    %1777 = vmatpush2.msra.mxu0 0.0
    %1778 = vmatprep.subr.mxu0 0.0
    %1779 = vmatpush2.msra.mxu0 0.0
    %1780 = vmatprep.subr.mxu0 0.0
    %1781 = vmatpush2.msra.mxu0 0.0
    %1782 = vmatprep.subr.mxu0 0.0
    %1783 = vmatpush2.msra.mxu0 0.0
    %1784 = vmatprep.subr.mxu0 0.0
    %1785 = vmatpush2.msra.mxu0 0.0
    %1786 = vmatprep.subr.mxu0 0.0
    %1787 = vmatpush2.msra.mxu0 0.0
    %1788 = vmatprep.subr.mxu0 0.0
    %1789 = vmatpush2.msra.mxu0 0.0
    %1790 = vmatprep.subr.mxu0 0.0
    %1791 = vmatpush2.msra.mxu0 0.0
    %1792 = vmatprep.subr.mxu0 0.0
    %1793 = vmatpush2.msra.mxu0 0.0
    %1794 = vmatprep.subr.mxu0 0.0
    %1795 = vmatpush2.msra.mxu0 0.0
    %1796 = vmatprep.subr.mxu0 0.0
    %1797 = vmatpush2.msra.mxu0 0.0
    %1798 = vmatprep.subr.mxu0 0.0
    %1799 = vmatpush2.msra.mxu0 0.0
    %1800 = vmatprep.subr.mxu0 0.0
    %1801 = vmatpush2.msra.mxu0 0.0
    %1802 = vmatprep.mubr.f32.mxu0 0.0
    %1803 = vmatmul.mubr.f32.gmra.mxu0 %v1583
    %v1804 = vpop.f32.mrf.mxu0
    %v1805 = vadd.f32 0.0, %v1804
    %v1806 = vpop.f32.mrf.mxu0
    %1807 = vmatprep.mubr.f32.mxu0 0.0
    %1808 = vmatmul.mubr.f32.gmra.mxu0 %v1586
    %v1809 = vpop.f32.mrf.mxu0
    %v1810 = vadd.f32 0.0, %v1809
    %v1811 = vpop.f32.mrf.mxu0
    %1812 = vdwg.mxu0
    %v1814 = vsel %vm424, %v1655, 0
    %v1817 = vsel %vm424, %v1660, 0
    %v1820 = vsel %vm424, %v1730, 0
    %v1823 = vsel %vm424, %v1735, 0
    %1825 = vmatprep.subr.mxu0 0.0
    %1826 = vmatpush1.xpose.msra.mxu0 0.0
    %1827 = vmatprep.subr.mxu0 0.0
    %1828 = vmatpush1.xpose.msra.mxu0 0.0
    %1829 = vmatprep.subr.mxu0 0.0
    %1830 = vmatpush1.xpose.msra.mxu0 0.0
    %1831 = vmatprep.subr.mxu0 0.0
    %1832 = vmatpush1.xpose.msra.mxu0 0.0
    %1833 = vmatprep.subr.mxu0 0.0
    %1834 = vmatpush1.xpose.msra.mxu0 0.0
    %1835 = vmatprep.subr.mxu0 0.0
    %1836 = vmatpush1.xpose.msra.mxu0 0.0
    %1837 = vmatprep.subr.mxu0 0.0
    %1838 = vmatpush1.xpose.msra.mxu0 0.0
    %1839 = vmatprep.subr.mxu0 0.0
    %1840 = vmatpush1.xpose.msra.mxu0 0.0
    %1841 = vmatprep.subr.mxu0 0.0
    %1842 = vmatpush1.xpose.msra.mxu0 0.0
    %1843 = vmatprep.subr.mxu0 0.0
    %1844 = vmatpush1.xpose.msra.mxu0 0.0
    %1845 = vmatprep.subr.mxu0 0.0
    %1846 = vmatpush1.xpose.msra.mxu0 0.0
    %1847 = vmatprep.subr.mxu0 0.0
    %1848 = vmatpush1.xpose.msra.mxu0 0.0
    %1849 = vmatprep.subr.mxu0 0.0
    %1850 = vmatpush1.xpose.msra.mxu0 0.0
    %1851 = vmatprep.subr.mxu0 0.0
    %1852 = vmatpush1.xpose.msra.mxu0 0.0
    %1853 = vmatprep.subr.mxu0 0.0
    %1854 = vmatpush1.xpose.msra.mxu0 %v1823
    %1855 = vmatprep.subr.mxu0 0.0
    %1856 = vmatpush1.xpose.msra.mxu0 %v1820
    %1857 = vmatprep.subr.mxu0 0.0
    %1858 = vmatpush2.xpose.msra.mxu0 0.0
    %1859 = vmatprep.subr.mxu0 0.0
    %1860 = vmatpush2.xpose.msra.mxu0 0.0
    %1861 = vmatprep.subr.mxu0 0.0
    %1862 = vmatpush2.xpose.msra.mxu0 0.0
    %1863 = vmatprep.subr.mxu0 0.0
    %1864 = vmatpush2.xpose.msra.mxu0 0.0
    %1865 = vmatprep.subr.mxu0 0.0
    %1866 = vmatpush2.xpose.msra.mxu0 0.0
    %1867 = vmatprep.subr.mxu0 0.0
    %1868 = vmatpush2.xpose.msra.mxu0 0.0
    %1869 = vmatprep.subr.mxu0 0.0
    %1870 = vmatpush2.xpose.msra.mxu0 0.0
    %1871 = vmatprep.subr.mxu0 0.0
    %1872 = vmatpush2.xpose.msra.mxu0 0.0
    %1873 = vmatprep.subr.mxu0 0.0
    %1874 = vmatpush2.xpose.msra.mxu0 0.0
    %1875 = vmatprep.subr.mxu0 0.0
    %1876 = vmatpush2.xpose.msra.mxu0 0.0
    %1877 = vmatprep.subr.mxu0 0.0
    %1878 = vmatpush2.xpose.msra.mxu0 0.0
    %1879 = vmatprep.subr.mxu0 0.0
    %1880 = vmatpush2.xpose.msra.mxu0 0.0
    %1881 = vmatprep.subr.mxu0 0.0
    %1882 = vmatpush2.xpose.msra.mxu0 0.0
    %1883 = vmatprep.subr.mxu0 0.0
    %1884 = vmatpush2.xpose.msra.mxu0 0.0
    %1885 = vmatprep.subr.mxu0 0.0
    %1886 = vmatpush2.xpose.msra.mxu0 0.0
    %1887 = vmatprep.subr.mxu0 0.0
    %1888 = vmatpush2.xpose.msra.mxu0 0.0
    %1889 = vmatprep.mubr.f32.mxu0 0.0
    %1890 = vmatmul.mubr.f32.gmra.mxu0 %v1814
    %v1891 = vpop.f32.mrf.mxu0
    %v1892 = vadd.f32 %v130, %v1891
    %v1893 = vpop.f32.mrf.mxu0
    %1894 = vmatprep.mubr.f32.mxu0 0.0
    %1895 = vmatmul.mubr.f32.gmra.mxu0 %v1817
    %v1896 = vpop.f32.mrf.mxu0
    %v1897 = vadd.f32 %v131, %v1896
    %v1898 = vpop.f32.mrf.mxu0
    %1899 = vdwg.mxu0
    %v1900 = vsel %vm512, %v1892, -inf
    %1901 = vmax.xlane.f32.xlu0 %v1900
    %v1902 = vpop.xlane.xlu0 %1901
    %v1903 = vsel %vm512, %v1897, -inf
    %1904 = vmax.xlane.f32.xlu0 %v1903
    %v1905 = vpop.xlane.xlu0 %1904
    %v1906 = vsub.f32 %v1892, %v1902
    %v1907 = vsub.f32 %v1897, %v1905
    %v1908 = vmul.f32 %v1906, 1.442695
    %v1909 = vpow.pop %v1908
    %v1910 = vmul.f32 %v1907, 1.442695
    %v1911 = vpow.pop %v1910
    %v1912 = vsel %vm512, %v1909, 0.0
    %1913 = vadd.xlane.f32.xlu0 %v1912
    %v1914 = vpop.xlane.xlu0 %1913
    %v1915 = vsel %vm512, %v1911, 0.0
    %1916 = vadd.xlane.f32.xlu0 %v1915
    %v1917 = vpop.xlane.xlu0 %1916
    %v1918 = vrcp.pop %v1914
    %v1919 = vrcp.pop %v1917
    %v1920 = vmul.f32 %v1909, %v1918
    %v1921 = vmul.f32 %v1911, %v1919
    %v1923 = vsel %vm512, %v1920, 0
    %v1926 = vsel %vm512, %v1921, 0
    %1928 = vmatprep.subr.mxu0 0.0
    %1929 = vmatpush1.msra.mxu0 0.0
    %1930 = vmatprep.subr.mxu0 0.0
    %1931 = vmatpush1.msra.mxu0 0.0
    %1932 = vmatprep.subr.mxu0 0.0
    %1933 = vmatpush1.msra.mxu0 0.0
    %1934 = vmatprep.subr.mxu0 0.0
    %1935 = vmatpush1.msra.mxu0 0.0
    %1936 = vmatprep.subr.mxu0 0.0
    %1937 = vmatpush1.msra.mxu0 0.0
    %1938 = vmatprep.subr.mxu0 0.0
    %1939 = vmatpush1.msra.mxu0 0.0
    %1940 = vmatprep.subr.mxu0 0.0
    %1941 = vmatpush1.msra.mxu0 0.0
    %1942 = vmatprep.subr.mxu0 0.0
    %1943 = vmatpush1.msra.mxu0 0.0
    %1944 = vmatprep.subr.mxu0 0.0
    %1945 = vmatpush1.msra.mxu0 0.0
    %1946 = vmatprep.subr.mxu0 0.0
    %1947 = vmatpush1.msra.mxu0 0.0
    %1948 = vmatprep.subr.mxu0 0.0
    %1949 = vmatpush1.msra.mxu0 0.0
    %1950 = vmatprep.subr.mxu0 0.0
    %1951 = vmatpush1.msra.mxu0 0.0
    %1952 = vmatprep.subr.mxu0 0.0
    %1953 = vmatpush1.msra.mxu0 0.0
    %1954 = vmatprep.subr.mxu0 0.0
    %1955 = vmatpush1.msra.mxu0 0.0
    %1956 = vmatprep.subr.mxu0 0.0
    %1957 = vmatpush1.msra.mxu0 %v1810
    %1958 = vmatprep.subr.mxu0 0.0
    %1959 = vmatpush1.msra.mxu0 %v1805
    %1960 = vmatprep.subr.mxu0 0.0
    %1961 = vmatpush2.msra.mxu0 0.0
    %1962 = vmatprep.subr.mxu0 0.0
    %1963 = vmatpush2.msra.mxu0 0.0
    %1964 = vmatprep.subr.mxu0 0.0
    %1965 = vmatpush2.msra.mxu0 0.0
    %1966 = vmatprep.subr.mxu0 0.0
    %1967 = vmatpush2.msra.mxu0 0.0
    %1968 = vmatprep.subr.mxu0 0.0
    %1969 = vmatpush2.msra.mxu0 0.0
    %1970 = vmatprep.subr.mxu0 0.0
    %1971 = vmatpush2.msra.mxu0 0.0
    %1972 = vmatprep.subr.mxu0 0.0
    %1973 = vmatpush2.msra.mxu0 0.0
    %1974 = vmatprep.subr.mxu0 0.0
    %1975 = vmatpush2.msra.mxu0 0.0
    %1976 = vmatprep.subr.mxu0 0.0
    %1977 = vmatpush2.msra.mxu0 0.0
    %1978 = vmatprep.subr.mxu0 0.0
    %1979 = vmatpush2.msra.mxu0 0.0
    %1980 = vmatprep.subr.mxu0 0.0
    %1981 = vmatpush2.msra.mxu0 0.0
    %1982 = vmatprep.subr.mxu0 0.0
    %1983 = vmatpush2.msra.mxu0 0.0
    %1984 = vmatprep.subr.mxu0 0.0
    %1985 = vmatpush2.msra.mxu0 0.0
    %1986 = vmatprep.subr.mxu0 0.0
    %1987 = vmatpush2.msra.mxu0 0.0
    %1988 = vmatprep.subr.mxu0 0.0
    %1989 = vmatpush2.msra.mxu0 0.0
    %1990 = vmatprep.subr.mxu0 0.0
    %1991 = vmatpush2.msra.mxu0 0.0
    %1992 = vmatprep.mubr.f32.mxu0 0.0
    %1993 = vmatmul.mubr.f32.gmra.mxu0 %v1923
    %v1994 = vpop.f32.mrf.mxu0
    %v1995 = vadd.f32 0.0, %v1994
    %v1996 = vpop.f32.mrf.mxu0
    %1997 = vmatprep.mubr.f32.mxu0 0.0
    %1998 = vmatmul.mubr.f32.gmra.mxu0 %v1926
    %v1999 = vpop.f32.mrf.mxu0
    %v2000 = vadd.f32 0.0, %v1999
    %v2001 = vpop.f32.mrf.mxu0
    %2002 = vdwg.mxu0
    %2003 = vrot.lane.b32.xlu0 %v1655, 120
    %v2004 = vpop.permute.xlu0 %2003
    %2005 = vrot.lane.b32.xlu0 %v1660, 120
    %v2006 = vpop.permute.xlu0 %2005
    %2007 = vrot.lane.b32.xlu0 %v1730, 120
    %v2008 = vpop.permute.xlu0 %2007
    %2009 = vrot.lane.b32.xlu0 %v1735, 120
    %v2010 = vpop.permute.xlu0 %2009
    %v2011 = vsel %vm424, %v2004, 0
    %v2013 = vsel %vm424, %v2006, 0
    %v2015 = vsel %vm424, %v2008, 0
    %v2017 = vsel %vm424, %v2010, 0
    %2019 = vmatprep.subr.mxu0 0.0
    %2020 = vmatpush1.xpose.msra.mxu0 0.0
    %2021 = vmatprep.subr.mxu0 0.0
    %2022 = vmatpush1.xpose.msra.mxu0 0.0
    %2023 = vmatprep.subr.mxu0 0.0
    %2024 = vmatpush1.xpose.msra.mxu0 0.0
    %2025 = vmatprep.subr.mxu0 0.0
    %2026 = vmatpush1.xpose.msra.mxu0 0.0
    %2027 = vmatprep.subr.mxu0 0.0
    %2028 = vmatpush1.xpose.msra.mxu0 0.0
    %2029 = vmatprep.subr.mxu0 0.0
    %2030 = vmatpush1.xpose.msra.mxu0 0.0
    %2031 = vmatprep.subr.mxu0 0.0
    %2032 = vmatpush1.xpose.msra.mxu0 0.0
    %2033 = vmatprep.subr.mxu0 0.0
    %2034 = vmatpush1.xpose.msra.mxu0 0.0
    %2035 = vmatprep.subr.mxu0 0.0
    %2036 = vmatpush1.xpose.msra.mxu0 0.0
    %2037 = vmatprep.subr.mxu0 0.0
    %2038 = vmatpush1.xpose.msra.mxu0 0.0
    %2039 = vmatprep.subr.mxu0 0.0
    %2040 = vmatpush1.xpose.msra.mxu0 0.0
    %2041 = vmatprep.subr.mxu0 0.0
    %2042 = vmatpush1.xpose.msra.mxu0 0.0
    %2043 = vmatprep.subr.mxu0 0.0
    %2044 = vmatpush1.xpose.msra.mxu0 0.0
    %2045 = vmatprep.subr.mxu0 0.0
    %2046 = vmatpush1.xpose.msra.mxu0 0.0
    %2047 = vmatprep.subr.mxu0 0.0
    %2048 = vmatpush1.xpose.msra.mxu0 %v2017
    %2049 = vmatprep.subr.mxu0 0.0
    %2050 = vmatpush1.xpose.msra.mxu0 %v2015
    %2051 = vmatprep.subr.mxu0 0.0
    %2052 = vmatpush2.xpose.msra.mxu0 0.0
    %2053 = vmatprep.subr.mxu0 0.0
    %2054 = vmatpush2.xpose.msra.mxu0 0.0
    %2055 = vmatprep.subr.mxu0 0.0
    %2056 = vmatpush2.xpose.msra.mxu0 0.0
    %2057 = vmatprep.subr.mxu0 0.0
    %2058 = vmatpush2.xpose.msra.mxu0 0.0
    %2059 = vmatprep.subr.mxu0 0.0
    %2060 = vmatpush2.xpose.msra.mxu0 0.0
    %2061 = vmatprep.subr.mxu0 0.0
    %2062 = vmatpush2.xpose.msra.mxu0 0.0
    %2063 = vmatprep.subr.mxu0 0.0
    %2064 = vmatpush2.xpose.msra.mxu0 0.0
    %2065 = vmatprep.subr.mxu0 0.0
    %2066 = vmatpush2.xpose.msra.mxu0 0.0
    %2067 = vmatprep.subr.mxu0 0.0
    %2068 = vmatpush2.xpose.msra.mxu0 0.0
    %2069 = vmatprep.subr.mxu0 0.0
    %2070 = vmatpush2.xpose.msra.mxu0 0.0
    %2071 = vmatprep.subr.mxu0 0.0
    %2072 = vmatpush2.xpose.msra.mxu0 0.0
    %2073 = vmatprep.subr.mxu0 0.0
    %2074 = vmatpush2.xpose.msra.mxu0 0.0
    %2075 = vmatprep.subr.mxu0 0.0
    %2076 = vmatpush2.xpose.msra.mxu0 0.0
    %2077 = vmatprep.subr.mxu0 0.0
    %2078 = vmatpush2.xpose.msra.mxu0 0.0
    %2079 = vmatprep.subr.mxu0 0.0
    %2080 = vmatpush2.xpose.msra.mxu0 0.0
    %2081 = vmatprep.subr.mxu0 0.0
    %2082 = vmatpush2.xpose.msra.mxu0 0.0
    %2083 = vmatprep.mubr.f32.mxu0 0.0
    %2084 = vmatmul.mubr.f32.gmra.mxu0 %v2011
    %v2085 = vpop.f32.mrf.mxu0
    %v2086 = vadd.f32 %v132, %v2085
    %v2087 = vpop.f32.mrf.mxu0
    %2088 = vmatprep.mubr.f32.mxu0 0.0
    %2089 = vmatmul.mubr.f32.gmra.mxu0 %v2013
    %v2090 = vpop.f32.mrf.mxu0
    %v2091 = vadd.f32 %v133, %v2090
    %v2092 = vpop.f32.mrf.mxu0
    %2093 = vdwg.mxu0
    %v2094 = vsel %vm512, %v2086, -inf
    %2095 = vmax.xlane.f32.xlu0 %v2094
    %v2096 = vpop.xlane.xlu0 %2095
    %v2097 = vsel %vm512, %v2091, -inf
    %2098 = vmax.xlane.f32.xlu0 %v2097
    %v2099 = vpop.xlane.xlu0 %2098
    %v2100 = vsub.f32 %v2086, %v2096
    %v2101 = vsub.f32 %v2091, %v2099
    %v2102 = vmul.f32 %v2100, 1.442695
    %v2103 = vpow.pop %v2102
    %v2104 = vmul.f32 %v2101, 1.442695
    %v2105 = vpow.pop %v2104
    %v2106 = vsel %vm512, %v2103, 0.0
    %2107 = vadd.xlane.f32.xlu0 %v2106
    %v2108 = vpop.xlane.xlu0 %2107
    %v2109 = vsel %vm512, %v2105, 0.0
    %2110 = vadd.xlane.f32.xlu0 %v2109
    %v2111 = vpop.xlane.xlu0 %2110
    %v2112 = vrcp.pop %v2108
    %v2113 = vrcp.pop %v2111
    %v2114 = vmul.f32 %v2103, %v2112
    %v2115 = vmul.f32 %v2105, %v2113
    %2118 = vrot.lane.b32.xlu0 %v1805, 120
    %v2119 = vpop.permute.xlu0 %2118
    %2120 = vrot.lane.b32.xlu0 %v1810, 120
    %v2121 = vpop.permute.xlu0 %2120
    %v2125 = vsel %vm512, %v2114, 0
    %v2128 = vsel %vm512, %v2115, 0
    %2130 = vmatprep.subr.mxu0 0.0
    %2131 = vmatpush1.msra.mxu0 0.0
    %2132 = vmatprep.subr.mxu0 0.0
    %2133 = vmatpush1.msra.mxu0 0.0
    %2134 = vmatprep.subr.mxu0 0.0
    %2135 = vmatpush1.msra.mxu0 0.0
    %2136 = vmatprep.subr.mxu0 0.0
    %2137 = vmatpush1.msra.mxu0 0.0
    %2138 = vmatprep.subr.mxu0 0.0
    %2139 = vmatpush1.msra.mxu0 0.0
    %2140 = vmatprep.subr.mxu0 0.0
    %2141 = vmatpush1.msra.mxu0 0.0
    %2142 = vmatprep.subr.mxu0 0.0
    %2143 = vmatpush1.msra.mxu0 0.0
    %2144 = vmatprep.subr.mxu0 0.0
    %2145 = vmatpush1.msra.mxu0 0.0
    %2146 = vmatprep.subr.mxu0 0.0
    %2147 = vmatpush1.msra.mxu0 0.0
    %2148 = vmatprep.subr.mxu0 0.0
    %2149 = vmatpush1.msra.mxu0 0.0
    %2150 = vmatprep.subr.mxu0 0.0
    %2151 = vmatpush1.msra.mxu0 0.0
    %2152 = vmatprep.subr.mxu0 0.0
    %2153 = vmatpush1.msra.mxu0 0.0
    %2154 = vmatprep.subr.mxu0 0.0
    %2155 = vmatpush1.msra.mxu0 0.0
    %2156 = vmatprep.subr.mxu0 0.0
    %2157 = vmatpush1.msra.mxu0 0.0
    %2158 = vmatprep.subr.mxu0 0.0
    %2159 = vmatpush1.msra.mxu0 %v2121
    %2160 = vmatprep.subr.mxu0 0.0
    %2161 = vmatpush1.msra.mxu0 %v2119
    %2162 = vmatprep.subr.mxu0 0.0
    %2163 = vmatpush2.msra.mxu0 0.0
    %2164 = vmatprep.subr.mxu0 0.0
    %2165 = vmatpush2.msra.mxu0 0.0
    %2166 = vmatprep.subr.mxu0 0.0
    %2167 = vmatpush2.msra.mxu0 0.0
    %2168 = vmatprep.subr.mxu0 0.0
    %2169 = vmatpush2.msra.mxu0 0.0
    %2170 = vmatprep.subr.mxu0 0.0
    %2171 = vmatpush2.msra.mxu0 0.0
    %2172 = vmatprep.subr.mxu0 0.0
    %2173 = vmatpush2.msra.mxu0 0.0
    %2174 = vmatprep.subr.mxu0 0.0
    %2175 = vmatpush2.msra.mxu0 0.0
    %2176 = vmatprep.subr.mxu0 0.0
    %2177 = vmatpush2.msra.mxu0 0.0
    %2178 = vmatprep.subr.mxu0 0.0
    %2179 = vmatpush2.msra.mxu0 0.0
    %2180 = vmatprep.subr.mxu0 0.0
    %2181 = vmatpush2.msra.mxu0 0.0
    %2182 = vmatprep.subr.mxu0 0.0
    %2183 = vmatpush2.msra.mxu0 0.0
    %2184 = vmatprep.subr.mxu0 0.0
    %2185 = vmatpush2.msra.mxu0 0.0
    %2186 = vmatprep.subr.mxu0 0.0
    %2187 = vmatpush2.msra.mxu0 0.0
    %2188 = vmatprep.subr.mxu0 0.0
    %2189 = vmatpush2.msra.mxu0 0.0
    %2190 = vmatprep.subr.mxu0 0.0
    %2191 = vmatpush2.msra.mxu0 0.0
    %2192 = vmatprep.subr.mxu0 0.0
    %2193 = vmatpush2.msra.mxu0 0.0
    %2194 = vmatprep.mubr.f32.mxu0 0.0
    %2195 = vmatmul.mubr.f32.gmra.mxu0 %v2125
    %v2196 = vpop.f32.mrf.mxu0
    %v2197 = vadd.f32 0.0, %v2196
    %v2198 = vpop.f32.mrf.mxu0
    %2199 = vmatprep.mubr.f32.mxu0 0.0
    %2200 = vmatmul.mubr.f32.gmra.mxu0 %v2128
    %v2201 = vpop.f32.mrf.mxu0
    %v2202 = vadd.f32 0.0, %v2201
    %v2203 = vpop.f32.mrf.mxu0
    %2204 = vdwg.mxu0
    %2205 = vrot.lane.b32.xlu0 %v1655, 112
    %v2206 = vpop.permute.xlu0 %2205
    %2207 = vrot.lane.b32.xlu0 %v1660, 112
    %v2208 = vpop.permute.xlu0 %2207
    %2209 = vrot.lane.b32.xlu0 %v1730, 112
    %v2210 = vpop.permute.xlu0 %2209
    %2211 = vrot.lane.b32.xlu0 %v1735, 112
    %v2212 = vpop.permute.xlu0 %2211
    %v2213 = vsel %vm424, %v2206, 0
    %v2215 = vsel %vm424, %v2208, 0
    %v2217 = vsel %vm424, %v2210, 0
    %v2219 = vsel %vm424, %v2212, 0
    %2221 = vmatprep.subr.mxu0 0.0
    %2222 = vmatpush1.xpose.msra.mxu0 0.0
    %2223 = vmatprep.subr.mxu0 0.0
    %2224 = vmatpush1.xpose.msra.mxu0 0.0
    %2225 = vmatprep.subr.mxu0 0.0
    %2226 = vmatpush1.xpose.msra.mxu0 0.0
    %2227 = vmatprep.subr.mxu0 0.0
    %2228 = vmatpush1.xpose.msra.mxu0 0.0
    %2229 = vmatprep.subr.mxu0 0.0
    %2230 = vmatpush1.xpose.msra.mxu0 0.0
    %2231 = vmatprep.subr.mxu0 0.0
    %2232 = vmatpush1.xpose.msra.mxu0 0.0
    %2233 = vmatprep.subr.mxu0 0.0
    %2234 = vmatpush1.xpose.msra.mxu0 0.0
    %2235 = vmatprep.subr.mxu0 0.0
    %2236 = vmatpush1.xpose.msra.mxu0 0.0
    %2237 = vmatprep.subr.mxu0 0.0
    %2238 = vmatpush1.xpose.msra.mxu0 0.0
    %2239 = vmatprep.subr.mxu0 0.0
    %2240 = vmatpush1.xpose.msra.mxu0 0.0
    %2241 = vmatprep.subr.mxu0 0.0
    %2242 = vmatpush1.xpose.msra.mxu0 0.0
    %2243 = vmatprep.subr.mxu0 0.0
    %2244 = vmatpush1.xpose.msra.mxu0 0.0
    %2245 = vmatprep.subr.mxu0 0.0
    %2246 = vmatpush1.xpose.msra.mxu0 0.0
    %2247 = vmatprep.subr.mxu0 0.0
    %2248 = vmatpush1.xpose.msra.mxu0 0.0
    %2249 = vmatprep.subr.mxu0 0.0
    %2250 = vmatpush1.xpose.msra.mxu0 %v2219
    %2251 = vmatprep.subr.mxu0 0.0
    %2252 = vmatpush1.xpose.msra.mxu0 %v2217
    %2253 = vmatprep.subr.mxu0 0.0
    %2254 = vmatpush2.xpose.msra.mxu0 0.0
    %2255 = vmatprep.subr.mxu0 0.0
    %2256 = vmatpush2.xpose.msra.mxu0 0.0
    %2257 = vmatprep.subr.mxu0 0.0
    %2258 = vmatpush2.xpose.msra.mxu0 0.0
    %2259 = vmatprep.subr.mxu0 0.0
    %2260 = vmatpush2.xpose.msra.mxu0 0.0
    %2261 = vmatprep.subr.mxu0 0.0
    %2262 = vmatpush2.xpose.msra.mxu0 0.0
    %2263 = vmatprep.subr.mxu0 0.0
    %2264 = vmatpush2.xpose.msra.mxu0 0.0
    %2265 = vmatprep.subr.mxu0 0.0
    %2266 = vmatpush2.xpose.msra.mxu0 0.0
    %2267 = vmatprep.subr.mxu0 0.0
    %2268 = vmatpush2.xpose.msra.mxu0 0.0
    %2269 = vmatprep.subr.mxu0 0.0
    %2270 = vmatpush2.xpose.msra.mxu0 0.0
    %2271 = vmatprep.subr.mxu0 0.0
    %2272 = vmatpush2.xpose.msra.mxu0 0.0
    %2273 = vmatprep.subr.mxu0 0.0
    %2274 = vmatpush2.xpose.msra.mxu0 0.0
    %2275 = vmatprep.subr.mxu0 0.0
    %2276 = vmatpush2.xpose.msra.mxu0 0.0
    %2277 = vmatprep.subr.mxu0 0.0
    %2278 = vmatpush2.xpose.msra.mxu0 0.0
    %2279 = vmatprep.subr.mxu0 0.0
    %2280 = vmatpush2.xpose.msra.mxu0 0.0
    %2281 = vmatprep.subr.mxu0 0.0
    %2282 = vmatpush2.xpose.msra.mxu0 0.0
    %2283 = vmatprep.subr.mxu0 0.0
    %2284 = vmatpush2.xpose.msra.mxu0 0.0
    %2285 = vmatprep.mubr.f32.mxu0 0.0
    %2286 = vmatmul.mubr.f32.gmra.mxu0 %v2213
    %v2287 = vpop.f32.mrf.mxu0
    %v2288 = vadd.f32 %v134, %v2287
    %v2289 = vpop.f32.mrf.mxu0
    %2290 = vmatprep.mubr.f32.mxu0 0.0
    %2291 = vmatmul.mubr.f32.gmra.mxu0 %v2215
    %v2292 = vpop.f32.mrf.mxu0
    %v2293 = vadd.f32 %v135, %v2292
    %v2294 = vpop.f32.mrf.mxu0
    %2295 = vdwg.mxu0
    %v2296 = vsel %vm512, %v2288, -inf
    %2297 = vmax.xlane.f32.xlu0 %v2296
    %v2298 = vpop.xlane.xlu0 %2297
    %v2299 = vsel %vm512, %v2293, -inf
    %2300 = vmax.xlane.f32.xlu0 %v2299
    %v2301 = vpop.xlane.xlu0 %2300
    %v2302 = vsub.f32 %v2288, %v2298
    %v2303 = vsub.f32 %v2293, %v2301
    %v2304 = vmul.f32 %v2302, 1.442695
    %v2305 = vpow.pop %v2304
    %v2306 = vmul.f32 %v2303, 1.442695
    %v2307 = vpow.pop %v2306
    %v2308 = vsel %vm512, %v2305, 0.0
    %2309 = vadd.xlane.f32.xlu0 %v2308
    %v2310 = vpop.xlane.xlu0 %2309
    %v2311 = vsel %vm512, %v2307, 0.0
    %2312 = vadd.xlane.f32.xlu0 %v2311
    %v2313 = vpop.xlane.xlu0 %2312
    %v2314 = vrcp.pop %v2310
    %v2315 = vrcp.pop %v2313
    %v2316 = vmul.f32 %v2305, %v2314
    %v2317 = vmul.f32 %v2307, %v2315
    %2318 = vrot.lane.b32.xlu0 %v1805, 112
    %v2319 = vpop.permute.xlu0 %2318
    %2320 = vrot.lane.b32.xlu0 %v1810, 112
    %v2321 = vpop.permute.xlu0 %2320
    %v2325 = vsel %vm512, %v2316, 0
    %v2328 = vsel %vm512, %v2317, 0
    %2330 = vmatprep.subr.mxu0 0.0
    %2331 = vmatpush1.msra.mxu0 0.0
    %2332 = vmatprep.subr.mxu0 0.0
    %2333 = vmatpush1.msra.mxu0 0.0
    %2334 = vmatprep.subr.mxu0 0.0
    %2335 = vmatpush1.msra.mxu0 0.0
    %2336 = vmatprep.subr.mxu0 0.0
    %2337 = vmatpush1.msra.mxu0 0.0
    %2338 = vmatprep.subr.mxu0 0.0
    %2339 = vmatpush1.msra.mxu0 0.0
    %2340 = vmatprep.subr.mxu0 0.0
    %2341 = vmatpush1.msra.mxu0 0.0
    %2342 = vmatprep.subr.mxu0 0.0
    %2343 = vmatpush1.msra.mxu0 0.0
    %2344 = vmatprep.subr.mxu0 0.0
    %2345 = vmatpush1.msra.mxu0 0.0
    %2346 = vmatprep.subr.mxu0 0.0
    %2347 = vmatpush1.msra.mxu0 0.0
    %2348 = vmatprep.subr.mxu0 0.0
    %2349 = vmatpush1.msra.mxu0 0.0
    %2350 = vmatprep.subr.mxu0 0.0
    %2351 = vmatpush1.msra.mxu0 0.0
    %2352 = vmatprep.subr.mxu0 0.0
    %2353 = vmatpush1.msra.mxu0 0.0
    %2354 = vmatprep.subr.mxu0 0.0
    %2355 = vmatpush1.msra.mxu0 0.0
    %2356 = vmatprep.subr.mxu0 0.0
    %2357 = vmatpush1.msra.mxu0 0.0
    %2358 = vmatprep.subr.mxu0 0.0
    %2359 = vmatpush1.msra.mxu0 %v2321
    %2360 = vmatprep.subr.mxu0 0.0
    %2361 = vmatpush1.msra.mxu0 %v2319
    %2362 = vmatprep.subr.mxu0 0.0
    %2363 = vmatpush2.msra.mxu0 0.0
    %2364 = vmatprep.subr.mxu0 0.0
    %2365 = vmatpush2.msra.mxu0 0.0
    %2366 = vmatprep.subr.mxu0 0.0
    %2367 = vmatpush2.msra.mxu0 0.0
    %2368 = vmatprep.subr.mxu0 0.0
    %2369 = vmatpush2.msra.mxu0 0.0
    %2370 = vmatprep.subr.mxu0 0.0
    %2371 = vmatpush2.msra.mxu0 0.0
    %2372 = vmatprep.subr.mxu0 0.0
    %2373 = vmatpush2.msra.mxu0 0.0
    %2374 = vmatprep.subr.mxu0 0.0
    %2375 = vmatpush2.msra.mxu0 0.0
    %2376 = vmatprep.subr.mxu0 0.0
    %2377 = vmatpush2.msra.mxu0 0.0
    %2378 = vmatprep.subr.mxu0 0.0
    %2379 = vmatpush2.msra.mxu0 0.0
    %2380 = vmatprep.subr.mxu0 0.0
    %2381 = vmatpush2.msra.mxu0 0.0
    %2382 = vmatprep.subr.mxu0 0.0
    %2383 = vmatpush2.msra.mxu0 0.0
    %2384 = vmatprep.subr.mxu0 0.0
    %2385 = vmatpush2.msra.mxu0 0.0
    %2386 = vmatprep.subr.mxu0 0.0
    %2387 = vmatpush2.msra.mxu0 0.0
    %2388 = vmatprep.subr.mxu0 0.0
    %2389 = vmatpush2.msra.mxu0 0.0
    %2390 = vmatprep.subr.mxu0 0.0
    %2391 = vmatpush2.msra.mxu0 0.0
    %2392 = vmatprep.subr.mxu0 0.0
    %2393 = vmatpush2.msra.mxu0 0.0
    %2394 = vmatprep.mubr.f32.mxu0 0.0
    %2395 = vmatmul.mubr.f32.gmra.mxu0 %v2325
    %v2396 = vpop.f32.mrf.mxu0
    %v2397 = vadd.f32 0.0, %v2396
    %v2398 = vpop.f32.mrf.mxu0
    %2399 = vmatprep.mubr.f32.mxu0 0.0
    %2400 = vmatmul.mubr.f32.gmra.mxu0 %v2328
    %v2401 = vpop.f32.mrf.mxu0
    %v2402 = vadd.f32 0.0, %v2401
    %v2403 = vpop.f32.mrf.mxu0
    %2404 = vdwg.mxu0
    %2405 = vrot.lane.b32.xlu0 %v1655, 104
    %v2406 = vpop.permute.xlu0 %2405
    %2407 = vrot.lane.b32.xlu0 %v1660, 104
    %v2408 = vpop.permute.xlu0 %2407
    %2409 = vrot.lane.b32.xlu0 %v1730, 104
    %v2410 = vpop.permute.xlu0 %2409
    %2411 = vrot.lane.b32.xlu0 %v1735, 104
    %v2412 = vpop.permute.xlu0 %2411
    %v2413 = vsel %vm424, %v2406, 0
    %v2415 = vsel %vm424, %v2408, 0
    %v2417 = vsel %vm424, %v2410, 0
    %v2419 = vsel %vm424, %v2412, 0
    %2421 = vmatprep.subr.mxu0 0.0
    %2422 = vmatpush1.xpose.msra.mxu0 0.0
    %2423 = vmatprep.subr.mxu0 0.0
    %2424 = vmatpush1.xpose.msra.mxu0 0.0
    %2425 = vmatprep.subr.mxu0 0.0
    %2426 = vmatpush1.xpose.msra.mxu0 0.0
    %2427 = vmatprep.subr.mxu0 0.0
    %2428 = vmatpush1.xpose.msra.mxu0 0.0
    %2429 = vmatprep.subr.mxu0 0.0
    %2430 = vmatpush1.xpose.msra.mxu0 0.0
    %2431 = vmatprep.subr.mxu0 0.0
    %2432 = vmatpush1.xpose.msra.mxu0 0.0
    %2433 = vmatprep.subr.mxu0 0.0
    %2434 = vmatpush1.xpose.msra.mxu0 0.0
    %2435 = vmatprep.subr.mxu0 0.0
    %2436 = vmatpush1.xpose.msra.mxu0 0.0
    %2437 = vmatprep.subr.mxu0 0.0
    %2438 = vmatpush1.xpose.msra.mxu0 0.0
    %2439 = vmatprep.subr.mxu0 0.0
    %2440 = vmatpush1.xpose.msra.mxu0 0.0
    %2441 = vmatprep.subr.mxu0 0.0
    %2442 = vmatpush1.xpose.msra.mxu0 0.0
    %2443 = vmatprep.subr.mxu0 0.0
    %2444 = vmatpush1.xpose.msra.mxu0 0.0
    %2445 = vmatprep.subr.mxu0 0.0
    %2446 = vmatpush1.xpose.msra.mxu0 0.0
    %2447 = vmatprep.subr.mxu0 0.0
    %2448 = vmatpush1.xpose.msra.mxu0 0.0
    %2449 = vmatprep.subr.mxu0 0.0
    %2450 = vmatpush1.xpose.msra.mxu0 %v2419
    %2451 = vmatprep.subr.mxu0 0.0
    %2452 = vmatpush1.xpose.msra.mxu0 %v2417
    %2453 = vmatprep.subr.mxu0 0.0
    %2454 = vmatpush2.xpose.msra.mxu0 0.0
    %2455 = vmatprep.subr.mxu0 0.0
    %2456 = vmatpush2.xpose.msra.mxu0 0.0
    %2457 = vmatprep.subr.mxu0 0.0
    %2458 = vmatpush2.xpose.msra.mxu0 0.0
    %2459 = vmatprep.subr.mxu0 0.0
    %2460 = vmatpush2.xpose.msra.mxu0 0.0
    %2461 = vmatprep.subr.mxu0 0.0
    %2462 = vmatpush2.xpose.msra.mxu0 0.0
    %2463 = vmatprep.subr.mxu0 0.0
    %2464 = vmatpush2.xpose.msra.mxu0 0.0
    %2465 = vmatprep.subr.mxu0 0.0
    %2466 = vmatpush2.xpose.msra.mxu0 0.0
    %2467 = vmatprep.subr.mxu0 0.0
    %2468 = vmatpush2.xpose.msra.mxu0 0.0
    %2469 = vmatprep.subr.mxu0 0.0
    %2470 = vmatpush2.xpose.msra.mxu0 0.0
    %2471 = vmatprep.subr.mxu0 0.0
    %2472 = vmatpush2.xpose.msra.mxu0 0.0
    %2473 = vmatprep.subr.mxu0 0.0
    %2474 = vmatpush2.xpose.msra.mxu0 0.0
    %2475 = vmatprep.subr.mxu0 0.0
    %2476 = vmatpush2.xpose.msra.mxu0 0.0
    %2477 = vmatprep.subr.mxu0 0.0
    %2478 = vmatpush2.xpose.msra.mxu0 0.0
    %2479 = vmatprep.subr.mxu0 0.0
    %2480 = vmatpush2.xpose.msra.mxu0 0.0
    %2481 = vmatprep.subr.mxu0 0.0
    %2482 = vmatpush2.xpose.msra.mxu0 0.0
    %2483 = vmatprep.subr.mxu0 0.0
    %2484 = vmatpush2.xpose.msra.mxu0 0.0
    %2485 = vmatprep.mubr.f32.mxu0 0.0
    %2486 = vmatmul.mubr.f32.gmra.mxu0 %v2413
    %v2487 = vpop.f32.mrf.mxu0
    %v2488 = vadd.f32 %v136, %v2487
    %v2489 = vpop.f32.mrf.mxu0
    %2490 = vmatprep.mubr.f32.mxu0 0.0
    %2491 = vmatmul.mubr.f32.gmra.mxu0 %v2415
    %v2492 = vpop.f32.mrf.mxu0
    %v2493 = vadd.f32 %v137, %v2492
    %v2494 = vpop.f32.mrf.mxu0
    %2495 = vdwg.mxu0
    %v2496 = vsel %vm512, %v2488, -inf
    %2497 = vmax.xlane.f32.xlu0 %v2496
    %v2498 = vpop.xlane.xlu0 %2497
    %v2499 = vsel %vm512, %v2493, -inf
    %2500 = vmax.xlane.f32.xlu0 %v2499
    %v2501 = vpop.xlane.xlu0 %2500
    %v2502 = vsub.f32 %v2488, %v2498
    %v2503 = vsub.f32 %v2493, %v2501
    %v2504 = vmul.f32 %v2502, 1.442695
    %v2505 = vpow.pop %v2504
    %v2506 = vmul.f32 %v2503, 1.442695
    %v2507 = vpow.pop %v2506
    %v2508 = vsel %vm512, %v2505, 0.0
    %2509 = vadd.xlane.f32.xlu0 %v2508
    %v2510 = vpop.xlane.xlu0 %2509
    %v2511 = vsel %vm512, %v2507, 0.0
    %2512 = vadd.xlane.f32.xlu0 %v2511
    %v2513 = vpop.xlane.xlu0 %2512
    %v2514 = vrcp.pop %v2510
    %v2515 = vrcp.pop %v2513
    %v2516 = vmul.f32 %v2505, %v2514
    %v2517 = vmul.f32 %v2507, %v2515
    %2518 = vrot.lane.b32.xlu0 %v1805, 104
    %v2519 = vpop.permute.xlu0 %2518
    %2520 = vrot.lane.b32.xlu0 %v1810, 104
    %v2521 = vpop.permute.xlu0 %2520
    %v2525 = vsel %vm512, %v2516, 0
    %v2528 = vsel %vm512, %v2517, 0
    %2530 = vmatprep.subr.mxu0 0.0
    %2531 = vmatpush1.msra.mxu0 0.0
    %2532 = vmatprep.subr.mxu0 0.0
    %2533 = vmatpush1.msra.mxu0 0.0
    %2534 = vmatprep.subr.mxu0 0.0
    %2535 = vmatpush1.msra.mxu0 0.0
    %2536 = vmatprep.subr.mxu0 0.0
    %2537 = vmatpush1.msra.mxu0 0.0
    %2538 = vmatprep.subr.mxu0 0.0
    %2539 = vmatpush1.msra.mxu0 0.0
    %2540 = vmatprep.subr.mxu0 0.0
    %2541 = vmatpush1.msra.mxu0 0.0
    %2542 = vmatprep.subr.mxu0 0.0
    %2543 = vmatpush1.msra.mxu0 0.0
    %2544 = vmatprep.subr.mxu0 0.0
    %2545 = vmatpush1.msra.mxu0 0.0
    %2546 = vmatprep.subr.mxu0 0.0
    %2547 = vmatpush1.msra.mxu0 0.0
    %2548 = vmatprep.subr.mxu0 0.0
    %2549 = vmatpush1.msra.mxu0 0.0
    %2550 = vmatprep.subr.mxu0 0.0
    %2551 = vmatpush1.msra.mxu0 0.0
    %2552 = vmatprep.subr.mxu0 0.0
    %2553 = vmatpush1.msra.mxu0 0.0
    %2554 = vmatprep.subr.mxu0 0.0
    %2555 = vmatpush1.msra.mxu0 0.0
    %2556 = vmatprep.subr.mxu0 0.0
    %2557 = vmatpush1.msra.mxu0 0.0
    %2558 = vmatprep.subr.mxu0 0.0
    %2559 = vmatpush1.msra.mxu0 %v2521
    %2560 = vmatprep.subr.mxu0 0.0
    %2561 = vmatpush1.msra.mxu0 %v2519
    %2562 = vmatprep.subr.mxu0 0.0
    %2563 = vmatpush2.msra.mxu0 0.0
    %2564 = vmatprep.subr.mxu0 0.0
    %2565 = vmatpush2.msra.mxu0 0.0
    %2566 = vmatprep.subr.mxu0 0.0
    %2567 = vmatpush2.msra.mxu0 0.0
    %2568 = vmatprep.subr.mxu0 0.0
    %2569 = vmatpush2.msra.mxu0 0.0
    %2570 = vmatprep.subr.mxu0 0.0
    %2571 = vmatpush2.msra.mxu0 0.0
    %2572 = vmatprep.subr.mxu0 0.0
    %2573 = vmatpush2.msra.mxu0 0.0
    %2574 = vmatprep.subr.mxu0 0.0
    %2575 = vmatpush2.msra.mxu0 0.0
    %2576 = vmatprep.subr.mxu0 0.0
    %2577 = vmatpush2.msra.mxu0 0.0
    %2578 = vmatprep.subr.mxu0 0.0
    %2579 = vmatpush2.msra.mxu0 0.0
    %2580 = vmatprep.subr.mxu0 0.0
    %2581 = vmatpush2.msra.mxu0 0.0
    %2582 = vmatprep.subr.mxu0 0.0
    %2583 = vmatpush2.msra.mxu0 0.0
    %2584 = vmatprep.subr.mxu0 0.0
    %2585 = vmatpush2.msra.mxu0 0.0
    %2586 = vmatprep.subr.mxu0 0.0
    %2587 = vmatpush2.msra.mxu0 0.0
    %2588 = vmatprep.subr.mxu0 0.0
    %2589 = vmatpush2.msra.mxu0 0.0
    %2590 = vmatprep.subr.mxu0 0.0
    %2591 = vmatpush2.msra.mxu0 0.0
    %2592 = vmatprep.subr.mxu0 0.0
    %2593 = vmatpush2.msra.mxu0 0.0
    %2594 = vmatprep.mubr.f32.mxu0 0.0
    %2595 = vmatmul.mubr.f32.gmra.mxu0 %v2525
    %v2596 = vpop.f32.mrf.mxu0
    %v2597 = vadd.f32 0.0, %v2596
    %v2598 = vpop.f32.mrf.mxu0
    %2599 = vmatprep.mubr.f32.mxu0 0.0
    %2600 = vmatmul.mubr.f32.gmra.mxu0 %v2528
    %v2601 = vpop.f32.mrf.mxu0
    %v2602 = vadd.f32 0.0, %v2601
    %v2603 = vpop.f32.mrf.mxu0
    %2604 = vdwg.mxu0
    %2607 = vrot.lane.b32.xlu0 %v2197, 8
    %v2608 = vpop.permute.xlu0 %2607
    %2609 = vrot.lane.b32.xlu0 %v2202, 8
    %v2610 = vpop.permute.xlu0 %2609
    %2615 = vrot.lane.b32.xlu0 %v2397, 16
    %v2616 = vpop.permute.xlu0 %2615
    %2617 = vrot.lane.b32.xlu0 %v2402, 16
    %v2618 = vpop.permute.xlu0 %2617
    %2623 = vrot.lane.b32.xlu0 %v2597, 24
    %v2624 = vpop.permute.xlu0 %2623
    %2625 = vrot.lane.b32.xlu0 %v2602, 24
    %v2626 = vpop.permute.xlu0 %2625
    %v2629 = vsel %vm424, %v1995, %v2608
    %v2630 = vsel %vm424, %v2000, %v2610
    %v2631 = vsel %vm512, %v2629, %v2616
    %v2632 = vsel %vm512, %v2630, %v2618
    %v2633 = vsel %vm1246, %v2631, %v2624
    %v2634 = vsel %vm1246, %v2632, %v2626
    %v2636 = vsel %vm153, %v2633, 0
    %v2639 = vsel %vm153, %v2634, 0
    %2641 = vmatprep.subr.mxu0 0.0
    %2642 = vmatpush1.msra.mxu0 0.0
    %2643 = vmatprep.subr.mxu0 0.0
    %2644 = vmatpush1.msra.mxu0 0.0
    %2645 = vmatprep.subr.mxu0 0.0
    %2646 = vmatpush1.msra.mxu0 0.0
    %2647 = vmatprep.subr.mxu0 0.0
    %2648 = vmatpush1.msra.mxu0 0.0
    %2649 = vmatprep.subr.mxu0 0.0
    %2650 = vmatpush1.msra.mxu0 0.0
    %2651 = vmatprep.subr.mxu0 0.0
    %2652 = vmatpush1.msra.mxu0 0.0
    %2653 = vmatprep.subr.mxu0 0.0
    %2654 = vmatpush1.msra.mxu0 0.0
    %2655 = vmatprep.subr.mxu0 0.0
    %2656 = vmatpush1.msra.mxu0 0.0
    %2657 = vmatprep.subr.mxu0 0.0
    %2658 = vmatpush1.msra.mxu0 0.0
    %2659 = vmatprep.subr.mxu0 0.0
    %2660 = vmatpush1.msra.mxu0 0.0
    %2661 = vmatprep.subr.mxu0 0.0
    %2662 = vmatpush1.msra.mxu0 0.0
    %2663 = vmatprep.subr.mxu0 0.0
    %2664 = vmatpush1.msra.mxu0 0.0
    %2665 = vmatprep.subr.mxu0 0.0
    %2666 = vmatpush1.msra.mxu0 %v1581
    %2667 = vmatprep.subr.mxu0 0.0
    %2668 = vmatpush1.msra.mxu0 %v1580
    %2669 = vmatprep.subr.mxu0 0.0
    %2670 = vmatpush1.msra.mxu0 %v1579
    %2671 = vmatprep.subr.mxu0 0.0
    %2672 = vmatpush1.msra.mxu0 %v1578
    %2673 = vmatprep.subr.mxu0 0.0
    %2674 = vmatpush2.msra.mxu0 0.0
    %2675 = vmatprep.subr.mxu0 0.0
    %2676 = vmatpush2.msra.mxu0 0.0
    %2677 = vmatprep.subr.mxu0 0.0
    %2678 = vmatpush2.msra.mxu0 0.0
    %2679 = vmatprep.subr.mxu0 0.0
    %2680 = vmatpush2.msra.mxu0 0.0
    %2681 = vmatprep.subr.mxu0 0.0
    %2682 = vmatpush2.msra.mxu0 0.0
    %2683 = vmatprep.subr.mxu0 0.0
    %2684 = vmatpush2.msra.mxu0 0.0
    %2685 = vmatprep.subr.mxu0 0.0
    %2686 = vmatpush2.msra.mxu0 0.0
    %2687 = vmatprep.subr.mxu0 0.0
    %2688 = vmatpush2.msra.mxu0 0.0
    %2689 = vmatprep.subr.mxu0 0.0
    %2690 = vmatpush2.msra.mxu0 0.0
    %2691 = vmatprep.subr.mxu0 0.0
    %2692 = vmatpush2.msra.mxu0 0.0
    %2693 = vmatprep.subr.mxu0 0.0
    %2694 = vmatpush2.msra.mxu0 0.0
    %2695 = vmatprep.subr.mxu0 0.0
    %2696 = vmatpush2.msra.mxu0 0.0
    %2697 = vmatprep.subr.mxu0 0.0
    %2698 = vmatpush2.msra.mxu0 0.0
    %2699 = vmatprep.subr.mxu0 0.0
    %2700 = vmatpush2.msra.mxu0 0.0
    %2701 = vmatprep.subr.mxu0 0.0
    %2702 = vmatpush2.msra.mxu0 0.0
    %2703 = vmatprep.subr.mxu0 0.0
    %2704 = vmatpush2.msra.mxu0 0.0
    %2705 = vmatprep.mubr.f32.mxu0 0.0
    %2706 = vmatmul.mubr.f32.gmra.mxu0 %v2636
    %v2707 = vpop.f32.mrf.mxu0
    %v2708 = vadd.f32 0.0, %v2707
    %v2709 = vpop.f32.mrf.mxu0
    %2710 = vmatprep.mubr.f32.mxu0 0.0
    %2711 = vmatmul.mubr.f32.gmra.mxu0 %v2639
    %v2712 = vpop.f32.mrf.mxu0
    %v2713 = vadd.f32 0.0, %v2712
    %v2714 = vpop.f32.mrf.mxu0
    %2715 = vdwg.mxu0
    %v2716 = vadd.f32 %v1534, %v2708
    %v2717 = vadd.f32 %v1535, %v2713
    %s2718 = scalar_lea.vmem %s23, 1
    %v2719 = vld [vmem:[%s2718] sm:$0x1]
    %v2720 = vmul.f32 %v2716, %v2716
    %v2721 = vmul.f32 %v2717, %v2717
    %v2722 = vsel %vm153, %v2720, 0.0
    %2723 = vadd.xlane.f32.xlu0 %v2722
    %v2724 = vpop.xlane.xlu0 %2723
    %v2725 = vsel %vm153, %v2721, 0.0
    %2726 = vadd.xlane.f32.xlu0 %v2725
    %v2727 = vpop.xlane.xlu0 %2726
    %v2728 = vmul.f32 %v2724, %v160
    %v2729 = vmul.f32 %v2727, %v160
    %v2730 = vadd.f32 %v2728, 1e-06
    %v2731 = vadd.f32 %v2729, 1e-06
    %v2732 = vrsqrt.pop %v2730
    %v2733 = vrsqrt.pop %v2731
    %v2734 = vmul.f32 %v2716, %v2732
    %v2735 = vmul.f32 %v2717, %v2733
    %v2737 = vlaneseq
    %v2738 = vshrl.u32 %v2737, 7
    %v2739 = vsub.s32 0, %v2738
    %v2740 = vrot.slane %v2719, %v2739
    %v2742 = vmul.f32 %v2734, %v2740
    %v2743 = vmul.f32 %v2735, %v2740
    %s2744 = scalar_lea.vmem %s25, 32
    %v2745 = vld [vmem:[%s2744] sm:$0xff]
    %v2746 = vld [vmem:[%s2744 + $0x8] sm:$0xff]
    %v2747 = vld [vmem:[%s2744 + $0x10] sm:$0xff]
    %v2748 = vld [vmem:[%s2744 + $0x18] sm:$0xff]
    %v2750 = vsel %vm153, %v2742, 0
    %v2753 = vsel %vm153, %v2743, 0
    %2755 = vmatprep.subr.mxu0 0.0
    %2756 = vmatpush1.msra.mxu0 0.0
    %2757 = vmatprep.subr.mxu0 0.0
    %2758 = vmatpush1.msra.mxu0 0.0
    %2759 = vmatprep.subr.mxu0 0.0
    %2760 = vmatpush1.msra.mxu0 0.0
    %2761 = vmatprep.subr.mxu0 0.0
    %2762 = vmatpush1.msra.mxu0 0.0
    %2763 = vmatprep.subr.mxu0 0.0
    %2764 = vmatpush1.msra.mxu0 0.0
    %2765 = vmatprep.subr.mxu0 0.0
    %2766 = vmatpush1.msra.mxu0 0.0
    %2767 = vmatprep.subr.mxu0 0.0
    %2768 = vmatpush1.msra.mxu0 0.0
    %2769 = vmatprep.subr.mxu0 0.0
    %2770 = vmatpush1.msra.mxu0 0.0
    %2771 = vmatprep.subr.mxu0 0.0
    %2772 = vmatpush1.msra.mxu0 0.0
    %2773 = vmatprep.subr.mxu0 0.0
    %2774 = vmatpush1.msra.mxu0 0.0
    %2775 = vmatprep.subr.mxu0 0.0
    %2776 = vmatpush1.msra.mxu0 0.0
    %2777 = vmatprep.subr.mxu0 0.0
    %2778 = vmatpush1.msra.mxu0 0.0
    %2779 = vmatprep.subr.mxu0 0.0
    %2780 = vmatpush1.msra.mxu0 %v2748
    %2781 = vmatprep.subr.mxu0 0.0
    %2782 = vmatpush1.msra.mxu0 %v2747
    %2783 = vmatprep.subr.mxu0 0.0
    %2784 = vmatpush1.msra.mxu0 %v2746
    %2785 = vmatprep.subr.mxu0 0.0
    %2786 = vmatpush1.msra.mxu0 %v2745
    %2787 = vmatprep.subr.mxu0 0.0
    %2788 = vmatpush2.msra.mxu0 0.0
    %2789 = vmatprep.subr.mxu0 0.0
    %2790 = vmatpush2.msra.mxu0 0.0
    %2791 = vmatprep.subr.mxu0 0.0
    %2792 = vmatpush2.msra.mxu0 0.0
    %2793 = vmatprep.subr.mxu0 0.0
    %2794 = vmatpush2.msra.mxu0 0.0
    %2795 = vmatprep.subr.mxu0 0.0
    %2796 = vmatpush2.msra.mxu0 0.0
    %2797 = vmatprep.subr.mxu0 0.0
    %2798 = vmatpush2.msra.mxu0 0.0
    %2799 = vmatprep.subr.mxu0 0.0
    %2800 = vmatpush2.msra.mxu0 0.0
    %2801 = vmatprep.subr.mxu0 0.0
    %2802 = vmatpush2.msra.mxu0 0.0
    %2803 = vmatprep.subr.mxu0 0.0
    %2804 = vmatpush2.msra.mxu0 0.0
    %2805 = vmatprep.subr.mxu0 0.0
    %2806 = vmatpush2.msra.mxu0 0.0
    %2807 = vmatprep.subr.mxu0 0.0
    %2808 = vmatpush2.msra.mxu0 0.0
    %2809 = vmatprep.subr.mxu0 0.0
    %2810 = vmatpush2.msra.mxu0 0.0
    %2811 = vmatprep.subr.mxu0 0.0
    %2812 = vmatpush2.msra.mxu0 0.0
    %2813 = vmatprep.subr.mxu0 0.0
    %2814 = vmatpush2.msra.mxu0 0.0
    %2815 = vmatprep.subr.mxu0 0.0
    %2816 = vmatpush2.msra.mxu0 0.0
    %2817 = vmatprep.subr.mxu0 0.0
    %2818 = vmatpush2.msra.mxu0 0.0
    %2819 = vmatprep.mubr.f32.mxu0 0.0
    %2820 = vmatmul.mubr.f32.gmra.mxu0 %v2750
    %v2821 = vpop.f32.mrf.mxu0
    %v2822 = vadd.f32 0.0, %v2821
    %v2823 = vpop.f32.mrf.mxu0
    %2824 = vmatprep.mubr.f32.mxu0 0.0
    %2825 = vmatmul.mubr.f32.gmra.mxu0 %v2753
    %v2826 = vpop.f32.mrf.mxu0
    %v2827 = vadd.f32 0.0, %v2826
    %v2828 = vpop.f32.mrf.mxu0
    %2829 = vdwg.mxu0
    %v2830 = vmax.f32 %v2822, 0.0
    %v2831 = vmax.f32 %v2827, 0.0
    %s2832 = scalar_lea.vmem %s27, 64
    %v2833 = vld [vmem:[%s2832] sm:$0xff]
    %v2834 = vld [vmem:[%s2832 + $0x8] sm:$0xff]
    %v2835 = vld [vmem:[%s2832 + $0x10] sm:$0xff]
    %v2836 = vld [vmem:[%s2832 + $0x18] sm:$0xff]
    %v2837 = vld [vmem:[%s2832 + $0x20] sm:$0xff]
    %v2838 = vld [vmem:[%s2832 + $0x28] sm:$0xff]
    %v2839 = vld [vmem:[%s2832 + $0x30] sm:$0xff]
    %v2840 = vld [vmem:[%s2832 + $0x38] sm:$0xff]
    %v2842 = vsel %vm1452, %v2830, 0
    %v2845 = vsel %vm1452, %v2831, 0
    %2847 = vmatprep.subr.mxu0 0.0
    %2848 = vmatpush1.msra.mxu0 0.0
    %2849 = vmatprep.subr.mxu0 0.0
    %2850 = vmatpush1.msra.mxu0 0.0
    %2851 = vmatprep.subr.mxu0 0.0
    %2852 = vmatpush1.msra.mxu0 0.0
    %2853 = vmatprep.subr.mxu0 0.0
    %2854 = vmatpush1.msra.mxu0 0.0
    %2855 = vmatprep.subr.mxu0 0.0
    %2856 = vmatpush1.msra.mxu0 0.0
    %2857 = vmatprep.subr.mxu0 0.0
    %2858 = vmatpush1.msra.mxu0 0.0
    %2859 = vmatprep.subr.mxu0 0.0
    %2860 = vmatpush1.msra.mxu0 0.0
    %2861 = vmatprep.subr.mxu0 0.0
    %2862 = vmatpush1.msra.mxu0 0.0
    %2863 = vmatprep.subr.mxu0 0.0
    %2864 = vmatpush1.msra.mxu0 %v2840
    %2865 = vmatprep.subr.mxu0 0.0
    %2866 = vmatpush1.msra.mxu0 %v2839
    %2867 = vmatprep.subr.mxu0 0.0
    %2868 = vmatpush1.msra.mxu0 %v2838
    %2869 = vmatprep.subr.mxu0 0.0
    %2870 = vmatpush1.msra.mxu0 %v2837
    %2871 = vmatprep.subr.mxu0 0.0
    %2872 = vmatpush1.msra.mxu0 %v2836
    %2873 = vmatprep.subr.mxu0 0.0
    %2874 = vmatpush1.msra.mxu0 %v2835
    %2875 = vmatprep.subr.mxu0 0.0
    %2876 = vmatpush1.msra.mxu0 %v2834
    %2877 = vmatprep.subr.mxu0 0.0
    %2878 = vmatpush1.msra.mxu0 %v2833
    %2879 = vmatprep.subr.mxu0 0.0
    %2880 = vmatpush2.msra.mxu0 0.0
    %2881 = vmatprep.subr.mxu0 0.0
    %2882 = vmatpush2.msra.mxu0 0.0
    %2883 = vmatprep.subr.mxu0 0.0
    %2884 = vmatpush2.msra.mxu0 0.0
    %2885 = vmatprep.subr.mxu0 0.0
    %2886 = vmatpush2.msra.mxu0 0.0
    %2887 = vmatprep.subr.mxu0 0.0
    %2888 = vmatpush2.msra.mxu0 0.0
    %2889 = vmatprep.subr.mxu0 0.0
    %2890 = vmatpush2.msra.mxu0 0.0
    %2891 = vmatprep.subr.mxu0 0.0
    %2892 = vmatpush2.msra.mxu0 0.0
    %2893 = vmatprep.subr.mxu0 0.0
    %2894 = vmatpush2.msra.mxu0 0.0
    %2895 = vmatprep.subr.mxu0 0.0
    %2896 = vmatpush2.msra.mxu0 0.0
    %2897 = vmatprep.subr.mxu0 0.0
    %2898 = vmatpush2.msra.mxu0 0.0
    %2899 = vmatprep.subr.mxu0 0.0
    %2900 = vmatpush2.msra.mxu0 0.0
    %2901 = vmatprep.subr.mxu0 0.0
    %2902 = vmatpush2.msra.mxu0 0.0
    %2903 = vmatprep.subr.mxu0 0.0
    %2904 = vmatpush2.msra.mxu0 0.0
    %2905 = vmatprep.subr.mxu0 0.0
    %2906 = vmatpush2.msra.mxu0 0.0
    %2907 = vmatprep.subr.mxu0 0.0
    %2908 = vmatpush2.msra.mxu0 0.0
    %2909 = vmatprep.subr.mxu0 0.0
    %2910 = vmatpush2.msra.mxu0 0.0
    %2911 = vmatprep.mubr.f32.mxu0 0.0
    %2912 = vmatmul.mubr.f32.gmra.mxu0 %v2842
    %v2913 = vpop.f32.mrf.mxu0
    %v2914 = vadd.f32 0.0, %v2913
    %v2915 = vpop.f32.mrf.mxu0
    %2916 = vmatprep.mubr.f32.mxu0 0.0
    %2917 = vmatmul.mubr.f32.gmra.mxu0 %v2845
    %v2918 = vpop.f32.mrf.mxu0
    %v2919 = vadd.f32 0.0, %v2918
    %v2920 = vpop.f32.mrf.mxu0
    %2921 = vdwg.mxu0
    %v2922 = vadd.f32 %v2716, %v2914
    %v2923 = vadd.f32 %v2717, %v2919
    %v2924 = vld [vmem:[%s29] sm:$0x1]
    %v2925 = vmul.f32 %v2922, %v2922
    %v2926 = vmul.f32 %v2923, %v2923
    %v2927 = vsel %vm153, %v2925, 0.0
    %2928 = vadd.xlane.f32.xlu0 %v2927
    %v2929 = vpop.xlane.xlu0 %2928
    %v2930 = vsel %vm153, %v2926, 0.0
    %2931 = vadd.xlane.f32.xlu0 %v2930
    %v2932 = vpop.xlane.xlu0 %2931
    %v2933 = vmul.f32 %v2929, %v160
    %v2934 = vmul.f32 %v2932, %v160
    %v2935 = vadd.f32 %v2933, 1e-06
    %v2936 = vadd.f32 %v2934, 1e-06
    %v2937 = vrsqrt.pop %v2935
    %v2938 = vrsqrt.pop %v2936
    %v2939 = vmul.f32 %v2922, %v2937
    %v2940 = vmul.f32 %v2923, %v2938
    %v2942 = vlaneseq
    %v2943 = vshrl.u32 %v2942, 7
    %v2944 = vsub.s32 0, %v2943
    %v2945 = vrot.slane %v2924, %v2944
    %v2947 = vmul.f32 %v2939, %v2945
    %v2948 = vmul.f32 %v2940, %v2945
    %v2949 = vld [vmem:[%s3] sm:$0xff]
    %v2950 = vld [vmem:[%s3 + $0x8] sm:$0xff]
    %v2951 = vld [vmem:[%s31] sm:$0x1]
    %v2952 = vmul.f32 %v2949, %v2949
    %v2953 = vmul.f32 %v2950, %v2950
    %v2954 = vsel %vm153, %v2952, 0.0
    %2955 = vadd.xlane.f32.xlu0 %v2954
    %v2956 = vpop.xlane.xlu0 %2955
    %v2957 = vsel %vm153, %v2953, 0.0
    %2958 = vadd.xlane.f32.xlu0 %v2957
    %v2959 = vpop.xlane.xlu0 %2958
    %v2960 = vmul.f32 %v2956, %v160
    %v2961 = vmul.f32 %v2959, %v160
    %v2962 = vadd.f32 %v2960, 1e-06
    %v2963 = vadd.f32 %v2961, 1e-06
    %v2964 = vrsqrt.pop %v2962
    %v2965 = vrsqrt.pop %v2963
    %v2966 = vmul.f32 %v2949, %v2964
    %v2967 = vmul.f32 %v2950, %v2965
    %v2969 = vlaneseq
    %v2970 = vshrl.u32 %v2969, 7
    %v2971 = vsub.s32 0, %v2970
    %v2972 = vrot.slane %v2951, %v2971
    %v2974 = vmul.f32 %v2966, %v2972
    %v2975 = vmul.f32 %v2967, %v2972
    %v2976 = vld [vmem:[%s33] sm:$0xff]
    %v2977 = vld [vmem:[%s33 + $0x8] sm:$0xff]
    %v2978 = vld [vmem:[%s33 + $0x10] sm:$0xff]
    %v2979 = vld [vmem:[%s33 + $0x18] sm:$0xff]
    %v2980 = vld [vmem:[%s35] sm:$0xff]
    %v2981 = vld [vmem:[%s35 + $0x8] sm:$0xff]
    %v2982 = vld [vmem:[%s35 + $0x10] sm:$0xff]
    %v2983 = vld [vmem:[%s35 + $0x18] sm:$0xff]
    %v2984 = vld [vmem:[%s37] sm:$0xff]
    %v2985 = vld [vmem:[%s37 + $0x8] sm:$0xff]
    %v2986 = vld [vmem:[%s37 + $0x10] sm:$0xff]
    %v2987 = vld [vmem:[%s37 + $0x18] sm:$0xff]
    %v2988 = vld [vmem:[%s39] sm:$0xff]
    %v2989 = vld [vmem:[%s39 + $0x8] sm:$0xff]
    %v2990 = vld [vmem:[%s39 + $0x10] sm:$0xff]
    %v2991 = vld [vmem:[%s39 + $0x18] sm:$0xff]
    %v2993 = vsel %vm153, %v2974, 0
    %v2996 = vsel %vm153, %v2975, 0
    %2998 = vmatprep.subr.mxu0 0.0
    %2999 = vmatpush1.msra.mxu0 0.0
    %3000 = vmatprep.subr.mxu0 0.0
    %3001 = vmatpush1.msra.mxu0 0.0
    %3002 = vmatprep.subr.mxu0 0.0
    %3003 = vmatpush1.msra.mxu0 0.0
    %3004 = vmatprep.subr.mxu0 0.0
    %3005 = vmatpush1.msra.mxu0 0.0
    %3006 = vmatprep.subr.mxu0 0.0
    %3007 = vmatpush1.msra.mxu0 0.0
    %3008 = vmatprep.subr.mxu0 0.0
    %3009 = vmatpush1.msra.mxu0 0.0
    %3010 = vmatprep.subr.mxu0 0.0
    %3011 = vmatpush1.msra.mxu0 0.0
    %3012 = vmatprep.subr.mxu0 0.0
    %3013 = vmatpush1.msra.mxu0 0.0
    %3014 = vmatprep.subr.mxu0 0.0
    %3015 = vmatpush1.msra.mxu0 0.0
    %3016 = vmatprep.subr.mxu0 0.0
    %3017 = vmatpush1.msra.mxu0 0.0
    %3018 = vmatprep.subr.mxu0 0.0
    %3019 = vmatpush1.msra.mxu0 0.0
    %3020 = vmatprep.subr.mxu0 0.0
    %3021 = vmatpush1.msra.mxu0 0.0
    %3022 = vmatprep.subr.mxu0 0.0
    %3023 = vmatpush1.msra.mxu0 %v2979
    %3024 = vmatprep.subr.mxu0 0.0
    %3025 = vmatpush1.msra.mxu0 %v2978
    %3026 = vmatprep.subr.mxu0 0.0
    %3027 = vmatpush1.msra.mxu0 %v2977
    %3028 = vmatprep.subr.mxu0 0.0
    %3029 = vmatpush1.msra.mxu0 %v2976
    %3030 = vmatprep.subr.mxu0 0.0
    %3031 = vmatpush2.msra.mxu0 0.0
    %3032 = vmatprep.subr.mxu0 0.0
    %3033 = vmatpush2.msra.mxu0 0.0
    %3034 = vmatprep.subr.mxu0 0.0
    %3035 = vmatpush2.msra.mxu0 0.0
    %3036 = vmatprep.subr.mxu0 0.0
    %3037 = vmatpush2.msra.mxu0 0.0
    %3038 = vmatprep.subr.mxu0 0.0
    %3039 = vmatpush2.msra.mxu0 0.0
    %3040 = vmatprep.subr.mxu0 0.0
    %3041 = vmatpush2.msra.mxu0 0.0
    %3042 = vmatprep.subr.mxu0 0.0
    %3043 = vmatpush2.msra.mxu0 0.0
    %3044 = vmatprep.subr.mxu0 0.0
    %3045 = vmatpush2.msra.mxu0 0.0
    %3046 = vmatprep.subr.mxu0 0.0
    %3047 = vmatpush2.msra.mxu0 0.0
    %3048 = vmatprep.subr.mxu0 0.0
    %3049 = vmatpush2.msra.mxu0 0.0
    %3050 = vmatprep.subr.mxu0 0.0
    %3051 = vmatpush2.msra.mxu0 0.0
    %3052 = vmatprep.subr.mxu0 0.0
    %3053 = vmatpush2.msra.mxu0 0.0
    %3054 = vmatprep.subr.mxu0 0.0
    %3055 = vmatpush2.msra.mxu0 0.0
    %3056 = vmatprep.subr.mxu0 0.0
    %3057 = vmatpush2.msra.mxu0 0.0
    %3058 = vmatprep.subr.mxu0 0.0
    %3059 = vmatpush2.msra.mxu0 0.0
    %3060 = vmatprep.subr.mxu0 0.0
    %3061 = vmatpush2.msra.mxu0 0.0
    %3062 = vmatprep.mubr.f32.mxu0 0.0
    %3063 = vmatmul.mubr.f32.gmra.mxu0 %v2993
    %v3064 = vpop.f32.mrf.mxu0
    %v3065 = vadd.f32 0.0, %v3064
    %v3066 = vpop.f32.mrf.mxu0
    %3067 = vmatprep.mubr.f32.mxu0 0.0
    %3068 = vmatmul.mubr.f32.gmra.mxu0 %v2996
    %v3069 = vpop.f32.mrf.mxu0
    %v3070 = vadd.f32 0.0, %v3069
    %v3071 = vpop.f32.mrf.mxu0
    %3072 = vdwg.mxu0
    %3073 = vmatprep.subr.mxu0 0.0
    %3074 = vmatpush1.msra.mxu0 0.0
    %3075 = vmatprep.subr.mxu0 0.0
    %3076 = vmatpush1.msra.mxu0 0.0
    %3077 = vmatprep.subr.mxu0 0.0
    %3078 = vmatpush1.msra.mxu0 0.0
    %3079 = vmatprep.subr.mxu0 0.0
    %3080 = vmatpush1.msra.mxu0 0.0
    %3081 = vmatprep.subr.mxu0 0.0
    %3082 = vmatpush1.msra.mxu0 0.0
    %3083 = vmatprep.subr.mxu0 0.0
    %3084 = vmatpush1.msra.mxu0 0.0
    %3085 = vmatprep.subr.mxu0 0.0
    %3086 = vmatpush1.msra.mxu0 0.0
    %3087 = vmatprep.subr.mxu0 0.0
    %3088 = vmatpush1.msra.mxu0 0.0
    %3089 = vmatprep.subr.mxu0 0.0
    %3090 = vmatpush1.msra.mxu0 0.0
    %3091 = vmatprep.subr.mxu0 0.0
    %3092 = vmatpush1.msra.mxu0 0.0
    %3093 = vmatprep.subr.mxu0 0.0
    %3094 = vmatpush1.msra.mxu0 0.0
    %3095 = vmatprep.subr.mxu0 0.0
    %3096 = vmatpush1.msra.mxu0 0.0
    %3097 = vmatprep.subr.mxu0 0.0
    %3098 = vmatpush1.msra.mxu0 %v2983
    %3099 = vmatprep.subr.mxu0 0.0
    %3100 = vmatpush1.msra.mxu0 %v2982
    %3101 = vmatprep.subr.mxu0 0.0
    %3102 = vmatpush1.msra.mxu0 %v2981
    %3103 = vmatprep.subr.mxu0 0.0
    %3104 = vmatpush1.msra.mxu0 %v2980
    %3105 = vmatprep.subr.mxu0 0.0
    %3106 = vmatpush2.msra.mxu0 0.0
    %3107 = vmatprep.subr.mxu0 0.0
    %3108 = vmatpush2.msra.mxu0 0.0
    %3109 = vmatprep.subr.mxu0 0.0
    %3110 = vmatpush2.msra.mxu0 0.0
    %3111 = vmatprep.subr.mxu0 0.0
    %3112 = vmatpush2.msra.mxu0 0.0
    %3113 = vmatprep.subr.mxu0 0.0
    %3114 = vmatpush2.msra.mxu0 0.0
    %3115 = vmatprep.subr.mxu0 0.0
    %3116 = vmatpush2.msra.mxu0 0.0
    %3117 = vmatprep.subr.mxu0 0.0
    %3118 = vmatpush2.msra.mxu0 0.0
    %3119 = vmatprep.subr.mxu0 0.0
    %3120 = vmatpush2.msra.mxu0 0.0
    %3121 = vmatprep.subr.mxu0 0.0
    %3122 = vmatpush2.msra.mxu0 0.0
    %3123 = vmatprep.subr.mxu0 0.0
    %3124 = vmatpush2.msra.mxu0 0.0
    %3125 = vmatprep.subr.mxu0 0.0
    %3126 = vmatpush2.msra.mxu0 0.0
    %3127 = vmatprep.subr.mxu0 0.0
    %3128 = vmatpush2.msra.mxu0 0.0
    %3129 = vmatprep.subr.mxu0 0.0
    %3130 = vmatpush2.msra.mxu0 0.0
    %3131 = vmatprep.subr.mxu0 0.0
    %3132 = vmatpush2.msra.mxu0 0.0
    %3133 = vmatprep.subr.mxu0 0.0
    %3134 = vmatpush2.msra.mxu0 0.0
    %3135 = vmatprep.subr.mxu0 0.0
    %3136 = vmatpush2.msra.mxu0 0.0
    %3137 = vmatprep.mubr.f32.mxu0 0.0
    %3138 = vmatmul.mubr.f32.gmra.mxu0 %v2993
    %v3139 = vpop.f32.mrf.mxu0
    %v3140 = vadd.f32 0.0, %v3139
    %v3141 = vpop.f32.mrf.mxu0
    %3142 = vmatprep.mubr.f32.mxu0 0.0
    %3143 = vmatmul.mubr.f32.gmra.mxu0 %v2996
    %v3144 = vpop.f32.mrf.mxu0
    %v3145 = vadd.f32 0.0, %v3144
    %v3146 = vpop.f32.mrf.mxu0
    %3147 = vdwg.mxu0
    %3148 = vmatprep.subr.mxu0 0.0
    %3149 = vmatpush1.msra.mxu0 0.0
    %3150 = vmatprep.subr.mxu0 0.0
    %3151 = vmatpush1.msra.mxu0 0.0
    %3152 = vmatprep.subr.mxu0 0.0
    %3153 = vmatpush1.msra.mxu0 0.0
    %3154 = vmatprep.subr.mxu0 0.0
    %3155 = vmatpush1.msra.mxu0 0.0
    %3156 = vmatprep.subr.mxu0 0.0
    %3157 = vmatpush1.msra.mxu0 0.0
    %3158 = vmatprep.subr.mxu0 0.0
    %3159 = vmatpush1.msra.mxu0 0.0
    %3160 = vmatprep.subr.mxu0 0.0
    %3161 = vmatpush1.msra.mxu0 0.0
    %3162 = vmatprep.subr.mxu0 0.0
    %3163 = vmatpush1.msra.mxu0 0.0
    %3164 = vmatprep.subr.mxu0 0.0
    %3165 = vmatpush1.msra.mxu0 0.0
    %3166 = vmatprep.subr.mxu0 0.0
    %3167 = vmatpush1.msra.mxu0 0.0
    %3168 = vmatprep.subr.mxu0 0.0
    %3169 = vmatpush1.msra.mxu0 0.0
    %3170 = vmatprep.subr.mxu0 0.0
    %3171 = vmatpush1.msra.mxu0 0.0
    %3172 = vmatprep.subr.mxu0 0.0
    %3173 = vmatpush1.msra.mxu0 %v2987
    %3174 = vmatprep.subr.mxu0 0.0
    %3175 = vmatpush1.msra.mxu0 %v2986
    %3176 = vmatprep.subr.mxu0 0.0
    %3177 = vmatpush1.msra.mxu0 %v2985
    %3178 = vmatprep.subr.mxu0 0.0
    %3179 = vmatpush1.msra.mxu0 %v2984
    %3180 = vmatprep.subr.mxu0 0.0
    %3181 = vmatpush2.msra.mxu0 0.0
    %3182 = vmatprep.subr.mxu0 0.0
    %3183 = vmatpush2.msra.mxu0 0.0
    %3184 = vmatprep.subr.mxu0 0.0
    %3185 = vmatpush2.msra.mxu0 0.0
    %3186 = vmatprep.subr.mxu0 0.0
    %3187 = vmatpush2.msra.mxu0 0.0
    %3188 = vmatprep.subr.mxu0 0.0
    %3189 = vmatpush2.msra.mxu0 0.0
    %3190 = vmatprep.subr.mxu0 0.0
    %3191 = vmatpush2.msra.mxu0 0.0
    %3192 = vmatprep.subr.mxu0 0.0
    %3193 = vmatpush2.msra.mxu0 0.0
    %3194 = vmatprep.subr.mxu0 0.0
    %3195 = vmatpush2.msra.mxu0 0.0
    %3196 = vmatprep.subr.mxu0 0.0
    %3197 = vmatpush2.msra.mxu0 0.0
    %3198 = vmatprep.subr.mxu0 0.0
    %3199 = vmatpush2.msra.mxu0 0.0
    %3200 = vmatprep.subr.mxu0 0.0
    %3201 = vmatpush2.msra.mxu0 0.0
    %3202 = vmatprep.subr.mxu0 0.0
    %3203 = vmatpush2.msra.mxu0 0.0
    %3204 = vmatprep.subr.mxu0 0.0
    %3205 = vmatpush2.msra.mxu0 0.0
    %3206 = vmatprep.subr.mxu0 0.0
    %3207 = vmatpush2.msra.mxu0 0.0
    %3208 = vmatprep.subr.mxu0 0.0
    %3209 = vmatpush2.msra.mxu0 0.0
    %3210 = vmatprep.subr.mxu0 0.0
    %3211 = vmatpush2.msra.mxu0 0.0
    %3212 = vmatprep.mubr.f32.mxu0 0.0
    %3213 = vmatmul.mubr.f32.gmra.mxu0 %v2993
    %v3214 = vpop.f32.mrf.mxu0
    %v3215 = vadd.f32 0.0, %v3214
    %v3216 = vpop.f32.mrf.mxu0
    %3217 = vmatprep.mubr.f32.mxu0 0.0
    %3218 = vmatmul.mubr.f32.gmra.mxu0 %v2996
    %v3219 = vpop.f32.mrf.mxu0
    %v3220 = vadd.f32 0.0, %v3219
    %v3221 = vpop.f32.mrf.mxu0
    %3222 = vdwg.mxu0
    %v3224 = vsel %vm424, %v3065, 0
    %v3227 = vsel %vm424, %v3070, 0
    %v3230 = vsel %vm424, %v3140, 0
    %v3233 = vsel %vm424, %v3145, 0
    %3235 = vmatprep.subr.mxu0 0.0
    %3236 = vmatpush1.xpose.msra.mxu0 0.0
    %3237 = vmatprep.subr.mxu0 0.0
    %3238 = vmatpush1.xpose.msra.mxu0 0.0
    %3239 = vmatprep.subr.mxu0 0.0
    %3240 = vmatpush1.xpose.msra.mxu0 0.0
    %3241 = vmatprep.subr.mxu0 0.0
    %3242 = vmatpush1.xpose.msra.mxu0 0.0
    %3243 = vmatprep.subr.mxu0 0.0
    %3244 = vmatpush1.xpose.msra.mxu0 0.0
    %3245 = vmatprep.subr.mxu0 0.0
    %3246 = vmatpush1.xpose.msra.mxu0 0.0
    %3247 = vmatprep.subr.mxu0 0.0
    %3248 = vmatpush1.xpose.msra.mxu0 0.0
    %3249 = vmatprep.subr.mxu0 0.0
    %3250 = vmatpush1.xpose.msra.mxu0 0.0
    %3251 = vmatprep.subr.mxu0 0.0
    %3252 = vmatpush1.xpose.msra.mxu0 0.0
    %3253 = vmatprep.subr.mxu0 0.0
    %3254 = vmatpush1.xpose.msra.mxu0 0.0
    %3255 = vmatprep.subr.mxu0 0.0
    %3256 = vmatpush1.xpose.msra.mxu0 0.0
    %3257 = vmatprep.subr.mxu0 0.0
    %3258 = vmatpush1.xpose.msra.mxu0 0.0
    %3259 = vmatprep.subr.mxu0 0.0
    %3260 = vmatpush1.xpose.msra.mxu0 0.0
    %3261 = vmatprep.subr.mxu0 0.0
    %3262 = vmatpush1.xpose.msra.mxu0 0.0
    %3263 = vmatprep.subr.mxu0 0.0
    %3264 = vmatpush1.xpose.msra.mxu0 %v3233
    %3265 = vmatprep.subr.mxu0 0.0
    %3266 = vmatpush1.xpose.msra.mxu0 %v3230
    %3267 = vmatprep.subr.mxu0 0.0
    %3268 = vmatpush2.xpose.msra.mxu0 0.0
    %3269 = vmatprep.subr.mxu0 0.0
    %3270 = vmatpush2.xpose.msra.mxu0 0.0
    %3271 = vmatprep.subr.mxu0 0.0
    %3272 = vmatpush2.xpose.msra.mxu0 0.0
    %3273 = vmatprep.subr.mxu0 0.0
    %3274 = vmatpush2.xpose.msra.mxu0 0.0
    %3275 = vmatprep.subr.mxu0 0.0
    %3276 = vmatpush2.xpose.msra.mxu0 0.0
    %3277 = vmatprep.subr.mxu0 0.0
    %3278 = vmatpush2.xpose.msra.mxu0 0.0
    %3279 = vmatprep.subr.mxu0 0.0
    %3280 = vmatpush2.xpose.msra.mxu0 0.0
    %3281 = vmatprep.subr.mxu0 0.0
    %3282 = vmatpush2.xpose.msra.mxu0 0.0
    %3283 = vmatprep.subr.mxu0 0.0
    %3284 = vmatpush2.xpose.msra.mxu0 0.0
    %3285 = vmatprep.subr.mxu0 0.0
    %3286 = vmatpush2.xpose.msra.mxu0 0.0
    %3287 = vmatprep.subr.mxu0 0.0
    %3288 = vmatpush2.xpose.msra.mxu0 0.0
    %3289 = vmatprep.subr.mxu0 0.0
    %3290 = vmatpush2.xpose.msra.mxu0 0.0
    %3291 = vmatprep.subr.mxu0 0.0
    %3292 = vmatpush2.xpose.msra.mxu0 0.0
    %3293 = vmatprep.subr.mxu0 0.0
    %3294 = vmatpush2.xpose.msra.mxu0 0.0
    %3295 = vmatprep.subr.mxu0 0.0
    %3296 = vmatpush2.xpose.msra.mxu0 0.0
    %3297 = vmatprep.subr.mxu0 0.0
    %3298 = vmatpush2.xpose.msra.mxu0 0.0
    %3299 = vmatprep.mubr.f32.mxu0 0.0
    %3300 = vmatmul.mubr.f32.gmra.mxu0 %v3224
    %v3301 = vpop.f32.mrf.mxu0
    %v3302 = vadd.f32 %v138, %v3301
    %v3303 = vpop.f32.mrf.mxu0
    %3304 = vmatprep.mubr.f32.mxu0 0.0
    %3305 = vmatmul.mubr.f32.gmra.mxu0 %v3227
    %v3306 = vpop.f32.mrf.mxu0
    %v3307 = vadd.f32 %v139, %v3306
    %v3308 = vpop.f32.mrf.mxu0
    %3309 = vdwg.mxu0
    %v3310 = vsel %vm512, %v3302, -inf
    %3311 = vmax.xlane.f32.xlu0 %v3310
    %v3312 = vpop.xlane.xlu0 %3311
    %v3313 = vsel %vm512, %v3307, -inf
    %3314 = vmax.xlane.f32.xlu0 %v3313
    %v3315 = vpop.xlane.xlu0 %3314
    %v3316 = vsub.f32 %v3302, %v3312
    %v3317 = vsub.f32 %v3307, %v3315
    %v3318 = vmul.f32 %v3316, 1.442695
    %v3319 = vpow.pop %v3318
    %v3320 = vmul.f32 %v3317, 1.442695
    %v3321 = vpow.pop %v3320
    %v3322 = vsel %vm512, %v3319, 0.0
    %3323 = vadd.xlane.f32.xlu0 %v3322
    %v3324 = vpop.xlane.xlu0 %3323
    %v3325 = vsel %vm512, %v3321, 0.0
    %3326 = vadd.xlane.f32.xlu0 %v3325
    %v3327 = vpop.xlane.xlu0 %3326
    %v3328 = vrcp.pop %v3324
    %v3329 = vrcp.pop %v3327
    %v3330 = vmul.f32 %v3319, %v3328
    %v3331 = vmul.f32 %v3321, %v3329
    %v3333 = vsel %vm512, %v3330, 0
    %v3336 = vsel %vm512, %v3331, 0
    %3338 = vmatprep.subr.mxu0 0.0
    %3339 = vmatpush1.msra.mxu0 0.0
    %3340 = vmatprep.subr.mxu0 0.0
    %3341 = vmatpush1.msra.mxu0 0.0
    %3342 = vmatprep.subr.mxu0 0.0
    %3343 = vmatpush1.msra.mxu0 0.0
    %3344 = vmatprep.subr.mxu0 0.0
    %3345 = vmatpush1.msra.mxu0 0.0
    %3346 = vmatprep.subr.mxu0 0.0
    %3347 = vmatpush1.msra.mxu0 0.0
    %3348 = vmatprep.subr.mxu0 0.0
    %3349 = vmatpush1.msra.mxu0 0.0
    %3350 = vmatprep.subr.mxu0 0.0
    %3351 = vmatpush1.msra.mxu0 0.0
    %3352 = vmatprep.subr.mxu0 0.0
    %3353 = vmatpush1.msra.mxu0 0.0
    %3354 = vmatprep.subr.mxu0 0.0
    %3355 = vmatpush1.msra.mxu0 0.0
    %3356 = vmatprep.subr.mxu0 0.0
    %3357 = vmatpush1.msra.mxu0 0.0
    %3358 = vmatprep.subr.mxu0 0.0
    %3359 = vmatpush1.msra.mxu0 0.0
    %3360 = vmatprep.subr.mxu0 0.0
    %3361 = vmatpush1.msra.mxu0 0.0
    %3362 = vmatprep.subr.mxu0 0.0
    %3363 = vmatpush1.msra.mxu0 0.0
    %3364 = vmatprep.subr.mxu0 0.0
    %3365 = vmatpush1.msra.mxu0 0.0
    %3366 = vmatprep.subr.mxu0 0.0
    %3367 = vmatpush1.msra.mxu0 %v3220
    %3368 = vmatprep.subr.mxu0 0.0
    %3369 = vmatpush1.msra.mxu0 %v3215
    %3370 = vmatprep.subr.mxu0 0.0
    %3371 = vmatpush2.msra.mxu0 0.0
    %3372 = vmatprep.subr.mxu0 0.0
    %3373 = vmatpush2.msra.mxu0 0.0
    %3374 = vmatprep.subr.mxu0 0.0
    %3375 = vmatpush2.msra.mxu0 0.0
    %3376 = vmatprep.subr.mxu0 0.0
    %3377 = vmatpush2.msra.mxu0 0.0
    %3378 = vmatprep.subr.mxu0 0.0
    %3379 = vmatpush2.msra.mxu0 0.0
    %3380 = vmatprep.subr.mxu0 0.0
    %3381 = vmatpush2.msra.mxu0 0.0
    %3382 = vmatprep.subr.mxu0 0.0
    %3383 = vmatpush2.msra.mxu0 0.0
    %3384 = vmatprep.subr.mxu0 0.0
    %3385 = vmatpush2.msra.mxu0 0.0
    %3386 = vmatprep.subr.mxu0 0.0
    %3387 = vmatpush2.msra.mxu0 0.0
    %3388 = vmatprep.subr.mxu0 0.0
    %3389 = vmatpush2.msra.mxu0 0.0
    %3390 = vmatprep.subr.mxu0 0.0
    %3391 = vmatpush2.msra.mxu0 0.0
    %3392 = vmatprep.subr.mxu0 0.0
    %3393 = vmatpush2.msra.mxu0 0.0
    %3394 = vmatprep.subr.mxu0 0.0
    %3395 = vmatpush2.msra.mxu0 0.0
    %3396 = vmatprep.subr.mxu0 0.0
    %3397 = vmatpush2.msra.mxu0 0.0
    %3398 = vmatprep.subr.mxu0 0.0
    %3399 = vmatpush2.msra.mxu0 0.0
    %3400 = vmatprep.subr.mxu0 0.0
    %3401 = vmatpush2.msra.mxu0 0.0
    %3402 = vmatprep.mubr.f32.mxu0 0.0
    %3403 = vmatmul.mubr.f32.gmra.mxu0 %v3333
    %v3404 = vpop.f32.mrf.mxu0
    %v3405 = vadd.f32 0.0, %v3404
    %v3406 = vpop.f32.mrf.mxu0
    %3407 = vmatprep.mubr.f32.mxu0 0.0
    %3408 = vmatmul.mubr.f32.gmra.mxu0 %v3336
    %v3409 = vpop.f32.mrf.mxu0
    %v3410 = vadd.f32 0.0, %v3409
    %v3411 = vpop.f32.mrf.mxu0
    %3412 = vdwg.mxu0
    %3413 = vrot.lane.b32.xlu0 %v3065, 120
    %v3414 = vpop.permute.xlu0 %3413
    %3415 = vrot.lane.b32.xlu0 %v3070, 120
    %v3416 = vpop.permute.xlu0 %3415
    %3417 = vrot.lane.b32.xlu0 %v3140, 120
    %v3418 = vpop.permute.xlu0 %3417
    %3419 = vrot.lane.b32.xlu0 %v3145, 120
    %v3420 = vpop.permute.xlu0 %3419
    %v3421 = vsel %vm424, %v3414, 0
    %v3423 = vsel %vm424, %v3416, 0
    %v3425 = vsel %vm424, %v3418, 0
    %v3427 = vsel %vm424, %v3420, 0
    %3429 = vmatprep.subr.mxu0 0.0
    %3430 = vmatpush1.xpose.msra.mxu0 0.0
    %3431 = vmatprep.subr.mxu0 0.0
    %3432 = vmatpush1.xpose.msra.mxu0 0.0
    %3433 = vmatprep.subr.mxu0 0.0
    %3434 = vmatpush1.xpose.msra.mxu0 0.0
    %3435 = vmatprep.subr.mxu0 0.0
    %3436 = vmatpush1.xpose.msra.mxu0 0.0
    %3437 = vmatprep.subr.mxu0 0.0
    %3438 = vmatpush1.xpose.msra.mxu0 0.0
    %3439 = vmatprep.subr.mxu0 0.0
    %3440 = vmatpush1.xpose.msra.mxu0 0.0
    %3441 = vmatprep.subr.mxu0 0.0
    %3442 = vmatpush1.xpose.msra.mxu0 0.0
    %3443 = vmatprep.subr.mxu0 0.0
    %3444 = vmatpush1.xpose.msra.mxu0 0.0
    %3445 = vmatprep.subr.mxu0 0.0
    %3446 = vmatpush1.xpose.msra.mxu0 0.0
    %3447 = vmatprep.subr.mxu0 0.0
    %3448 = vmatpush1.xpose.msra.mxu0 0.0
    %3449 = vmatprep.subr.mxu0 0.0
    %3450 = vmatpush1.xpose.msra.mxu0 0.0
    %3451 = vmatprep.subr.mxu0 0.0
    %3452 = vmatpush1.xpose.msra.mxu0 0.0
    %3453 = vmatprep.subr.mxu0 0.0
    %3454 = vmatpush1.xpose.msra.mxu0 0.0
    %3455 = vmatprep.subr.mxu0 0.0
    %3456 = vmatpush1.xpose.msra.mxu0 0.0
    %3457 = vmatprep.subr.mxu0 0.0
    %3458 = vmatpush1.xpose.msra.mxu0 %v3427
    %3459 = vmatprep.subr.mxu0 0.0
    %3460 = vmatpush1.xpose.msra.mxu0 %v3425
    %3461 = vmatprep.subr.mxu0 0.0
    %3462 = vmatpush2.xpose.msra.mxu0 0.0
    %3463 = vmatprep.subr.mxu0 0.0
    %3464 = vmatpush2.xpose.msra.mxu0 0.0
    %3465 = vmatprep.subr.mxu0 0.0
    %3466 = vmatpush2.xpose.msra.mxu0 0.0
    %3467 = vmatprep.subr.mxu0 0.0
    %3468 = vmatpush2.xpose.msra.mxu0 0.0
    %3469 = vmatprep.subr.mxu0 0.0
    %3470 = vmatpush2.xpose.msra.mxu0 0.0
    %3471 = vmatprep.subr.mxu0 0.0
    %3472 = vmatpush2.xpose.msra.mxu0 0.0
    %3473 = vmatprep.subr.mxu0 0.0
    %3474 = vmatpush2.xpose.msra.mxu0 0.0
    %3475 = vmatprep.subr.mxu0 0.0
    %3476 = vmatpush2.xpose.msra.mxu0 0.0
    %3477 = vmatprep.subr.mxu0 0.0
    %3478 = vmatpush2.xpose.msra.mxu0 0.0
    %3479 = vmatprep.subr.mxu0 0.0
    %3480 = vmatpush2.xpose.msra.mxu0 0.0
    %3481 = vmatprep.subr.mxu0 0.0
    %3482 = vmatpush2.xpose.msra.mxu0 0.0
    %3483 = vmatprep.subr.mxu0 0.0
    %3484 = vmatpush2.xpose.msra.mxu0 0.0
    %3485 = vmatprep.subr.mxu0 0.0
    %3486 = vmatpush2.xpose.msra.mxu0 0.0
    %3487 = vmatprep.subr.mxu0 0.0
    %3488 = vmatpush2.xpose.msra.mxu0 0.0
    %3489 = vmatprep.subr.mxu0 0.0
    %3490 = vmatpush2.xpose.msra.mxu0 0.0
    %3491 = vmatprep.subr.mxu0 0.0
    %3492 = vmatpush2.xpose.msra.mxu0 0.0
    %3493 = vmatprep.mubr.f32.mxu0 0.0
    %3494 = vmatmul.mubr.f32.gmra.mxu0 %v3421
    %v3495 = vpop.f32.mrf.mxu0
    %v3496 = vadd.f32 %v140, %v3495
    %v3497 = vpop.f32.mrf.mxu0
    %3498 = vmatprep.mubr.f32.mxu0 0.0
    %3499 = vmatmul.mubr.f32.gmra.mxu0 %v3423
    %v3500 = vpop.f32.mrf.mxu0
    %v3501 = vadd.f32 %v141, %v3500
    %v3502 = vpop.f32.mrf.mxu0
    %3503 = vdwg.mxu0
    %v3504 = vsel %vm512, %v3496, -inf
    %3505 = vmax.xlane.f32.xlu0 %v3504
    %v3506 = vpop.xlane.xlu0 %3505
    %v3507 = vsel %vm512, %v3501, -inf
    %3508 = vmax.xlane.f32.xlu0 %v3507
    %v3509 = vpop.xlane.xlu0 %3508
    %v3510 = vsub.f32 %v3496, %v3506
    %v3511 = vsub.f32 %v3501, %v3509
    %v3512 = vmul.f32 %v3510, 1.442695
    %v3513 = vpow.pop %v3512
    %v3514 = vmul.f32 %v3511, 1.442695
    %v3515 = vpow.pop %v3514
    %v3516 = vsel %vm512, %v3513, 0.0
    %3517 = vadd.xlane.f32.xlu0 %v3516
    %v3518 = vpop.xlane.xlu0 %3517
    %v3519 = vsel %vm512, %v3515, 0.0
    %3520 = vadd.xlane.f32.xlu0 %v3519
    %v3521 = vpop.xlane.xlu0 %3520
    %v3522 = vrcp.pop %v3518
    %v3523 = vrcp.pop %v3521
    %v3524 = vmul.f32 %v3513, %v3522
    %v3525 = vmul.f32 %v3515, %v3523
    %3528 = vrot.lane.b32.xlu0 %v3215, 120
    %v3529 = vpop.permute.xlu0 %3528
    %3530 = vrot.lane.b32.xlu0 %v3220, 120
    %v3531 = vpop.permute.xlu0 %3530
    %v3535 = vsel %vm512, %v3524, 0
    %v3538 = vsel %vm512, %v3525, 0
    %3540 = vmatprep.subr.mxu0 0.0
    %3541 = vmatpush1.msra.mxu0 0.0
    %3542 = vmatprep.subr.mxu0 0.0
    %3543 = vmatpush1.msra.mxu0 0.0
    %3544 = vmatprep.subr.mxu0 0.0
    %3545 = vmatpush1.msra.mxu0 0.0
    %3546 = vmatprep.subr.mxu0 0.0
    %3547 = vmatpush1.msra.mxu0 0.0
    %3548 = vmatprep.subr.mxu0 0.0
    %3549 = vmatpush1.msra.mxu0 0.0
    %3550 = vmatprep.subr.mxu0 0.0
    %3551 = vmatpush1.msra.mxu0 0.0
    %3552 = vmatprep.subr.mxu0 0.0
    %3553 = vmatpush1.msra.mxu0 0.0
    %3554 = vmatprep.subr.mxu0 0.0
    %3555 = vmatpush1.msra.mxu0 0.0
    %3556 = vmatprep.subr.mxu0 0.0
    %3557 = vmatpush1.msra.mxu0 0.0
    %3558 = vmatprep.subr.mxu0 0.0
    %3559 = vmatpush1.msra.mxu0 0.0
    %3560 = vmatprep.subr.mxu0 0.0
    %3561 = vmatpush1.msra.mxu0 0.0
    %3562 = vmatprep.subr.mxu0 0.0
    %3563 = vmatpush1.msra.mxu0 0.0
    %3564 = vmatprep.subr.mxu0 0.0
    %3565 = vmatpush1.msra.mxu0 0.0
    %3566 = vmatprep.subr.mxu0 0.0
    %3567 = vmatpush1.msra.mxu0 0.0
    %3568 = vmatprep.subr.mxu0 0.0
    %3569 = vmatpush1.msra.mxu0 %v3531
    %3570 = vmatprep.subr.mxu0 0.0
    %3571 = vmatpush1.msra.mxu0 %v3529
    %3572 = vmatprep.subr.mxu0 0.0
    %3573 = vmatpush2.msra.mxu0 0.0
    %3574 = vmatprep.subr.mxu0 0.0
    %3575 = vmatpush2.msra.mxu0 0.0
    %3576 = vmatprep.subr.mxu0 0.0
    %3577 = vmatpush2.msra.mxu0 0.0
    %3578 = vmatprep.subr.mxu0 0.0
    %3579 = vmatpush2.msra.mxu0 0.0
    %3580 = vmatprep.subr.mxu0 0.0
    %3581 = vmatpush2.msra.mxu0 0.0
    %3582 = vmatprep.subr.mxu0 0.0
    %3583 = vmatpush2.msra.mxu0 0.0
    %3584 = vmatprep.subr.mxu0 0.0
    %3585 = vmatpush2.msra.mxu0 0.0
    %3586 = vmatprep.subr.mxu0 0.0
    %3587 = vmatpush2.msra.mxu0 0.0
    %3588 = vmatprep.subr.mxu0 0.0
    %3589 = vmatpush2.msra.mxu0 0.0
    %3590 = vmatprep.subr.mxu0 0.0
    %3591 = vmatpush2.msra.mxu0 0.0
    %3592 = vmatprep.subr.mxu0 0.0
    %3593 = vmatpush2.msra.mxu0 0.0
    %3594 = vmatprep.subr.mxu0 0.0
    %3595 = vmatpush2.msra.mxu0 0.0
    %3596 = vmatprep.subr.mxu0 0.0
    %3597 = vmatpush2.msra.mxu0 0.0
    %3598 = vmatprep.subr.mxu0 0.0
    %3599 = vmatpush2.msra.mxu0 0.0
    %3600 = vmatprep.subr.mxu0 0.0
    %3601 = vmatpush2.msra.mxu0 0.0
    %3602 = vmatprep.subr.mxu0 0.0
    %3603 = vmatpush2.msra.mxu0 0.0
    %3604 = vmatprep.mubr.f32.mxu0 0.0
    %3605 = vmatmul.mubr.f32.gmra.mxu0 %v3535
    %v3606 = vpop.f32.mrf.mxu0
    %v3607 = vadd.f32 0.0, %v3606
    %v3608 = vpop.f32.mrf.mxu0
    %3609 = vmatprep.mubr.f32.mxu0 0.0
    %3610 = vmatmul.mubr.f32.gmra.mxu0 %v3538
    %v3611 = vpop.f32.mrf.mxu0
    %v3612 = vadd.f32 0.0, %v3611
    %v3613 = vpop.f32.mrf.mxu0
    %3614 = vdwg.mxu0
    %3615 = vrot.lane.b32.xlu0 %v3065, 112
    %v3616 = vpop.permute.xlu0 %3615
    %3617 = vrot.lane.b32.xlu0 %v3070, 112
    %v3618 = vpop.permute.xlu0 %3617
    %3619 = vrot.lane.b32.xlu0 %v3140, 112
    %v3620 = vpop.permute.xlu0 %3619
    %3621 = vrot.lane.b32.xlu0 %v3145, 112
    %v3622 = vpop.permute.xlu0 %3621
    %v3623 = vsel %vm424, %v3616, 0
    %v3625 = vsel %vm424, %v3618, 0
    %v3627 = vsel %vm424, %v3620, 0
    %v3629 = vsel %vm424, %v3622, 0
    %3631 = vmatprep.subr.mxu0 0.0
    %3632 = vmatpush1.xpose.msra.mxu0 0.0
    %3633 = vmatprep.subr.mxu0 0.0
    %3634 = vmatpush1.xpose.msra.mxu0 0.0
    %3635 = vmatprep.subr.mxu0 0.0
    %3636 = vmatpush1.xpose.msra.mxu0 0.0
    %3637 = vmatprep.subr.mxu0 0.0
    %3638 = vmatpush1.xpose.msra.mxu0 0.0
    %3639 = vmatprep.subr.mxu0 0.0
    %3640 = vmatpush1.xpose.msra.mxu0 0.0
    %3641 = vmatprep.subr.mxu0 0.0
    %3642 = vmatpush1.xpose.msra.mxu0 0.0
    %3643 = vmatprep.subr.mxu0 0.0
    %3644 = vmatpush1.xpose.msra.mxu0 0.0
    %3645 = vmatprep.subr.mxu0 0.0
    %3646 = vmatpush1.xpose.msra.mxu0 0.0
    %3647 = vmatprep.subr.mxu0 0.0
    %3648 = vmatpush1.xpose.msra.mxu0 0.0
    %3649 = vmatprep.subr.mxu0 0.0
    %3650 = vmatpush1.xpose.msra.mxu0 0.0
    %3651 = vmatprep.subr.mxu0 0.0
    %3652 = vmatpush1.xpose.msra.mxu0 0.0
    %3653 = vmatprep.subr.mxu0 0.0
    %3654 = vmatpush1.xpose.msra.mxu0 0.0
    %3655 = vmatprep.subr.mxu0 0.0
    %3656 = vmatpush1.xpose.msra.mxu0 0.0
    %3657 = vmatprep.subr.mxu0 0.0
    %3658 = vmatpush1.xpose.msra.mxu0 0.0
    %3659 = vmatprep.subr.mxu0 0.0
    %3660 = vmatpush1.xpose.msra.mxu0 %v3629
    %3661 = vmatprep.subr.mxu0 0.0
    %3662 = vmatpush1.xpose.msra.mxu0 %v3627
    %3663 = vmatprep.subr.mxu0 0.0
    %3664 = vmatpush2.xpose.msra.mxu0 0.0
    %3665 = vmatprep.subr.mxu0 0.0
    %3666 = vmatpush2.xpose.msra.mxu0 0.0
    %3667 = vmatprep.subr.mxu0 0.0
    %3668 = vmatpush2.xpose.msra.mxu0 0.0
    %3669 = vmatprep.subr.mxu0 0.0
    %3670 = vmatpush2.xpose.msra.mxu0 0.0
    %3671 = vmatprep.subr.mxu0 0.0
    %3672 = vmatpush2.xpose.msra.mxu0 0.0
    %3673 = vmatprep.subr.mxu0 0.0
    %3674 = vmatpush2.xpose.msra.mxu0 0.0
    %3675 = vmatprep.subr.mxu0 0.0
    %3676 = vmatpush2.xpose.msra.mxu0 0.0
    %3677 = vmatprep.subr.mxu0 0.0
    %3678 = vmatpush2.xpose.msra.mxu0 0.0
    %3679 = vmatprep.subr.mxu0 0.0
    %3680 = vmatpush2.xpose.msra.mxu0 0.0
    %3681 = vmatprep.subr.mxu0 0.0
    %3682 = vmatpush2.xpose.msra.mxu0 0.0
    %3683 = vmatprep.subr.mxu0 0.0
    %3684 = vmatpush2.xpose.msra.mxu0 0.0
    %3685 = vmatprep.subr.mxu0 0.0
    %3686 = vmatpush2.xpose.msra.mxu0 0.0
    %3687 = vmatprep.subr.mxu0 0.0
    %3688 = vmatpush2.xpose.msra.mxu0 0.0
    %3689 = vmatprep.subr.mxu0 0.0
    %3690 = vmatpush2.xpose.msra.mxu0 0.0
    %3691 = vmatprep.subr.mxu0 0.0
    %3692 = vmatpush2.xpose.msra.mxu0 0.0
    %3693 = vmatprep.subr.mxu0 0.0
    %3694 = vmatpush2.xpose.msra.mxu0 0.0
    %3695 = vmatprep.mubr.f32.mxu0 0.0
    %3696 = vmatmul.mubr.f32.gmra.mxu0 %v3623
    %v3697 = vpop.f32.mrf.mxu0
    %v3698 = vadd.f32 %v142, %v3697
    %v3699 = vpop.f32.mrf.mxu0
    %3700 = vmatprep.mubr.f32.mxu0 0.0
    %3701 = vmatmul.mubr.f32.gmra.mxu0 %v3625
    %v3702 = vpop.f32.mrf.mxu0
    %v3703 = vadd.f32 %v143, %v3702
    %v3704 = vpop.f32.mrf.mxu0
    %3705 = vdwg.mxu0
    %v3706 = vsel %vm512, %v3698, -inf
    %3707 = vmax.xlane.f32.xlu0 %v3706
    %v3708 = vpop.xlane.xlu0 %3707
    %v3709 = vsel %vm512, %v3703, -inf
    %3710 = vmax.xlane.f32.xlu0 %v3709
    %v3711 = vpop.xlane.xlu0 %3710
    %v3712 = vsub.f32 %v3698, %v3708
    %v3713 = vsub.f32 %v3703, %v3711
    %v3714 = vmul.f32 %v3712, 1.442695
    %v3715 = vpow.pop %v3714
    %v3716 = vmul.f32 %v3713, 1.442695
    %v3717 = vpow.pop %v3716
    %v3718 = vsel %vm512, %v3715, 0.0
    %3719 = vadd.xlane.f32.xlu0 %v3718
    %v3720 = vpop.xlane.xlu0 %3719
    %v3721 = vsel %vm512, %v3717, 0.0
    %3722 = vadd.xlane.f32.xlu0 %v3721
    %v3723 = vpop.xlane.xlu0 %3722
    %v3724 = vrcp.pop %v3720
    %v3725 = vrcp.pop %v3723
    %v3726 = vmul.f32 %v3715, %v3724
    %v3727 = vmul.f32 %v3717, %v3725
    %3728 = vrot.lane.b32.xlu0 %v3215, 112
    %v3729 = vpop.permute.xlu0 %3728
    %3730 = vrot.lane.b32.xlu0 %v3220, 112
    %v3731 = vpop.permute.xlu0 %3730
    %v3735 = vsel %vm512, %v3726, 0
    %v3738 = vsel %vm512, %v3727, 0
    %3740 = vmatprep.subr.mxu0 0.0
    %3741 = vmatpush1.msra.mxu0 0.0
    %3742 = vmatprep.subr.mxu0 0.0
    %3743 = vmatpush1.msra.mxu0 0.0
    %3744 = vmatprep.subr.mxu0 0.0
    %3745 = vmatpush1.msra.mxu0 0.0
    %3746 = vmatprep.subr.mxu0 0.0
    %3747 = vmatpush1.msra.mxu0 0.0
    %3748 = vmatprep.subr.mxu0 0.0
    %3749 = vmatpush1.msra.mxu0 0.0
    %3750 = vmatprep.subr.mxu0 0.0
    %3751 = vmatpush1.msra.mxu0 0.0
    %3752 = vmatprep.subr.mxu0 0.0
    %3753 = vmatpush1.msra.mxu0 0.0
    %3754 = vmatprep.subr.mxu0 0.0
    %3755 = vmatpush1.msra.mxu0 0.0
    %3756 = vmatprep.subr.mxu0 0.0
    %3757 = vmatpush1.msra.mxu0 0.0
    %3758 = vmatprep.subr.mxu0 0.0
    %3759 = vmatpush1.msra.mxu0 0.0
    %3760 = vmatprep.subr.mxu0 0.0
    %3761 = vmatpush1.msra.mxu0 0.0
    %3762 = vmatprep.subr.mxu0 0.0
    %3763 = vmatpush1.msra.mxu0 0.0
    %3764 = vmatprep.subr.mxu0 0.0
    %3765 = vmatpush1.msra.mxu0 0.0
    %3766 = vmatprep.subr.mxu0 0.0
    %3767 = vmatpush1.msra.mxu0 0.0
    %3768 = vmatprep.subr.mxu0 0.0
    %3769 = vmatpush1.msra.mxu0 %v3731
    %3770 = vmatprep.subr.mxu0 0.0
    %3771 = vmatpush1.msra.mxu0 %v3729
    %3772 = vmatprep.subr.mxu0 0.0
    %3773 = vmatpush2.msra.mxu0 0.0
    %3774 = vmatprep.subr.mxu0 0.0
    %3775 = vmatpush2.msra.mxu0 0.0
    %3776 = vmatprep.subr.mxu0 0.0
    %3777 = vmatpush2.msra.mxu0 0.0
    %3778 = vmatprep.subr.mxu0 0.0
    %3779 = vmatpush2.msra.mxu0 0.0
    %3780 = vmatprep.subr.mxu0 0.0
    %3781 = vmatpush2.msra.mxu0 0.0
    %3782 = vmatprep.subr.mxu0 0.0
    %3783 = vmatpush2.msra.mxu0 0.0
    %3784 = vmatprep.subr.mxu0 0.0
    %3785 = vmatpush2.msra.mxu0 0.0
    %3786 = vmatprep.subr.mxu0 0.0
    %3787 = vmatpush2.msra.mxu0 0.0
    %3788 = vmatprep.subr.mxu0 0.0
    %3789 = vmatpush2.msra.mxu0 0.0
    %3790 = vmatprep.subr.mxu0 0.0
    %3791 = vmatpush2.msra.mxu0 0.0
    %3792 = vmatprep.subr.mxu0 0.0
    %3793 = vmatpush2.msra.mxu0 0.0
    %3794 = vmatprep.subr.mxu0 0.0
    %3795 = vmatpush2.msra.mxu0 0.0
    %3796 = vmatprep.subr.mxu0 0.0
    %3797 = vmatpush2.msra.mxu0 0.0
    %3798 = vmatprep.subr.mxu0 0.0
    %3799 = vmatpush2.msra.mxu0 0.0
    %3800 = vmatprep.subr.mxu0 0.0
    %3801 = vmatpush2.msra.mxu0 0.0
    %3802 = vmatprep.subr.mxu0 0.0
    %3803 = vmatpush2.msra.mxu0 0.0
    %3804 = vmatprep.mubr.f32.mxu0 0.0
    %3805 = vmatmul.mubr.f32.gmra.mxu0 %v3735
    %v3806 = vpop.f32.mrf.mxu0
    %v3807 = vadd.f32 0.0, %v3806
    %v3808 = vpop.f32.mrf.mxu0
    %3809 = vmatprep.mubr.f32.mxu0 0.0
    %3810 = vmatmul.mubr.f32.gmra.mxu0 %v3738
    %v3811 = vpop.f32.mrf.mxu0
    %v3812 = vadd.f32 0.0, %v3811
    %v3813 = vpop.f32.mrf.mxu0
    %3814 = vdwg.mxu0
    %3815 = vrot.lane.b32.xlu0 %v3065, 104
    %v3816 = vpop.permute.xlu0 %3815
    %3817 = vrot.lane.b32.xlu0 %v3070, 104
    %v3818 = vpop.permute.xlu0 %3817
    %3819 = vrot.lane.b32.xlu0 %v3140, 104
    %v3820 = vpop.permute.xlu0 %3819
    %3821 = vrot.lane.b32.xlu0 %v3145, 104
    %v3822 = vpop.permute.xlu0 %3821
    %v3823 = vsel %vm424, %v3816, 0
    %v3825 = vsel %vm424, %v3818, 0
    %v3827 = vsel %vm424, %v3820, 0
    %v3829 = vsel %vm424, %v3822, 0
    %3831 = vmatprep.subr.mxu0 0.0
    %3832 = vmatpush1.xpose.msra.mxu0 0.0
    %3833 = vmatprep.subr.mxu0 0.0
    %3834 = vmatpush1.xpose.msra.mxu0 0.0
    %3835 = vmatprep.subr.mxu0 0.0
    %3836 = vmatpush1.xpose.msra.mxu0 0.0
    %3837 = vmatprep.subr.mxu0 0.0
    %3838 = vmatpush1.xpose.msra.mxu0 0.0
    %3839 = vmatprep.subr.mxu0 0.0
    %3840 = vmatpush1.xpose.msra.mxu0 0.0
    %3841 = vmatprep.subr.mxu0 0.0
    %3842 = vmatpush1.xpose.msra.mxu0 0.0
    %3843 = vmatprep.subr.mxu0 0.0
    %3844 = vmatpush1.xpose.msra.mxu0 0.0
    %3845 = vmatprep.subr.mxu0 0.0
    %3846 = vmatpush1.xpose.msra.mxu0 0.0
    %3847 = vmatprep.subr.mxu0 0.0
    %3848 = vmatpush1.xpose.msra.mxu0 0.0
    %3849 = vmatprep.subr.mxu0 0.0
    %3850 = vmatpush1.xpose.msra.mxu0 0.0
    %3851 = vmatprep.subr.mxu0 0.0
    %3852 = vmatpush1.xpose.msra.mxu0 0.0
    %3853 = vmatprep.subr.mxu0 0.0
    %3854 = vmatpush1.xpose.msra.mxu0 0.0
    %3855 = vmatprep.subr.mxu0 0.0
    %3856 = vmatpush1.xpose.msra.mxu0 0.0
    %3857 = vmatprep.subr.mxu0 0.0
    %3858 = vmatpush1.xpose.msra.mxu0 0.0
    %3859 = vmatprep.subr.mxu0 0.0
    %3860 = vmatpush1.xpose.msra.mxu0 %v3829
    %3861 = vmatprep.subr.mxu0 0.0
    %3862 = vmatpush1.xpose.msra.mxu0 %v3827
    %3863 = vmatprep.subr.mxu0 0.0
    %3864 = vmatpush2.xpose.msra.mxu0 0.0
    %3865 = vmatprep.subr.mxu0 0.0
    %3866 = vmatpush2.xpose.msra.mxu0 0.0
    %3867 = vmatprep.subr.mxu0 0.0
    %3868 = vmatpush2.xpose.msra.mxu0 0.0
    %3869 = vmatprep.subr.mxu0 0.0
    %3870 = vmatpush2.xpose.msra.mxu0 0.0
    %3871 = vmatprep.subr.mxu0 0.0
    %3872 = vmatpush2.xpose.msra.mxu0 0.0
    %3873 = vmatprep.subr.mxu0 0.0
    %3874 = vmatpush2.xpose.msra.mxu0 0.0
    %3875 = vmatprep.subr.mxu0 0.0
    %3876 = vmatpush2.xpose.msra.mxu0 0.0
    %3877 = vmatprep.subr.mxu0 0.0
    %3878 = vmatpush2.xpose.msra.mxu0 0.0
    %3879 = vmatprep.subr.mxu0 0.0
    %3880 = vmatpush2.xpose.msra.mxu0 0.0
    %3881 = vmatprep.subr.mxu0 0.0
    %3882 = vmatpush2.xpose.msra.mxu0 0.0
    %3883 = vmatprep.subr.mxu0 0.0
    %3884 = vmatpush2.xpose.msra.mxu0 0.0
    %3885 = vmatprep.subr.mxu0 0.0
    %3886 = vmatpush2.xpose.msra.mxu0 0.0
    %3887 = vmatprep.subr.mxu0 0.0
    %3888 = vmatpush2.xpose.msra.mxu0 0.0
    %3889 = vmatprep.subr.mxu0 0.0
    %3890 = vmatpush2.xpose.msra.mxu0 0.0
    %3891 = vmatprep.subr.mxu0 0.0
    %3892 = vmatpush2.xpose.msra.mxu0 0.0
    %3893 = vmatprep.subr.mxu0 0.0
    %3894 = vmatpush2.xpose.msra.mxu0 0.0
    %3895 = vmatprep.mubr.f32.mxu0 0.0
    %3896 = vmatmul.mubr.f32.gmra.mxu0 %v3823
    %v3897 = vpop.f32.mrf.mxu0
    %v3898 = vadd.f32 %v144, %v3897
    %v3899 = vpop.f32.mrf.mxu0
    %3900 = vmatprep.mubr.f32.mxu0 0.0
    %3901 = vmatmul.mubr.f32.gmra.mxu0 %v3825
    %v3902 = vpop.f32.mrf.mxu0
    %v3903 = vadd.f32 %v145, %v3902
    %v3904 = vpop.f32.mrf.mxu0
    %3905 = vdwg.mxu0
    %v3906 = vsel %vm512, %v3898, -inf
    %3907 = vmax.xlane.f32.xlu0 %v3906
    %v3908 = vpop.xlane.xlu0 %3907
    %v3909 = vsel %vm512, %v3903, -inf
    %3910 = vmax.xlane.f32.xlu0 %v3909
    %v3911 = vpop.xlane.xlu0 %3910
    %v3912 = vsub.f32 %v3898, %v3908
    %v3913 = vsub.f32 %v3903, %v3911
    %v3914 = vmul.f32 %v3912, 1.442695
    %v3915 = vpow.pop %v3914
    %v3916 = vmul.f32 %v3913, 1.442695
    %v3917 = vpow.pop %v3916
    %v3918 = vsel %vm512, %v3915, 0.0
    %3919 = vadd.xlane.f32.xlu0 %v3918
    %v3920 = vpop.xlane.xlu0 %3919
    %v3921 = vsel %vm512, %v3917, 0.0
    %3922 = vadd.xlane.f32.xlu0 %v3921
    %v3923 = vpop.xlane.xlu0 %3922
    %v3924 = vrcp.pop %v3920
    %v3925 = vrcp.pop %v3923
    %v3926 = vmul.f32 %v3915, %v3924
    %v3927 = vmul.f32 %v3917, %v3925
    %3928 = vrot.lane.b32.xlu0 %v3215, 104
    %v3929 = vpop.permute.xlu0 %3928
    %3930 = vrot.lane.b32.xlu0 %v3220, 104
    %v3931 = vpop.permute.xlu0 %3930
    %v3935 = vsel %vm512, %v3926, 0
    %v3938 = vsel %vm512, %v3927, 0
    %3940 = vmatprep.subr.mxu0 0.0
    %3941 = vmatpush1.msra.mxu0 0.0
    %3942 = vmatprep.subr.mxu0 0.0
    %3943 = vmatpush1.msra.mxu0 0.0
    %3944 = vmatprep.subr.mxu0 0.0
    %3945 = vmatpush1.msra.mxu0 0.0
    %3946 = vmatprep.subr.mxu0 0.0
    %3947 = vmatpush1.msra.mxu0 0.0
    %3948 = vmatprep.subr.mxu0 0.0
    %3949 = vmatpush1.msra.mxu0 0.0
    %3950 = vmatprep.subr.mxu0 0.0
    %3951 = vmatpush1.msra.mxu0 0.0
    %3952 = vmatprep.subr.mxu0 0.0
    %3953 = vmatpush1.msra.mxu0 0.0
    %3954 = vmatprep.subr.mxu0 0.0
    %3955 = vmatpush1.msra.mxu0 0.0
    %3956 = vmatprep.subr.mxu0 0.0
    %3957 = vmatpush1.msra.mxu0 0.0
    %3958 = vmatprep.subr.mxu0 0.0
    %3959 = vmatpush1.msra.mxu0 0.0
    %3960 = vmatprep.subr.mxu0 0.0
    %3961 = vmatpush1.msra.mxu0 0.0
    %3962 = vmatprep.subr.mxu0 0.0
    %3963 = vmatpush1.msra.mxu0 0.0
    %3964 = vmatprep.subr.mxu0 0.0
    %3965 = vmatpush1.msra.mxu0 0.0
    %3966 = vmatprep.subr.mxu0 0.0
    %3967 = vmatpush1.msra.mxu0 0.0
    %3968 = vmatprep.subr.mxu0 0.0
    %3969 = vmatpush1.msra.mxu0 %v3931
    %3970 = vmatprep.subr.mxu0 0.0
    %3971 = vmatpush1.msra.mxu0 %v3929
    %3972 = vmatprep.subr.mxu0 0.0
    %3973 = vmatpush2.msra.mxu0 0.0
    %3974 = vmatprep.subr.mxu0 0.0
    %3975 = vmatpush2.msra.mxu0 0.0
    %3976 = vmatprep.subr.mxu0 0.0
    %3977 = vmatpush2.msra.mxu0 0.0
    %3978 = vmatprep.subr.mxu0 0.0
    %3979 = vmatpush2.msra.mxu0 0.0
    %3980 = vmatprep.subr.mxu0 0.0
    %3981 = vmatpush2.msra.mxu0 0.0
    %3982 = vmatprep.subr.mxu0 0.0
    %3983 = vmatpush2.msra.mxu0 0.0
    %3984 = vmatprep.subr.mxu0 0.0
    %3985 = vmatpush2.msra.mxu0 0.0
    %3986 = vmatprep.subr.mxu0 0.0
    %3987 = vmatpush2.msra.mxu0 0.0
    %3988 = vmatprep.subr.mxu0 0.0
    %3989 = vmatpush2.msra.mxu0 0.0
    %3990 = vmatprep.subr.mxu0 0.0
    %3991 = vmatpush2.msra.mxu0 0.0
    %3992 = vmatprep.subr.mxu0 0.0
    %3993 = vmatpush2.msra.mxu0 0.0
    %3994 = vmatprep.subr.mxu0 0.0
    %3995 = vmatpush2.msra.mxu0 0.0
    %3996 = vmatprep.subr.mxu0 0.0
    %3997 = vmatpush2.msra.mxu0 0.0
    %3998 = vmatprep.subr.mxu0 0.0
    %3999 = vmatpush2.msra.mxu0 0.0
    %4000 = vmatprep.subr.mxu0 0.0
    %4001 = vmatpush2.msra.mxu0 0.0
    %4002 = vmatprep.subr.mxu0 0.0
    %4003 = vmatpush2.msra.mxu0 0.0
    %4004 = vmatprep.mubr.f32.mxu0 0.0
    %4005 = vmatmul.mubr.f32.gmra.mxu0 %v3935
    %v4006 = vpop.f32.mrf.mxu0
    %v4007 = vadd.f32 0.0, %v4006
    %v4008 = vpop.f32.mrf.mxu0
    %4009 = vmatprep.mubr.f32.mxu0 0.0
    %4010 = vmatmul.mubr.f32.gmra.mxu0 %v3938
    %v4011 = vpop.f32.mrf.mxu0
    %v4012 = vadd.f32 0.0, %v4011
    %v4013 = vpop.f32.mrf.mxu0
    %4014 = vdwg.mxu0
    %4017 = vrot.lane.b32.xlu0 %v3607, 8
    %v4018 = vpop.permute.xlu0 %4017
    %4019 = vrot.lane.b32.xlu0 %v3612, 8
    %v4020 = vpop.permute.xlu0 %4019
    %4025 = vrot.lane.b32.xlu0 %v3807, 16
    %v4026 = vpop.permute.xlu0 %4025
    %4027 = vrot.lane.b32.xlu0 %v3812, 16
    %v4028 = vpop.permute.xlu0 %4027
    %4033 = vrot.lane.b32.xlu0 %v4007, 24
    %v4034 = vpop.permute.xlu0 %4033
    %4035 = vrot.lane.b32.xlu0 %v4012, 24
    %v4036 = vpop.permute.xlu0 %4035
    %v4039 = vsel %vm424, %v3405, %v4018
    %v4040 = vsel %vm424, %v3410, %v4020
    %v4041 = vsel %vm512, %v4039, %v4026
    %v4042 = vsel %vm512, %v4040, %v4028
    %v4043 = vsel %vm1246, %v4041, %v4034
    %v4044 = vsel %vm1246, %v4042, %v4036
    %v4046 = vsel %vm153, %v4043, 0
    %v4049 = vsel %vm153, %v4044, 0
    %4051 = vmatprep.subr.mxu0 0.0
    %4052 = vmatpush1.msra.mxu0 0.0
    %4053 = vmatprep.subr.mxu0 0.0
    %4054 = vmatpush1.msra.mxu0 0.0
    %4055 = vmatprep.subr.mxu0 0.0
    %4056 = vmatpush1.msra.mxu0 0.0
    %4057 = vmatprep.subr.mxu0 0.0
    %4058 = vmatpush1.msra.mxu0 0.0
    %4059 = vmatprep.subr.mxu0 0.0
    %4060 = vmatpush1.msra.mxu0 0.0
    %4061 = vmatprep.subr.mxu0 0.0
    %4062 = vmatpush1.msra.mxu0 0.0
    %4063 = vmatprep.subr.mxu0 0.0
    %4064 = vmatpush1.msra.mxu0 0.0
    %4065 = vmatprep.subr.mxu0 0.0
    %4066 = vmatpush1.msra.mxu0 0.0
    %4067 = vmatprep.subr.mxu0 0.0
    %4068 = vmatpush1.msra.mxu0 0.0
    %4069 = vmatprep.subr.mxu0 0.0
    %4070 = vmatpush1.msra.mxu0 0.0
    %4071 = vmatprep.subr.mxu0 0.0
    %4072 = vmatpush1.msra.mxu0 0.0
    %4073 = vmatprep.subr.mxu0 0.0
    %4074 = vmatpush1.msra.mxu0 0.0
    %4075 = vmatprep.subr.mxu0 0.0
    %4076 = vmatpush1.msra.mxu0 %v2991
    %4077 = vmatprep.subr.mxu0 0.0
    %4078 = vmatpush1.msra.mxu0 %v2990
    %4079 = vmatprep.subr.mxu0 0.0
    %4080 = vmatpush1.msra.mxu0 %v2989
    %4081 = vmatprep.subr.mxu0 0.0
    %4082 = vmatpush1.msra.mxu0 %v2988
    %4083 = vmatprep.subr.mxu0 0.0
    %4084 = vmatpush2.msra.mxu0 0.0
    %4085 = vmatprep.subr.mxu0 0.0
    %4086 = vmatpush2.msra.mxu0 0.0
    %4087 = vmatprep.subr.mxu0 0.0
    %4088 = vmatpush2.msra.mxu0 0.0
    %4089 = vmatprep.subr.mxu0 0.0
    %4090 = vmatpush2.msra.mxu0 0.0
    %4091 = vmatprep.subr.mxu0 0.0
    %4092 = vmatpush2.msra.mxu0 0.0
    %4093 = vmatprep.subr.mxu0 0.0
    %4094 = vmatpush2.msra.mxu0 0.0
    %4095 = vmatprep.subr.mxu0 0.0
    %4096 = vmatpush2.msra.mxu0 0.0
    %4097 = vmatprep.subr.mxu0 0.0
    %4098 = vmatpush2.msra.mxu0 0.0
    %4099 = vmatprep.subr.mxu0 0.0
    %4100 = vmatpush2.msra.mxu0 0.0
    %4101 = vmatprep.subr.mxu0 0.0
    %4102 = vmatpush2.msra.mxu0 0.0
    %4103 = vmatprep.subr.mxu0 0.0
    %4104 = vmatpush2.msra.mxu0 0.0
    %4105 = vmatprep.subr.mxu0 0.0
    %4106 = vmatpush2.msra.mxu0 0.0
    %4107 = vmatprep.subr.mxu0 0.0
    %4108 = vmatpush2.msra.mxu0 0.0
    %4109 = vmatprep.subr.mxu0 0.0
    %4110 = vmatpush2.msra.mxu0 0.0
    %4111 = vmatprep.subr.mxu0 0.0
    %4112 = vmatpush2.msra.mxu0 0.0
    %4113 = vmatprep.subr.mxu0 0.0
    %4114 = vmatpush2.msra.mxu0 0.0
    %4115 = vmatprep.mubr.f32.mxu0 0.0
    %4116 = vmatmul.mubr.f32.gmra.mxu0 %v4046
    %v4117 = vpop.f32.mrf.mxu0
    %v4118 = vadd.f32 0.0, %v4117
    %v4119 = vpop.f32.mrf.mxu0
    %4120 = vmatprep.mubr.f32.mxu0 0.0
    %4121 = vmatmul.mubr.f32.gmra.mxu0 %v4049
    %v4122 = vpop.f32.mrf.mxu0
    %v4123 = vadd.f32 0.0, %v4122
    %v4124 = vpop.f32.mrf.mxu0
    %4125 = vdwg.mxu0
    %v4126 = vadd.f32 %v2949, %v4118
    %v4127 = vadd.f32 %v2950, %v4123
    %v4128 = vld [vmem:[%s41] sm:$0x1]
    %v4129 = vmul.f32 %v4126, %v4126
    %v4130 = vmul.f32 %v4127, %v4127
    %v4131 = vsel %vm153, %v4129, 0.0
    %4132 = vadd.xlane.f32.xlu0 %v4131
    %v4133 = vpop.xlane.xlu0 %4132
    %v4134 = vsel %vm153, %v4130, 0.0
    %4135 = vadd.xlane.f32.xlu0 %v4134
    %v4136 = vpop.xlane.xlu0 %4135
    %v4137 = vmul.f32 %v4133, %v160
    %v4138 = vmul.f32 %v4136, %v160
    %v4139 = vadd.f32 %v4137, 1e-06
    %v4140 = vadd.f32 %v4138, 1e-06
    %v4141 = vrsqrt.pop %v4139
    %v4142 = vrsqrt.pop %v4140
    %v4143 = vmul.f32 %v4126, %v4141
    %v4144 = vmul.f32 %v4127, %v4142
    %v4146 = vlaneseq
    %v4147 = vshrl.u32 %v4146, 7
    %v4148 = vsub.s32 0, %v4147
    %v4149 = vrot.slane %v4128, %v4148
    %v4151 = vmul.f32 %v4143, %v4149
    %v4152 = vmul.f32 %v4144, %v4149
    %v4153 = vld [vmem:[%s43] sm:$0xff]
    %v4154 = vld [vmem:[%s43 + $0x8] sm:$0xff]
    %v4155 = vld [vmem:[%s43 + $0x10] sm:$0xff]
    %v4156 = vld [vmem:[%s43 + $0x18] sm:$0xff]
    %v4157 = vld [vmem:[%s45] sm:$0xff]
    %v4158 = vld [vmem:[%s45 + $0x8] sm:$0xff]
    %v4159 = vld [vmem:[%s45 + $0x10] sm:$0xff]
    %v4160 = vld [vmem:[%s45 + $0x18] sm:$0xff]
    %v4161 = vld [vmem:[%s47] sm:$0xff]
    %v4162 = vld [vmem:[%s47 + $0x8] sm:$0xff]
    %v4163 = vld [vmem:[%s47 + $0x10] sm:$0xff]
    %v4164 = vld [vmem:[%s47 + $0x18] sm:$0xff]
    %v4165 = vld [vmem:[%s49] sm:$0xff]
    %v4166 = vld [vmem:[%s49 + $0x8] sm:$0xff]
    %v4167 = vld [vmem:[%s49 + $0x10] sm:$0xff]
    %v4168 = vld [vmem:[%s49 + $0x18] sm:$0xff]
    %v4170 = vsel %vm153, %v4151, 0
    %v4173 = vsel %vm153, %v4152, 0
    %4175 = vmatprep.subr.mxu0 0.0
    %4176 = vmatpush1.msra.mxu0 0.0
    %4177 = vmatprep.subr.mxu0 0.0
    %4178 = vmatpush1.msra.mxu0 0.0
    %4179 = vmatprep.subr.mxu0 0.0
    %4180 = vmatpush1.msra.mxu0 0.0
    %4181 = vmatprep.subr.mxu0 0.0
    %4182 = vmatpush1.msra.mxu0 0.0
    %4183 = vmatprep.subr.mxu0 0.0
    %4184 = vmatpush1.msra.mxu0 0.0
    %4185 = vmatprep.subr.mxu0 0.0
    %4186 = vmatpush1.msra.mxu0 0.0
    %4187 = vmatprep.subr.mxu0 0.0
    %4188 = vmatpush1.msra.mxu0 0.0
    %4189 = vmatprep.subr.mxu0 0.0
    %4190 = vmatpush1.msra.mxu0 0.0
    %4191 = vmatprep.subr.mxu0 0.0
    %4192 = vmatpush1.msra.mxu0 0.0
    %4193 = vmatprep.subr.mxu0 0.0
    %4194 = vmatpush1.msra.mxu0 0.0
    %4195 = vmatprep.subr.mxu0 0.0
    %4196 = vmatpush1.msra.mxu0 0.0
    %4197 = vmatprep.subr.mxu0 0.0
    %4198 = vmatpush1.msra.mxu0 0.0
    %4199 = vmatprep.subr.mxu0 0.0
    %4200 = vmatpush1.msra.mxu0 %v4156
    %4201 = vmatprep.subr.mxu0 0.0
    %4202 = vmatpush1.msra.mxu0 %v4155
    %4203 = vmatprep.subr.mxu0 0.0
    %4204 = vmatpush1.msra.mxu0 %v4154
    %4205 = vmatprep.subr.mxu0 0.0
    %4206 = vmatpush1.msra.mxu0 %v4153
    %4207 = vmatprep.subr.mxu0 0.0
    %4208 = vmatpush2.msra.mxu0 0.0
    %4209 = vmatprep.subr.mxu0 0.0
    %4210 = vmatpush2.msra.mxu0 0.0
    %4211 = vmatprep.subr.mxu0 0.0
    %4212 = vmatpush2.msra.mxu0 0.0
    %4213 = vmatprep.subr.mxu0 0.0
    %4214 = vmatpush2.msra.mxu0 0.0
    %4215 = vmatprep.subr.mxu0 0.0
    %4216 = vmatpush2.msra.mxu0 0.0
    %4217 = vmatprep.subr.mxu0 0.0
    %4218 = vmatpush2.msra.mxu0 0.0
    %4219 = vmatprep.subr.mxu0 0.0
    %4220 = vmatpush2.msra.mxu0 0.0
    %4221 = vmatprep.subr.mxu0 0.0
    %4222 = vmatpush2.msra.mxu0 0.0
    %4223 = vmatprep.subr.mxu0 0.0
    %4224 = vmatpush2.msra.mxu0 0.0
    %4225 = vmatprep.subr.mxu0 0.0
    %4226 = vmatpush2.msra.mxu0 0.0
    %4227 = vmatprep.subr.mxu0 0.0
    %4228 = vmatpush2.msra.mxu0 0.0
    %4229 = vmatprep.subr.mxu0 0.0
    %4230 = vmatpush2.msra.mxu0 0.0
    %4231 = vmatprep.subr.mxu0 0.0
    %4232 = vmatpush2.msra.mxu0 0.0
    %4233 = vmatprep.subr.mxu0 0.0
    %4234 = vmatpush2.msra.mxu0 0.0
    %4235 = vmatprep.subr.mxu0 0.0
    %4236 = vmatpush2.msra.mxu0 0.0
    %4237 = vmatprep.subr.mxu0 0.0
    %4238 = vmatpush2.msra.mxu0 0.0
    %4239 = vmatprep.mubr.f32.mxu0 0.0
    %4240 = vmatmul.mubr.f32.gmra.mxu0 %v4170
    %v4241 = vpop.f32.mrf.mxu0
    %v4242 = vadd.f32 0.0, %v4241
    %v4243 = vpop.f32.mrf.mxu0
    %4244 = vmatprep.mubr.f32.mxu0 0.0
    %4245 = vmatmul.mubr.f32.gmra.mxu0 %v4173
    %v4246 = vpop.f32.mrf.mxu0
    %v4247 = vadd.f32 0.0, %v4246
    %v4248 = vpop.f32.mrf.mxu0
    %4249 = vdwg.mxu0
    %v4251 = vsel %vm153, %v2947, 0
    %v4254 = vsel %vm153, %v2948, 0
    %4256 = vmatprep.subr.mxu0 0.0
    %4257 = vmatpush1.msra.mxu0 0.0
    %4258 = vmatprep.subr.mxu0 0.0
    %4259 = vmatpush1.msra.mxu0 0.0
    %4260 = vmatprep.subr.mxu0 0.0
    %4261 = vmatpush1.msra.mxu0 0.0
    %4262 = vmatprep.subr.mxu0 0.0
    %4263 = vmatpush1.msra.mxu0 0.0
    %4264 = vmatprep.subr.mxu0 0.0
    %4265 = vmatpush1.msra.mxu0 0.0
    %4266 = vmatprep.subr.mxu0 0.0
    %4267 = vmatpush1.msra.mxu0 0.0
    %4268 = vmatprep.subr.mxu0 0.0
    %4269 = vmatpush1.msra.mxu0 0.0
    %4270 = vmatprep.subr.mxu0 0.0
    %4271 = vmatpush1.msra.mxu0 0.0
    %4272 = vmatprep.subr.mxu0 0.0
    %4273 = vmatpush1.msra.mxu0 0.0
    %4274 = vmatprep.subr.mxu0 0.0
    %4275 = vmatpush1.msra.mxu0 0.0
    %4276 = vmatprep.subr.mxu0 0.0
    %4277 = vmatpush1.msra.mxu0 0.0
    %4278 = vmatprep.subr.mxu0 0.0
    %4279 = vmatpush1.msra.mxu0 0.0
    %4280 = vmatprep.subr.mxu0 0.0
    %4281 = vmatpush1.msra.mxu0 %v4160
    %4282 = vmatprep.subr.mxu0 0.0
    %4283 = vmatpush1.msra.mxu0 %v4159
    %4284 = vmatprep.subr.mxu0 0.0
    %4285 = vmatpush1.msra.mxu0 %v4158
    %4286 = vmatprep.subr.mxu0 0.0
    %4287 = vmatpush1.msra.mxu0 %v4157
    %4288 = vmatprep.subr.mxu0 0.0
    %4289 = vmatpush2.msra.mxu0 0.0
    %4290 = vmatprep.subr.mxu0 0.0
    %4291 = vmatpush2.msra.mxu0 0.0
    %4292 = vmatprep.subr.mxu0 0.0
    %4293 = vmatpush2.msra.mxu0 0.0
    %4294 = vmatprep.subr.mxu0 0.0
    %4295 = vmatpush2.msra.mxu0 0.0
    %4296 = vmatprep.subr.mxu0 0.0
    %4297 = vmatpush2.msra.mxu0 0.0
    %4298 = vmatprep.subr.mxu0 0.0
    %4299 = vmatpush2.msra.mxu0 0.0
    %4300 = vmatprep.subr.mxu0 0.0
    %4301 = vmatpush2.msra.mxu0 0.0
    %4302 = vmatprep.subr.mxu0 0.0
    %4303 = vmatpush2.msra.mxu0 0.0
    %4304 = vmatprep.subr.mxu0 0.0
    %4305 = vmatpush2.msra.mxu0 0.0
    %4306 = vmatprep.subr.mxu0 0.0
    %4307 = vmatpush2.msra.mxu0 0.0
    %4308 = vmatprep.subr.mxu0 0.0
    %4309 = vmatpush2.msra.mxu0 0.0
    %4310 = vmatprep.subr.mxu0 0.0
    %4311 = vmatpush2.msra.mxu0 0.0
    %4312 = vmatprep.subr.mxu0 0.0
    %4313 = vmatpush2.msra.mxu0 0.0
    %4314 = vmatprep.subr.mxu0 0.0
    %4315 = vmatpush2.msra.mxu0 0.0
    %4316 = vmatprep.subr.mxu0 0.0
    %4317 = vmatpush2.msra.mxu0 0.0
    %4318 = vmatprep.subr.mxu0 0.0
    %4319 = vmatpush2.msra.mxu0 0.0
    %4320 = vmatprep.mubr.f32.mxu0 0.0
    %4321 = vmatmul.mubr.f32.gmra.mxu0 %v4251
    %v4322 = vpop.f32.mrf.mxu0
    %v4323 = vadd.f32 0.0, %v4322
    %v4324 = vpop.f32.mrf.mxu0
    %4325 = vmatprep.mubr.f32.mxu0 0.0
    %4326 = vmatmul.mubr.f32.gmra.mxu0 %v4254
    %v4327 = vpop.f32.mrf.mxu0
    %v4328 = vadd.f32 0.0, %v4327
    %v4329 = vpop.f32.mrf.mxu0
    %4330 = vdwg.mxu0
    %4331 = vmatprep.subr.mxu0 0.0
    %4332 = vmatpush1.msra.mxu0 0.0
    %4333 = vmatprep.subr.mxu0 0.0
    %4334 = vmatpush1.msra.mxu0 0.0
    %4335 = vmatprep.subr.mxu0 0.0
    %4336 = vmatpush1.msra.mxu0 0.0
    %4337 = vmatprep.subr.mxu0 0.0
    %4338 = vmatpush1.msra.mxu0 0.0
    %4339 = vmatprep.subr.mxu0 0.0
    %4340 = vmatpush1.msra.mxu0 0.0
    %4341 = vmatprep.subr.mxu0 0.0
    %4342 = vmatpush1.msra.mxu0 0.0
    %4343 = vmatprep.subr.mxu0 0.0
    %4344 = vmatpush1.msra.mxu0 0.0
    %4345 = vmatprep.subr.mxu0 0.0
    %4346 = vmatpush1.msra.mxu0 0.0
    %4347 = vmatprep.subr.mxu0 0.0
    %4348 = vmatpush1.msra.mxu0 0.0
    %4349 = vmatprep.subr.mxu0 0.0
    %4350 = vmatpush1.msra.mxu0 0.0
    %4351 = vmatprep.subr.mxu0 0.0
    %4352 = vmatpush1.msra.mxu0 0.0
    %4353 = vmatprep.subr.mxu0 0.0
    %4354 = vmatpush1.msra.mxu0 0.0
    %4355 = vmatprep.subr.mxu0 0.0
    %4356 = vmatpush1.msra.mxu0 %v4164
    %4357 = vmatprep.subr.mxu0 0.0
    %4358 = vmatpush1.msra.mxu0 %v4163
    %4359 = vmatprep.subr.mxu0 0.0
    %4360 = vmatpush1.msra.mxu0 %v4162
    %4361 = vmatprep.subr.mxu0 0.0
    %4362 = vmatpush1.msra.mxu0 %v4161
    %4363 = vmatprep.subr.mxu0 0.0
    %4364 = vmatpush2.msra.mxu0 0.0
    %4365 = vmatprep.subr.mxu0 0.0
    %4366 = vmatpush2.msra.mxu0 0.0
    %4367 = vmatprep.subr.mxu0 0.0
    %4368 = vmatpush2.msra.mxu0 0.0
    %4369 = vmatprep.subr.mxu0 0.0
    %4370 = vmatpush2.msra.mxu0 0.0
    %4371 = vmatprep.subr.mxu0 0.0
    %4372 = vmatpush2.msra.mxu0 0.0
    %4373 = vmatprep.subr.mxu0 0.0
    %4374 = vmatpush2.msra.mxu0 0.0
    %4375 = vmatprep.subr.mxu0 0.0
    %4376 = vmatpush2.msra.mxu0 0.0
    %4377 = vmatprep.subr.mxu0 0.0
    %4378 = vmatpush2.msra.mxu0 0.0
    %4379 = vmatprep.subr.mxu0 0.0
    %4380 = vmatpush2.msra.mxu0 0.0
    %4381 = vmatprep.subr.mxu0 0.0
    %4382 = vmatpush2.msra.mxu0 0.0
    %4383 = vmatprep.subr.mxu0 0.0
    %4384 = vmatpush2.msra.mxu0 0.0
    %4385 = vmatprep.subr.mxu0 0.0
    %4386 = vmatpush2.msra.mxu0 0.0
    %4387 = vmatprep.subr.mxu0 0.0
    %4388 = vmatpush2.msra.mxu0 0.0
    %4389 = vmatprep.subr.mxu0 0.0
    %4390 = vmatpush2.msra.mxu0 0.0
    %4391 = vmatprep.subr.mxu0 0.0
    %4392 = vmatpush2.msra.mxu0 0.0
    %4393 = vmatprep.subr.mxu0 0.0
    %4394 = vmatpush2.msra.mxu0 0.0
    %4395 = vmatprep.mubr.f32.mxu0 0.0
    %4396 = vmatmul.mubr.f32.gmra.mxu0 %v4251
    %v4397 = vpop.f32.mrf.mxu0
    %v4398 = vadd.f32 0.0, %v4397
    %v4399 = vpop.f32.mrf.mxu0
    %4400 = vmatprep.mubr.f32.mxu0 0.0
    %4401 = vmatmul.mubr.f32.gmra.mxu0 %v4254
    %v4402 = vpop.f32.mrf.mxu0
    %v4403 = vadd.f32 0.0, %v4402
    %v4404 = vpop.f32.mrf.mxu0
    %4405 = vdwg.mxu0
    %v4407 = vsel %vm424, %v4242, 0
    %v4410 = vsel %vm424, %v4247, 0
    %v4413 = vsel %vm424, %v4323, 0
    %v4416 = vsel %vm424, %v4328, 0
    %4418 = vmatprep.subr.mxu0 0.0
    %4419 = vmatpush1.xpose.msra.mxu0 0.0
    %4420 = vmatprep.subr.mxu0 0.0
    %4421 = vmatpush1.xpose.msra.mxu0 0.0
    %4422 = vmatprep.subr.mxu0 0.0
    %4423 = vmatpush1.xpose.msra.mxu0 0.0
    %4424 = vmatprep.subr.mxu0 0.0
    %4425 = vmatpush1.xpose.msra.mxu0 0.0
    %4426 = vmatprep.subr.mxu0 0.0
    %4427 = vmatpush1.xpose.msra.mxu0 0.0
    %4428 = vmatprep.subr.mxu0 0.0
    %4429 = vmatpush1.xpose.msra.mxu0 0.0
    %4430 = vmatprep.subr.mxu0 0.0
    %4431 = vmatpush1.xpose.msra.mxu0 0.0
    %4432 = vmatprep.subr.mxu0 0.0
    %4433 = vmatpush1.xpose.msra.mxu0 0.0
    %4434 = vmatprep.subr.mxu0 0.0
    %4435 = vmatpush1.xpose.msra.mxu0 0.0
    %4436 = vmatprep.subr.mxu0 0.0
    %4437 = vmatpush1.xpose.msra.mxu0 0.0
    %4438 = vmatprep.subr.mxu0 0.0
    %4439 = vmatpush1.xpose.msra.mxu0 0.0
    %4440 = vmatprep.subr.mxu0 0.0
    %4441 = vmatpush1.xpose.msra.mxu0 0.0
    %4442 = vmatprep.subr.mxu0 0.0
    %4443 = vmatpush1.xpose.msra.mxu0 0.0
    %4444 = vmatprep.subr.mxu0 0.0
    %4445 = vmatpush1.xpose.msra.mxu0 0.0
    %4446 = vmatprep.subr.mxu0 0.0
    %4447 = vmatpush1.xpose.msra.mxu0 %v4416
    %4448 = vmatprep.subr.mxu0 0.0
    %4449 = vmatpush1.xpose.msra.mxu0 %v4413
    %4450 = vmatprep.subr.mxu0 0.0
    %4451 = vmatpush2.xpose.msra.mxu0 0.0
    %4452 = vmatprep.subr.mxu0 0.0
    %4453 = vmatpush2.xpose.msra.mxu0 0.0
    %4454 = vmatprep.subr.mxu0 0.0
    %4455 = vmatpush2.xpose.msra.mxu0 0.0
    %4456 = vmatprep.subr.mxu0 0.0
    %4457 = vmatpush2.xpose.msra.mxu0 0.0
    %4458 = vmatprep.subr.mxu0 0.0
    %4459 = vmatpush2.xpose.msra.mxu0 0.0
    %4460 = vmatprep.subr.mxu0 0.0
    %4461 = vmatpush2.xpose.msra.mxu0 0.0
    %4462 = vmatprep.subr.mxu0 0.0
    %4463 = vmatpush2.xpose.msra.mxu0 0.0
    %4464 = vmatprep.subr.mxu0 0.0
    %4465 = vmatpush2.xpose.msra.mxu0 0.0
    %4466 = vmatprep.subr.mxu0 0.0
    %4467 = vmatpush2.xpose.msra.mxu0 0.0
    %4468 = vmatprep.subr.mxu0 0.0
    %4469 = vmatpush2.xpose.msra.mxu0 0.0
    %4470 = vmatprep.subr.mxu0 0.0
    %4471 = vmatpush2.xpose.msra.mxu0 0.0
    %4472 = vmatprep.subr.mxu0 0.0
    %4473 = vmatpush2.xpose.msra.mxu0 0.0
    %4474 = vmatprep.subr.mxu0 0.0
    %4475 = vmatpush2.xpose.msra.mxu0 0.0
    %4476 = vmatprep.subr.mxu0 0.0
    %4477 = vmatpush2.xpose.msra.mxu0 0.0
    %4478 = vmatprep.subr.mxu0 0.0
    %4479 = vmatpush2.xpose.msra.mxu0 0.0
    %4480 = vmatprep.subr.mxu0 0.0
    %4481 = vmatpush2.xpose.msra.mxu0 0.0
    %4482 = vmatprep.mubr.f32.mxu0 0.0
    %4483 = vmatmul.mubr.f32.gmra.mxu0 %v4407
    %v4484 = vpop.f32.mrf.mxu0
    %v4485 = vadd.f32 %v146, %v4484
    %v4486 = vpop.f32.mrf.mxu0
    %4487 = vmatprep.mubr.f32.mxu0 0.0
    %4488 = vmatmul.mubr.f32.gmra.mxu0 %v4410
    %v4489 = vpop.f32.mrf.mxu0
    %v4490 = vadd.f32 %v147, %v4489
    %v4491 = vpop.f32.mrf.mxu0
    %4492 = vdwg.mxu0
    %v4493 = vsel %vm512, %v4485, -inf
    %4494 = vmax.xlane.f32.xlu0 %v4493
    %v4495 = vpop.xlane.xlu0 %4494
    %v4496 = vsel %vm512, %v4490, -inf
    %4497 = vmax.xlane.f32.xlu0 %v4496
    %v4498 = vpop.xlane.xlu0 %4497
    %v4499 = vsub.f32 %v4485, %v4495
    %v4500 = vsub.f32 %v4490, %v4498
    %v4501 = vmul.f32 %v4499, 1.442695
    %v4502 = vpow.pop %v4501
    %v4503 = vmul.f32 %v4500, 1.442695
    %v4504 = vpow.pop %v4503
    %v4505 = vsel %vm512, %v4502, 0.0
    %4506 = vadd.xlane.f32.xlu0 %v4505
    %v4507 = vpop.xlane.xlu0 %4506
    %v4508 = vsel %vm512, %v4504, 0.0
    %4509 = vadd.xlane.f32.xlu0 %v4508
    %v4510 = vpop.xlane.xlu0 %4509
    %v4511 = vrcp.pop %v4507
    %v4512 = vrcp.pop %v4510
    %v4513 = vmul.f32 %v4502, %v4511
    %v4514 = vmul.f32 %v4504, %v4512
    %v4516 = vsel %vm512, %v4513, 0
    %v4519 = vsel %vm512, %v4514, 0
    %4521 = vmatprep.subr.mxu0 0.0
    %4522 = vmatpush1.msra.mxu0 0.0
    %4523 = vmatprep.subr.mxu0 0.0
    %4524 = vmatpush1.msra.mxu0 0.0
    %4525 = vmatprep.subr.mxu0 0.0
    %4526 = vmatpush1.msra.mxu0 0.0
    %4527 = vmatprep.subr.mxu0 0.0
    %4528 = vmatpush1.msra.mxu0 0.0
    %4529 = vmatprep.subr.mxu0 0.0
    %4530 = vmatpush1.msra.mxu0 0.0
    %4531 = vmatprep.subr.mxu0 0.0
    %4532 = vmatpush1.msra.mxu0 0.0
    %4533 = vmatprep.subr.mxu0 0.0
    %4534 = vmatpush1.msra.mxu0 0.0
    %4535 = vmatprep.subr.mxu0 0.0
    %4536 = vmatpush1.msra.mxu0 0.0
    %4537 = vmatprep.subr.mxu0 0.0
    %4538 = vmatpush1.msra.mxu0 0.0
    %4539 = vmatprep.subr.mxu0 0.0
    %4540 = vmatpush1.msra.mxu0 0.0
    %4541 = vmatprep.subr.mxu0 0.0
    %4542 = vmatpush1.msra.mxu0 0.0
    %4543 = vmatprep.subr.mxu0 0.0
    %4544 = vmatpush1.msra.mxu0 0.0
    %4545 = vmatprep.subr.mxu0 0.0
    %4546 = vmatpush1.msra.mxu0 0.0
    %4547 = vmatprep.subr.mxu0 0.0
    %4548 = vmatpush1.msra.mxu0 0.0
    %4549 = vmatprep.subr.mxu0 0.0
    %4550 = vmatpush1.msra.mxu0 %v4403
    %4551 = vmatprep.subr.mxu0 0.0
    %4552 = vmatpush1.msra.mxu0 %v4398
    %4553 = vmatprep.subr.mxu0 0.0
    %4554 = vmatpush2.msra.mxu0 0.0
    %4555 = vmatprep.subr.mxu0 0.0
    %4556 = vmatpush2.msra.mxu0 0.0
    %4557 = vmatprep.subr.mxu0 0.0
    %4558 = vmatpush2.msra.mxu0 0.0
    %4559 = vmatprep.subr.mxu0 0.0
    %4560 = vmatpush2.msra.mxu0 0.0
    %4561 = vmatprep.subr.mxu0 0.0
    %4562 = vmatpush2.msra.mxu0 0.0
    %4563 = vmatprep.subr.mxu0 0.0
    %4564 = vmatpush2.msra.mxu0 0.0
    %4565 = vmatprep.subr.mxu0 0.0
    %4566 = vmatpush2.msra.mxu0 0.0
    %4567 = vmatprep.subr.mxu0 0.0
    %4568 = vmatpush2.msra.mxu0 0.0
    %4569 = vmatprep.subr.mxu0 0.0
    %4570 = vmatpush2.msra.mxu0 0.0
    %4571 = vmatprep.subr.mxu0 0.0
    %4572 = vmatpush2.msra.mxu0 0.0
    %4573 = vmatprep.subr.mxu0 0.0
    %4574 = vmatpush2.msra.mxu0 0.0
    %4575 = vmatprep.subr.mxu0 0.0
    %4576 = vmatpush2.msra.mxu0 0.0
    %4577 = vmatprep.subr.mxu0 0.0
    %4578 = vmatpush2.msra.mxu0 0.0
    %4579 = vmatprep.subr.mxu0 0.0
    %4580 = vmatpush2.msra.mxu0 0.0
    %4581 = vmatprep.subr.mxu0 0.0
    %4582 = vmatpush2.msra.mxu0 0.0
    %4583 = vmatprep.subr.mxu0 0.0
    %4584 = vmatpush2.msra.mxu0 0.0
    %4585 = vmatprep.mubr.f32.mxu0 0.0
    %4586 = vmatmul.mubr.f32.gmra.mxu0 %v4516
    %v4587 = vpop.f32.mrf.mxu0
    %v4588 = vadd.f32 0.0, %v4587
    %v4589 = vpop.f32.mrf.mxu0
    %4590 = vmatprep.mubr.f32.mxu0 0.0
    %4591 = vmatmul.mubr.f32.gmra.mxu0 %v4519
    %v4592 = vpop.f32.mrf.mxu0
    %v4593 = vadd.f32 0.0, %v4592
    %v4594 = vpop.f32.mrf.mxu0
    %4595 = vdwg.mxu0
    %4596 = vrot.lane.b32.xlu0 %v4242, 120
    %v4597 = vpop.permute.xlu0 %4596
    %4598 = vrot.lane.b32.xlu0 %v4247, 120
    %v4599 = vpop.permute.xlu0 %4598
    %4600 = vrot.lane.b32.xlu0 %v4323, 120
    %v4601 = vpop.permute.xlu0 %4600
    %4602 = vrot.lane.b32.xlu0 %v4328, 120
    %v4603 = vpop.permute.xlu0 %4602
    %v4604 = vsel %vm424, %v4597, 0
    %v4606 = vsel %vm424, %v4599, 0
    %v4608 = vsel %vm424, %v4601, 0
    %v4610 = vsel %vm424, %v4603, 0
    %4612 = vmatprep.subr.mxu0 0.0
    %4613 = vmatpush1.xpose.msra.mxu0 0.0
    %4614 = vmatprep.subr.mxu0 0.0
    %4615 = vmatpush1.xpose.msra.mxu0 0.0
    %4616 = vmatprep.subr.mxu0 0.0
    %4617 = vmatpush1.xpose.msra.mxu0 0.0
    %4618 = vmatprep.subr.mxu0 0.0
    %4619 = vmatpush1.xpose.msra.mxu0 0.0
    %4620 = vmatprep.subr.mxu0 0.0
    %4621 = vmatpush1.xpose.msra.mxu0 0.0
    %4622 = vmatprep.subr.mxu0 0.0
    %4623 = vmatpush1.xpose.msra.mxu0 0.0
    %4624 = vmatprep.subr.mxu0 0.0
    %4625 = vmatpush1.xpose.msra.mxu0 0.0
    %4626 = vmatprep.subr.mxu0 0.0
    %4627 = vmatpush1.xpose.msra.mxu0 0.0
    %4628 = vmatprep.subr.mxu0 0.0
    %4629 = vmatpush1.xpose.msra.mxu0 0.0
    %4630 = vmatprep.subr.mxu0 0.0
    %4631 = vmatpush1.xpose.msra.mxu0 0.0
    %4632 = vmatprep.subr.mxu0 0.0
    %4633 = vmatpush1.xpose.msra.mxu0 0.0
    %4634 = vmatprep.subr.mxu0 0.0
    %4635 = vmatpush1.xpose.msra.mxu0 0.0
    %4636 = vmatprep.subr.mxu0 0.0
    %4637 = vmatpush1.xpose.msra.mxu0 0.0
    %4638 = vmatprep.subr.mxu0 0.0
    %4639 = vmatpush1.xpose.msra.mxu0 0.0
    %4640 = vmatprep.subr.mxu0 0.0
    %4641 = vmatpush1.xpose.msra.mxu0 %v4610
    %4642 = vmatprep.subr.mxu0 0.0
    %4643 = vmatpush1.xpose.msra.mxu0 %v4608
    %4644 = vmatprep.subr.mxu0 0.0
    %4645 = vmatpush2.xpose.msra.mxu0 0.0
    %4646 = vmatprep.subr.mxu0 0.0
    %4647 = vmatpush2.xpose.msra.mxu0 0.0
    %4648 = vmatprep.subr.mxu0 0.0
    %4649 = vmatpush2.xpose.msra.mxu0 0.0
    %4650 = vmatprep.subr.mxu0 0.0
    %4651 = vmatpush2.xpose.msra.mxu0 0.0
    %4652 = vmatprep.subr.mxu0 0.0
    %4653 = vmatpush2.xpose.msra.mxu0 0.0
    %4654 = vmatprep.subr.mxu0 0.0
    %4655 = vmatpush2.xpose.msra.mxu0 0.0
    %4656 = vmatprep.subr.mxu0 0.0
    %4657 = vmatpush2.xpose.msra.mxu0 0.0
    %4658 = vmatprep.subr.mxu0 0.0
    %4659 = vmatpush2.xpose.msra.mxu0 0.0
    %4660 = vmatprep.subr.mxu0 0.0
    %4661 = vmatpush2.xpose.msra.mxu0 0.0
    %4662 = vmatprep.subr.mxu0 0.0
    %4663 = vmatpush2.xpose.msra.mxu0 0.0
    %4664 = vmatprep.subr.mxu0 0.0
    %4665 = vmatpush2.xpose.msra.mxu0 0.0
    %4666 = vmatprep.subr.mxu0 0.0
    %4667 = vmatpush2.xpose.msra.mxu0 0.0
    %4668 = vmatprep.subr.mxu0 0.0
    %4669 = vmatpush2.xpose.msra.mxu0 0.0
    %4670 = vmatprep.subr.mxu0 0.0
    %4671 = vmatpush2.xpose.msra.mxu0 0.0
    %4672 = vmatprep.subr.mxu0 0.0
    %4673 = vmatpush2.xpose.msra.mxu0 0.0
    %4674 = vmatprep.subr.mxu0 0.0
    %4675 = vmatpush2.xpose.msra.mxu0 0.0
    %4676 = vmatprep.mubr.f32.mxu0 0.0
    %4677 = vmatmul.mubr.f32.gmra.mxu0 %v4604
    %v4678 = vpop.f32.mrf.mxu0
    %v4679 = vadd.f32 %v146, %v4678
    %v4680 = vpop.f32.mrf.mxu0
    %4681 = vmatprep.mubr.f32.mxu0 0.0
    %4682 = vmatmul.mubr.f32.gmra.mxu0 %v4606
    %v4683 = vpop.f32.mrf.mxu0
    %v4684 = vadd.f32 %v147, %v4683
    %v4685 = vpop.f32.mrf.mxu0
    %4686 = vdwg.mxu0
    %v4687 = vsel %vm512, %v4679, -inf
    %4688 = vmax.xlane.f32.xlu0 %v4687
    %v4689 = vpop.xlane.xlu0 %4688
    %v4690 = vsel %vm512, %v4684, -inf
    %4691 = vmax.xlane.f32.xlu0 %v4690
    %v4692 = vpop.xlane.xlu0 %4691
    %v4693 = vsub.f32 %v4679, %v4689
    %v4694 = vsub.f32 %v4684, %v4692
    %v4695 = vmul.f32 %v4693, 1.442695
    %v4696 = vpow.pop %v4695
    %v4697 = vmul.f32 %v4694, 1.442695
    %v4698 = vpow.pop %v4697
    %v4699 = vsel %vm512, %v4696, 0.0
    %4700 = vadd.xlane.f32.xlu0 %v4699
    %v4701 = vpop.xlane.xlu0 %4700
    %v4702 = vsel %vm512, %v4698, 0.0
    %4703 = vadd.xlane.f32.xlu0 %v4702
    %v4704 = vpop.xlane.xlu0 %4703
    %v4705 = vrcp.pop %v4701
    %v4706 = vrcp.pop %v4704
    %v4707 = vmul.f32 %v4696, %v4705
    %v4708 = vmul.f32 %v4698, %v4706
    %4711 = vrot.lane.b32.xlu0 %v4398, 120
    %v4712 = vpop.permute.xlu0 %4711
    %4713 = vrot.lane.b32.xlu0 %v4403, 120
    %v4714 = vpop.permute.xlu0 %4713
    %v4718 = vsel %vm512, %v4707, 0
    %v4721 = vsel %vm512, %v4708, 0
    %4723 = vmatprep.subr.mxu0 0.0
    %4724 = vmatpush1.msra.mxu0 0.0
    %4725 = vmatprep.subr.mxu0 0.0
    %4726 = vmatpush1.msra.mxu0 0.0
    %4727 = vmatprep.subr.mxu0 0.0
    %4728 = vmatpush1.msra.mxu0 0.0
    %4729 = vmatprep.subr.mxu0 0.0
    %4730 = vmatpush1.msra.mxu0 0.0
    %4731 = vmatprep.subr.mxu0 0.0
    %4732 = vmatpush1.msra.mxu0 0.0
    %4733 = vmatprep.subr.mxu0 0.0
    %4734 = vmatpush1.msra.mxu0 0.0
    %4735 = vmatprep.subr.mxu0 0.0
    %4736 = vmatpush1.msra.mxu0 0.0
    %4737 = vmatprep.subr.mxu0 0.0
    %4738 = vmatpush1.msra.mxu0 0.0
    %4739 = vmatprep.subr.mxu0 0.0
    %4740 = vmatpush1.msra.mxu0 0.0
    %4741 = vmatprep.subr.mxu0 0.0
    %4742 = vmatpush1.msra.mxu0 0.0
    %4743 = vmatprep.subr.mxu0 0.0
    %4744 = vmatpush1.msra.mxu0 0.0
    %4745 = vmatprep.subr.mxu0 0.0
    %4746 = vmatpush1.msra.mxu0 0.0
    %4747 = vmatprep.subr.mxu0 0.0
    %4748 = vmatpush1.msra.mxu0 0.0
    %4749 = vmatprep.subr.mxu0 0.0
    %4750 = vmatpush1.msra.mxu0 0.0
    %4751 = vmatprep.subr.mxu0 0.0
    %4752 = vmatpush1.msra.mxu0 %v4714
    %4753 = vmatprep.subr.mxu0 0.0
    %4754 = vmatpush1.msra.mxu0 %v4712
    %4755 = vmatprep.subr.mxu0 0.0
    %4756 = vmatpush2.msra.mxu0 0.0
    %4757 = vmatprep.subr.mxu0 0.0
    %4758 = vmatpush2.msra.mxu0 0.0
    %4759 = vmatprep.subr.mxu0 0.0
    %4760 = vmatpush2.msra.mxu0 0.0
    %4761 = vmatprep.subr.mxu0 0.0
    %4762 = vmatpush2.msra.mxu0 0.0
    %4763 = vmatprep.subr.mxu0 0.0
    %4764 = vmatpush2.msra.mxu0 0.0
    %4765 = vmatprep.subr.mxu0 0.0
    %4766 = vmatpush2.msra.mxu0 0.0
    %4767 = vmatprep.subr.mxu0 0.0
    %4768 = vmatpush2.msra.mxu0 0.0
    %4769 = vmatprep.subr.mxu0 0.0
    %4770 = vmatpush2.msra.mxu0 0.0
    %4771 = vmatprep.subr.mxu0 0.0
    %4772 = vmatpush2.msra.mxu0 0.0
    %4773 = vmatprep.subr.mxu0 0.0
    %4774 = vmatpush2.msra.mxu0 0.0
    %4775 = vmatprep.subr.mxu0 0.0
    %4776 = vmatpush2.msra.mxu0 0.0
    %4777 = vmatprep.subr.mxu0 0.0
    %4778 = vmatpush2.msra.mxu0 0.0
    %4779 = vmatprep.subr.mxu0 0.0
    %4780 = vmatpush2.msra.mxu0 0.0
    %4781 = vmatprep.subr.mxu0 0.0
    %4782 = vmatpush2.msra.mxu0 0.0
    %4783 = vmatprep.subr.mxu0 0.0
    %4784 = vmatpush2.msra.mxu0 0.0
    %4785 = vmatprep.subr.mxu0 0.0
    %4786 = vmatpush2.msra.mxu0 0.0
    %4787 = vmatprep.mubr.f32.mxu0 0.0
    %4788 = vmatmul.mubr.f32.gmra.mxu0 %v4718
    %v4789 = vpop.f32.mrf.mxu0
    %v4790 = vadd.f32 0.0, %v4789
    %v4791 = vpop.f32.mrf.mxu0
    %4792 = vmatprep.mubr.f32.mxu0 0.0
    %4793 = vmatmul.mubr.f32.gmra.mxu0 %v4721
    %v4794 = vpop.f32.mrf.mxu0
    %v4795 = vadd.f32 0.0, %v4794
    %v4796 = vpop.f32.mrf.mxu0
    %4797 = vdwg.mxu0
    %4798 = vrot.lane.b32.xlu0 %v4242, 112
    %v4799 = vpop.permute.xlu0 %4798
    %4800 = vrot.lane.b32.xlu0 %v4247, 112
    %v4801 = vpop.permute.xlu0 %4800
    %4802 = vrot.lane.b32.xlu0 %v4323, 112
    %v4803 = vpop.permute.xlu0 %4802
    %4804 = vrot.lane.b32.xlu0 %v4328, 112
    %v4805 = vpop.permute.xlu0 %4804
    %v4806 = vsel %vm424, %v4799, 0
    %v4808 = vsel %vm424, %v4801, 0
    %v4810 = vsel %vm424, %v4803, 0
    %v4812 = vsel %vm424, %v4805, 0
    %4814 = vmatprep.subr.mxu0 0.0
    %4815 = vmatpush1.xpose.msra.mxu0 0.0
    %4816 = vmatprep.subr.mxu0 0.0
    %4817 = vmatpush1.xpose.msra.mxu0 0.0
    %4818 = vmatprep.subr.mxu0 0.0
    %4819 = vmatpush1.xpose.msra.mxu0 0.0
    %4820 = vmatprep.subr.mxu0 0.0
    %4821 = vmatpush1.xpose.msra.mxu0 0.0
    %4822 = vmatprep.subr.mxu0 0.0
    %4823 = vmatpush1.xpose.msra.mxu0 0.0
    %4824 = vmatprep.subr.mxu0 0.0
    %4825 = vmatpush1.xpose.msra.mxu0 0.0
    %4826 = vmatprep.subr.mxu0 0.0
    %4827 = vmatpush1.xpose.msra.mxu0 0.0
    %4828 = vmatprep.subr.mxu0 0.0
    %4829 = vmatpush1.xpose.msra.mxu0 0.0
    %4830 = vmatprep.subr.mxu0 0.0
    %4831 = vmatpush1.xpose.msra.mxu0 0.0
    %4832 = vmatprep.subr.mxu0 0.0
    %4833 = vmatpush1.xpose.msra.mxu0 0.0
    %4834 = vmatprep.subr.mxu0 0.0
    %4835 = vmatpush1.xpose.msra.mxu0 0.0
    %4836 = vmatprep.subr.mxu0 0.0
    %4837 = vmatpush1.xpose.msra.mxu0 0.0
    %4838 = vmatprep.subr.mxu0 0.0
    %4839 = vmatpush1.xpose.msra.mxu0 0.0
    %4840 = vmatprep.subr.mxu0 0.0
    %4841 = vmatpush1.xpose.msra.mxu0 0.0
    %4842 = vmatprep.subr.mxu0 0.0
    %4843 = vmatpush1.xpose.msra.mxu0 %v4812
    %4844 = vmatprep.subr.mxu0 0.0
    %4845 = vmatpush1.xpose.msra.mxu0 %v4810
    %4846 = vmatprep.subr.mxu0 0.0
    %4847 = vmatpush2.xpose.msra.mxu0 0.0
    %4848 = vmatprep.subr.mxu0 0.0
    %4849 = vmatpush2.xpose.msra.mxu0 0.0
    %4850 = vmatprep.subr.mxu0 0.0
    %4851 = vmatpush2.xpose.msra.mxu0 0.0
    %4852 = vmatprep.subr.mxu0 0.0
    %4853 = vmatpush2.xpose.msra.mxu0 0.0
    %4854 = vmatprep.subr.mxu0 0.0
    %4855 = vmatpush2.xpose.msra.mxu0 0.0
    %4856 = vmatprep.subr.mxu0 0.0
    %4857 = vmatpush2.xpose.msra.mxu0 0.0
    %4858 = vmatprep.subr.mxu0 0.0
    %4859 = vmatpush2.xpose.msra.mxu0 0.0
    %4860 = vmatprep.subr.mxu0 0.0
    %4861 = vmatpush2.xpose.msra.mxu0 0.0
    %4862 = vmatprep.subr.mxu0 0.0
    %4863 = vmatpush2.xpose.msra.mxu0 0.0
    %4864 = vmatprep.subr.mxu0 0.0
    %4865 = vmatpush2.xpose.msra.mxu0 0.0
    %4866 = vmatprep.subr.mxu0 0.0
    %4867 = vmatpush2.xpose.msra.mxu0 0.0
    %4868 = vmatprep.subr.mxu0 0.0
    %4869 = vmatpush2.xpose.msra.mxu0 0.0
    %4870 = vmatprep.subr.mxu0 0.0
    %4871 = vmatpush2.xpose.msra.mxu0 0.0
    %4872 = vmatprep.subr.mxu0 0.0
    %4873 = vmatpush2.xpose.msra.mxu0 0.0
    %4874 = vmatprep.subr.mxu0 0.0
    %4875 = vmatpush2.xpose.msra.mxu0 0.0
    %4876 = vmatprep.subr.mxu0 0.0
    %4877 = vmatpush2.xpose.msra.mxu0 0.0
    %4878 = vmatprep.mubr.f32.mxu0 0.0
    %4879 = vmatmul.mubr.f32.gmra.mxu0 %v4806
    %v4880 = vpop.f32.mrf.mxu0
    %v4881 = vadd.f32 %v146, %v4880
    %v4882 = vpop.f32.mrf.mxu0
    %4883 = vmatprep.mubr.f32.mxu0 0.0
    %4884 = vmatmul.mubr.f32.gmra.mxu0 %v4808
    %v4885 = vpop.f32.mrf.mxu0
    %v4886 = vadd.f32 %v147, %v4885
    %v4887 = vpop.f32.mrf.mxu0
    %4888 = vdwg.mxu0
    %v4889 = vsel %vm512, %v4881, -inf
    %4890 = vmax.xlane.f32.xlu0 %v4889
    %v4891 = vpop.xlane.xlu0 %4890
    %v4892 = vsel %vm512, %v4886, -inf
    %4893 = vmax.xlane.f32.xlu0 %v4892
    %v4894 = vpop.xlane.xlu0 %4893
    %v4895 = vsub.f32 %v4881, %v4891
    %v4896 = vsub.f32 %v4886, %v4894
    %v4897 = vmul.f32 %v4895, 1.442695
    %v4898 = vpow.pop %v4897
    %v4899 = vmul.f32 %v4896, 1.442695
    %v4900 = vpow.pop %v4899
    %v4901 = vsel %vm512, %v4898, 0.0
    %4902 = vadd.xlane.f32.xlu0 %v4901
    %v4903 = vpop.xlane.xlu0 %4902
    %v4904 = vsel %vm512, %v4900, 0.0
    %4905 = vadd.xlane.f32.xlu0 %v4904
    %v4906 = vpop.xlane.xlu0 %4905
    %v4907 = vrcp.pop %v4903
    %v4908 = vrcp.pop %v4906
    %v4909 = vmul.f32 %v4898, %v4907
    %v4910 = vmul.f32 %v4900, %v4908
    %4911 = vrot.lane.b32.xlu0 %v4398, 112
    %v4912 = vpop.permute.xlu0 %4911
    %4913 = vrot.lane.b32.xlu0 %v4403, 112
    %v4914 = vpop.permute.xlu0 %4913
    %v4918 = vsel %vm512, %v4909, 0
    %v4921 = vsel %vm512, %v4910, 0
    %4923 = vmatprep.subr.mxu0 0.0
    %4924 = vmatpush1.msra.mxu0 0.0
    %4925 = vmatprep.subr.mxu0 0.0
    %4926 = vmatpush1.msra.mxu0 0.0
    %4927 = vmatprep.subr.mxu0 0.0
    %4928 = vmatpush1.msra.mxu0 0.0
    %4929 = vmatprep.subr.mxu0 0.0
    %4930 = vmatpush1.msra.mxu0 0.0
    %4931 = vmatprep.subr.mxu0 0.0
    %4932 = vmatpush1.msra.mxu0 0.0
    %4933 = vmatprep.subr.mxu0 0.0
    %4934 = vmatpush1.msra.mxu0 0.0
    %4935 = vmatprep.subr.mxu0 0.0
    %4936 = vmatpush1.msra.mxu0 0.0
    %4937 = vmatprep.subr.mxu0 0.0
    %4938 = vmatpush1.msra.mxu0 0.0
    %4939 = vmatprep.subr.mxu0 0.0
    %4940 = vmatpush1.msra.mxu0 0.0
    %4941 = vmatprep.subr.mxu0 0.0
    %4942 = vmatpush1.msra.mxu0 0.0
    %4943 = vmatprep.subr.mxu0 0.0
    %4944 = vmatpush1.msra.mxu0 0.0
    %4945 = vmatprep.subr.mxu0 0.0
    %4946 = vmatpush1.msra.mxu0 0.0
    %4947 = vmatprep.subr.mxu0 0.0
    %4948 = vmatpush1.msra.mxu0 0.0
    %4949 = vmatprep.subr.mxu0 0.0
    %4950 = vmatpush1.msra.mxu0 0.0
    %4951 = vmatprep.subr.mxu0 0.0
    %4952 = vmatpush1.msra.mxu0 %v4914
    %4953 = vmatprep.subr.mxu0 0.0
    %4954 = vmatpush1.msra.mxu0 %v4912
    %4955 = vmatprep.subr.mxu0 0.0
    %4956 = vmatpush2.msra.mxu0 0.0
    %4957 = vmatprep.subr.mxu0 0.0
    %4958 = vmatpush2.msra.mxu0 0.0
    %4959 = vmatprep.subr.mxu0 0.0
    %4960 = vmatpush2.msra.mxu0 0.0
    %4961 = vmatprep.subr.mxu0 0.0
    %4962 = vmatpush2.msra.mxu0 0.0
    %4963 = vmatprep.subr.mxu0 0.0
    %4964 = vmatpush2.msra.mxu0 0.0
    %4965 = vmatprep.subr.mxu0 0.0
    %4966 = vmatpush2.msra.mxu0 0.0
    %4967 = vmatprep.subr.mxu0 0.0
    %4968 = vmatpush2.msra.mxu0 0.0
    %4969 = vmatprep.subr.mxu0 0.0
    %4970 = vmatpush2.msra.mxu0 0.0
    %4971 = vmatprep.subr.mxu0 0.0
    %4972 = vmatpush2.msra.mxu0 0.0
    %4973 = vmatprep.subr.mxu0 0.0
    %4974 = vmatpush2.msra.mxu0 0.0
    %4975 = vmatprep.subr.mxu0 0.0
    %4976 = vmatpush2.msra.mxu0 0.0
    %4977 = vmatprep.subr.mxu0 0.0
    %4978 = vmatpush2.msra.mxu0 0.0
    %4979 = vmatprep.subr.mxu0 0.0
    %4980 = vmatpush2.msra.mxu0 0.0
    %4981 = vmatprep.subr.mxu0 0.0
    %4982 = vmatpush2.msra.mxu0 0.0
    %4983 = vmatprep.subr.mxu0 0.0
    %4984 = vmatpush2.msra.mxu0 0.0
    %4985 = vmatprep.subr.mxu0 0.0
    %4986 = vmatpush2.msra.mxu0 0.0
    %4987 = vmatprep.mubr.f32.mxu0 0.0
    %4988 = vmatmul.mubr.f32.gmra.mxu0 %v4918
    %v4989 = vpop.f32.mrf.mxu0
    %v4990 = vadd.f32 0.0, %v4989
    %v4991 = vpop.f32.mrf.mxu0
    %4992 = vmatprep.mubr.f32.mxu0 0.0
    %4993 = vmatmul.mubr.f32.gmra.mxu0 %v4921
    %v4994 = vpop.f32.mrf.mxu0
    %v4995 = vadd.f32 0.0, %v4994
    %v4996 = vpop.f32.mrf.mxu0
    %4997 = vdwg.mxu0
    %4998 = vrot.lane.b32.xlu0 %v4242, 104
    %v4999 = vpop.permute.xlu0 %4998
    %5000 = vrot.lane.b32.xlu0 %v4247, 104
    %v5001 = vpop.permute.xlu0 %5000
    %5002 = vrot.lane.b32.xlu0 %v4323, 104
    %v5003 = vpop.permute.xlu0 %5002
    %5004 = vrot.lane.b32.xlu0 %v4328, 104
    %v5005 = vpop.permute.xlu0 %5004
    %v5006 = vsel %vm424, %v4999, 0
    %v5008 = vsel %vm424, %v5001, 0
    %v5010 = vsel %vm424, %v5003, 0
    %v5012 = vsel %vm424, %v5005, 0
    %5014 = vmatprep.subr.mxu0 0.0
    %5015 = vmatpush1.xpose.msra.mxu0 0.0
    %5016 = vmatprep.subr.mxu0 0.0
    %5017 = vmatpush1.xpose.msra.mxu0 0.0
    %5018 = vmatprep.subr.mxu0 0.0
    %5019 = vmatpush1.xpose.msra.mxu0 0.0
    %5020 = vmatprep.subr.mxu0 0.0
    %5021 = vmatpush1.xpose.msra.mxu0 0.0
    %5022 = vmatprep.subr.mxu0 0.0
    %5023 = vmatpush1.xpose.msra.mxu0 0.0
    %5024 = vmatprep.subr.mxu0 0.0
    %5025 = vmatpush1.xpose.msra.mxu0 0.0
    %5026 = vmatprep.subr.mxu0 0.0
    %5027 = vmatpush1.xpose.msra.mxu0 0.0
    %5028 = vmatprep.subr.mxu0 0.0
    %5029 = vmatpush1.xpose.msra.mxu0 0.0
    %5030 = vmatprep.subr.mxu0 0.0
    %5031 = vmatpush1.xpose.msra.mxu0 0.0
    %5032 = vmatprep.subr.mxu0 0.0
    %5033 = vmatpush1.xpose.msra.mxu0 0.0
    %5034 = vmatprep.subr.mxu0 0.0
    %5035 = vmatpush1.xpose.msra.mxu0 0.0
    %5036 = vmatprep.subr.mxu0 0.0
    %5037 = vmatpush1.xpose.msra.mxu0 0.0
    %5038 = vmatprep.subr.mxu0 0.0
    %5039 = vmatpush1.xpose.msra.mxu0 0.0
    %5040 = vmatprep.subr.mxu0 0.0
    %5041 = vmatpush1.xpose.msra.mxu0 0.0
    %5042 = vmatprep.subr.mxu0 0.0
    %5043 = vmatpush1.xpose.msra.mxu0 %v5012
    %5044 = vmatprep.subr.mxu0 0.0
    %5045 = vmatpush1.xpose.msra.mxu0 %v5010
    %5046 = vmatprep.subr.mxu0 0.0
    %5047 = vmatpush2.xpose.msra.mxu0 0.0
    %5048 = vmatprep.subr.mxu0 0.0
    %5049 = vmatpush2.xpose.msra.mxu0 0.0
    %5050 = vmatprep.subr.mxu0 0.0
    %5051 = vmatpush2.xpose.msra.mxu0 0.0
    %5052 = vmatprep.subr.mxu0 0.0
    %5053 = vmatpush2.xpose.msra.mxu0 0.0
    %5054 = vmatprep.subr.mxu0 0.0
    %5055 = vmatpush2.xpose.msra.mxu0 0.0
    %5056 = vmatprep.subr.mxu0 0.0
    %5057 = vmatpush2.xpose.msra.mxu0 0.0
    %5058 = vmatprep.subr.mxu0 0.0
    %5059 = vmatpush2.xpose.msra.mxu0 0.0
    %5060 = vmatprep.subr.mxu0 0.0
    %5061 = vmatpush2.xpose.msra.mxu0 0.0
    %5062 = vmatprep.subr.mxu0 0.0
    %5063 = vmatpush2.xpose.msra.mxu0 0.0
    %5064 = vmatprep.subr.mxu0 0.0
    %5065 = vmatpush2.xpose.msra.mxu0 0.0
    %5066 = vmatprep.subr.mxu0 0.0
    %5067 = vmatpush2.xpose.msra.mxu0 0.0
    %5068 = vmatprep.subr.mxu0 0.0
    %5069 = vmatpush2.xpose.msra.mxu0 0.0
    %5070 = vmatprep.subr.mxu0 0.0
    %5071 = vmatpush2.xpose.msra.mxu0 0.0
    %5072 = vmatprep.subr.mxu0 0.0
    %5073 = vmatpush2.xpose.msra.mxu0 0.0
    %5074 = vmatprep.subr.mxu0 0.0
    %5075 = vmatpush2.xpose.msra.mxu0 0.0
    %5076 = vmatprep.subr.mxu0 0.0
    %5077 = vmatpush2.xpose.msra.mxu0 0.0
    %5078 = vmatprep.mubr.f32.mxu0 0.0
    %5079 = vmatmul.mubr.f32.gmra.mxu0 %v5006
    %v5080 = vpop.f32.mrf.mxu0
    %v5081 = vadd.f32 %v146, %v5080
    %v5082 = vpop.f32.mrf.mxu0
    %5083 = vmatprep.mubr.f32.mxu0 0.0
    %5084 = vmatmul.mubr.f32.gmra.mxu0 %v5008
    %v5085 = vpop.f32.mrf.mxu0
    %v5086 = vadd.f32 %v147, %v5085
    %v5087 = vpop.f32.mrf.mxu0
    %5088 = vdwg.mxu0
    %v5089 = vsel %vm512, %v5081, -inf
    %5090 = vmax.xlane.f32.xlu0 %v5089
    %v5091 = vpop.xlane.xlu0 %5090
    %v5092 = vsel %vm512, %v5086, -inf
    %5093 = vmax.xlane.f32.xlu0 %v5092
    %v5094 = vpop.xlane.xlu0 %5093
    %v5095 = vsub.f32 %v5081, %v5091
    %v5096 = vsub.f32 %v5086, %v5094
    %v5097 = vmul.f32 %v5095, 1.442695
    %v5098 = vpow.pop %v5097
    %v5099 = vmul.f32 %v5096, 1.442695
    %v5100 = vpow.pop %v5099
    %v5101 = vsel %vm512, %v5098, 0.0
    %5102 = vadd.xlane.f32.xlu0 %v5101
    %v5103 = vpop.xlane.xlu0 %5102
    %v5104 = vsel %vm512, %v5100, 0.0
    %5105 = vadd.xlane.f32.xlu0 %v5104
    %v5106 = vpop.xlane.xlu0 %5105
    %v5107 = vrcp.pop %v5103
    %v5108 = vrcp.pop %v5106
    %v5109 = vmul.f32 %v5098, %v5107
    %v5110 = vmul.f32 %v5100, %v5108
    %5111 = vrot.lane.b32.xlu0 %v4398, 104
    %v5112 = vpop.permute.xlu0 %5111
    %5113 = vrot.lane.b32.xlu0 %v4403, 104
    %v5114 = vpop.permute.xlu0 %5113
    %v5118 = vsel %vm512, %v5109, 0
    %v5121 = vsel %vm512, %v5110, 0
    %5123 = vmatprep.subr.mxu0 0.0
    %5124 = vmatpush1.msra.mxu0 0.0
    %5125 = vmatprep.subr.mxu0 0.0
    %5126 = vmatpush1.msra.mxu0 0.0
    %5127 = vmatprep.subr.mxu0 0.0
    %5128 = vmatpush1.msra.mxu0 0.0
    %5129 = vmatprep.subr.mxu0 0.0
    %5130 = vmatpush1.msra.mxu0 0.0
    %5131 = vmatprep.subr.mxu0 0.0
    %5132 = vmatpush1.msra.mxu0 0.0
    %5133 = vmatprep.subr.mxu0 0.0
    %5134 = vmatpush1.msra.mxu0 0.0
    %5135 = vmatprep.subr.mxu0 0.0
    %5136 = vmatpush1.msra.mxu0 0.0
    %5137 = vmatprep.subr.mxu0 0.0
    %5138 = vmatpush1.msra.mxu0 0.0
    %5139 = vmatprep.subr.mxu0 0.0
    %5140 = vmatpush1.msra.mxu0 0.0
    %5141 = vmatprep.subr.mxu0 0.0
    %5142 = vmatpush1.msra.mxu0 0.0
    %5143 = vmatprep.subr.mxu0 0.0
    %5144 = vmatpush1.msra.mxu0 0.0
    %5145 = vmatprep.subr.mxu0 0.0
    %5146 = vmatpush1.msra.mxu0 0.0
    %5147 = vmatprep.subr.mxu0 0.0
    %5148 = vmatpush1.msra.mxu0 0.0
    %5149 = vmatprep.subr.mxu0 0.0
    %5150 = vmatpush1.msra.mxu0 0.0
    %5151 = vmatprep.subr.mxu0 0.0
    %5152 = vmatpush1.msra.mxu0 %v5114
    %5153 = vmatprep.subr.mxu0 0.0
    %5154 = vmatpush1.msra.mxu0 %v5112
    %5155 = vmatprep.subr.mxu0 0.0
    %5156 = vmatpush2.msra.mxu0 0.0
    %5157 = vmatprep.subr.mxu0 0.0
    %5158 = vmatpush2.msra.mxu0 0.0
    %5159 = vmatprep.subr.mxu0 0.0
    %5160 = vmatpush2.msra.mxu0 0.0
    %5161 = vmatprep.subr.mxu0 0.0
    %5162 = vmatpush2.msra.mxu0 0.0
    %5163 = vmatprep.subr.mxu0 0.0
    %5164 = vmatpush2.msra.mxu0 0.0
    %5165 = vmatprep.subr.mxu0 0.0
    %5166 = vmatpush2.msra.mxu0 0.0
    %5167 = vmatprep.subr.mxu0 0.0
    %5168 = vmatpush2.msra.mxu0 0.0
    %5169 = vmatprep.subr.mxu0 0.0
    %5170 = vmatpush2.msra.mxu0 0.0
    %5171 = vmatprep.subr.mxu0 0.0
    %5172 = vmatpush2.msra.mxu0 0.0
    %5173 = vmatprep.subr.mxu0 0.0
    %5174 = vmatpush2.msra.mxu0 0.0
    %5175 = vmatprep.subr.mxu0 0.0
    %5176 = vmatpush2.msra.mxu0 0.0
    %5177 = vmatprep.subr.mxu0 0.0
    %5178 = vmatpush2.msra.mxu0 0.0
    %5179 = vmatprep.subr.mxu0 0.0
    %5180 = vmatpush2.msra.mxu0 0.0
    %5181 = vmatprep.subr.mxu0 0.0
    %5182 = vmatpush2.msra.mxu0 0.0
    %5183 = vmatprep.subr.mxu0 0.0
    %5184 = vmatpush2.msra.mxu0 0.0
    %5185 = vmatprep.subr.mxu0 0.0
    %5186 = vmatpush2.msra.mxu0 0.0
    %5187 = vmatprep.mubr.f32.mxu0 0.0
    %5188 = vmatmul.mubr.f32.gmra.mxu0 %v5118
    %v5189 = vpop.f32.mrf.mxu0
    %v5190 = vadd.f32 0.0, %v5189
    %v5191 = vpop.f32.mrf.mxu0
    %5192 = vmatprep.mubr.f32.mxu0 0.0
    %5193 = vmatmul.mubr.f32.gmra.mxu0 %v5121
    %v5194 = vpop.f32.mrf.mxu0
    %v5195 = vadd.f32 0.0, %v5194
    %v5196 = vpop.f32.mrf.mxu0
    %5197 = vdwg.mxu0
    %5200 = vrot.lane.b32.xlu0 %v4790, 8
    %v5201 = vpop.permute.xlu0 %5200
    %5202 = vrot.lane.b32.xlu0 %v4795, 8
    %v5203 = vpop.permute.xlu0 %5202
    %5208 = vrot.lane.b32.xlu0 %v4990, 16
    %v5209 = vpop.permute.xlu0 %5208
    %5210 = vrot.lane.b32.xlu0 %v4995, 16
    %v5211 = vpop.permute.xlu0 %5210
    %5216 = vrot.lane.b32.xlu0 %v5190, 24
    %v5217 = vpop.permute.xlu0 %5216
    %5218 = vrot.lane.b32.xlu0 %v5195, 24
    %v5219 = vpop.permute.xlu0 %5218
    %v5222 = vsel %vm424, %v4588, %v5201
    %v5223 = vsel %vm424, %v4593, %v5203
    %v5224 = vsel %vm512, %v5222, %v5209
    %v5225 = vsel %vm512, %v5223, %v5211
    %v5226 = vsel %vm1246, %v5224, %v5217
    %v5227 = vsel %vm1246, %v5225, %v5219
    %v5229 = vsel %vm153, %v5226, 0
    %v5232 = vsel %vm153, %v5227, 0
    %5234 = vmatprep.subr.mxu0 0.0
    %5235 = vmatpush1.msra.mxu0 0.0
    %5236 = vmatprep.subr.mxu0 0.0
    %5237 = vmatpush1.msra.mxu0 0.0
    %5238 = vmatprep.subr.mxu0 0.0
    %5239 = vmatpush1.msra.mxu0 0.0
    %5240 = vmatprep.subr.mxu0 0.0
    %5241 = vmatpush1.msra.mxu0 0.0
    %5242 = vmatprep.subr.mxu0 0.0
    %5243 = vmatpush1.msra.mxu0 0.0
    %5244 = vmatprep.subr.mxu0 0.0
    %5245 = vmatpush1.msra.mxu0 0.0
    %5246 = vmatprep.subr.mxu0 0.0
    %5247 = vmatpush1.msra.mxu0 0.0
    %5248 = vmatprep.subr.mxu0 0.0
    %5249 = vmatpush1.msra.mxu0 0.0
    %5250 = vmatprep.subr.mxu0 0.0
    %5251 = vmatpush1.msra.mxu0 0.0
    %5252 = vmatprep.subr.mxu0 0.0
    %5253 = vmatpush1.msra.mxu0 0.0
    %5254 = vmatprep.subr.mxu0 0.0
    %5255 = vmatpush1.msra.mxu0 0.0
    %5256 = vmatprep.subr.mxu0 0.0
    %5257 = vmatpush1.msra.mxu0 0.0
    %5258 = vmatprep.subr.mxu0 0.0
    %5259 = vmatpush1.msra.mxu0 %v4168
    %5260 = vmatprep.subr.mxu0 0.0
    %5261 = vmatpush1.msra.mxu0 %v4167
    %5262 = vmatprep.subr.mxu0 0.0
    %5263 = vmatpush1.msra.mxu0 %v4166
    %5264 = vmatprep.subr.mxu0 0.0
    %5265 = vmatpush1.msra.mxu0 %v4165
    %5266 = vmatprep.subr.mxu0 0.0
    %5267 = vmatpush2.msra.mxu0 0.0
    %5268 = vmatprep.subr.mxu0 0.0
    %5269 = vmatpush2.msra.mxu0 0.0
    %5270 = vmatprep.subr.mxu0 0.0
    %5271 = vmatpush2.msra.mxu0 0.0
    %5272 = vmatprep.subr.mxu0 0.0
    %5273 = vmatpush2.msra.mxu0 0.0
    %5274 = vmatprep.subr.mxu0 0.0
    %5275 = vmatpush2.msra.mxu0 0.0
    %5276 = vmatprep.subr.mxu0 0.0
    %5277 = vmatpush2.msra.mxu0 0.0
    %5278 = vmatprep.subr.mxu0 0.0
    %5279 = vmatpush2.msra.mxu0 0.0
    %5280 = vmatprep.subr.mxu0 0.0
    %5281 = vmatpush2.msra.mxu0 0.0
    %5282 = vmatprep.subr.mxu0 0.0
    %5283 = vmatpush2.msra.mxu0 0.0
    %5284 = vmatprep.subr.mxu0 0.0
    %5285 = vmatpush2.msra.mxu0 0.0
    %5286 = vmatprep.subr.mxu0 0.0
    %5287 = vmatpush2.msra.mxu0 0.0
    %5288 = vmatprep.subr.mxu0 0.0
    %5289 = vmatpush2.msra.mxu0 0.0
    %5290 = vmatprep.subr.mxu0 0.0
    %5291 = vmatpush2.msra.mxu0 0.0
    %5292 = vmatprep.subr.mxu0 0.0
    %5293 = vmatpush2.msra.mxu0 0.0
    %5294 = vmatprep.subr.mxu0 0.0
    %5295 = vmatpush2.msra.mxu0 0.0
    %5296 = vmatprep.subr.mxu0 0.0
    %5297 = vmatpush2.msra.mxu0 0.0
    %5298 = vmatprep.mubr.f32.mxu0 0.0
    %5299 = vmatmul.mubr.f32.gmra.mxu0 %v5229
    %v5300 = vpop.f32.mrf.mxu0
    %v5301 = vadd.f32 0.0, %v5300
    %v5302 = vpop.f32.mrf.mxu0
    %5303 = vmatprep.mubr.f32.mxu0 0.0
    %5304 = vmatmul.mubr.f32.gmra.mxu0 %v5232
    %v5305 = vpop.f32.mrf.mxu0
    %v5306 = vadd.f32 0.0, %v5305
    %v5307 = vpop.f32.mrf.mxu0
    %5308 = vdwg.mxu0
    %v5309 = vadd.f32 %v4126, %v5301
    %v5310 = vadd.f32 %v4127, %v5306
    %v5311 = vld [vmem:[%s51] sm:$0x1]
    %v5312 = vmul.f32 %v5309, %v5309
    %v5313 = vmul.f32 %v5310, %v5310
    %v5314 = vsel %vm153, %v5312, 0.0
    %5315 = vadd.xlane.f32.xlu0 %v5314
    %v5316 = vpop.xlane.xlu0 %5315
    %v5317 = vsel %vm153, %v5313, 0.0
    %5318 = vadd.xlane.f32.xlu0 %v5317
    %v5319 = vpop.xlane.xlu0 %5318
    %v5320 = vmul.f32 %v5316, %v160
    %v5321 = vmul.f32 %v5319, %v160
    %v5322 = vadd.f32 %v5320, 1e-06
    %v5323 = vadd.f32 %v5321, 1e-06
    %v5324 = vrsqrt.pop %v5322
    %v5325 = vrsqrt.pop %v5323
    %v5326 = vmul.f32 %v5309, %v5324
    %v5327 = vmul.f32 %v5310, %v5325
    %v5329 = vlaneseq
    %v5330 = vshrl.u32 %v5329, 7
    %v5331 = vsub.s32 0, %v5330
    %v5332 = vrot.slane %v5311, %v5331
    %v5334 = vmul.f32 %v5326, %v5332
    %v5335 = vmul.f32 %v5327, %v5332
    %v5336 = vld [vmem:[%s53] sm:$0xff]
    %v5337 = vld [vmem:[%s53 + $0x8] sm:$0xff]
    %v5338 = vld [vmem:[%s53 + $0x10] sm:$0xff]
    %v5339 = vld [vmem:[%s53 + $0x18] sm:$0xff]
    %v5341 = vsel %vm153, %v5334, 0
    %v5344 = vsel %vm153, %v5335, 0
    %5346 = vmatprep.subr.mxu0 0.0
    %5347 = vmatpush1.msra.mxu0 0.0
    %5348 = vmatprep.subr.mxu0 0.0
    %5349 = vmatpush1.msra.mxu0 0.0
    %5350 = vmatprep.subr.mxu0 0.0
    %5351 = vmatpush1.msra.mxu0 0.0
    %5352 = vmatprep.subr.mxu0 0.0
    %5353 = vmatpush1.msra.mxu0 0.0
    %5354 = vmatprep.subr.mxu0 0.0
    %5355 = vmatpush1.msra.mxu0 0.0
    %5356 = vmatprep.subr.mxu0 0.0
    %5357 = vmatpush1.msra.mxu0 0.0
    %5358 = vmatprep.subr.mxu0 0.0
    %5359 = vmatpush1.msra.mxu0 0.0
    %5360 = vmatprep.subr.mxu0 0.0
    %5361 = vmatpush1.msra.mxu0 0.0
    %5362 = vmatprep.subr.mxu0 0.0
    %5363 = vmatpush1.msra.mxu0 0.0
    %5364 = vmatprep.subr.mxu0 0.0
    %5365 = vmatpush1.msra.mxu0 0.0
    %5366 = vmatprep.subr.mxu0 0.0
    %5367 = vmatpush1.msra.mxu0 0.0
    %5368 = vmatprep.subr.mxu0 0.0
    %5369 = vmatpush1.msra.mxu0 0.0
    %5370 = vmatprep.subr.mxu0 0.0
    %5371 = vmatpush1.msra.mxu0 %v5339
    %5372 = vmatprep.subr.mxu0 0.0
    %5373 = vmatpush1.msra.mxu0 %v5338
    %5374 = vmatprep.subr.mxu0 0.0
    %5375 = vmatpush1.msra.mxu0 %v5337
    %5376 = vmatprep.subr.mxu0 0.0
    %5377 = vmatpush1.msra.mxu0 %v5336
    %5378 = vmatprep.subr.mxu0 0.0
    %5379 = vmatpush2.msra.mxu0 0.0
    %5380 = vmatprep.subr.mxu0 0.0
    %5381 = vmatpush2.msra.mxu0 0.0
    %5382 = vmatprep.subr.mxu0 0.0
    %5383 = vmatpush2.msra.mxu0 0.0
    %5384 = vmatprep.subr.mxu0 0.0
    %5385 = vmatpush2.msra.mxu0 0.0
    %5386 = vmatprep.subr.mxu0 0.0
    %5387 = vmatpush2.msra.mxu0 0.0
    %5388 = vmatprep.subr.mxu0 0.0
    %5389 = vmatpush2.msra.mxu0 0.0
    %5390 = vmatprep.subr.mxu0 0.0
    %5391 = vmatpush2.msra.mxu0 0.0
    %5392 = vmatprep.subr.mxu0 0.0
    %5393 = vmatpush2.msra.mxu0 0.0
    %5394 = vmatprep.subr.mxu0 0.0
    %5395 = vmatpush2.msra.mxu0 0.0
    %5396 = vmatprep.subr.mxu0 0.0
    %5397 = vmatpush2.msra.mxu0 0.0
    %5398 = vmatprep.subr.mxu0 0.0
    %5399 = vmatpush2.msra.mxu0 0.0
    %5400 = vmatprep.subr.mxu0 0.0
    %5401 = vmatpush2.msra.mxu0 0.0
    %5402 = vmatprep.subr.mxu0 0.0
    %5403 = vmatpush2.msra.mxu0 0.0
    %5404 = vmatprep.subr.mxu0 0.0
    %5405 = vmatpush2.msra.mxu0 0.0
    %5406 = vmatprep.subr.mxu0 0.0
    %5407 = vmatpush2.msra.mxu0 0.0
    %5408 = vmatprep.subr.mxu0 0.0
    %5409 = vmatpush2.msra.mxu0 0.0
    %5410 = vmatprep.mubr.f32.mxu0 0.0
    %5411 = vmatmul.mubr.f32.gmra.mxu0 %v5341
    %v5412 = vpop.f32.mrf.mxu0
    %v5413 = vadd.f32 0.0, %v5412
    %v5414 = vpop.f32.mrf.mxu0
    %5415 = vmatprep.mubr.f32.mxu0 0.0
    %5416 = vmatmul.mubr.f32.gmra.mxu0 %v5344
    %v5417 = vpop.f32.mrf.mxu0
    %v5418 = vadd.f32 0.0, %v5417
    %v5419 = vpop.f32.mrf.mxu0
    %5420 = vdwg.mxu0
    %v5421 = vmax.f32 %v5413, 0.0
    %v5422 = vmax.f32 %v5418, 0.0
    %v5423 = vld [vmem:[%s55] sm:$0xff]
    %v5424 = vld [vmem:[%s55 + $0x8] sm:$0xff]
    %v5425 = vld [vmem:[%s55 + $0x10] sm:$0xff]
    %v5426 = vld [vmem:[%s55 + $0x18] sm:$0xff]
    %v5427 = vld [vmem:[%s55 + $0x20] sm:$0xff]
    %v5428 = vld [vmem:[%s55 + $0x28] sm:$0xff]
    %v5429 = vld [vmem:[%s55 + $0x30] sm:$0xff]
    %v5430 = vld [vmem:[%s55 + $0x38] sm:$0xff]
    %v5432 = vsel %vm1452, %v5421, 0
    %v5435 = vsel %vm1452, %v5422, 0
    %5437 = vmatprep.subr.mxu0 0.0
    %5438 = vmatpush1.msra.mxu0 0.0
    %5439 = vmatprep.subr.mxu0 0.0
    %5440 = vmatpush1.msra.mxu0 0.0
    %5441 = vmatprep.subr.mxu0 0.0
    %5442 = vmatpush1.msra.mxu0 0.0
    %5443 = vmatprep.subr.mxu0 0.0
    %5444 = vmatpush1.msra.mxu0 0.0
    %5445 = vmatprep.subr.mxu0 0.0
    %5446 = vmatpush1.msra.mxu0 0.0
    %5447 = vmatprep.subr.mxu0 0.0
    %5448 = vmatpush1.msra.mxu0 0.0
    %5449 = vmatprep.subr.mxu0 0.0
    %5450 = vmatpush1.msra.mxu0 0.0
    %5451 = vmatprep.subr.mxu0 0.0
    %5452 = vmatpush1.msra.mxu0 0.0
    %5453 = vmatprep.subr.mxu0 0.0
    %5454 = vmatpush1.msra.mxu0 %v5430
    %5455 = vmatprep.subr.mxu0 0.0
    %5456 = vmatpush1.msra.mxu0 %v5429
    %5457 = vmatprep.subr.mxu0 0.0
    %5458 = vmatpush1.msra.mxu0 %v5428
    %5459 = vmatprep.subr.mxu0 0.0
    %5460 = vmatpush1.msra.mxu0 %v5427
    %5461 = vmatprep.subr.mxu0 0.0
    %5462 = vmatpush1.msra.mxu0 %v5426
    %5463 = vmatprep.subr.mxu0 0.0
    %5464 = vmatpush1.msra.mxu0 %v5425
    %5465 = vmatprep.subr.mxu0 0.0
    %5466 = vmatpush1.msra.mxu0 %v5424
    %5467 = vmatprep.subr.mxu0 0.0
    %5468 = vmatpush1.msra.mxu0 %v5423
    %5469 = vmatprep.subr.mxu0 0.0
    %5470 = vmatpush2.msra.mxu0 0.0
    %5471 = vmatprep.subr.mxu0 0.0
    %5472 = vmatpush2.msra.mxu0 0.0
    %5473 = vmatprep.subr.mxu0 0.0
    %5474 = vmatpush2.msra.mxu0 0.0
    %5475 = vmatprep.subr.mxu0 0.0
    %5476 = vmatpush2.msra.mxu0 0.0
    %5477 = vmatprep.subr.mxu0 0.0
    %5478 = vmatpush2.msra.mxu0 0.0
    %5479 = vmatprep.subr.mxu0 0.0
    %5480 = vmatpush2.msra.mxu0 0.0
    %5481 = vmatprep.subr.mxu0 0.0
    %5482 = vmatpush2.msra.mxu0 0.0
    %5483 = vmatprep.subr.mxu0 0.0
    %5484 = vmatpush2.msra.mxu0 0.0
    %5485 = vmatprep.subr.mxu0 0.0
    %5486 = vmatpush2.msra.mxu0 0.0
    %5487 = vmatprep.subr.mxu0 0.0
    %5488 = vmatpush2.msra.mxu0 0.0
    %5489 = vmatprep.subr.mxu0 0.0
    %5490 = vmatpush2.msra.mxu0 0.0
    %5491 = vmatprep.subr.mxu0 0.0
    %5492 = vmatpush2.msra.mxu0 0.0
    %5493 = vmatprep.subr.mxu0 0.0
    %5494 = vmatpush2.msra.mxu0 0.0
    %5495 = vmatprep.subr.mxu0 0.0
    %5496 = vmatpush2.msra.mxu0 0.0
    %5497 = vmatprep.subr.mxu0 0.0
    %5498 = vmatpush2.msra.mxu0 0.0
    %5499 = vmatprep.subr.mxu0 0.0
    %5500 = vmatpush2.msra.mxu0 0.0
    %5501 = vmatprep.mubr.f32.mxu0 0.0
    %5502 = vmatmul.mubr.f32.gmra.mxu0 %v5432
    %v5503 = vpop.f32.mrf.mxu0
    %v5504 = vadd.f32 0.0, %v5503
    %v5505 = vpop.f32.mrf.mxu0
    %5506 = vmatprep.mubr.f32.mxu0 0.0
    %5507 = vmatmul.mubr.f32.gmra.mxu0 %v5435
    %v5508 = vpop.f32.mrf.mxu0
    %v5509 = vadd.f32 0.0, %v5508
    %v5510 = vpop.f32.mrf.mxu0
    %5511 = vdwg.mxu0
    %v5512 = vadd.f32 %v5309, %v5504
    %v5513 = vadd.f32 %v5310, %v5509
    %s5514 = scalar_lea.vmem %s31, 1
    %v5515 = vld [vmem:[%s5514] sm:$0x1]
    %v5516 = vmul.f32 %v5512, %v5512
    %v5517 = vmul.f32 %v5513, %v5513
    %v5518 = vsel %vm153, %v5516, 0.0
    %5519 = vadd.xlane.f32.xlu0 %v5518
    %v5520 = vpop.xlane.xlu0 %5519
    %v5521 = vsel %vm153, %v5517, 0.0
    %5522 = vadd.xlane.f32.xlu0 %v5521
    %v5523 = vpop.xlane.xlu0 %5522
    %v5524 = vmul.f32 %v5520, %v160
    %v5525 = vmul.f32 %v5523, %v160
    %v5526 = vadd.f32 %v5524, 1e-06
    %v5527 = vadd.f32 %v5525, 1e-06
    %v5528 = vrsqrt.pop %v5526
    %v5529 = vrsqrt.pop %v5527
    %v5530 = vmul.f32 %v5512, %v5528
    %v5531 = vmul.f32 %v5513, %v5529
    %v5533 = vlaneseq
    %v5534 = vshrl.u32 %v5533, 7
    %v5535 = vsub.s32 0, %v5534
    %v5536 = vrot.slane %v5515, %v5535
    %v5538 = vmul.f32 %v5530, %v5536
    %v5539 = vmul.f32 %v5531, %v5536
    %s5540 = scalar_lea.vmem %s33, 32
    %v5541 = vld [vmem:[%s5540] sm:$0xff]
    %v5542 = vld [vmem:[%s5540 + $0x8] sm:$0xff]
    %v5543 = vld [vmem:[%s5540 + $0x10] sm:$0xff]
    %v5544 = vld [vmem:[%s5540 + $0x18] sm:$0xff]
    %s5545 = scalar_lea.vmem %s35, 32
    %v5546 = vld [vmem:[%s5545] sm:$0xff]
    %v5547 = vld [vmem:[%s5545 + $0x8] sm:$0xff]
    %v5548 = vld [vmem:[%s5545 + $0x10] sm:$0xff]
    %v5549 = vld [vmem:[%s5545 + $0x18] sm:$0xff]
    %s5550 = scalar_lea.vmem %s37, 32
    %v5551 = vld [vmem:[%s5550] sm:$0xff]
    %v5552 = vld [vmem:[%s5550 + $0x8] sm:$0xff]
    %v5553 = vld [vmem:[%s5550 + $0x10] sm:$0xff]
    %v5554 = vld [vmem:[%s5550 + $0x18] sm:$0xff]
    %s5555 = scalar_lea.vmem %s39, 32
    %v5556 = vld [vmem:[%s5555] sm:$0xff]
    %v5557 = vld [vmem:[%s5555 + $0x8] sm:$0xff]
    %v5558 = vld [vmem:[%s5555 + $0x10] sm:$0xff]
    %v5559 = vld [vmem:[%s5555 + $0x18] sm:$0xff]
    %v5561 = vsel %vm153, %v5538, 0
    %v5564 = vsel %vm153, %v5539, 0
    %5566 = vmatprep.subr.mxu0 0.0
    %5567 = vmatpush1.msra.mxu0 0.0
    %5568 = vmatprep.subr.mxu0 0.0
    %5569 = vmatpush1.msra.mxu0 0.0
    %5570 = vmatprep.subr.mxu0 0.0
    %5571 = vmatpush1.msra.mxu0 0.0
    %5572 = vmatprep.subr.mxu0 0.0
    %5573 = vmatpush1.msra.mxu0 0.0
    %5574 = vmatprep.subr.mxu0 0.0
    %5575 = vmatpush1.msra.mxu0 0.0
    %5576 = vmatprep.subr.mxu0 0.0
    %5577 = vmatpush1.msra.mxu0 0.0
    %5578 = vmatprep.subr.mxu0 0.0
    %5579 = vmatpush1.msra.mxu0 0.0
    %5580 = vmatprep.subr.mxu0 0.0
    %5581 = vmatpush1.msra.mxu0 0.0
    %5582 = vmatprep.subr.mxu0 0.0
    %5583 = vmatpush1.msra.mxu0 0.0
    %5584 = vmatprep.subr.mxu0 0.0
    %5585 = vmatpush1.msra.mxu0 0.0
    %5586 = vmatprep.subr.mxu0 0.0
    %5587 = vmatpush1.msra.mxu0 0.0
    %5588 = vmatprep.subr.mxu0 0.0
    %5589 = vmatpush1.msra.mxu0 0.0
    %5590 = vmatprep.subr.mxu0 0.0
    %5591 = vmatpush1.msra.mxu0 %v5544
    %5592 = vmatprep.subr.mxu0 0.0
    %5593 = vmatpush1.msra.mxu0 %v5543
    %5594 = vmatprep.subr.mxu0 0.0
    %5595 = vmatpush1.msra.mxu0 %v5542
    %5596 = vmatprep.subr.mxu0 0.0
    %5597 = vmatpush1.msra.mxu0 %v5541
    %5598 = vmatprep.subr.mxu0 0.0
    %5599 = vmatpush2.msra.mxu0 0.0
    %5600 = vmatprep.subr.mxu0 0.0
    %5601 = vmatpush2.msra.mxu0 0.0
    %5602 = vmatprep.subr.mxu0 0.0
    %5603 = vmatpush2.msra.mxu0 0.0
    %5604 = vmatprep.subr.mxu0 0.0
    %5605 = vmatpush2.msra.mxu0 0.0
    %5606 = vmatprep.subr.mxu0 0.0
    %5607 = vmatpush2.msra.mxu0 0.0
    %5608 = vmatprep.subr.mxu0 0.0
    %5609 = vmatpush2.msra.mxu0 0.0
    %5610 = vmatprep.subr.mxu0 0.0
    %5611 = vmatpush2.msra.mxu0 0.0
    %5612 = vmatprep.subr.mxu0 0.0
    %5613 = vmatpush2.msra.mxu0 0.0
    %5614 = vmatprep.subr.mxu0 0.0
    %5615 = vmatpush2.msra.mxu0 0.0
    %5616 = vmatprep.subr.mxu0 0.0
    %5617 = vmatpush2.msra.mxu0 0.0
    %5618 = vmatprep.subr.mxu0 0.0
    %5619 = vmatpush2.msra.mxu0 0.0
    %5620 = vmatprep.subr.mxu0 0.0
    %5621 = vmatpush2.msra.mxu0 0.0
    %5622 = vmatprep.subr.mxu0 0.0
    %5623 = vmatpush2.msra.mxu0 0.0
    %5624 = vmatprep.subr.mxu0 0.0
    %5625 = vmatpush2.msra.mxu0 0.0
    %5626 = vmatprep.subr.mxu0 0.0
    %5627 = vmatpush2.msra.mxu0 0.0
    %5628 = vmatprep.subr.mxu0 0.0
    %5629 = vmatpush2.msra.mxu0 0.0
    %5630 = vmatprep.mubr.f32.mxu0 0.0
    %5631 = vmatmul.mubr.f32.gmra.mxu0 %v5561
    %v5632 = vpop.f32.mrf.mxu0
    %v5633 = vadd.f32 0.0, %v5632
    %v5634 = vpop.f32.mrf.mxu0
    %5635 = vmatprep.mubr.f32.mxu0 0.0
    %5636 = vmatmul.mubr.f32.gmra.mxu0 %v5564
    %v5637 = vpop.f32.mrf.mxu0
    %v5638 = vadd.f32 0.0, %v5637
    %v5639 = vpop.f32.mrf.mxu0
    %5640 = vdwg.mxu0
    %5641 = vmatprep.subr.mxu0 0.0
    %5642 = vmatpush1.msra.mxu0 0.0
    %5643 = vmatprep.subr.mxu0 0.0
    %5644 = vmatpush1.msra.mxu0 0.0
    %5645 = vmatprep.subr.mxu0 0.0
    %5646 = vmatpush1.msra.mxu0 0.0
    %5647 = vmatprep.subr.mxu0 0.0
    %5648 = vmatpush1.msra.mxu0 0.0
    %5649 = vmatprep.subr.mxu0 0.0
    %5650 = vmatpush1.msra.mxu0 0.0
    %5651 = vmatprep.subr.mxu0 0.0
    %5652 = vmatpush1.msra.mxu0 0.0
    %5653 = vmatprep.subr.mxu0 0.0
    %5654 = vmatpush1.msra.mxu0 0.0
    %5655 = vmatprep.subr.mxu0 0.0
    %5656 = vmatpush1.msra.mxu0 0.0
    %5657 = vmatprep.subr.mxu0 0.0
    %5658 = vmatpush1.msra.mxu0 0.0
    %5659 = vmatprep.subr.mxu0 0.0
    %5660 = vmatpush1.msra.mxu0 0.0
    %5661 = vmatprep.subr.mxu0 0.0
    %5662 = vmatpush1.msra.mxu0 0.0
    %5663 = vmatprep.subr.mxu0 0.0
    %5664 = vmatpush1.msra.mxu0 0.0
    %5665 = vmatprep.subr.mxu0 0.0
    %5666 = vmatpush1.msra.mxu0 %v5549
    %5667 = vmatprep.subr.mxu0 0.0
    %5668 = vmatpush1.msra.mxu0 %v5548
    %5669 = vmatprep.subr.mxu0 0.0
    %5670 = vmatpush1.msra.mxu0 %v5547
    %5671 = vmatprep.subr.mxu0 0.0
    %5672 = vmatpush1.msra.mxu0 %v5546
    %5673 = vmatprep.subr.mxu0 0.0
    %5674 = vmatpush2.msra.mxu0 0.0
    %5675 = vmatprep.subr.mxu0 0.0
    %5676 = vmatpush2.msra.mxu0 0.0
    %5677 = vmatprep.subr.mxu0 0.0
    %5678 = vmatpush2.msra.mxu0 0.0
    %5679 = vmatprep.subr.mxu0 0.0
    %5680 = vmatpush2.msra.mxu0 0.0
    %5681 = vmatprep.subr.mxu0 0.0
    %5682 = vmatpush2.msra.mxu0 0.0
    %5683 = vmatprep.subr.mxu0 0.0
    %5684 = vmatpush2.msra.mxu0 0.0
    %5685 = vmatprep.subr.mxu0 0.0
    %5686 = vmatpush2.msra.mxu0 0.0
    %5687 = vmatprep.subr.mxu0 0.0
    %5688 = vmatpush2.msra.mxu0 0.0
    %5689 = vmatprep.subr.mxu0 0.0
    %5690 = vmatpush2.msra.mxu0 0.0
    %5691 = vmatprep.subr.mxu0 0.0
    %5692 = vmatpush2.msra.mxu0 0.0
    %5693 = vmatprep.subr.mxu0 0.0
    %5694 = vmatpush2.msra.mxu0 0.0
    %5695 = vmatprep.subr.mxu0 0.0
    %5696 = vmatpush2.msra.mxu0 0.0
    %5697 = vmatprep.subr.mxu0 0.0
    %5698 = vmatpush2.msra.mxu0 0.0
    %5699 = vmatprep.subr.mxu0 0.0
    %5700 = vmatpush2.msra.mxu0 0.0
    %5701 = vmatprep.subr.mxu0 0.0
    %5702 = vmatpush2.msra.mxu0 0.0
    %5703 = vmatprep.subr.mxu0 0.0
    %5704 = vmatpush2.msra.mxu0 0.0
    %5705 = vmatprep.mubr.f32.mxu0 0.0
    %5706 = vmatmul.mubr.f32.gmra.mxu0 %v5561
    %v5707 = vpop.f32.mrf.mxu0
    %v5708 = vadd.f32 0.0, %v5707
    %v5709 = vpop.f32.mrf.mxu0
    %5710 = vmatprep.mubr.f32.mxu0 0.0
    %5711 = vmatmul.mubr.f32.gmra.mxu0 %v5564
    %v5712 = vpop.f32.mrf.mxu0
    %v5713 = vadd.f32 0.0, %v5712
    %v5714 = vpop.f32.mrf.mxu0
    %5715 = vdwg.mxu0
    %5716 = vmatprep.subr.mxu0 0.0
    %5717 = vmatpush1.msra.mxu0 0.0
    %5718 = vmatprep.subr.mxu0 0.0
    %5719 = vmatpush1.msra.mxu0 0.0
    %5720 = vmatprep.subr.mxu0 0.0
    %5721 = vmatpush1.msra.mxu0 0.0
    %5722 = vmatprep.subr.mxu0 0.0
    %5723 = vmatpush1.msra.mxu0 0.0
    %5724 = vmatprep.subr.mxu0 0.0
    %5725 = vmatpush1.msra.mxu0 0.0
    %5726 = vmatprep.subr.mxu0 0.0
    %5727 = vmatpush1.msra.mxu0 0.0
    %5728 = vmatprep.subr.mxu0 0.0
    %5729 = vmatpush1.msra.mxu0 0.0
    %5730 = vmatprep.subr.mxu0 0.0
    %5731 = vmatpush1.msra.mxu0 0.0
    %5732 = vmatprep.subr.mxu0 0.0
    %5733 = vmatpush1.msra.mxu0 0.0
    %5734 = vmatprep.subr.mxu0 0.0
    %5735 = vmatpush1.msra.mxu0 0.0
    %5736 = vmatprep.subr.mxu0 0.0
    %5737 = vmatpush1.msra.mxu0 0.0
    %5738 = vmatprep.subr.mxu0 0.0
    %5739 = vmatpush1.msra.mxu0 0.0
    %5740 = vmatprep.subr.mxu0 0.0
    %5741 = vmatpush1.msra.mxu0 %v5554
    %5742 = vmatprep.subr.mxu0 0.0
    %5743 = vmatpush1.msra.mxu0 %v5553
    %5744 = vmatprep.subr.mxu0 0.0
    %5745 = vmatpush1.msra.mxu0 %v5552
    %5746 = vmatprep.subr.mxu0 0.0
    %5747 = vmatpush1.msra.mxu0 %v5551
    %5748 = vmatprep.subr.mxu0 0.0
    %5749 = vmatpush2.msra.mxu0 0.0
    %5750 = vmatprep.subr.mxu0 0.0
    %5751 = vmatpush2.msra.mxu0 0.0
    %5752 = vmatprep.subr.mxu0 0.0
    %5753 = vmatpush2.msra.mxu0 0.0
    %5754 = vmatprep.subr.mxu0 0.0
    %5755 = vmatpush2.msra.mxu0 0.0
    %5756 = vmatprep.subr.mxu0 0.0
    %5757 = vmatpush2.msra.mxu0 0.0
    %5758 = vmatprep.subr.mxu0 0.0
    %5759 = vmatpush2.msra.mxu0 0.0
    %5760 = vmatprep.subr.mxu0 0.0
    %5761 = vmatpush2.msra.mxu0 0.0
    %5762 = vmatprep.subr.mxu0 0.0
    %5763 = vmatpush2.msra.mxu0 0.0
    %5764 = vmatprep.subr.mxu0 0.0
    %5765 = vmatpush2.msra.mxu0 0.0
    %5766 = vmatprep.subr.mxu0 0.0
    %5767 = vmatpush2.msra.mxu0 0.0
    %5768 = vmatprep.subr.mxu0 0.0
    %5769 = vmatpush2.msra.mxu0 0.0
    %5770 = vmatprep.subr.mxu0 0.0
    %5771 = vmatpush2.msra.mxu0 0.0
    %5772 = vmatprep.subr.mxu0 0.0
    %5773 = vmatpush2.msra.mxu0 0.0
    %5774 = vmatprep.subr.mxu0 0.0
    %5775 = vmatpush2.msra.mxu0 0.0
    %5776 = vmatprep.subr.mxu0 0.0
    %5777 = vmatpush2.msra.mxu0 0.0
    %5778 = vmatprep.subr.mxu0 0.0
    %5779 = vmatpush2.msra.mxu0 0.0
    %5780 = vmatprep.mubr.f32.mxu0 0.0
    %5781 = vmatmul.mubr.f32.gmra.mxu0 %v5561
    %v5782 = vpop.f32.mrf.mxu0
    %v5783 = vadd.f32 0.0, %v5782
    %v5784 = vpop.f32.mrf.mxu0
    %5785 = vmatprep.mubr.f32.mxu0 0.0
    %5786 = vmatmul.mubr.f32.gmra.mxu0 %v5564
    %v5787 = vpop.f32.mrf.mxu0
    %v5788 = vadd.f32 0.0, %v5787
    %v5789 = vpop.f32.mrf.mxu0
    %5790 = vdwg.mxu0
    %v5792 = vsel %vm424, %v5633, 0
    %v5795 = vsel %vm424, %v5638, 0
    %v5798 = vsel %vm424, %v5708, 0
    %v5801 = vsel %vm424, %v5713, 0
    %5803 = vmatprep.subr.mxu0 0.0
    %5804 = vmatpush1.xpose.msra.mxu0 0.0
    %5805 = vmatprep.subr.mxu0 0.0
    %5806 = vmatpush1.xpose.msra.mxu0 0.0
    %5807 = vmatprep.subr.mxu0 0.0
    %5808 = vmatpush1.xpose.msra.mxu0 0.0
    %5809 = vmatprep.subr.mxu0 0.0
    %5810 = vmatpush1.xpose.msra.mxu0 0.0
    %5811 = vmatprep.subr.mxu0 0.0
    %5812 = vmatpush1.xpose.msra.mxu0 0.0
    %5813 = vmatprep.subr.mxu0 0.0
    %5814 = vmatpush1.xpose.msra.mxu0 0.0
    %5815 = vmatprep.subr.mxu0 0.0
    %5816 = vmatpush1.xpose.msra.mxu0 0.0
    %5817 = vmatprep.subr.mxu0 0.0
    %5818 = vmatpush1.xpose.msra.mxu0 0.0
    %5819 = vmatprep.subr.mxu0 0.0
    %5820 = vmatpush1.xpose.msra.mxu0 0.0
    %5821 = vmatprep.subr.mxu0 0.0
    %5822 = vmatpush1.xpose.msra.mxu0 0.0
    %5823 = vmatprep.subr.mxu0 0.0
    %5824 = vmatpush1.xpose.msra.mxu0 0.0
    %5825 = vmatprep.subr.mxu0 0.0
    %5826 = vmatpush1.xpose.msra.mxu0 0.0
    %5827 = vmatprep.subr.mxu0 0.0
    %5828 = vmatpush1.xpose.msra.mxu0 0.0
    %5829 = vmatprep.subr.mxu0 0.0
    %5830 = vmatpush1.xpose.msra.mxu0 0.0
    %5831 = vmatprep.subr.mxu0 0.0
    %5832 = vmatpush1.xpose.msra.mxu0 %v5801
    %5833 = vmatprep.subr.mxu0 0.0
    %5834 = vmatpush1.xpose.msra.mxu0 %v5798
    %5835 = vmatprep.subr.mxu0 0.0
    %5836 = vmatpush2.xpose.msra.mxu0 0.0
    %5837 = vmatprep.subr.mxu0 0.0
    %5838 = vmatpush2.xpose.msra.mxu0 0.0
    %5839 = vmatprep.subr.mxu0 0.0
    %5840 = vmatpush2.xpose.msra.mxu0 0.0
    %5841 = vmatprep.subr.mxu0 0.0
    %5842 = vmatpush2.xpose.msra.mxu0 0.0
    %5843 = vmatprep.subr.mxu0 0.0
    %5844 = vmatpush2.xpose.msra.mxu0 0.0
    %5845 = vmatprep.subr.mxu0 0.0
    %5846 = vmatpush2.xpose.msra.mxu0 0.0
    %5847 = vmatprep.subr.mxu0 0.0
    %5848 = vmatpush2.xpose.msra.mxu0 0.0
    %5849 = vmatprep.subr.mxu0 0.0
    %5850 = vmatpush2.xpose.msra.mxu0 0.0
    %5851 = vmatprep.subr.mxu0 0.0
    %5852 = vmatpush2.xpose.msra.mxu0 0.0
    %5853 = vmatprep.subr.mxu0 0.0
    %5854 = vmatpush2.xpose.msra.mxu0 0.0
    %5855 = vmatprep.subr.mxu0 0.0
    %5856 = vmatpush2.xpose.msra.mxu0 0.0
    %5857 = vmatprep.subr.mxu0 0.0
    %5858 = vmatpush2.xpose.msra.mxu0 0.0
    %5859 = vmatprep.subr.mxu0 0.0
    %5860 = vmatpush2.xpose.msra.mxu0 0.0
    %5861 = vmatprep.subr.mxu0 0.0
    %5862 = vmatpush2.xpose.msra.mxu0 0.0
    %5863 = vmatprep.subr.mxu0 0.0
    %5864 = vmatpush2.xpose.msra.mxu0 0.0
    %5865 = vmatprep.subr.mxu0 0.0
    %5866 = vmatpush2.xpose.msra.mxu0 0.0
    %5867 = vmatprep.mubr.f32.mxu0 0.0
    %5868 = vmatmul.mubr.f32.gmra.mxu0 %v5792
    %v5869 = vpop.f32.mrf.mxu0
    %v5870 = vadd.f32 %v138, %v5869
    %v5871 = vpop.f32.mrf.mxu0
    %5872 = vmatprep.mubr.f32.mxu0 0.0
    %5873 = vmatmul.mubr.f32.gmra.mxu0 %v5795
    %v5874 = vpop.f32.mrf.mxu0
    %v5875 = vadd.f32 %v139, %v5874
    %v5876 = vpop.f32.mrf.mxu0
    %5877 = vdwg.mxu0
    %v5878 = vsel %vm512, %v5870, -inf
    %5879 = vmax.xlane.f32.xlu0 %v5878
    %v5880 = vpop.xlane.xlu0 %5879
    %v5881 = vsel %vm512, %v5875, -inf
    %5882 = vmax.xlane.f32.xlu0 %v5881
    %v5883 = vpop.xlane.xlu0 %5882
    %v5884 = vsub.f32 %v5870, %v5880
    %v5885 = vsub.f32 %v5875, %v5883
    %v5886 = vmul.f32 %v5884, 1.442695
    %v5887 = vpow.pop %v5886
    %v5888 = vmul.f32 %v5885, 1.442695
    %v5889 = vpow.pop %v5888
    %v5890 = vsel %vm512, %v5887, 0.0
    %5891 = vadd.xlane.f32.xlu0 %v5890
    %v5892 = vpop.xlane.xlu0 %5891
    %v5893 = vsel %vm512, %v5889, 0.0
    %5894 = vadd.xlane.f32.xlu0 %v5893
    %v5895 = vpop.xlane.xlu0 %5894
    %v5896 = vrcp.pop %v5892
    %v5897 = vrcp.pop %v5895
    %v5898 = vmul.f32 %v5887, %v5896
    %v5899 = vmul.f32 %v5889, %v5897
    %v5901 = vsel %vm512, %v5898, 0
    %v5904 = vsel %vm512, %v5899, 0
    %5906 = vmatprep.subr.mxu0 0.0
    %5907 = vmatpush1.msra.mxu0 0.0
    %5908 = vmatprep.subr.mxu0 0.0
    %5909 = vmatpush1.msra.mxu0 0.0
    %5910 = vmatprep.subr.mxu0 0.0
    %5911 = vmatpush1.msra.mxu0 0.0
    %5912 = vmatprep.subr.mxu0 0.0
    %5913 = vmatpush1.msra.mxu0 0.0
    %5914 = vmatprep.subr.mxu0 0.0
    %5915 = vmatpush1.msra.mxu0 0.0
    %5916 = vmatprep.subr.mxu0 0.0
    %5917 = vmatpush1.msra.mxu0 0.0
    %5918 = vmatprep.subr.mxu0 0.0
    %5919 = vmatpush1.msra.mxu0 0.0
    %5920 = vmatprep.subr.mxu0 0.0
    %5921 = vmatpush1.msra.mxu0 0.0
    %5922 = vmatprep.subr.mxu0 0.0
    %5923 = vmatpush1.msra.mxu0 0.0
    %5924 = vmatprep.subr.mxu0 0.0
    %5925 = vmatpush1.msra.mxu0 0.0
    %5926 = vmatprep.subr.mxu0 0.0
    %5927 = vmatpush1.msra.mxu0 0.0
    %5928 = vmatprep.subr.mxu0 0.0
    %5929 = vmatpush1.msra.mxu0 0.0
    %5930 = vmatprep.subr.mxu0 0.0
    %5931 = vmatpush1.msra.mxu0 0.0
    %5932 = vmatprep.subr.mxu0 0.0
    %5933 = vmatpush1.msra.mxu0 0.0
    %5934 = vmatprep.subr.mxu0 0.0
    %5935 = vmatpush1.msra.mxu0 %v5788
    %5936 = vmatprep.subr.mxu0 0.0
    %5937 = vmatpush1.msra.mxu0 %v5783
    %5938 = vmatprep.subr.mxu0 0.0
    %5939 = vmatpush2.msra.mxu0 0.0
    %5940 = vmatprep.subr.mxu0 0.0
    %5941 = vmatpush2.msra.mxu0 0.0
    %5942 = vmatprep.subr.mxu0 0.0
    %5943 = vmatpush2.msra.mxu0 0.0
    %5944 = vmatprep.subr.mxu0 0.0
    %5945 = vmatpush2.msra.mxu0 0.0
    %5946 = vmatprep.subr.mxu0 0.0
    %5947 = vmatpush2.msra.mxu0 0.0
    %5948 = vmatprep.subr.mxu0 0.0
    %5949 = vmatpush2.msra.mxu0 0.0
    %5950 = vmatprep.subr.mxu0 0.0
    %5951 = vmatpush2.msra.mxu0 0.0
    %5952 = vmatprep.subr.mxu0 0.0
    %5953 = vmatpush2.msra.mxu0 0.0
    %5954 = vmatprep.subr.mxu0 0.0
    %5955 = vmatpush2.msra.mxu0 0.0
    %5956 = vmatprep.subr.mxu0 0.0
    %5957 = vmatpush2.msra.mxu0 0.0
    %5958 = vmatprep.subr.mxu0 0.0
    %5959 = vmatpush2.msra.mxu0 0.0
    %5960 = vmatprep.subr.mxu0 0.0
    %5961 = vmatpush2.msra.mxu0 0.0
    %5962 = vmatprep.subr.mxu0 0.0
    %5963 = vmatpush2.msra.mxu0 0.0
    %5964 = vmatprep.subr.mxu0 0.0
    %5965 = vmatpush2.msra.mxu0 0.0
    %5966 = vmatprep.subr.mxu0 0.0
    %5967 = vmatpush2.msra.mxu0 0.0
    %5968 = vmatprep.subr.mxu0 0.0
    %5969 = vmatpush2.msra.mxu0 0.0
    %5970 = vmatprep.mubr.f32.mxu0 0.0
    %5971 = vmatmul.mubr.f32.gmra.mxu0 %v5901
    %v5972 = vpop.f32.mrf.mxu0
    %v5973 = vadd.f32 0.0, %v5972
    %v5974 = vpop.f32.mrf.mxu0
    %5975 = vmatprep.mubr.f32.mxu0 0.0
    %5976 = vmatmul.mubr.f32.gmra.mxu0 %v5904
    %v5977 = vpop.f32.mrf.mxu0
    %v5978 = vadd.f32 0.0, %v5977
    %v5979 = vpop.f32.mrf.mxu0
    %5980 = vdwg.mxu0
    %5981 = vrot.lane.b32.xlu0 %v5633, 120
    %v5982 = vpop.permute.xlu0 %5981
    %5983 = vrot.lane.b32.xlu0 %v5638, 120
    %v5984 = vpop.permute.xlu0 %5983
    %5985 = vrot.lane.b32.xlu0 %v5708, 120
    %v5986 = vpop.permute.xlu0 %5985
    %5987 = vrot.lane.b32.xlu0 %v5713, 120
    %v5988 = vpop.permute.xlu0 %5987
    %v5989 = vsel %vm424, %v5982, 0
    %v5991 = vsel %vm424, %v5984, 0
    %v5993 = vsel %vm424, %v5986, 0
    %v5995 = vsel %vm424, %v5988, 0
    %5997 = vmatprep.subr.mxu0 0.0
    %5998 = vmatpush1.xpose.msra.mxu0 0.0
    %5999 = vmatprep.subr.mxu0 0.0
    %6000 = vmatpush1.xpose.msra.mxu0 0.0
    %6001 = vmatprep.subr.mxu0 0.0
    %6002 = vmatpush1.xpose.msra.mxu0 0.0
    %6003 = vmatprep.subr.mxu0 0.0
    %6004 = vmatpush1.xpose.msra.mxu0 0.0
    %6005 = vmatprep.subr.mxu0 0.0
    %6006 = vmatpush1.xpose.msra.mxu0 0.0
    %6007 = vmatprep.subr.mxu0 0.0
    %6008 = vmatpush1.xpose.msra.mxu0 0.0
    %6009 = vmatprep.subr.mxu0 0.0
    %6010 = vmatpush1.xpose.msra.mxu0 0.0
    %6011 = vmatprep.subr.mxu0 0.0
    %6012 = vmatpush1.xpose.msra.mxu0 0.0
    %6013 = vmatprep.subr.mxu0 0.0
    %6014 = vmatpush1.xpose.msra.mxu0 0.0
    %6015 = vmatprep.subr.mxu0 0.0
    %6016 = vmatpush1.xpose.msra.mxu0 0.0
    %6017 = vmatprep.subr.mxu0 0.0
    %6018 = vmatpush1.xpose.msra.mxu0 0.0
    %6019 = vmatprep.subr.mxu0 0.0
    %6020 = vmatpush1.xpose.msra.mxu0 0.0
    %6021 = vmatprep.subr.mxu0 0.0
    %6022 = vmatpush1.xpose.msra.mxu0 0.0
    %6023 = vmatprep.subr.mxu0 0.0
    %6024 = vmatpush1.xpose.msra.mxu0 0.0
    %6025 = vmatprep.subr.mxu0 0.0
    %6026 = vmatpush1.xpose.msra.mxu0 %v5995
    %6027 = vmatprep.subr.mxu0 0.0
    %6028 = vmatpush1.xpose.msra.mxu0 %v5993
    %6029 = vmatprep.subr.mxu0 0.0
    %6030 = vmatpush2.xpose.msra.mxu0 0.0
    %6031 = vmatprep.subr.mxu0 0.0
    %6032 = vmatpush2.xpose.msra.mxu0 0.0
    %6033 = vmatprep.subr.mxu0 0.0
    %6034 = vmatpush2.xpose.msra.mxu0 0.0
    %6035 = vmatprep.subr.mxu0 0.0
    %6036 = vmatpush2.xpose.msra.mxu0 0.0
    %6037 = vmatprep.subr.mxu0 0.0
    %6038 = vmatpush2.xpose.msra.mxu0 0.0
    %6039 = vmatprep.subr.mxu0 0.0
    %6040 = vmatpush2.xpose.msra.mxu0 0.0
    %6041 = vmatprep.subr.mxu0 0.0
    %6042 = vmatpush2.xpose.msra.mxu0 0.0
    %6043 = vmatprep.subr.mxu0 0.0
    %6044 = vmatpush2.xpose.msra.mxu0 0.0
    %6045 = vmatprep.subr.mxu0 0.0
    %6046 = vmatpush2.xpose.msra.mxu0 0.0
    %6047 = vmatprep.subr.mxu0 0.0
    %6048 = vmatpush2.xpose.msra.mxu0 0.0
    %6049 = vmatprep.subr.mxu0 0.0
    %6050 = vmatpush2.xpose.msra.mxu0 0.0
    %6051 = vmatprep.subr.mxu0 0.0
    %6052 = vmatpush2.xpose.msra.mxu0 0.0
    %6053 = vmatprep.subr.mxu0 0.0
    %6054 = vmatpush2.xpose.msra.mxu0 0.0
    %6055 = vmatprep.subr.mxu0 0.0
    %6056 = vmatpush2.xpose.msra.mxu0 0.0
    %6057 = vmatprep.subr.mxu0 0.0
    %6058 = vmatpush2.xpose.msra.mxu0 0.0
    %6059 = vmatprep.subr.mxu0 0.0
    %6060 = vmatpush2.xpose.msra.mxu0 0.0
    %6061 = vmatprep.mubr.f32.mxu0 0.0
    %6062 = vmatmul.mubr.f32.gmra.mxu0 %v5989
    %v6063 = vpop.f32.mrf.mxu0
    %v6064 = vadd.f32 %v140, %v6063
    %v6065 = vpop.f32.mrf.mxu0
    %6066 = vmatprep.mubr.f32.mxu0 0.0
    %6067 = vmatmul.mubr.f32.gmra.mxu0 %v5991
    %v6068 = vpop.f32.mrf.mxu0
    %v6069 = vadd.f32 %v141, %v6068
    %v6070 = vpop.f32.mrf.mxu0
    %6071 = vdwg.mxu0
    %v6072 = vsel %vm512, %v6064, -inf
    %6073 = vmax.xlane.f32.xlu0 %v6072
    %v6074 = vpop.xlane.xlu0 %6073
    %v6075 = vsel %vm512, %v6069, -inf
    %6076 = vmax.xlane.f32.xlu0 %v6075
    %v6077 = vpop.xlane.xlu0 %6076
    %v6078 = vsub.f32 %v6064, %v6074
    %v6079 = vsub.f32 %v6069, %v6077
    %v6080 = vmul.f32 %v6078, 1.442695
    %v6081 = vpow.pop %v6080
    %v6082 = vmul.f32 %v6079, 1.442695
    %v6083 = vpow.pop %v6082
    %v6084 = vsel %vm512, %v6081, 0.0
    %6085 = vadd.xlane.f32.xlu0 %v6084
    %v6086 = vpop.xlane.xlu0 %6085
    %v6087 = vsel %vm512, %v6083, 0.0
    %6088 = vadd.xlane.f32.xlu0 %v6087
    %v6089 = vpop.xlane.xlu0 %6088
    %v6090 = vrcp.pop %v6086
    %v6091 = vrcp.pop %v6089
    %v6092 = vmul.f32 %v6081, %v6090
    %v6093 = vmul.f32 %v6083, %v6091
    %6096 = vrot.lane.b32.xlu0 %v5783, 120
    %v6097 = vpop.permute.xlu0 %6096
    %6098 = vrot.lane.b32.xlu0 %v5788, 120
    %v6099 = vpop.permute.xlu0 %6098
    %v6103 = vsel %vm512, %v6092, 0
    %v6106 = vsel %vm512, %v6093, 0
    %6108 = vmatprep.subr.mxu0 0.0
    %6109 = vmatpush1.msra.mxu0 0.0
    %6110 = vmatprep.subr.mxu0 0.0
    %6111 = vmatpush1.msra.mxu0 0.0
    %6112 = vmatprep.subr.mxu0 0.0
    %6113 = vmatpush1.msra.mxu0 0.0
    %6114 = vmatprep.subr.mxu0 0.0
    %6115 = vmatpush1.msra.mxu0 0.0
    %6116 = vmatprep.subr.mxu0 0.0
    %6117 = vmatpush1.msra.mxu0 0.0
    %6118 = vmatprep.subr.mxu0 0.0
    %6119 = vmatpush1.msra.mxu0 0.0
    %6120 = vmatprep.subr.mxu0 0.0
    %6121 = vmatpush1.msra.mxu0 0.0
    %6122 = vmatprep.subr.mxu0 0.0
    %6123 = vmatpush1.msra.mxu0 0.0
    %6124 = vmatprep.subr.mxu0 0.0
    %6125 = vmatpush1.msra.mxu0 0.0
    %6126 = vmatprep.subr.mxu0 0.0
    %6127 = vmatpush1.msra.mxu0 0.0
    %6128 = vmatprep.subr.mxu0 0.0
    %6129 = vmatpush1.msra.mxu0 0.0
    %6130 = vmatprep.subr.mxu0 0.0
    %6131 = vmatpush1.msra.mxu0 0.0
    %6132 = vmatprep.subr.mxu0 0.0
    %6133 = vmatpush1.msra.mxu0 0.0
    %6134 = vmatprep.subr.mxu0 0.0
    %6135 = vmatpush1.msra.mxu0 0.0
    %6136 = vmatprep.subr.mxu0 0.0
    %6137 = vmatpush1.msra.mxu0 %v6099
    %6138 = vmatprep.subr.mxu0 0.0
    %6139 = vmatpush1.msra.mxu0 %v6097
    %6140 = vmatprep.subr.mxu0 0.0
    %6141 = vmatpush2.msra.mxu0 0.0
    %6142 = vmatprep.subr.mxu0 0.0
    %6143 = vmatpush2.msra.mxu0 0.0
    %6144 = vmatprep.subr.mxu0 0.0
    %6145 = vmatpush2.msra.mxu0 0.0
    %6146 = vmatprep.subr.mxu0 0.0
    %6147 = vmatpush2.msra.mxu0 0.0
    %6148 = vmatprep.subr.mxu0 0.0
    %6149 = vmatpush2.msra.mxu0 0.0
    %6150 = vmatprep.subr.mxu0 0.0
    %6151 = vmatpush2.msra.mxu0 0.0
    %6152 = vmatprep.subr.mxu0 0.0
    %6153 = vmatpush2.msra.mxu0 0.0
    %6154 = vmatprep.subr.mxu0 0.0
    %6155 = vmatpush2.msra.mxu0 0.0
    %6156 = vmatprep.subr.mxu0 0.0
    %6157 = vmatpush2.msra.mxu0 0.0
    %6158 = vmatprep.subr.mxu0 0.0
    %6159 = vmatpush2.msra.mxu0 0.0
    %6160 = vmatprep.subr.mxu0 0.0
    %6161 = vmatpush2.msra.mxu0 0.0
    %6162 = vmatprep.subr.mxu0 0.0
    %6163 = vmatpush2.msra.mxu0 0.0
    %6164 = vmatprep.subr.mxu0 0.0
    %6165 = vmatpush2.msra.mxu0 0.0
    %6166 = vmatprep.subr.mxu0 0.0
    %6167 = vmatpush2.msra.mxu0 0.0
    %6168 = vmatprep.subr.mxu0 0.0
    %6169 = vmatpush2.msra.mxu0 0.0
    %6170 = vmatprep.subr.mxu0 0.0
    %6171 = vmatpush2.msra.mxu0 0.0
    %6172 = vmatprep.mubr.f32.mxu0 0.0
    %6173 = vmatmul.mubr.f32.gmra.mxu0 %v6103
    %v6174 = vpop.f32.mrf.mxu0
    %v6175 = vadd.f32 0.0, %v6174
    %v6176 = vpop.f32.mrf.mxu0
    %6177 = vmatprep.mubr.f32.mxu0 0.0
    %6178 = vmatmul.mubr.f32.gmra.mxu0 %v6106
    %v6179 = vpop.f32.mrf.mxu0
    %v6180 = vadd.f32 0.0, %v6179
    %v6181 = vpop.f32.mrf.mxu0
    %6182 = vdwg.mxu0
    %6183 = vrot.lane.b32.xlu0 %v5633, 112
    %v6184 = vpop.permute.xlu0 %6183
    %6185 = vrot.lane.b32.xlu0 %v5638, 112
    %v6186 = vpop.permute.xlu0 %6185
    %6187 = vrot.lane.b32.xlu0 %v5708, 112
    %v6188 = vpop.permute.xlu0 %6187
    %6189 = vrot.lane.b32.xlu0 %v5713, 112
    %v6190 = vpop.permute.xlu0 %6189
    %v6191 = vsel %vm424, %v6184, 0
    %v6193 = vsel %vm424, %v6186, 0
    %v6195 = vsel %vm424, %v6188, 0
    %v6197 = vsel %vm424, %v6190, 0
    %6199 = vmatprep.subr.mxu0 0.0
    %6200 = vmatpush1.xpose.msra.mxu0 0.0
    %6201 = vmatprep.subr.mxu0 0.0
    %6202 = vmatpush1.xpose.msra.mxu0 0.0
    %6203 = vmatprep.subr.mxu0 0.0
    %6204 = vmatpush1.xpose.msra.mxu0 0.0
    %6205 = vmatprep.subr.mxu0 0.0
    %6206 = vmatpush1.xpose.msra.mxu0 0.0
    %6207 = vmatprep.subr.mxu0 0.0
    %6208 = vmatpush1.xpose.msra.mxu0 0.0
    %6209 = vmatprep.subr.mxu0 0.0
    %6210 = vmatpush1.xpose.msra.mxu0 0.0
    %6211 = vmatprep.subr.mxu0 0.0
    %6212 = vmatpush1.xpose.msra.mxu0 0.0
    %6213 = vmatprep.subr.mxu0 0.0
    %6214 = vmatpush1.xpose.msra.mxu0 0.0
    %6215 = vmatprep.subr.mxu0 0.0
    %6216 = vmatpush1.xpose.msra.mxu0 0.0
    %6217 = vmatprep.subr.mxu0 0.0
    %6218 = vmatpush1.xpose.msra.mxu0 0.0
    %6219 = vmatprep.subr.mxu0 0.0
    %6220 = vmatpush1.xpose.msra.mxu0 0.0
    %6221 = vmatprep.subr.mxu0 0.0
    %6222 = vmatpush1.xpose.msra.mxu0 0.0
    %6223 = vmatprep.subr.mxu0 0.0
    %6224 = vmatpush1.xpose.msra.mxu0 0.0
    %6225 = vmatprep.subr.mxu0 0.0
    %6226 = vmatpush1.xpose.msra.mxu0 0.0
    %6227 = vmatprep.subr.mxu0 0.0
    %6228 = vmatpush1.xpose.msra.mxu0 %v6197
    %6229 = vmatprep.subr.mxu0 0.0
    %6230 = vmatpush1.xpose.msra.mxu0 %v6195
    %6231 = vmatprep.subr.mxu0 0.0
    %6232 = vmatpush2.xpose.msra.mxu0 0.0
    %6233 = vmatprep.subr.mxu0 0.0
    %6234 = vmatpush2.xpose.msra.mxu0 0.0
    %6235 = vmatprep.subr.mxu0 0.0
    %6236 = vmatpush2.xpose.msra.mxu0 0.0
    %6237 = vmatprep.subr.mxu0 0.0
    %6238 = vmatpush2.xpose.msra.mxu0 0.0
    %6239 = vmatprep.subr.mxu0 0.0
    %6240 = vmatpush2.xpose.msra.mxu0 0.0
    %6241 = vmatprep.subr.mxu0 0.0
    %6242 = vmatpush2.xpose.msra.mxu0 0.0
    %6243 = vmatprep.subr.mxu0 0.0
    %6244 = vmatpush2.xpose.msra.mxu0 0.0
    %6245 = vmatprep.subr.mxu0 0.0
    %6246 = vmatpush2.xpose.msra.mxu0 0.0
    %6247 = vmatprep.subr.mxu0 0.0
    %6248 = vmatpush2.xpose.msra.mxu0 0.0
    %6249 = vmatprep.subr.mxu0 0.0
    %6250 = vmatpush2.xpose.msra.mxu0 0.0
    %6251 = vmatprep.subr.mxu0 0.0
    %6252 = vmatpush2.xpose.msra.mxu0 0.0
    %6253 = vmatprep.subr.mxu0 0.0
    %6254 = vmatpush2.xpose.msra.mxu0 0.0
    %6255 = vmatprep.subr.mxu0 0.0
    %6256 = vmatpush2.xpose.msra.mxu0 0.0
    %6257 = vmatprep.subr.mxu0 0.0
    %6258 = vmatpush2.xpose.msra.mxu0 0.0
    %6259 = vmatprep.subr.mxu0 0.0
    %6260 = vmatpush2.xpose.msra.mxu0 0.0
    %6261 = vmatprep.subr.mxu0 0.0
    %6262 = vmatpush2.xpose.msra.mxu0 0.0
    %6263 = vmatprep.mubr.f32.mxu0 0.0
    %6264 = vmatmul.mubr.f32.gmra.mxu0 %v6191
    %v6265 = vpop.f32.mrf.mxu0
    %v6266 = vadd.f32 %v142, %v6265
    %v6267 = vpop.f32.mrf.mxu0
    %6268 = vmatprep.mubr.f32.mxu0 0.0
    %6269 = vmatmul.mubr.f32.gmra.mxu0 %v6193
    %v6270 = vpop.f32.mrf.mxu0
    %v6271 = vadd.f32 %v143, %v6270
    %v6272 = vpop.f32.mrf.mxu0
    %6273 = vdwg.mxu0
    %v6274 = vsel %vm512, %v6266, -inf
    %6275 = vmax.xlane.f32.xlu0 %v6274
    %v6276 = vpop.xlane.xlu0 %6275
    %v6277 = vsel %vm512, %v6271, -inf
    %6278 = vmax.xlane.f32.xlu0 %v6277
    %v6279 = vpop.xlane.xlu0 %6278
    %v6280 = vsub.f32 %v6266, %v6276
    %v6281 = vsub.f32 %v6271, %v6279
    %v6282 = vmul.f32 %v6280, 1.442695
    %v6283 = vpow.pop %v6282
    %v6284 = vmul.f32 %v6281, 1.442695
    %v6285 = vpow.pop %v6284
    %v6286 = vsel %vm512, %v6283, 0.0
    %6287 = vadd.xlane.f32.xlu0 %v6286
    %v6288 = vpop.xlane.xlu0 %6287
    %v6289 = vsel %vm512, %v6285, 0.0
    %6290 = vadd.xlane.f32.xlu0 %v6289
    %v6291 = vpop.xlane.xlu0 %6290
    %v6292 = vrcp.pop %v6288
    %v6293 = vrcp.pop %v6291
    %v6294 = vmul.f32 %v6283, %v6292
    %v6295 = vmul.f32 %v6285, %v6293
    %6296 = vrot.lane.b32.xlu0 %v5783, 112
    %v6297 = vpop.permute.xlu0 %6296
    %6298 = vrot.lane.b32.xlu0 %v5788, 112
    %v6299 = vpop.permute.xlu0 %6298
    %v6303 = vsel %vm512, %v6294, 0
    %v6306 = vsel %vm512, %v6295, 0
    %6308 = vmatprep.subr.mxu0 0.0
    %6309 = vmatpush1.msra.mxu0 0.0
    %6310 = vmatprep.subr.mxu0 0.0
    %6311 = vmatpush1.msra.mxu0 0.0
    %6312 = vmatprep.subr.mxu0 0.0
    %6313 = vmatpush1.msra.mxu0 0.0
    %6314 = vmatprep.subr.mxu0 0.0
    %6315 = vmatpush1.msra.mxu0 0.0
    %6316 = vmatprep.subr.mxu0 0.0
    %6317 = vmatpush1.msra.mxu0 0.0
    %6318 = vmatprep.subr.mxu0 0.0
    %6319 = vmatpush1.msra.mxu0 0.0
    %6320 = vmatprep.subr.mxu0 0.0
    %6321 = vmatpush1.msra.mxu0 0.0
    %6322 = vmatprep.subr.mxu0 0.0
    %6323 = vmatpush1.msra.mxu0 0.0
    %6324 = vmatprep.subr.mxu0 0.0
    %6325 = vmatpush1.msra.mxu0 0.0
    %6326 = vmatprep.subr.mxu0 0.0
    %6327 = vmatpush1.msra.mxu0 0.0
    %6328 = vmatprep.subr.mxu0 0.0
    %6329 = vmatpush1.msra.mxu0 0.0
    %6330 = vmatprep.subr.mxu0 0.0
    %6331 = vmatpush1.msra.mxu0 0.0
    %6332 = vmatprep.subr.mxu0 0.0
    %6333 = vmatpush1.msra.mxu0 0.0
    %6334 = vmatprep.subr.mxu0 0.0
    %6335 = vmatpush1.msra.mxu0 0.0
    %6336 = vmatprep.subr.mxu0 0.0
    %6337 = vmatpush1.msra.mxu0 %v6299
    %6338 = vmatprep.subr.mxu0 0.0
    %6339 = vmatpush1.msra.mxu0 %v6297
    %6340 = vmatprep.subr.mxu0 0.0
    %6341 = vmatpush2.msra.mxu0 0.0
    %6342 = vmatprep.subr.mxu0 0.0
    %6343 = vmatpush2.msra.mxu0 0.0
    %6344 = vmatprep.subr.mxu0 0.0
    %6345 = vmatpush2.msra.mxu0 0.0
    %6346 = vmatprep.subr.mxu0 0.0
    %6347 = vmatpush2.msra.mxu0 0.0
    %6348 = vmatprep.subr.mxu0 0.0
    %6349 = vmatpush2.msra.mxu0 0.0
    %6350 = vmatprep.subr.mxu0 0.0
    %6351 = vmatpush2.msra.mxu0 0.0
    %6352 = vmatprep.subr.mxu0 0.0
    %6353 = vmatpush2.msra.mxu0 0.0
    %6354 = vmatprep.subr.mxu0 0.0
    %6355 = vmatpush2.msra.mxu0 0.0
    %6356 = vmatprep.subr.mxu0 0.0
    %6357 = vmatpush2.msra.mxu0 0.0
    %6358 = vmatprep.subr.mxu0 0.0
    %6359 = vmatpush2.msra.mxu0 0.0
    %6360 = vmatprep.subr.mxu0 0.0
    %6361 = vmatpush2.msra.mxu0 0.0
    %6362 = vmatprep.subr.mxu0 0.0
    %6363 = vmatpush2.msra.mxu0 0.0
    %6364 = vmatprep.subr.mxu0 0.0
    %6365 = vmatpush2.msra.mxu0 0.0
    %6366 = vmatprep.subr.mxu0 0.0
    %6367 = vmatpush2.msra.mxu0 0.0
    %6368 = vmatprep.subr.mxu0 0.0
    %6369 = vmatpush2.msra.mxu0 0.0
    %6370 = vmatprep.subr.mxu0 0.0
    %6371 = vmatpush2.msra.mxu0 0.0
    %6372 = vmatprep.mubr.f32.mxu0 0.0
    %6373 = vmatmul.mubr.f32.gmra.mxu0 %v6303
    %v6374 = vpop.f32.mrf.mxu0
    %v6375 = vadd.f32 0.0, %v6374
    %v6376 = vpop.f32.mrf.mxu0
    %6377 = vmatprep.mubr.f32.mxu0 0.0
    %6378 = vmatmul.mubr.f32.gmra.mxu0 %v6306
    %v6379 = vpop.f32.mrf.mxu0
    %v6380 = vadd.f32 0.0, %v6379
    %v6381 = vpop.f32.mrf.mxu0
    %6382 = vdwg.mxu0
    %6383 = vrot.lane.b32.xlu0 %v5633, 104
    %v6384 = vpop.permute.xlu0 %6383
    %6385 = vrot.lane.b32.xlu0 %v5638, 104
    %v6386 = vpop.permute.xlu0 %6385
    %6387 = vrot.lane.b32.xlu0 %v5708, 104
    %v6388 = vpop.permute.xlu0 %6387
    %6389 = vrot.lane.b32.xlu0 %v5713, 104
    %v6390 = vpop.permute.xlu0 %6389
    %v6391 = vsel %vm424, %v6384, 0
    %v6393 = vsel %vm424, %v6386, 0
    %v6395 = vsel %vm424, %v6388, 0
    %v6397 = vsel %vm424, %v6390, 0
    %6399 = vmatprep.subr.mxu0 0.0
    %6400 = vmatpush1.xpose.msra.mxu0 0.0
    %6401 = vmatprep.subr.mxu0 0.0
    %6402 = vmatpush1.xpose.msra.mxu0 0.0
    %6403 = vmatprep.subr.mxu0 0.0
    %6404 = vmatpush1.xpose.msra.mxu0 0.0
    %6405 = vmatprep.subr.mxu0 0.0
    %6406 = vmatpush1.xpose.msra.mxu0 0.0
    %6407 = vmatprep.subr.mxu0 0.0
    %6408 = vmatpush1.xpose.msra.mxu0 0.0
    %6409 = vmatprep.subr.mxu0 0.0
    %6410 = vmatpush1.xpose.msra.mxu0 0.0
    %6411 = vmatprep.subr.mxu0 0.0
    %6412 = vmatpush1.xpose.msra.mxu0 0.0
    %6413 = vmatprep.subr.mxu0 0.0
    %6414 = vmatpush1.xpose.msra.mxu0 0.0
    %6415 = vmatprep.subr.mxu0 0.0
    %6416 = vmatpush1.xpose.msra.mxu0 0.0
    %6417 = vmatprep.subr.mxu0 0.0
    %6418 = vmatpush1.xpose.msra.mxu0 0.0
    %6419 = vmatprep.subr.mxu0 0.0
    %6420 = vmatpush1.xpose.msra.mxu0 0.0
    %6421 = vmatprep.subr.mxu0 0.0
    %6422 = vmatpush1.xpose.msra.mxu0 0.0
    %6423 = vmatprep.subr.mxu0 0.0
    %6424 = vmatpush1.xpose.msra.mxu0 0.0
    %6425 = vmatprep.subr.mxu0 0.0
    %6426 = vmatpush1.xpose.msra.mxu0 0.0
    %6427 = vmatprep.subr.mxu0 0.0
    %6428 = vmatpush1.xpose.msra.mxu0 %v6397
    %6429 = vmatprep.subr.mxu0 0.0
    %6430 = vmatpush1.xpose.msra.mxu0 %v6395
    %6431 = vmatprep.subr.mxu0 0.0
    %6432 = vmatpush2.xpose.msra.mxu0 0.0
    %6433 = vmatprep.subr.mxu0 0.0
    %6434 = vmatpush2.xpose.msra.mxu0 0.0
    %6435 = vmatprep.subr.mxu0 0.0
    %6436 = vmatpush2.xpose.msra.mxu0 0.0
    %6437 = vmatprep.subr.mxu0 0.0
    %6438 = vmatpush2.xpose.msra.mxu0 0.0
    %6439 = vmatprep.subr.mxu0 0.0
    %6440 = vmatpush2.xpose.msra.mxu0 0.0
    %6441 = vmatprep.subr.mxu0 0.0
    %6442 = vmatpush2.xpose.msra.mxu0 0.0
    %6443 = vmatprep.subr.mxu0 0.0
    %6444 = vmatpush2.xpose.msra.mxu0 0.0
    %6445 = vmatprep.subr.mxu0 0.0
    %6446 = vmatpush2.xpose.msra.mxu0 0.0
    %6447 = vmatprep.subr.mxu0 0.0
    %6448 = vmatpush2.xpose.msra.mxu0 0.0
    %6449 = vmatprep.subr.mxu0 0.0
    %6450 = vmatpush2.xpose.msra.mxu0 0.0
    %6451 = vmatprep.subr.mxu0 0.0
    %6452 = vmatpush2.xpose.msra.mxu0 0.0
    %6453 = vmatprep.subr.mxu0 0.0
    %6454 = vmatpush2.xpose.msra.mxu0 0.0
    %6455 = vmatprep.subr.mxu0 0.0
    %6456 = vmatpush2.xpose.msra.mxu0 0.0
    %6457 = vmatprep.subr.mxu0 0.0
    %6458 = vmatpush2.xpose.msra.mxu0 0.0
    %6459 = vmatprep.subr.mxu0 0.0
    %6460 = vmatpush2.xpose.msra.mxu0 0.0
    %6461 = vmatprep.subr.mxu0 0.0
    %6462 = vmatpush2.xpose.msra.mxu0 0.0
    %6463 = vmatprep.mubr.f32.mxu0 0.0
    %6464 = vmatmul.mubr.f32.gmra.mxu0 %v6391
    %v6465 = vpop.f32.mrf.mxu0
    %v6466 = vadd.f32 %v144, %v6465
    %v6467 = vpop.f32.mrf.mxu0
    %6468 = vmatprep.mubr.f32.mxu0 0.0
    %6469 = vmatmul.mubr.f32.gmra.mxu0 %v6393
    %v6470 = vpop.f32.mrf.mxu0
    %v6471 = vadd.f32 %v145, %v6470
    %v6472 = vpop.f32.mrf.mxu0
    %6473 = vdwg.mxu0
    %v6474 = vsel %vm512, %v6466, -inf
    %6475 = vmax.xlane.f32.xlu0 %v6474
    %v6476 = vpop.xlane.xlu0 %6475
    %v6477 = vsel %vm512, %v6471, -inf
    %6478 = vmax.xlane.f32.xlu0 %v6477
    %v6479 = vpop.xlane.xlu0 %6478
    %v6480 = vsub.f32 %v6466, %v6476
    %v6481 = vsub.f32 %v6471, %v6479
    %v6482 = vmul.f32 %v6480, 1.442695
    %v6483 = vpow.pop %v6482
    %v6484 = vmul.f32 %v6481, 1.442695
    %v6485 = vpow.pop %v6484
    %v6486 = vsel %vm512, %v6483, 0.0
    %6487 = vadd.xlane.f32.xlu0 %v6486
    %v6488 = vpop.xlane.xlu0 %6487
    %v6489 = vsel %vm512, %v6485, 0.0
    %6490 = vadd.xlane.f32.xlu0 %v6489
    %v6491 = vpop.xlane.xlu0 %6490
    %v6492 = vrcp.pop %v6488
    %v6493 = vrcp.pop %v6491
    %v6494 = vmul.f32 %v6483, %v6492
    %v6495 = vmul.f32 %v6485, %v6493
    %6496 = vrot.lane.b32.xlu0 %v5783, 104
    %v6497 = vpop.permute.xlu0 %6496
    %6498 = vrot.lane.b32.xlu0 %v5788, 104
    %v6499 = vpop.permute.xlu0 %6498
    %v6503 = vsel %vm512, %v6494, 0
    %v6506 = vsel %vm512, %v6495, 0
    %6508 = vmatprep.subr.mxu0 0.0
    %6509 = vmatpush1.msra.mxu0 0.0
    %6510 = vmatprep.subr.mxu0 0.0
    %6511 = vmatpush1.msra.mxu0 0.0
    %6512 = vmatprep.subr.mxu0 0.0
    %6513 = vmatpush1.msra.mxu0 0.0
    %6514 = vmatprep.subr.mxu0 0.0
    %6515 = vmatpush1.msra.mxu0 0.0
    %6516 = vmatprep.subr.mxu0 0.0
    %6517 = vmatpush1.msra.mxu0 0.0
    %6518 = vmatprep.subr.mxu0 0.0
    %6519 = vmatpush1.msra.mxu0 0.0
    %6520 = vmatprep.subr.mxu0 0.0
    %6521 = vmatpush1.msra.mxu0 0.0
    %6522 = vmatprep.subr.mxu0 0.0
    %6523 = vmatpush1.msra.mxu0 0.0
    %6524 = vmatprep.subr.mxu0 0.0
    %6525 = vmatpush1.msra.mxu0 0.0
    %6526 = vmatprep.subr.mxu0 0.0
    %6527 = vmatpush1.msra.mxu0 0.0
    %6528 = vmatprep.subr.mxu0 0.0
    %6529 = vmatpush1.msra.mxu0 0.0
    %6530 = vmatprep.subr.mxu0 0.0
    %6531 = vmatpush1.msra.mxu0 0.0
    %6532 = vmatprep.subr.mxu0 0.0
    %6533 = vmatpush1.msra.mxu0 0.0
    %6534 = vmatprep.subr.mxu0 0.0
    %6535 = vmatpush1.msra.mxu0 0.0
    %6536 = vmatprep.subr.mxu0 0.0
    %6537 = vmatpush1.msra.mxu0 %v6499
    %6538 = vmatprep.subr.mxu0 0.0
    %6539 = vmatpush1.msra.mxu0 %v6497
    %6540 = vmatprep.subr.mxu0 0.0
    %6541 = vmatpush2.msra.mxu0 0.0
    %6542 = vmatprep.subr.mxu0 0.0
    %6543 = vmatpush2.msra.mxu0 0.0
    %6544 = vmatprep.subr.mxu0 0.0
    %6545 = vmatpush2.msra.mxu0 0.0
    %6546 = vmatprep.subr.mxu0 0.0
    %6547 = vmatpush2.msra.mxu0 0.0
    %6548 = vmatprep.subr.mxu0 0.0
    %6549 = vmatpush2.msra.mxu0 0.0
    %6550 = vmatprep.subr.mxu0 0.0
    %6551 = vmatpush2.msra.mxu0 0.0
    %6552 = vmatprep.subr.mxu0 0.0
    %6553 = vmatpush2.msra.mxu0 0.0
    %6554 = vmatprep.subr.mxu0 0.0
    %6555 = vmatpush2.msra.mxu0 0.0
    %6556 = vmatprep.subr.mxu0 0.0
    %6557 = vmatpush2.msra.mxu0 0.0
    %6558 = vmatprep.subr.mxu0 0.0
    %6559 = vmatpush2.msra.mxu0 0.0
    %6560 = vmatprep.subr.mxu0 0.0
    %6561 = vmatpush2.msra.mxu0 0.0
    %6562 = vmatprep.subr.mxu0 0.0
    %6563 = vmatpush2.msra.mxu0 0.0
    %6564 = vmatprep.subr.mxu0 0.0
    %6565 = vmatpush2.msra.mxu0 0.0
    %6566 = vmatprep.subr.mxu0 0.0
    %6567 = vmatpush2.msra.mxu0 0.0
    %6568 = vmatprep.subr.mxu0 0.0
    %6569 = vmatpush2.msra.mxu0 0.0
    %6570 = vmatprep.subr.mxu0 0.0
    %6571 = vmatpush2.msra.mxu0 0.0
    %6572 = vmatprep.mubr.f32.mxu0 0.0
    %6573 = vmatmul.mubr.f32.gmra.mxu0 %v6503
    %v6574 = vpop.f32.mrf.mxu0
    %v6575 = vadd.f32 0.0, %v6574
    %v6576 = vpop.f32.mrf.mxu0
    %6577 = vmatprep.mubr.f32.mxu0 0.0
    %6578 = vmatmul.mubr.f32.gmra.mxu0 %v6506
    %v6579 = vpop.f32.mrf.mxu0
    %v6580 = vadd.f32 0.0, %v6579
    %v6581 = vpop.f32.mrf.mxu0
    %6582 = vdwg.mxu0
    %6585 = vrot.lane.b32.xlu0 %v6175, 8
    %v6586 = vpop.permute.xlu0 %6585
    %6587 = vrot.lane.b32.xlu0 %v6180, 8
    %v6588 = vpop.permute.xlu0 %6587
    %6593 = vrot.lane.b32.xlu0 %v6375, 16
    %v6594 = vpop.permute.xlu0 %6593
    %6595 = vrot.lane.b32.xlu0 %v6380, 16
    %v6596 = vpop.permute.xlu0 %6595
    %6601 = vrot.lane.b32.xlu0 %v6575, 24
    %v6602 = vpop.permute.xlu0 %6601
    %6603 = vrot.lane.b32.xlu0 %v6580, 24
    %v6604 = vpop.permute.xlu0 %6603
    %v6607 = vsel %vm424, %v5973, %v6586
    %v6608 = vsel %vm424, %v5978, %v6588
    %v6609 = vsel %vm512, %v6607, %v6594
    %v6610 = vsel %vm512, %v6608, %v6596
    %v6611 = vsel %vm1246, %v6609, %v6602
    %v6612 = vsel %vm1246, %v6610, %v6604
    %v6614 = vsel %vm153, %v6611, 0
    %v6617 = vsel %vm153, %v6612, 0
    %6619 = vmatprep.subr.mxu0 0.0
    %6620 = vmatpush1.msra.mxu0 0.0
    %6621 = vmatprep.subr.mxu0 0.0
    %6622 = vmatpush1.msra.mxu0 0.0
    %6623 = vmatprep.subr.mxu0 0.0
    %6624 = vmatpush1.msra.mxu0 0.0
    %6625 = vmatprep.subr.mxu0 0.0
    %6626 = vmatpush1.msra.mxu0 0.0
    %6627 = vmatprep.subr.mxu0 0.0
    %6628 = vmatpush1.msra.mxu0 0.0
    %6629 = vmatprep.subr.mxu0 0.0
    %6630 = vmatpush1.msra.mxu0 0.0
    %6631 = vmatprep.subr.mxu0 0.0
    %6632 = vmatpush1.msra.mxu0 0.0
    %6633 = vmatprep.subr.mxu0 0.0
    %6634 = vmatpush1.msra.mxu0 0.0
    %6635 = vmatprep.subr.mxu0 0.0
    %6636 = vmatpush1.msra.mxu0 0.0
    %6637 = vmatprep.subr.mxu0 0.0
    %6638 = vmatpush1.msra.mxu0 0.0
    %6639 = vmatprep.subr.mxu0 0.0
    %6640 = vmatpush1.msra.mxu0 0.0
    %6641 = vmatprep.subr.mxu0 0.0
    %6642 = vmatpush1.msra.mxu0 0.0
    %6643 = vmatprep.subr.mxu0 0.0
    %6644 = vmatpush1.msra.mxu0 %v5559
    %6645 = vmatprep.subr.mxu0 0.0
    %6646 = vmatpush1.msra.mxu0 %v5558
    %6647 = vmatprep.subr.mxu0 0.0
    %6648 = vmatpush1.msra.mxu0 %v5557
    %6649 = vmatprep.subr.mxu0 0.0
    %6650 = vmatpush1.msra.mxu0 %v5556
    %6651 = vmatprep.subr.mxu0 0.0
    %6652 = vmatpush2.msra.mxu0 0.0
    %6653 = vmatprep.subr.mxu0 0.0
    %6654 = vmatpush2.msra.mxu0 0.0
    %6655 = vmatprep.subr.mxu0 0.0
    %6656 = vmatpush2.msra.mxu0 0.0
    %6657 = vmatprep.subr.mxu0 0.0
    %6658 = vmatpush2.msra.mxu0 0.0
    %6659 = vmatprep.subr.mxu0 0.0
    %6660 = vmatpush2.msra.mxu0 0.0
    %6661 = vmatprep.subr.mxu0 0.0
    %6662 = vmatpush2.msra.mxu0 0.0
    %6663 = vmatprep.subr.mxu0 0.0
    %6664 = vmatpush2.msra.mxu0 0.0
    %6665 = vmatprep.subr.mxu0 0.0
    %6666 = vmatpush2.msra.mxu0 0.0
    %6667 = vmatprep.subr.mxu0 0.0
    %6668 = vmatpush2.msra.mxu0 0.0
    %6669 = vmatprep.subr.mxu0 0.0
    %6670 = vmatpush2.msra.mxu0 0.0
    %6671 = vmatprep.subr.mxu0 0.0
    %6672 = vmatpush2.msra.mxu0 0.0
    %6673 = vmatprep.subr.mxu0 0.0
    %6674 = vmatpush2.msra.mxu0 0.0
    %6675 = vmatprep.subr.mxu0 0.0
    %6676 = vmatpush2.msra.mxu0 0.0
    %6677 = vmatprep.subr.mxu0 0.0
    %6678 = vmatpush2.msra.mxu0 0.0
    %6679 = vmatprep.subr.mxu0 0.0
    %6680 = vmatpush2.msra.mxu0 0.0
    %6681 = vmatprep.subr.mxu0 0.0
    %6682 = vmatpush2.msra.mxu0 0.0
    %6683 = vmatprep.mubr.f32.mxu0 0.0
    %6684 = vmatmul.mubr.f32.gmra.mxu0 %v6614
    %v6685 = vpop.f32.mrf.mxu0
    %v6686 = vadd.f32 0.0, %v6685
    %v6687 = vpop.f32.mrf.mxu0
    %6688 = vmatprep.mubr.f32.mxu0 0.0
    %6689 = vmatmul.mubr.f32.gmra.mxu0 %v6617
    %v6690 = vpop.f32.mrf.mxu0
    %v6691 = vadd.f32 0.0, %v6690
    %v6692 = vpop.f32.mrf.mxu0
    %6693 = vdwg.mxu0
    %v6694 = vadd.f32 %v5512, %v6686
    %v6695 = vadd.f32 %v5513, %v6691
    %s6696 = scalar_lea.vmem %s41, 1
    %v6697 = vld [vmem:[%s6696] sm:$0x1]
    %v6698 = vmul.f32 %v6694, %v6694
    %v6699 = vmul.f32 %v6695, %v6695
    %v6700 = vsel %vm153, %v6698, 0.0
    %6701 = vadd.xlane.f32.xlu0 %v6700
    %v6702 = vpop.xlane.xlu0 %6701
    %v6703 = vsel %vm153, %v6699, 0.0
    %6704 = vadd.xlane.f32.xlu0 %v6703
    %v6705 = vpop.xlane.xlu0 %6704
    %v6706 = vmul.f32 %v6702, %v160
    %v6707 = vmul.f32 %v6705, %v160
    %v6708 = vadd.f32 %v6706, 1e-06
    %v6709 = vadd.f32 %v6707, 1e-06
    %v6710 = vrsqrt.pop %v6708
    %v6711 = vrsqrt.pop %v6709
    %v6712 = vmul.f32 %v6694, %v6710
    %v6713 = vmul.f32 %v6695, %v6711
    %v6715 = vlaneseq
    %v6716 = vshrl.u32 %v6715, 7
    %v6717 = vsub.s32 0, %v6716
    %v6718 = vrot.slane %v6697, %v6717
    %v6720 = vmul.f32 %v6712, %v6718
    %v6721 = vmul.f32 %v6713, %v6718
    %s6722 = scalar_lea.vmem %s43, 32
    %v6723 = vld [vmem:[%s6722] sm:$0xff]
    %v6724 = vld [vmem:[%s6722 + $0x8] sm:$0xff]
    %v6725 = vld [vmem:[%s6722 + $0x10] sm:$0xff]
    %v6726 = vld [vmem:[%s6722 + $0x18] sm:$0xff]
    %s6727 = scalar_lea.vmem %s45, 32
    %v6728 = vld [vmem:[%s6727] sm:$0xff]
    %v6729 = vld [vmem:[%s6727 + $0x8] sm:$0xff]
    %v6730 = vld [vmem:[%s6727 + $0x10] sm:$0xff]
    %v6731 = vld [vmem:[%s6727 + $0x18] sm:$0xff]
    %s6732 = scalar_lea.vmem %s47, 32
    %v6733 = vld [vmem:[%s6732] sm:$0xff]
    %v6734 = vld [vmem:[%s6732 + $0x8] sm:$0xff]
    %v6735 = vld [vmem:[%s6732 + $0x10] sm:$0xff]
    %v6736 = vld [vmem:[%s6732 + $0x18] sm:$0xff]
    %s6737 = scalar_lea.vmem %s49, 32
    %v6738 = vld [vmem:[%s6737] sm:$0xff]
    %v6739 = vld [vmem:[%s6737 + $0x8] sm:$0xff]
    %v6740 = vld [vmem:[%s6737 + $0x10] sm:$0xff]
    %v6741 = vld [vmem:[%s6737 + $0x18] sm:$0xff]
    %v6743 = vsel %vm153, %v6720, 0
    %v6746 = vsel %vm153, %v6721, 0
    %6748 = vmatprep.subr.mxu0 0.0
    %6749 = vmatpush1.msra.mxu0 0.0
    %6750 = vmatprep.subr.mxu0 0.0
    %6751 = vmatpush1.msra.mxu0 0.0
    %6752 = vmatprep.subr.mxu0 0.0
    %6753 = vmatpush1.msra.mxu0 0.0
    %6754 = vmatprep.subr.mxu0 0.0
    %6755 = vmatpush1.msra.mxu0 0.0
    %6756 = vmatprep.subr.mxu0 0.0
    %6757 = vmatpush1.msra.mxu0 0.0
    %6758 = vmatprep.subr.mxu0 0.0
    %6759 = vmatpush1.msra.mxu0 0.0
    %6760 = vmatprep.subr.mxu0 0.0
    %6761 = vmatpush1.msra.mxu0 0.0
    %6762 = vmatprep.subr.mxu0 0.0
    %6763 = vmatpush1.msra.mxu0 0.0
    %6764 = vmatprep.subr.mxu0 0.0
    %6765 = vmatpush1.msra.mxu0 0.0
    %6766 = vmatprep.subr.mxu0 0.0
    %6767 = vmatpush1.msra.mxu0 0.0
    %6768 = vmatprep.subr.mxu0 0.0
    %6769 = vmatpush1.msra.mxu0 0.0
    %6770 = vmatprep.subr.mxu0 0.0
    %6771 = vmatpush1.msra.mxu0 0.0
    %6772 = vmatprep.subr.mxu0 0.0
    %6773 = vmatpush1.msra.mxu0 %v6726
    %6774 = vmatprep.subr.mxu0 0.0
    %6775 = vmatpush1.msra.mxu0 %v6725
    %6776 = vmatprep.subr.mxu0 0.0
    %6777 = vmatpush1.msra.mxu0 %v6724
    %6778 = vmatprep.subr.mxu0 0.0
    %6779 = vmatpush1.msra.mxu0 %v6723
    %6780 = vmatprep.subr.mxu0 0.0
    %6781 = vmatpush2.msra.mxu0 0.0
    %6782 = vmatprep.subr.mxu0 0.0
    %6783 = vmatpush2.msra.mxu0 0.0
    %6784 = vmatprep.subr.mxu0 0.0
    %6785 = vmatpush2.msra.mxu0 0.0
    %6786 = vmatprep.subr.mxu0 0.0
    %6787 = vmatpush2.msra.mxu0 0.0
    %6788 = vmatprep.subr.mxu0 0.0
    %6789 = vmatpush2.msra.mxu0 0.0
    %6790 = vmatprep.subr.mxu0 0.0
    %6791 = vmatpush2.msra.mxu0 0.0
    %6792 = vmatprep.subr.mxu0 0.0
    %6793 = vmatpush2.msra.mxu0 0.0
    %6794 = vmatprep.subr.mxu0 0.0
    %6795 = vmatpush2.msra.mxu0 0.0
    %6796 = vmatprep.subr.mxu0 0.0
    %6797 = vmatpush2.msra.mxu0 0.0
    %6798 = vmatprep.subr.mxu0 0.0
    %6799 = vmatpush2.msra.mxu0 0.0
    %6800 = vmatprep.subr.mxu0 0.0
    %6801 = vmatpush2.msra.mxu0 0.0
    %6802 = vmatprep.subr.mxu0 0.0
    %6803 = vmatpush2.msra.mxu0 0.0
    %6804 = vmatprep.subr.mxu0 0.0
    %6805 = vmatpush2.msra.mxu0 0.0
    %6806 = vmatprep.subr.mxu0 0.0
    %6807 = vmatpush2.msra.mxu0 0.0
    %6808 = vmatprep.subr.mxu0 0.0
    %6809 = vmatpush2.msra.mxu0 0.0
    %6810 = vmatprep.subr.mxu0 0.0
    %6811 = vmatpush2.msra.mxu0 0.0
    %6812 = vmatprep.mubr.f32.mxu0 0.0
    %6813 = vmatmul.mubr.f32.gmra.mxu0 %v6743
    %v6814 = vpop.f32.mrf.mxu0
    %v6815 = vadd.f32 0.0, %v6814
    %v6816 = vpop.f32.mrf.mxu0
    %6817 = vmatprep.mubr.f32.mxu0 0.0
    %6818 = vmatmul.mubr.f32.gmra.mxu0 %v6746
    %v6819 = vpop.f32.mrf.mxu0
    %v6820 = vadd.f32 0.0, %v6819
    %v6821 = vpop.f32.mrf.mxu0
    %6822 = vdwg.mxu0
    %6823 = vmatprep.subr.mxu0 0.0
    %6824 = vmatpush1.msra.mxu0 0.0
    %6825 = vmatprep.subr.mxu0 0.0
    %6826 = vmatpush1.msra.mxu0 0.0
    %6827 = vmatprep.subr.mxu0 0.0
    %6828 = vmatpush1.msra.mxu0 0.0
    %6829 = vmatprep.subr.mxu0 0.0
    %6830 = vmatpush1.msra.mxu0 0.0
    %6831 = vmatprep.subr.mxu0 0.0
    %6832 = vmatpush1.msra.mxu0 0.0
    %6833 = vmatprep.subr.mxu0 0.0
    %6834 = vmatpush1.msra.mxu0 0.0
    %6835 = vmatprep.subr.mxu0 0.0
    %6836 = vmatpush1.msra.mxu0 0.0
    %6837 = vmatprep.subr.mxu0 0.0
    %6838 = vmatpush1.msra.mxu0 0.0
    %6839 = vmatprep.subr.mxu0 0.0
    %6840 = vmatpush1.msra.mxu0 0.0
    %6841 = vmatprep.subr.mxu0 0.0
    %6842 = vmatpush1.msra.mxu0 0.0
    %6843 = vmatprep.subr.mxu0 0.0
    %6844 = vmatpush1.msra.mxu0 0.0
    %6845 = vmatprep.subr.mxu0 0.0
    %6846 = vmatpush1.msra.mxu0 0.0
    %6847 = vmatprep.subr.mxu0 0.0
    %6848 = vmatpush1.msra.mxu0 %v6731
    %6849 = vmatprep.subr.mxu0 0.0
    %6850 = vmatpush1.msra.mxu0 %v6730
    %6851 = vmatprep.subr.mxu0 0.0
    %6852 = vmatpush1.msra.mxu0 %v6729
    %6853 = vmatprep.subr.mxu0 0.0
    %6854 = vmatpush1.msra.mxu0 %v6728
    %6855 = vmatprep.subr.mxu0 0.0
    %6856 = vmatpush2.msra.mxu0 0.0
    %6857 = vmatprep.subr.mxu0 0.0
    %6858 = vmatpush2.msra.mxu0 0.0
    %6859 = vmatprep.subr.mxu0 0.0
    %6860 = vmatpush2.msra.mxu0 0.0
    %6861 = vmatprep.subr.mxu0 0.0
    %6862 = vmatpush2.msra.mxu0 0.0
    %6863 = vmatprep.subr.mxu0 0.0
    %6864 = vmatpush2.msra.mxu0 0.0
    %6865 = vmatprep.subr.mxu0 0.0
    %6866 = vmatpush2.msra.mxu0 0.0
    %6867 = vmatprep.subr.mxu0 0.0
    %6868 = vmatpush2.msra.mxu0 0.0
    %6869 = vmatprep.subr.mxu0 0.0
    %6870 = vmatpush2.msra.mxu0 0.0
    %6871 = vmatprep.subr.mxu0 0.0
    %6872 = vmatpush2.msra.mxu0 0.0
    %6873 = vmatprep.subr.mxu0 0.0
    %6874 = vmatpush2.msra.mxu0 0.0
    %6875 = vmatprep.subr.mxu0 0.0
    %6876 = vmatpush2.msra.mxu0 0.0
    %6877 = vmatprep.subr.mxu0 0.0
    %6878 = vmatpush2.msra.mxu0 0.0
    %6879 = vmatprep.subr.mxu0 0.0
    %6880 = vmatpush2.msra.mxu0 0.0
    %6881 = vmatprep.subr.mxu0 0.0
    %6882 = vmatpush2.msra.mxu0 0.0
    %6883 = vmatprep.subr.mxu0 0.0
    %6884 = vmatpush2.msra.mxu0 0.0
    %6885 = vmatprep.subr.mxu0 0.0
    %6886 = vmatpush2.msra.mxu0 0.0
    %6887 = vmatprep.mubr.f32.mxu0 0.0
    %6888 = vmatmul.mubr.f32.gmra.mxu0 %v4251
    %v6889 = vpop.f32.mrf.mxu0
    %v6890 = vadd.f32 0.0, %v6889
    %v6891 = vpop.f32.mrf.mxu0
    %6892 = vmatprep.mubr.f32.mxu0 0.0
    %6893 = vmatmul.mubr.f32.gmra.mxu0 %v4254
    %v6894 = vpop.f32.mrf.mxu0
    %v6895 = vadd.f32 0.0, %v6894
    %v6896 = vpop.f32.mrf.mxu0
    %6897 = vdwg.mxu0
    %6898 = vmatprep.subr.mxu0 0.0
    %6899 = vmatpush1.msra.mxu0 0.0
    %6900 = vmatprep.subr.mxu0 0.0
    %6901 = vmatpush1.msra.mxu0 0.0
    %6902 = vmatprep.subr.mxu0 0.0
    %6903 = vmatpush1.msra.mxu0 0.0
    %6904 = vmatprep.subr.mxu0 0.0
    %6905 = vmatpush1.msra.mxu0 0.0
    %6906 = vmatprep.subr.mxu0 0.0
    %6907 = vmatpush1.msra.mxu0 0.0
    %6908 = vmatprep.subr.mxu0 0.0
    %6909 = vmatpush1.msra.mxu0 0.0
    %6910 = vmatprep.subr.mxu0 0.0
    %6911 = vmatpush1.msra.mxu0 0.0
    %6912 = vmatprep.subr.mxu0 0.0
    %6913 = vmatpush1.msra.mxu0 0.0
    %6914 = vmatprep.subr.mxu0 0.0
    %6915 = vmatpush1.msra.mxu0 0.0
    %6916 = vmatprep.subr.mxu0 0.0
    %6917 = vmatpush1.msra.mxu0 0.0
    %6918 = vmatprep.subr.mxu0 0.0
    %6919 = vmatpush1.msra.mxu0 0.0
    %6920 = vmatprep.subr.mxu0 0.0
    %6921 = vmatpush1.msra.mxu0 0.0
    %6922 = vmatprep.subr.mxu0 0.0
    %6923 = vmatpush1.msra.mxu0 %v6736
    %6924 = vmatprep.subr.mxu0 0.0
    %6925 = vmatpush1.msra.mxu0 %v6735
    %6926 = vmatprep.subr.mxu0 0.0
    %6927 = vmatpush1.msra.mxu0 %v6734
    %6928 = vmatprep.subr.mxu0 0.0
    %6929 = vmatpush1.msra.mxu0 %v6733
    %6930 = vmatprep.subr.mxu0 0.0
    %6931 = vmatpush2.msra.mxu0 0.0
    %6932 = vmatprep.subr.mxu0 0.0
    %6933 = vmatpush2.msra.mxu0 0.0
    %6934 = vmatprep.subr.mxu0 0.0
    %6935 = vmatpush2.msra.mxu0 0.0
    %6936 = vmatprep.subr.mxu0 0.0
    %6937 = vmatpush2.msra.mxu0 0.0
    %6938 = vmatprep.subr.mxu0 0.0
    %6939 = vmatpush2.msra.mxu0 0.0
    %6940 = vmatprep.subr.mxu0 0.0
    %6941 = vmatpush2.msra.mxu0 0.0
    %6942 = vmatprep.subr.mxu0 0.0
    %6943 = vmatpush2.msra.mxu0 0.0
    %6944 = vmatprep.subr.mxu0 0.0
    %6945 = vmatpush2.msra.mxu0 0.0
    %6946 = vmatprep.subr.mxu0 0.0
    %6947 = vmatpush2.msra.mxu0 0.0
    %6948 = vmatprep.subr.mxu0 0.0
    %6949 = vmatpush2.msra.mxu0 0.0
    %6950 = vmatprep.subr.mxu0 0.0
    %6951 = vmatpush2.msra.mxu0 0.0
    %6952 = vmatprep.subr.mxu0 0.0
    %6953 = vmatpush2.msra.mxu0 0.0
    %6954 = vmatprep.subr.mxu0 0.0
    %6955 = vmatpush2.msra.mxu0 0.0
    %6956 = vmatprep.subr.mxu0 0.0
    %6957 = vmatpush2.msra.mxu0 0.0
    %6958 = vmatprep.subr.mxu0 0.0
    %6959 = vmatpush2.msra.mxu0 0.0
    %6960 = vmatprep.subr.mxu0 0.0
    %6961 = vmatpush2.msra.mxu0 0.0
    %6962 = vmatprep.mubr.f32.mxu0 0.0
    %6963 = vmatmul.mubr.f32.gmra.mxu0 %v4251
    %v6964 = vpop.f32.mrf.mxu0
    %v6965 = vadd.f32 0.0, %v6964
    %v6966 = vpop.f32.mrf.mxu0
    %6967 = vmatprep.mubr.f32.mxu0 0.0
    %6968 = vmatmul.mubr.f32.gmra.mxu0 %v4254
    %v6969 = vpop.f32.mrf.mxu0
    %v6970 = vadd.f32 0.0, %v6969
    %v6971 = vpop.f32.mrf.mxu0
    %6972 = vdwg.mxu0
    %v6974 = vsel %vm424, %v6815, 0
    %v6977 = vsel %vm424, %v6820, 0
    %v6980 = vsel %vm424, %v6890, 0
    %v6983 = vsel %vm424, %v6895, 0
    %6985 = vmatprep.subr.mxu0 0.0
    %6986 = vmatpush1.xpose.msra.mxu0 0.0
    %6987 = vmatprep.subr.mxu0 0.0
    %6988 = vmatpush1.xpose.msra.mxu0 0.0
    %6989 = vmatprep.subr.mxu0 0.0
    %6990 = vmatpush1.xpose.msra.mxu0 0.0
    %6991 = vmatprep.subr.mxu0 0.0
    %6992 = vmatpush1.xpose.msra.mxu0 0.0
    %6993 = vmatprep.subr.mxu0 0.0
    %6994 = vmatpush1.xpose.msra.mxu0 0.0
    %6995 = vmatprep.subr.mxu0 0.0
    %6996 = vmatpush1.xpose.msra.mxu0 0.0
    %6997 = vmatprep.subr.mxu0 0.0
    %6998 = vmatpush1.xpose.msra.mxu0 0.0
    %6999 = vmatprep.subr.mxu0 0.0
    %7000 = vmatpush1.xpose.msra.mxu0 0.0
    %7001 = vmatprep.subr.mxu0 0.0
    %7002 = vmatpush1.xpose.msra.mxu0 0.0
    %7003 = vmatprep.subr.mxu0 0.0
    %7004 = vmatpush1.xpose.msra.mxu0 0.0
    %7005 = vmatprep.subr.mxu0 0.0
    %7006 = vmatpush1.xpose.msra.mxu0 0.0
    %7007 = vmatprep.subr.mxu0 0.0
    %7008 = vmatpush1.xpose.msra.mxu0 0.0
    %7009 = vmatprep.subr.mxu0 0.0
    %7010 = vmatpush1.xpose.msra.mxu0 0.0
    %7011 = vmatprep.subr.mxu0 0.0
    %7012 = vmatpush1.xpose.msra.mxu0 0.0
    %7013 = vmatprep.subr.mxu0 0.0
    %7014 = vmatpush1.xpose.msra.mxu0 %v6983
    %7015 = vmatprep.subr.mxu0 0.0
    %7016 = vmatpush1.xpose.msra.mxu0 %v6980
    %7017 = vmatprep.subr.mxu0 0.0
    %7018 = vmatpush2.xpose.msra.mxu0 0.0
    %7019 = vmatprep.subr.mxu0 0.0
    %7020 = vmatpush2.xpose.msra.mxu0 0.0
    %7021 = vmatprep.subr.mxu0 0.0
    %7022 = vmatpush2.xpose.msra.mxu0 0.0
    %7023 = vmatprep.subr.mxu0 0.0
    %7024 = vmatpush2.xpose.msra.mxu0 0.0
    %7025 = vmatprep.subr.mxu0 0.0
    %7026 = vmatpush2.xpose.msra.mxu0 0.0
    %7027 = vmatprep.subr.mxu0 0.0
    %7028 = vmatpush2.xpose.msra.mxu0 0.0
    %7029 = vmatprep.subr.mxu0 0.0
    %7030 = vmatpush2.xpose.msra.mxu0 0.0
    %7031 = vmatprep.subr.mxu0 0.0
    %7032 = vmatpush2.xpose.msra.mxu0 0.0
    %7033 = vmatprep.subr.mxu0 0.0
    %7034 = vmatpush2.xpose.msra.mxu0 0.0
    %7035 = vmatprep.subr.mxu0 0.0
    %7036 = vmatpush2.xpose.msra.mxu0 0.0
    %7037 = vmatprep.subr.mxu0 0.0
    %7038 = vmatpush2.xpose.msra.mxu0 0.0
    %7039 = vmatprep.subr.mxu0 0.0
    %7040 = vmatpush2.xpose.msra.mxu0 0.0
    %7041 = vmatprep.subr.mxu0 0.0
    %7042 = vmatpush2.xpose.msra.mxu0 0.0
    %7043 = vmatprep.subr.mxu0 0.0
    %7044 = vmatpush2.xpose.msra.mxu0 0.0
    %7045 = vmatprep.subr.mxu0 0.0
    %7046 = vmatpush2.xpose.msra.mxu0 0.0
    %7047 = vmatprep.subr.mxu0 0.0
    %7048 = vmatpush2.xpose.msra.mxu0 0.0
    %7049 = vmatprep.mubr.f32.mxu0 0.0
    %7050 = vmatmul.mubr.f32.gmra.mxu0 %v6974
    %v7051 = vpop.f32.mrf.mxu0
    %v7052 = vadd.f32 %v146, %v7051
    %v7053 = vpop.f32.mrf.mxu0
    %7054 = vmatprep.mubr.f32.mxu0 0.0
    %7055 = vmatmul.mubr.f32.gmra.mxu0 %v6977
    %v7056 = vpop.f32.mrf.mxu0
    %v7057 = vadd.f32 %v147, %v7056
    %v7058 = vpop.f32.mrf.mxu0
    %7059 = vdwg.mxu0
    %v7060 = vsel %vm512, %v7052, -inf
    %7061 = vmax.xlane.f32.xlu0 %v7060
    %v7062 = vpop.xlane.xlu0 %7061
    %v7063 = vsel %vm512, %v7057, -inf
    %7064 = vmax.xlane.f32.xlu0 %v7063
    %v7065 = vpop.xlane.xlu0 %7064
    %v7066 = vsub.f32 %v7052, %v7062
    %v7067 = vsub.f32 %v7057, %v7065
    %v7068 = vmul.f32 %v7066, 1.442695
    %v7069 = vpow.pop %v7068
    %v7070 = vmul.f32 %v7067, 1.442695
    %v7071 = vpow.pop %v7070
    %v7072 = vsel %vm512, %v7069, 0.0
    %7073 = vadd.xlane.f32.xlu0 %v7072
    %v7074 = vpop.xlane.xlu0 %7073
    %v7075 = vsel %vm512, %v7071, 0.0
    %7076 = vadd.xlane.f32.xlu0 %v7075
    %v7077 = vpop.xlane.xlu0 %7076
    %v7078 = vrcp.pop %v7074
    %v7079 = vrcp.pop %v7077
    %v7080 = vmul.f32 %v7069, %v7078
    %v7081 = vmul.f32 %v7071, %v7079
    %v7083 = vsel %vm512, %v7080, 0
    %v7086 = vsel %vm512, %v7081, 0
    %7088 = vmatprep.subr.mxu0 0.0
    %7089 = vmatpush1.msra.mxu0 0.0
    %7090 = vmatprep.subr.mxu0 0.0
    %7091 = vmatpush1.msra.mxu0 0.0
    %7092 = vmatprep.subr.mxu0 0.0
    %7093 = vmatpush1.msra.mxu0 0.0
    %7094 = vmatprep.subr.mxu0 0.0
    %7095 = vmatpush1.msra.mxu0 0.0
    %7096 = vmatprep.subr.mxu0 0.0
    %7097 = vmatpush1.msra.mxu0 0.0
    %7098 = vmatprep.subr.mxu0 0.0
    %7099 = vmatpush1.msra.mxu0 0.0
    %7100 = vmatprep.subr.mxu0 0.0
    %7101 = vmatpush1.msra.mxu0 0.0
    %7102 = vmatprep.subr.mxu0 0.0
    %7103 = vmatpush1.msra.mxu0 0.0
    %7104 = vmatprep.subr.mxu0 0.0
    %7105 = vmatpush1.msra.mxu0 0.0
    %7106 = vmatprep.subr.mxu0 0.0
    %7107 = vmatpush1.msra.mxu0 0.0
    %7108 = vmatprep.subr.mxu0 0.0
    %7109 = vmatpush1.msra.mxu0 0.0
    %7110 = vmatprep.subr.mxu0 0.0
    %7111 = vmatpush1.msra.mxu0 0.0
    %7112 = vmatprep.subr.mxu0 0.0
    %7113 = vmatpush1.msra.mxu0 0.0
    %7114 = vmatprep.subr.mxu0 0.0
    %7115 = vmatpush1.msra.mxu0 0.0
    %7116 = vmatprep.subr.mxu0 0.0
    %7117 = vmatpush1.msra.mxu0 %v6970
    %7118 = vmatprep.subr.mxu0 0.0
    %7119 = vmatpush1.msra.mxu0 %v6965
    %7120 = vmatprep.subr.mxu0 0.0
    %7121 = vmatpush2.msra.mxu0 0.0
    %7122 = vmatprep.subr.mxu0 0.0
    %7123 = vmatpush2.msra.mxu0 0.0
    %7124 = vmatprep.subr.mxu0 0.0
    %7125 = vmatpush2.msra.mxu0 0.0
    %7126 = vmatprep.subr.mxu0 0.0
    %7127 = vmatpush2.msra.mxu0 0.0
    %7128 = vmatprep.subr.mxu0 0.0
    %7129 = vmatpush2.msra.mxu0 0.0
    %7130 = vmatprep.subr.mxu0 0.0
    %7131 = vmatpush2.msra.mxu0 0.0
    %7132 = vmatprep.subr.mxu0 0.0
    %7133 = vmatpush2.msra.mxu0 0.0
    %7134 = vmatprep.subr.mxu0 0.0
    %7135 = vmatpush2.msra.mxu0 0.0
    %7136 = vmatprep.subr.mxu0 0.0
    %7137 = vmatpush2.msra.mxu0 0.0
    %7138 = vmatprep.subr.mxu0 0.0
    %7139 = vmatpush2.msra.mxu0 0.0
    %7140 = vmatprep.subr.mxu0 0.0
    %7141 = vmatpush2.msra.mxu0 0.0
    %7142 = vmatprep.subr.mxu0 0.0
    %7143 = vmatpush2.msra.mxu0 0.0
    %7144 = vmatprep.subr.mxu0 0.0
    %7145 = vmatpush2.msra.mxu0 0.0
    %7146 = vmatprep.subr.mxu0 0.0
    %7147 = vmatpush2.msra.mxu0 0.0
    %7148 = vmatprep.subr.mxu0 0.0
    %7149 = vmatpush2.msra.mxu0 0.0
    %7150 = vmatprep.subr.mxu0 0.0
    %7151 = vmatpush2.msra.mxu0 0.0
    %7152 = vmatprep.mubr.f32.mxu0 0.0
    %7153 = vmatmul.mubr.f32.gmra.mxu0 %v7083
    %v7154 = vpop.f32.mrf.mxu0
    %v7155 = vadd.f32 0.0, %v7154
    %v7156 = vpop.f32.mrf.mxu0
    %7157 = vmatprep.mubr.f32.mxu0 0.0
    %7158 = vmatmul.mubr.f32.gmra.mxu0 %v7086
    %v7159 = vpop.f32.mrf.mxu0
    %v7160 = vadd.f32 0.0, %v7159
    %v7161 = vpop.f32.mrf.mxu0
    %7162 = vdwg.mxu0
    %7163 = vrot.lane.b32.xlu0 %v6815, 120
    %v7164 = vpop.permute.xlu0 %7163
    %7165 = vrot.lane.b32.xlu0 %v6820, 120
    %v7166 = vpop.permute.xlu0 %7165
    %7167 = vrot.lane.b32.xlu0 %v6890, 120
    %v7168 = vpop.permute.xlu0 %7167
    %7169 = vrot.lane.b32.xlu0 %v6895, 120
    %v7170 = vpop.permute.xlu0 %7169
    %v7171 = vsel %vm424, %v7164, 0
    %v7173 = vsel %vm424, %v7166, 0
    %v7175 = vsel %vm424, %v7168, 0
    %v7177 = vsel %vm424, %v7170, 0
    %7179 = vmatprep.subr.mxu0 0.0
    %7180 = vmatpush1.xpose.msra.mxu0 0.0
    %7181 = vmatprep.subr.mxu0 0.0
    %7182 = vmatpush1.xpose.msra.mxu0 0.0
    %7183 = vmatprep.subr.mxu0 0.0
    %7184 = vmatpush1.xpose.msra.mxu0 0.0
    %7185 = vmatprep.subr.mxu0 0.0
    %7186 = vmatpush1.xpose.msra.mxu0 0.0
    %7187 = vmatprep.subr.mxu0 0.0
    %7188 = vmatpush1.xpose.msra.mxu0 0.0
    %7189 = vmatprep.subr.mxu0 0.0
    %7190 = vmatpush1.xpose.msra.mxu0 0.0
    %7191 = vmatprep.subr.mxu0 0.0
    %7192 = vmatpush1.xpose.msra.mxu0 0.0
    %7193 = vmatprep.subr.mxu0 0.0
    %7194 = vmatpush1.xpose.msra.mxu0 0.0
    %7195 = vmatprep.subr.mxu0 0.0
    %7196 = vmatpush1.xpose.msra.mxu0 0.0
    %7197 = vmatprep.subr.mxu0 0.0
    %7198 = vmatpush1.xpose.msra.mxu0 0.0
    %7199 = vmatprep.subr.mxu0 0.0
    %7200 = vmatpush1.xpose.msra.mxu0 0.0
    %7201 = vmatprep.subr.mxu0 0.0
    %7202 = vmatpush1.xpose.msra.mxu0 0.0
    %7203 = vmatprep.subr.mxu0 0.0
    %7204 = vmatpush1.xpose.msra.mxu0 0.0
    %7205 = vmatprep.subr.mxu0 0.0
    %7206 = vmatpush1.xpose.msra.mxu0 0.0
    %7207 = vmatprep.subr.mxu0 0.0
    %7208 = vmatpush1.xpose.msra.mxu0 %v7177
    %7209 = vmatprep.subr.mxu0 0.0
    %7210 = vmatpush1.xpose.msra.mxu0 %v7175
    %7211 = vmatprep.subr.mxu0 0.0
    %7212 = vmatpush2.xpose.msra.mxu0 0.0
    %7213 = vmatprep.subr.mxu0 0.0
    %7214 = vmatpush2.xpose.msra.mxu0 0.0
    %7215 = vmatprep.subr.mxu0 0.0
    %7216 = vmatpush2.xpose.msra.mxu0 0.0
    %7217 = vmatprep.subr.mxu0 0.0
    %7218 = vmatpush2.xpose.msra.mxu0 0.0
    %7219 = vmatprep.subr.mxu0 0.0
    %7220 = vmatpush2.xpose.msra.mxu0 0.0
    %7221 = vmatprep.subr.mxu0 0.0
    %7222 = vmatpush2.xpose.msra.mxu0 0.0
    %7223 = vmatprep.subr.mxu0 0.0
    %7224 = vmatpush2.xpose.msra.mxu0 0.0
    %7225 = vmatprep.subr.mxu0 0.0
    %7226 = vmatpush2.xpose.msra.mxu0 0.0
    %7227 = vmatprep.subr.mxu0 0.0
    %7228 = vmatpush2.xpose.msra.mxu0 0.0
    %7229 = vmatprep.subr.mxu0 0.0
    %7230 = vmatpush2.xpose.msra.mxu0 0.0
    %7231 = vmatprep.subr.mxu0 0.0
    %7232 = vmatpush2.xpose.msra.mxu0 0.0
    %7233 = vmatprep.subr.mxu0 0.0
    %7234 = vmatpush2.xpose.msra.mxu0 0.0
    %7235 = vmatprep.subr.mxu0 0.0
    %7236 = vmatpush2.xpose.msra.mxu0 0.0
    %7237 = vmatprep.subr.mxu0 0.0
    %7238 = vmatpush2.xpose.msra.mxu0 0.0
    %7239 = vmatprep.subr.mxu0 0.0
    %7240 = vmatpush2.xpose.msra.mxu0 0.0
    %7241 = vmatprep.subr.mxu0 0.0
    %7242 = vmatpush2.xpose.msra.mxu0 0.0
    %7243 = vmatprep.mubr.f32.mxu0 0.0
    %7244 = vmatmul.mubr.f32.gmra.mxu0 %v7171
    %v7245 = vpop.f32.mrf.mxu0
    %v7246 = vadd.f32 %v146, %v7245
    %v7247 = vpop.f32.mrf.mxu0
    %7248 = vmatprep.mubr.f32.mxu0 0.0
    %7249 = vmatmul.mubr.f32.gmra.mxu0 %v7173
    %v7250 = vpop.f32.mrf.mxu0
    %v7251 = vadd.f32 %v147, %v7250
    %v7252 = vpop.f32.mrf.mxu0
    %7253 = vdwg.mxu0
    %v7254 = vsel %vm512, %v7246, -inf
    %7255 = vmax.xlane.f32.xlu0 %v7254
    %v7256 = vpop.xlane.xlu0 %7255
    %v7257 = vsel %vm512, %v7251, -inf
    %7258 = vmax.xlane.f32.xlu0 %v7257
    %v7259 = vpop.xlane.xlu0 %7258
    %v7260 = vsub.f32 %v7246, %v7256
    %v7261 = vsub.f32 %v7251, %v7259
    %v7262 = vmul.f32 %v7260, 1.442695
    %v7263 = vpow.pop %v7262
    %v7264 = vmul.f32 %v7261, 1.442695
    %v7265 = vpow.pop %v7264
    %v7266 = vsel %vm512, %v7263, 0.0
    %7267 = vadd.xlane.f32.xlu0 %v7266
    %v7268 = vpop.xlane.xlu0 %7267
    %v7269 = vsel %vm512, %v7265, 0.0
    %7270 = vadd.xlane.f32.xlu0 %v7269
    %v7271 = vpop.xlane.xlu0 %7270
    %v7272 = vrcp.pop %v7268
    %v7273 = vrcp.pop %v7271
    %v7274 = vmul.f32 %v7263, %v7272
    %v7275 = vmul.f32 %v7265, %v7273
    %7278 = vrot.lane.b32.xlu0 %v6965, 120
    %v7279 = vpop.permute.xlu0 %7278
    %7280 = vrot.lane.b32.xlu0 %v6970, 120
    %v7281 = vpop.permute.xlu0 %7280
    %v7285 = vsel %vm512, %v7274, 0
    %v7288 = vsel %vm512, %v7275, 0
    %7290 = vmatprep.subr.mxu0 0.0
    %7291 = vmatpush1.msra.mxu0 0.0
    %7292 = vmatprep.subr.mxu0 0.0
    %7293 = vmatpush1.msra.mxu0 0.0
    %7294 = vmatprep.subr.mxu0 0.0
    %7295 = vmatpush1.msra.mxu0 0.0
    %7296 = vmatprep.subr.mxu0 0.0
    %7297 = vmatpush1.msra.mxu0 0.0
    %7298 = vmatprep.subr.mxu0 0.0
    %7299 = vmatpush1.msra.mxu0 0.0
    %7300 = vmatprep.subr.mxu0 0.0
    %7301 = vmatpush1.msra.mxu0 0.0
    %7302 = vmatprep.subr.mxu0 0.0
    %7303 = vmatpush1.msra.mxu0 0.0
    %7304 = vmatprep.subr.mxu0 0.0
    %7305 = vmatpush1.msra.mxu0 0.0
    %7306 = vmatprep.subr.mxu0 0.0
    %7307 = vmatpush1.msra.mxu0 0.0
    %7308 = vmatprep.subr.mxu0 0.0
    %7309 = vmatpush1.msra.mxu0 0.0
    %7310 = vmatprep.subr.mxu0 0.0
    %7311 = vmatpush1.msra.mxu0 0.0
    %7312 = vmatprep.subr.mxu0 0.0
    %7313 = vmatpush1.msra.mxu0 0.0
    %7314 = vmatprep.subr.mxu0 0.0
    %7315 = vmatpush1.msra.mxu0 0.0
    %7316 = vmatprep.subr.mxu0 0.0
    %7317 = vmatpush1.msra.mxu0 0.0
    %7318 = vmatprep.subr.mxu0 0.0
    %7319 = vmatpush1.msra.mxu0 %v7281
    %7320 = vmatprep.subr.mxu0 0.0
    %7321 = vmatpush1.msra.mxu0 %v7279
    %7322 = vmatprep.subr.mxu0 0.0
    %7323 = vmatpush2.msra.mxu0 0.0
    %7324 = vmatprep.subr.mxu0 0.0
    %7325 = vmatpush2.msra.mxu0 0.0
    %7326 = vmatprep.subr.mxu0 0.0
    %7327 = vmatpush2.msra.mxu0 0.0
    %7328 = vmatprep.subr.mxu0 0.0
    %7329 = vmatpush2.msra.mxu0 0.0
    %7330 = vmatprep.subr.mxu0 0.0
    %7331 = vmatpush2.msra.mxu0 0.0
    %7332 = vmatprep.subr.mxu0 0.0
    %7333 = vmatpush2.msra.mxu0 0.0
    %7334 = vmatprep.subr.mxu0 0.0
    %7335 = vmatpush2.msra.mxu0 0.0
    %7336 = vmatprep.subr.mxu0 0.0
    %7337 = vmatpush2.msra.mxu0 0.0
    %7338 = vmatprep.subr.mxu0 0.0
    %7339 = vmatpush2.msra.mxu0 0.0
    %7340 = vmatprep.subr.mxu0 0.0
    %7341 = vmatpush2.msra.mxu0 0.0
    %7342 = vmatprep.subr.mxu0 0.0
    %7343 = vmatpush2.msra.mxu0 0.0
    %7344 = vmatprep.subr.mxu0 0.0
    %7345 = vmatpush2.msra.mxu0 0.0
    %7346 = vmatprep.subr.mxu0 0.0
    %7347 = vmatpush2.msra.mxu0 0.0
    %7348 = vmatprep.subr.mxu0 0.0
    %7349 = vmatpush2.msra.mxu0 0.0
    %7350 = vmatprep.subr.mxu0 0.0
    %7351 = vmatpush2.msra.mxu0 0.0
    %7352 = vmatprep.subr.mxu0 0.0
    %7353 = vmatpush2.msra.mxu0 0.0
    %7354 = vmatprep.mubr.f32.mxu0 0.0
    %7355 = vmatmul.mubr.f32.gmra.mxu0 %v7285
    %v7356 = vpop.f32.mrf.mxu0
    %v7357 = vadd.f32 0.0, %v7356
    %v7358 = vpop.f32.mrf.mxu0
    %7359 = vmatprep.mubr.f32.mxu0 0.0
    %7360 = vmatmul.mubr.f32.gmra.mxu0 %v7288
    %v7361 = vpop.f32.mrf.mxu0
    %v7362 = vadd.f32 0.0, %v7361
    %v7363 = vpop.f32.mrf.mxu0
    %7364 = vdwg.mxu0
    %7365 = vrot.lane.b32.xlu0 %v6815, 112
    %v7366 = vpop.permute.xlu0 %7365
    %7367 = vrot.lane.b32.xlu0 %v6820, 112
    %v7368 = vpop.permute.xlu0 %7367
    %7369 = vrot.lane.b32.xlu0 %v6890, 112
    %v7370 = vpop.permute.xlu0 %7369
    %7371 = vrot.lane.b32.xlu0 %v6895, 112
    %v7372 = vpop.permute.xlu0 %7371
    %v7373 = vsel %vm424, %v7366, 0
    %v7375 = vsel %vm424, %v7368, 0
    %v7377 = vsel %vm424, %v7370, 0
    %v7379 = vsel %vm424, %v7372, 0
    %7381 = vmatprep.subr.mxu0 0.0
    %7382 = vmatpush1.xpose.msra.mxu0 0.0
    %7383 = vmatprep.subr.mxu0 0.0
    %7384 = vmatpush1.xpose.msra.mxu0 0.0
    %7385 = vmatprep.subr.mxu0 0.0
    %7386 = vmatpush1.xpose.msra.mxu0 0.0
    %7387 = vmatprep.subr.mxu0 0.0
    %7388 = vmatpush1.xpose.msra.mxu0 0.0
    %7389 = vmatprep.subr.mxu0 0.0
    %7390 = vmatpush1.xpose.msra.mxu0 0.0
    %7391 = vmatprep.subr.mxu0 0.0
    %7392 = vmatpush1.xpose.msra.mxu0 0.0
    %7393 = vmatprep.subr.mxu0 0.0
    %7394 = vmatpush1.xpose.msra.mxu0 0.0
    %7395 = vmatprep.subr.mxu0 0.0
    %7396 = vmatpush1.xpose.msra.mxu0 0.0
    %7397 = vmatprep.subr.mxu0 0.0
    %7398 = vmatpush1.xpose.msra.mxu0 0.0
    %7399 = vmatprep.subr.mxu0 0.0
    %7400 = vmatpush1.xpose.msra.mxu0 0.0
    %7401 = vmatprep.subr.mxu0 0.0
    %7402 = vmatpush1.xpose.msra.mxu0 0.0
    %7403 = vmatprep.subr.mxu0 0.0
    %7404 = vmatpush1.xpose.msra.mxu0 0.0
    %7405 = vmatprep.subr.mxu0 0.0
    %7406 = vmatpush1.xpose.msra.mxu0 0.0
    %7407 = vmatprep.subr.mxu0 0.0
    %7408 = vmatpush1.xpose.msra.mxu0 0.0
    %7409 = vmatprep.subr.mxu0 0.0
    %7410 = vmatpush1.xpose.msra.mxu0 %v7379
    %7411 = vmatprep.subr.mxu0 0.0
    %7412 = vmatpush1.xpose.msra.mxu0 %v7377
    %7413 = vmatprep.subr.mxu0 0.0
    %7414 = vmatpush2.xpose.msra.mxu0 0.0
    %7415 = vmatprep.subr.mxu0 0.0
    %7416 = vmatpush2.xpose.msra.mxu0 0.0
    %7417 = vmatprep.subr.mxu0 0.0
    %7418 = vmatpush2.xpose.msra.mxu0 0.0
    %7419 = vmatprep.subr.mxu0 0.0
    %7420 = vmatpush2.xpose.msra.mxu0 0.0
    %7421 = vmatprep.subr.mxu0 0.0
    %7422 = vmatpush2.xpose.msra.mxu0 0.0
    %7423 = vmatprep.subr.mxu0 0.0
    %7424 = vmatpush2.xpose.msra.mxu0 0.0
    %7425 = vmatprep.subr.mxu0 0.0
    %7426 = vmatpush2.xpose.msra.mxu0 0.0
    %7427 = vmatprep.subr.mxu0 0.0
    %7428 = vmatpush2.xpose.msra.mxu0 0.0
    %7429 = vmatprep.subr.mxu0 0.0
    %7430 = vmatpush2.xpose.msra.mxu0 0.0
    %7431 = vmatprep.subr.mxu0 0.0
    %7432 = vmatpush2.xpose.msra.mxu0 0.0
    %7433 = vmatprep.subr.mxu0 0.0
    %7434 = vmatpush2.xpose.msra.mxu0 0.0
    %7435 = vmatprep.subr.mxu0 0.0
    %7436 = vmatpush2.xpose.msra.mxu0 0.0
    %7437 = vmatprep.subr.mxu0 0.0
    %7438 = vmatpush2.xpose.msra.mxu0 0.0
    %7439 = vmatprep.subr.mxu0 0.0
    %7440 = vmatpush2.xpose.msra.mxu0 0.0
    %7441 = vmatprep.subr.mxu0 0.0
    %7442 = vmatpush2.xpose.msra.mxu0 0.0
    %7443 = vmatprep.subr.mxu0 0.0
    %7444 = vmatpush2.xpose.msra.mxu0 0.0
    %7445 = vmatprep.mubr.f32.mxu0 0.0
    %7446 = vmatmul.mubr.f32.gmra.mxu0 %v7373
    %v7447 = vpop.f32.mrf.mxu0
    %v7448 = vadd.f32 %v146, %v7447
    %v7449 = vpop.f32.mrf.mxu0
    %7450 = vmatprep.mubr.f32.mxu0 0.0
    %7451 = vmatmul.mubr.f32.gmra.mxu0 %v7375
    %v7452 = vpop.f32.mrf.mxu0
    %v7453 = vadd.f32 %v147, %v7452
    %v7454 = vpop.f32.mrf.mxu0
    %7455 = vdwg.mxu0
    %v7456 = vsel %vm512, %v7448, -inf
    %7457 = vmax.xlane.f32.xlu0 %v7456
    %v7458 = vpop.xlane.xlu0 %7457
    %v7459 = vsel %vm512, %v7453, -inf
    %7460 = vmax.xlane.f32.xlu0 %v7459
    %v7461 = vpop.xlane.xlu0 %7460
    %v7462 = vsub.f32 %v7448, %v7458
    %v7463 = vsub.f32 %v7453, %v7461
    %v7464 = vmul.f32 %v7462, 1.442695
    %v7465 = vpow.pop %v7464
    %v7466 = vmul.f32 %v7463, 1.442695
    %v7467 = vpow.pop %v7466
    %v7468 = vsel %vm512, %v7465, 0.0
    %7469 = vadd.xlane.f32.xlu0 %v7468
    %v7470 = vpop.xlane.xlu0 %7469
    %v7471 = vsel %vm512, %v7467, 0.0
    %7472 = vadd.xlane.f32.xlu0 %v7471
    %v7473 = vpop.xlane.xlu0 %7472
    %v7474 = vrcp.pop %v7470
    %v7475 = vrcp.pop %v7473
    %v7476 = vmul.f32 %v7465, %v7474
    %v7477 = vmul.f32 %v7467, %v7475
    %7478 = vrot.lane.b32.xlu0 %v6965, 112
    %v7479 = vpop.permute.xlu0 %7478
    %7480 = vrot.lane.b32.xlu0 %v6970, 112
    %v7481 = vpop.permute.xlu0 %7480
    %v7485 = vsel %vm512, %v7476, 0
    %v7488 = vsel %vm512, %v7477, 0
    %7490 = vmatprep.subr.mxu0 0.0
    %7491 = vmatpush1.msra.mxu0 0.0
    %7492 = vmatprep.subr.mxu0 0.0
    %7493 = vmatpush1.msra.mxu0 0.0
    %7494 = vmatprep.subr.mxu0 0.0
    %7495 = vmatpush1.msra.mxu0 0.0
    %7496 = vmatprep.subr.mxu0 0.0
    %7497 = vmatpush1.msra.mxu0 0.0
    %7498 = vmatprep.subr.mxu0 0.0
    %7499 = vmatpush1.msra.mxu0 0.0
    %7500 = vmatprep.subr.mxu0 0.0
    %7501 = vmatpush1.msra.mxu0 0.0
    %7502 = vmatprep.subr.mxu0 0.0
    %7503 = vmatpush1.msra.mxu0 0.0
    %7504 = vmatprep.subr.mxu0 0.0
    %7505 = vmatpush1.msra.mxu0 0.0
    %7506 = vmatprep.subr.mxu0 0.0
    %7507 = vmatpush1.msra.mxu0 0.0
    %7508 = vmatprep.subr.mxu0 0.0
    %7509 = vmatpush1.msra.mxu0 0.0
    %7510 = vmatprep.subr.mxu0 0.0
    %7511 = vmatpush1.msra.mxu0 0.0
    %7512 = vmatprep.subr.mxu0 0.0
    %7513 = vmatpush1.msra.mxu0 0.0
    %7514 = vmatprep.subr.mxu0 0.0
    %7515 = vmatpush1.msra.mxu0 0.0
    %7516 = vmatprep.subr.mxu0 0.0
    %7517 = vmatpush1.msra.mxu0 0.0
    %7518 = vmatprep.subr.mxu0 0.0
    %7519 = vmatpush1.msra.mxu0 %v7481
    %7520 = vmatprep.subr.mxu0 0.0
    %7521 = vmatpush1.msra.mxu0 %v7479
    %7522 = vmatprep.subr.mxu0 0.0
    %7523 = vmatpush2.msra.mxu0 0.0
    %7524 = vmatprep.subr.mxu0 0.0
    %7525 = vmatpush2.msra.mxu0 0.0
    %7526 = vmatprep.subr.mxu0 0.0
    %7527 = vmatpush2.msra.mxu0 0.0
    %7528 = vmatprep.subr.mxu0 0.0
    %7529 = vmatpush2.msra.mxu0 0.0
    %7530 = vmatprep.subr.mxu0 0.0
    %7531 = vmatpush2.msra.mxu0 0.0
    %7532 = vmatprep.subr.mxu0 0.0
    %7533 = vmatpush2.msra.mxu0 0.0
    %7534 = vmatprep.subr.mxu0 0.0
    %7535 = vmatpush2.msra.mxu0 0.0
    %7536 = vmatprep.subr.mxu0 0.0
    %7537 = vmatpush2.msra.mxu0 0.0
    %7538 = vmatprep.subr.mxu0 0.0
    %7539 = vmatpush2.msra.mxu0 0.0
    %7540 = vmatprep.subr.mxu0 0.0
    %7541 = vmatpush2.msra.mxu0 0.0
    %7542 = vmatprep.subr.mxu0 0.0
    %7543 = vmatpush2.msra.mxu0 0.0
    %7544 = vmatprep.subr.mxu0 0.0
    %7545 = vmatpush2.msra.mxu0 0.0
    %7546 = vmatprep.subr.mxu0 0.0
    %7547 = vmatpush2.msra.mxu0 0.0
    %7548 = vmatprep.subr.mxu0 0.0
    %7549 = vmatpush2.msra.mxu0 0.0
    %7550 = vmatprep.subr.mxu0 0.0
    %7551 = vmatpush2.msra.mxu0 0.0
    %7552 = vmatprep.subr.mxu0 0.0
    %7553 = vmatpush2.msra.mxu0 0.0
    %7554 = vmatprep.mubr.f32.mxu0 0.0
    %7555 = vmatmul.mubr.f32.gmra.mxu0 %v7485
    %v7556 = vpop.f32.mrf.mxu0
    %v7557 = vadd.f32 0.0, %v7556
    %v7558 = vpop.f32.mrf.mxu0
    %7559 = vmatprep.mubr.f32.mxu0 0.0
    %7560 = vmatmul.mubr.f32.gmra.mxu0 %v7488
    %v7561 = vpop.f32.mrf.mxu0
    %v7562 = vadd.f32 0.0, %v7561
    %v7563 = vpop.f32.mrf.mxu0
    %7564 = vdwg.mxu0
    %7565 = vrot.lane.b32.xlu0 %v6815, 104
    %v7566 = vpop.permute.xlu0 %7565
    %7567 = vrot.lane.b32.xlu0 %v6820, 104
    %v7568 = vpop.permute.xlu0 %7567
    %7569 = vrot.lane.b32.xlu0 %v6890, 104
    %v7570 = vpop.permute.xlu0 %7569
    %7571 = vrot.lane.b32.xlu0 %v6895, 104
    %v7572 = vpop.permute.xlu0 %7571
    %v7573 = vsel %vm424, %v7566, 0
    %v7575 = vsel %vm424, %v7568, 0
    %v7577 = vsel %vm424, %v7570, 0
    %v7579 = vsel %vm424, %v7572, 0
    %7581 = vmatprep.subr.mxu0 0.0
    %7582 = vmatpush1.xpose.msra.mxu0 0.0
    %7583 = vmatprep.subr.mxu0 0.0
    %7584 = vmatpush1.xpose.msra.mxu0 0.0
    %7585 = vmatprep.subr.mxu0 0.0
    %7586 = vmatpush1.xpose.msra.mxu0 0.0
    %7587 = vmatprep.subr.mxu0 0.0
    %7588 = vmatpush1.xpose.msra.mxu0 0.0
    %7589 = vmatprep.subr.mxu0 0.0
    %7590 = vmatpush1.xpose.msra.mxu0 0.0
    %7591 = vmatprep.subr.mxu0 0.0
    %7592 = vmatpush1.xpose.msra.mxu0 0.0
    %7593 = vmatprep.subr.mxu0 0.0
    %7594 = vmatpush1.xpose.msra.mxu0 0.0
    %7595 = vmatprep.subr.mxu0 0.0
    %7596 = vmatpush1.xpose.msra.mxu0 0.0
    %7597 = vmatprep.subr.mxu0 0.0
    %7598 = vmatpush1.xpose.msra.mxu0 0.0
    %7599 = vmatprep.subr.mxu0 0.0
    %7600 = vmatpush1.xpose.msra.mxu0 0.0
    %7601 = vmatprep.subr.mxu0 0.0
    %7602 = vmatpush1.xpose.msra.mxu0 0.0
    %7603 = vmatprep.subr.mxu0 0.0
    %7604 = vmatpush1.xpose.msra.mxu0 0.0
    %7605 = vmatprep.subr.mxu0 0.0
    %7606 = vmatpush1.xpose.msra.mxu0 0.0
    %7607 = vmatprep.subr.mxu0 0.0
    %7608 = vmatpush1.xpose.msra.mxu0 0.0
    %7609 = vmatprep.subr.mxu0 0.0
    %7610 = vmatpush1.xpose.msra.mxu0 %v7579
    %7611 = vmatprep.subr.mxu0 0.0
    %7612 = vmatpush1.xpose.msra.mxu0 %v7577
    %7613 = vmatprep.subr.mxu0 0.0
    %7614 = vmatpush2.xpose.msra.mxu0 0.0
    %7615 = vmatprep.subr.mxu0 0.0
    %7616 = vmatpush2.xpose.msra.mxu0 0.0
    %7617 = vmatprep.subr.mxu0 0.0
    %7618 = vmatpush2.xpose.msra.mxu0 0.0
    %7619 = vmatprep.subr.mxu0 0.0
    %7620 = vmatpush2.xpose.msra.mxu0 0.0
    %7621 = vmatprep.subr.mxu0 0.0
    %7622 = vmatpush2.xpose.msra.mxu0 0.0
    %7623 = vmatprep.subr.mxu0 0.0
    %7624 = vmatpush2.xpose.msra.mxu0 0.0
    %7625 = vmatprep.subr.mxu0 0.0
    %7626 = vmatpush2.xpose.msra.mxu0 0.0
    %7627 = vmatprep.subr.mxu0 0.0
    %7628 = vmatpush2.xpose.msra.mxu0 0.0
    %7629 = vmatprep.subr.mxu0 0.0
    %7630 = vmatpush2.xpose.msra.mxu0 0.0
    %7631 = vmatprep.subr.mxu0 0.0
    %7632 = vmatpush2.xpose.msra.mxu0 0.0
    %7633 = vmatprep.subr.mxu0 0.0
    %7634 = vmatpush2.xpose.msra.mxu0 0.0
    %7635 = vmatprep.subr.mxu0 0.0
    %7636 = vmatpush2.xpose.msra.mxu0 0.0
    %7637 = vmatprep.subr.mxu0 0.0
    %7638 = vmatpush2.xpose.msra.mxu0 0.0
    %7639 = vmatprep.subr.mxu0 0.0
    %7640 = vmatpush2.xpose.msra.mxu0 0.0
    %7641 = vmatprep.subr.mxu0 0.0
    %7642 = vmatpush2.xpose.msra.mxu0 0.0
    %7643 = vmatprep.subr.mxu0 0.0
    %7644 = vmatpush2.xpose.msra.mxu0 0.0
    %7645 = vmatprep.mubr.f32.mxu0 0.0
    %7646 = vmatmul.mubr.f32.gmra.mxu0 %v7573
    %v7647 = vpop.f32.mrf.mxu0
    %v7648 = vadd.f32 %v146, %v7647
    %v7649 = vpop.f32.mrf.mxu0
    %7650 = vmatprep.mubr.f32.mxu0 0.0
    %7651 = vmatmul.mubr.f32.gmra.mxu0 %v7575
    %v7652 = vpop.f32.mrf.mxu0
    %v7653 = vadd.f32 %v147, %v7652
    %v7654 = vpop.f32.mrf.mxu0
    %7655 = vdwg.mxu0
    %v7656 = vsel %vm512, %v7648, -inf
    %7657 = vmax.xlane.f32.xlu0 %v7656
    %v7658 = vpop.xlane.xlu0 %7657
    %v7659 = vsel %vm512, %v7653, -inf
    %7660 = vmax.xlane.f32.xlu0 %v7659
    %v7661 = vpop.xlane.xlu0 %7660
    %v7662 = vsub.f32 %v7648, %v7658
    %v7663 = vsub.f32 %v7653, %v7661
    %v7664 = vmul.f32 %v7662, 1.442695
    %v7665 = vpow.pop %v7664
    %v7666 = vmul.f32 %v7663, 1.442695
    %v7667 = vpow.pop %v7666
    %v7668 = vsel %vm512, %v7665, 0.0
    %7669 = vadd.xlane.f32.xlu0 %v7668
    %v7670 = vpop.xlane.xlu0 %7669
    %v7671 = vsel %vm512, %v7667, 0.0
    %7672 = vadd.xlane.f32.xlu0 %v7671
    %v7673 = vpop.xlane.xlu0 %7672
    %v7674 = vrcp.pop %v7670
    %v7675 = vrcp.pop %v7673
    %v7676 = vmul.f32 %v7665, %v7674
    %v7677 = vmul.f32 %v7667, %v7675
    %7678 = vrot.lane.b32.xlu0 %v6965, 104
    %v7679 = vpop.permute.xlu0 %7678
    %7680 = vrot.lane.b32.xlu0 %v6970, 104
    %v7681 = vpop.permute.xlu0 %7680
    %v7685 = vsel %vm512, %v7676, 0
    %v7688 = vsel %vm512, %v7677, 0
    %7690 = vmatprep.subr.mxu0 0.0
    %7691 = vmatpush1.msra.mxu0 0.0
    %7692 = vmatprep.subr.mxu0 0.0
    %7693 = vmatpush1.msra.mxu0 0.0
    %7694 = vmatprep.subr.mxu0 0.0
    %7695 = vmatpush1.msra.mxu0 0.0
    %7696 = vmatprep.subr.mxu0 0.0
    %7697 = vmatpush1.msra.mxu0 0.0
    %7698 = vmatprep.subr.mxu0 0.0
    %7699 = vmatpush1.msra.mxu0 0.0
    %7700 = vmatprep.subr.mxu0 0.0
    %7701 = vmatpush1.msra.mxu0 0.0
    %7702 = vmatprep.subr.mxu0 0.0
    %7703 = vmatpush1.msra.mxu0 0.0
    %7704 = vmatprep.subr.mxu0 0.0
    %7705 = vmatpush1.msra.mxu0 0.0
    %7706 = vmatprep.subr.mxu0 0.0
    %7707 = vmatpush1.msra.mxu0 0.0
    %7708 = vmatprep.subr.mxu0 0.0
    %7709 = vmatpush1.msra.mxu0 0.0
    %7710 = vmatprep.subr.mxu0 0.0
    %7711 = vmatpush1.msra.mxu0 0.0
    %7712 = vmatprep.subr.mxu0 0.0
    %7713 = vmatpush1.msra.mxu0 0.0
    %7714 = vmatprep.subr.mxu0 0.0
    %7715 = vmatpush1.msra.mxu0 0.0
    %7716 = vmatprep.subr.mxu0 0.0
    %7717 = vmatpush1.msra.mxu0 0.0
    %7718 = vmatprep.subr.mxu0 0.0
    %7719 = vmatpush1.msra.mxu0 %v7681
    %7720 = vmatprep.subr.mxu0 0.0
    %7721 = vmatpush1.msra.mxu0 %v7679
    %7722 = vmatprep.subr.mxu0 0.0
    %7723 = vmatpush2.msra.mxu0 0.0
    %7724 = vmatprep.subr.mxu0 0.0
    %7725 = vmatpush2.msra.mxu0 0.0
    %7726 = vmatprep.subr.mxu0 0.0
    %7727 = vmatpush2.msra.mxu0 0.0
    %7728 = vmatprep.subr.mxu0 0.0
    %7729 = vmatpush2.msra.mxu0 0.0
    %7730 = vmatprep.subr.mxu0 0.0
    %7731 = vmatpush2.msra.mxu0 0.0
    %7732 = vmatprep.subr.mxu0 0.0
    %7733 = vmatpush2.msra.mxu0 0.0
    %7734 = vmatprep.subr.mxu0 0.0
    %7735 = vmatpush2.msra.mxu0 0.0
    %7736 = vmatprep.subr.mxu0 0.0
    %7737 = vmatpush2.msra.mxu0 0.0
    %7738 = vmatprep.subr.mxu0 0.0
    %7739 = vmatpush2.msra.mxu0 0.0
    %7740 = vmatprep.subr.mxu0 0.0
    %7741 = vmatpush2.msra.mxu0 0.0
    %7742 = vmatprep.subr.mxu0 0.0
    %7743 = vmatpush2.msra.mxu0 0.0
    %7744 = vmatprep.subr.mxu0 0.0
    %7745 = vmatpush2.msra.mxu0 0.0
    %7746 = vmatprep.subr.mxu0 0.0
    %7747 = vmatpush2.msra.mxu0 0.0
    %7748 = vmatprep.subr.mxu0 0.0
    %7749 = vmatpush2.msra.mxu0 0.0
    %7750 = vmatprep.subr.mxu0 0.0
    %7751 = vmatpush2.msra.mxu0 0.0
    %7752 = vmatprep.subr.mxu0 0.0
    %7753 = vmatpush2.msra.mxu0 0.0
    %7754 = vmatprep.mubr.f32.mxu0 0.0
    %7755 = vmatmul.mubr.f32.gmra.mxu0 %v7685
    %v7756 = vpop.f32.mrf.mxu0
    %v7757 = vadd.f32 0.0, %v7756
    %v7758 = vpop.f32.mrf.mxu0
    %7759 = vmatprep.mubr.f32.mxu0 0.0
    %7760 = vmatmul.mubr.f32.gmra.mxu0 %v7688
    %v7761 = vpop.f32.mrf.mxu0
    %v7762 = vadd.f32 0.0, %v7761
    %v7763 = vpop.f32.mrf.mxu0
    %7764 = vdwg.mxu0
    %7767 = vrot.lane.b32.xlu0 %v7357, 8
    %v7768 = vpop.permute.xlu0 %7767
    %7769 = vrot.lane.b32.xlu0 %v7362, 8
    %v7770 = vpop.permute.xlu0 %7769
    %7775 = vrot.lane.b32.xlu0 %v7557, 16
    %v7776 = vpop.permute.xlu0 %7775
    %7777 = vrot.lane.b32.xlu0 %v7562, 16
    %v7778 = vpop.permute.xlu0 %7777
    %7783 = vrot.lane.b32.xlu0 %v7757, 24
    %v7784 = vpop.permute.xlu0 %7783
    %7785 = vrot.lane.b32.xlu0 %v7762, 24
    %v7786 = vpop.permute.xlu0 %7785
    %v7789 = vsel %vm424, %v7155, %v7768
    %v7790 = vsel %vm424, %v7160, %v7770
    %v7791 = vsel %vm512, %v7789, %v7776
    %v7792 = vsel %vm512, %v7790, %v7778
    %v7793 = vsel %vm1246, %v7791, %v7784
    %v7794 = vsel %vm1246, %v7792, %v7786
    %v7796 = vsel %vm153, %v7793, 0
    %v7799 = vsel %vm153, %v7794, 0
    %7801 = vmatprep.subr.mxu0 0.0
    %7802 = vmatpush1.msra.mxu0 0.0
    %7803 = vmatprep.subr.mxu0 0.0
    %7804 = vmatpush1.msra.mxu0 0.0
    %7805 = vmatprep.subr.mxu0 0.0
    %7806 = vmatpush1.msra.mxu0 0.0
    %7807 = vmatprep.subr.mxu0 0.0
    %7808 = vmatpush1.msra.mxu0 0.0
    %7809 = vmatprep.subr.mxu0 0.0
    %7810 = vmatpush1.msra.mxu0 0.0
    %7811 = vmatprep.subr.mxu0 0.0
    %7812 = vmatpush1.msra.mxu0 0.0
    %7813 = vmatprep.subr.mxu0 0.0
    %7814 = vmatpush1.msra.mxu0 0.0
    %7815 = vmatprep.subr.mxu0 0.0
    %7816 = vmatpush1.msra.mxu0 0.0
    %7817 = vmatprep.subr.mxu0 0.0
    %7818 = vmatpush1.msra.mxu0 0.0
    %7819 = vmatprep.subr.mxu0 0.0
    %7820 = vmatpush1.msra.mxu0 0.0
    %7821 = vmatprep.subr.mxu0 0.0
    %7822 = vmatpush1.msra.mxu0 0.0
    %7823 = vmatprep.subr.mxu0 0.0
    %7824 = vmatpush1.msra.mxu0 0.0
    %7825 = vmatprep.subr.mxu0 0.0
    %7826 = vmatpush1.msra.mxu0 %v6741
    %7827 = vmatprep.subr.mxu0 0.0
    %7828 = vmatpush1.msra.mxu0 %v6740
    %7829 = vmatprep.subr.mxu0 0.0
    %7830 = vmatpush1.msra.mxu0 %v6739
    %7831 = vmatprep.subr.mxu0 0.0
    %7832 = vmatpush1.msra.mxu0 %v6738
    %7833 = vmatprep.subr.mxu0 0.0
    %7834 = vmatpush2.msra.mxu0 0.0
    %7835 = vmatprep.subr.mxu0 0.0
    %7836 = vmatpush2.msra.mxu0 0.0
    %7837 = vmatprep.subr.mxu0 0.0
    %7838 = vmatpush2.msra.mxu0 0.0
    %7839 = vmatprep.subr.mxu0 0.0
    %7840 = vmatpush2.msra.mxu0 0.0
    %7841 = vmatprep.subr.mxu0 0.0
    %7842 = vmatpush2.msra.mxu0 0.0
    %7843 = vmatprep.subr.mxu0 0.0
    %7844 = vmatpush2.msra.mxu0 0.0
    %7845 = vmatprep.subr.mxu0 0.0
    %7846 = vmatpush2.msra.mxu0 0.0
    %7847 = vmatprep.subr.mxu0 0.0
    %7848 = vmatpush2.msra.mxu0 0.0
    %7849 = vmatprep.subr.mxu0 0.0
    %7850 = vmatpush2.msra.mxu0 0.0
    %7851 = vmatprep.subr.mxu0 0.0
    %7852 = vmatpush2.msra.mxu0 0.0
    %7853 = vmatprep.subr.mxu0 0.0
    %7854 = vmatpush2.msra.mxu0 0.0
    %7855 = vmatprep.subr.mxu0 0.0
    %7856 = vmatpush2.msra.mxu0 0.0
    %7857 = vmatprep.subr.mxu0 0.0
    %7858 = vmatpush2.msra.mxu0 0.0
    %7859 = vmatprep.subr.mxu0 0.0
    %7860 = vmatpush2.msra.mxu0 0.0
    %7861 = vmatprep.subr.mxu0 0.0
    %7862 = vmatpush2.msra.mxu0 0.0
    %7863 = vmatprep.subr.mxu0 0.0
    %7864 = vmatpush2.msra.mxu0 0.0
    %7865 = vmatprep.mubr.f32.mxu0 0.0
    %7866 = vmatmul.mubr.f32.gmra.mxu0 %v7796
    %v7867 = vpop.f32.mrf.mxu0
    %v7868 = vadd.f32 0.0, %v7867
    %v7869 = vpop.f32.mrf.mxu0
    %7870 = vmatprep.mubr.f32.mxu0 0.0
    %7871 = vmatmul.mubr.f32.gmra.mxu0 %v7799
    %v7872 = vpop.f32.mrf.mxu0
    %v7873 = vadd.f32 0.0, %v7872
    %v7874 = vpop.f32.mrf.mxu0
    %7875 = vdwg.mxu0
    %v7876 = vadd.f32 %v6694, %v7868
    %v7877 = vadd.f32 %v6695, %v7873
    %s7878 = scalar_lea.vmem %s51, 1
    %v7879 = vld [vmem:[%s7878] sm:$0x1]
    %v7880 = vmul.f32 %v7876, %v7876
    %v7881 = vmul.f32 %v7877, %v7877
    %v7882 = vsel %vm153, %v7880, 0.0
    %7883 = vadd.xlane.f32.xlu0 %v7882
    %v7884 = vpop.xlane.xlu0 %7883
    %v7885 = vsel %vm153, %v7881, 0.0
    %7886 = vadd.xlane.f32.xlu0 %v7885
    %v7887 = vpop.xlane.xlu0 %7886
    %v7888 = vmul.f32 %v7884, %v160
    %v7889 = vmul.f32 %v7887, %v160
    %v7890 = vadd.f32 %v7888, 1e-06
    %v7891 = vadd.f32 %v7889, 1e-06
    %v7892 = vrsqrt.pop %v7890
    %v7893 = vrsqrt.pop %v7891
    %v7894 = vmul.f32 %v7876, %v7892
    %v7895 = vmul.f32 %v7877, %v7893
    %v7897 = vlaneseq
    %v7898 = vshrl.u32 %v7897, 7
    %v7899 = vsub.s32 0, %v7898
    %v7900 = vrot.slane %v7879, %v7899
    %v7902 = vmul.f32 %v7894, %v7900
    %v7903 = vmul.f32 %v7895, %v7900
    %s7904 = scalar_lea.vmem %s53, 32
    %v7905 = vld [vmem:[%s7904] sm:$0xff]
    %v7906 = vld [vmem:[%s7904 + $0x8] sm:$0xff]
    %v7907 = vld [vmem:[%s7904 + $0x10] sm:$0xff]
    %v7908 = vld [vmem:[%s7904 + $0x18] sm:$0xff]
    %v7910 = vsel %vm153, %v7902, 0
    %v7913 = vsel %vm153, %v7903, 0
    %7915 = vmatprep.subr.mxu0 0.0
    %7916 = vmatpush1.msra.mxu0 0.0
    %7917 = vmatprep.subr.mxu0 0.0
    %7918 = vmatpush1.msra.mxu0 0.0
    %7919 = vmatprep.subr.mxu0 0.0
    %7920 = vmatpush1.msra.mxu0 0.0
    %7921 = vmatprep.subr.mxu0 0.0
    %7922 = vmatpush1.msra.mxu0 0.0
    %7923 = vmatprep.subr.mxu0 0.0
    %7924 = vmatpush1.msra.mxu0 0.0
    %7925 = vmatprep.subr.mxu0 0.0
    %7926 = vmatpush1.msra.mxu0 0.0
    %7927 = vmatprep.subr.mxu0 0.0
    %7928 = vmatpush1.msra.mxu0 0.0
    %7929 = vmatprep.subr.mxu0 0.0
    %7930 = vmatpush1.msra.mxu0 0.0
    %7931 = vmatprep.subr.mxu0 0.0
    %7932 = vmatpush1.msra.mxu0 0.0
    %7933 = vmatprep.subr.mxu0 0.0
    %7934 = vmatpush1.msra.mxu0 0.0
    %7935 = vmatprep.subr.mxu0 0.0
    %7936 = vmatpush1.msra.mxu0 0.0
    %7937 = vmatprep.subr.mxu0 0.0
    %7938 = vmatpush1.msra.mxu0 0.0
    %7939 = vmatprep.subr.mxu0 0.0
    %7940 = vmatpush1.msra.mxu0 %v7908
    %7941 = vmatprep.subr.mxu0 0.0
    %7942 = vmatpush1.msra.mxu0 %v7907
    %7943 = vmatprep.subr.mxu0 0.0
    %7944 = vmatpush1.msra.mxu0 %v7906
    %7945 = vmatprep.subr.mxu0 0.0
    %7946 = vmatpush1.msra.mxu0 %v7905
    %7947 = vmatprep.subr.mxu0 0.0
    %7948 = vmatpush2.msra.mxu0 0.0
    %7949 = vmatprep.subr.mxu0 0.0
    %7950 = vmatpush2.msra.mxu0 0.0
    %7951 = vmatprep.subr.mxu0 0.0
    %7952 = vmatpush2.msra.mxu0 0.0
    %7953 = vmatprep.subr.mxu0 0.0
    %7954 = vmatpush2.msra.mxu0 0.0
    %7955 = vmatprep.subr.mxu0 0.0
    %7956 = vmatpush2.msra.mxu0 0.0
    %7957 = vmatprep.subr.mxu0 0.0
    %7958 = vmatpush2.msra.mxu0 0.0
    %7959 = vmatprep.subr.mxu0 0.0
    %7960 = vmatpush2.msra.mxu0 0.0
    %7961 = vmatprep.subr.mxu0 0.0
    %7962 = vmatpush2.msra.mxu0 0.0
    %7963 = vmatprep.subr.mxu0 0.0
    %7964 = vmatpush2.msra.mxu0 0.0
    %7965 = vmatprep.subr.mxu0 0.0
    %7966 = vmatpush2.msra.mxu0 0.0
    %7967 = vmatprep.subr.mxu0 0.0
    %7968 = vmatpush2.msra.mxu0 0.0
    %7969 = vmatprep.subr.mxu0 0.0
    %7970 = vmatpush2.msra.mxu0 0.0
    %7971 = vmatprep.subr.mxu0 0.0
    %7972 = vmatpush2.msra.mxu0 0.0
    %7973 = vmatprep.subr.mxu0 0.0
    %7974 = vmatpush2.msra.mxu0 0.0
    %7975 = vmatprep.subr.mxu0 0.0
    %7976 = vmatpush2.msra.mxu0 0.0
    %7977 = vmatprep.subr.mxu0 0.0
    %7978 = vmatpush2.msra.mxu0 0.0
    %7979 = vmatprep.mubr.f32.mxu0 0.0
    %7980 = vmatmul.mubr.f32.gmra.mxu0 %v7910
    %v7981 = vpop.f32.mrf.mxu0
    %v7982 = vadd.f32 0.0, %v7981
    %v7983 = vpop.f32.mrf.mxu0
    %7984 = vmatprep.mubr.f32.mxu0 0.0
    %7985 = vmatmul.mubr.f32.gmra.mxu0 %v7913
    %v7986 = vpop.f32.mrf.mxu0
    %v7987 = vadd.f32 0.0, %v7986
    %v7988 = vpop.f32.mrf.mxu0
    %7989 = vdwg.mxu0
    %v7990 = vmax.f32 %v7982, 0.0
    %v7991 = vmax.f32 %v7987, 0.0
    %s7992 = scalar_lea.vmem %s55, 64
    %v7993 = vld [vmem:[%s7992] sm:$0xff]
    %v7994 = vld [vmem:[%s7992 + $0x8] sm:$0xff]
    %v7995 = vld [vmem:[%s7992 + $0x10] sm:$0xff]
    %v7996 = vld [vmem:[%s7992 + $0x18] sm:$0xff]
    %v7997 = vld [vmem:[%s7992 + $0x20] sm:$0xff]
    %v7998 = vld [vmem:[%s7992 + $0x28] sm:$0xff]
    %v7999 = vld [vmem:[%s7992 + $0x30] sm:$0xff]
    %v8000 = vld [vmem:[%s7992 + $0x38] sm:$0xff]
    %v8002 = vsel %vm1452, %v7990, 0
    %v8005 = vsel %vm1452, %v7991, 0
    %8007 = vmatprep.subr.mxu0 0.0
    %8008 = vmatpush1.msra.mxu0 0.0
    %8009 = vmatprep.subr.mxu0 0.0
    %8010 = vmatpush1.msra.mxu0 0.0
    %8011 = vmatprep.subr.mxu0 0.0
    %8012 = vmatpush1.msra.mxu0 0.0
    %8013 = vmatprep.subr.mxu0 0.0
    %8014 = vmatpush1.msra.mxu0 0.0
    %8015 = vmatprep.subr.mxu0 0.0
    %8016 = vmatpush1.msra.mxu0 0.0
    %8017 = vmatprep.subr.mxu0 0.0
    %8018 = vmatpush1.msra.mxu0 0.0
    %8019 = vmatprep.subr.mxu0 0.0
    %8020 = vmatpush1.msra.mxu0 0.0
    %8021 = vmatprep.subr.mxu0 0.0
    %8022 = vmatpush1.msra.mxu0 0.0
    %8023 = vmatprep.subr.mxu0 0.0
    %8024 = vmatpush1.msra.mxu0 %v8000
    %8025 = vmatprep.subr.mxu0 0.0
    %8026 = vmatpush1.msra.mxu0 %v7999
    %8027 = vmatprep.subr.mxu0 0.0
    %8028 = vmatpush1.msra.mxu0 %v7998
    %8029 = vmatprep.subr.mxu0 0.0
    %8030 = vmatpush1.msra.mxu0 %v7997
    %8031 = vmatprep.subr.mxu0 0.0
    %8032 = vmatpush1.msra.mxu0 %v7996
    %8033 = vmatprep.subr.mxu0 0.0
    %8034 = vmatpush1.msra.mxu0 %v7995
    %8035 = vmatprep.subr.mxu0 0.0
    %8036 = vmatpush1.msra.mxu0 %v7994
    %8037 = vmatprep.subr.mxu0 0.0
    %8038 = vmatpush1.msra.mxu0 %v7993
    %8039 = vmatprep.subr.mxu0 0.0
    %8040 = vmatpush2.msra.mxu0 0.0
    %8041 = vmatprep.subr.mxu0 0.0
    %8042 = vmatpush2.msra.mxu0 0.0
    %8043 = vmatprep.subr.mxu0 0.0
    %8044 = vmatpush2.msra.mxu0 0.0
    %8045 = vmatprep.subr.mxu0 0.0
    %8046 = vmatpush2.msra.mxu0 0.0
    %8047 = vmatprep.subr.mxu0 0.0
    %8048 = vmatpush2.msra.mxu0 0.0
    %8049 = vmatprep.subr.mxu0 0.0
    %8050 = vmatpush2.msra.mxu0 0.0
    %8051 = vmatprep.subr.mxu0 0.0
    %8052 = vmatpush2.msra.mxu0 0.0
    %8053 = vmatprep.subr.mxu0 0.0
    %8054 = vmatpush2.msra.mxu0 0.0
    %8055 = vmatprep.subr.mxu0 0.0
    %8056 = vmatpush2.msra.mxu0 0.0
    %8057 = vmatprep.subr.mxu0 0.0
    %8058 = vmatpush2.msra.mxu0 0.0
    %8059 = vmatprep.subr.mxu0 0.0
    %8060 = vmatpush2.msra.mxu0 0.0
    %8061 = vmatprep.subr.mxu0 0.0
    %8062 = vmatpush2.msra.mxu0 0.0
    %8063 = vmatprep.subr.mxu0 0.0
    %8064 = vmatpush2.msra.mxu0 0.0
    %8065 = vmatprep.subr.mxu0 0.0
    %8066 = vmatpush2.msra.mxu0 0.0
    %8067 = vmatprep.subr.mxu0 0.0
    %8068 = vmatpush2.msra.mxu0 0.0
    %8069 = vmatprep.subr.mxu0 0.0
    %8070 = vmatpush2.msra.mxu0 0.0
    %8071 = vmatprep.mubr.f32.mxu0 0.0
    %8072 = vmatmul.mubr.f32.gmra.mxu0 %v8002
    %v8073 = vpop.f32.mrf.mxu0
    %v8074 = vadd.f32 0.0, %v8073
    %v8075 = vpop.f32.mrf.mxu0
    %8076 = vmatprep.mubr.f32.mxu0 0.0
    %8077 = vmatmul.mubr.f32.gmra.mxu0 %v8005
    %v8078 = vpop.f32.mrf.mxu0
    %v8079 = vadd.f32 0.0, %v8078
    %v8080 = vpop.f32.mrf.mxu0
    %8081 = vdwg.mxu0
    %v8082 = vadd.f32 %v7876, %v8074
    %v8083 = vadd.f32 %v7877, %v8079
    %v8084 = vld [vmem:[%s57] sm:$0x1]
    %v8085 = vmul.f32 %v8082, %v8082
    %v8086 = vmul.f32 %v8083, %v8083
    %v8087 = vsel %vm153, %v8085, 0.0
    %8088 = vadd.xlane.f32.xlu0 %v8087
    %v8089 = vpop.xlane.xlu0 %8088
    %v8090 = vsel %vm153, %v8086, 0.0
    %8091 = vadd.xlane.f32.xlu0 %v8090
    %v8092 = vpop.xlane.xlu0 %8091
    %v8093 = vmul.f32 %v8089, %v160
    %v8094 = vmul.f32 %v8092, %v160
    %v8095 = vadd.f32 %v8093, 1e-06
    %v8096 = vadd.f32 %v8094, 1e-06
    %v8097 = vrsqrt.pop %v8095
    %v8098 = vrsqrt.pop %v8096
    %v8099 = vmul.f32 %v8082, %v8097
    %v8100 = vmul.f32 %v8083, %v8098
    %v8102 = vlaneseq
    %v8103 = vshrl.u32 %v8102, 7
    %v8104 = vsub.s32 0, %v8103
    %v8105 = vrot.slane %v8084, %v8104
    %v8107 = vmul.f32 %v8099, %v8105
    %v8108 = vmul.f32 %v8100, %v8105
    %v8109 = vmul.f32 %v8107, 0.17677669
    %v8110 = vmul.f32 %v8108, 0.17677669
    %v8111 = vld [vmem:[%s59] sm:$0xff]
    %v8112 = vld [vmem:[%s59 + $0x8] sm:$0xff]
    %v8113 = vld [vmem:[%s59 + $0x10] sm:$0xff]
    %v8114 = vld [vmem:[%s59 + $0x18] sm:$0xff]
    %v8116 = vsel %vm153, %v8109, 0
    %v8119 = vsel %vm153, %v8110, 0
    %8121 = vmatprep.subr.mxu0 0.0
    %8122 = vmatpush1.msra.mxu0 0.0
    %8123 = vmatprep.subr.mxu0 0.0
    %8124 = vmatpush1.msra.mxu0 0.0
    %8125 = vmatprep.subr.mxu0 0.0
    %8126 = vmatpush1.msra.mxu0 0.0
    %8127 = vmatprep.subr.mxu0 0.0
    %8128 = vmatpush1.msra.mxu0 0.0
    %8129 = vmatprep.subr.mxu0 0.0
    %8130 = vmatpush1.msra.mxu0 0.0
    %8131 = vmatprep.subr.mxu0 0.0
    %8132 = vmatpush1.msra.mxu0 0.0
    %8133 = vmatprep.subr.mxu0 0.0
    %8134 = vmatpush1.msra.mxu0 0.0
    %8135 = vmatprep.subr.mxu0 0.0
    %8136 = vmatpush1.msra.mxu0 0.0
    %8137 = vmatprep.subr.mxu0 0.0
    %8138 = vmatpush1.msra.mxu0 0.0
    %8139 = vmatprep.subr.mxu0 0.0
    %8140 = vmatpush1.msra.mxu0 0.0
    %8141 = vmatprep.subr.mxu0 0.0
    %8142 = vmatpush1.msra.mxu0 0.0
    %8143 = vmatprep.subr.mxu0 0.0
    %8144 = vmatpush1.msra.mxu0 0.0
    %8145 = vmatprep.subr.mxu0 0.0
    %8146 = vmatpush1.msra.mxu0 %v8114
    %8147 = vmatprep.subr.mxu0 0.0
    %8148 = vmatpush1.msra.mxu0 %v8113
    %8149 = vmatprep.subr.mxu0 0.0
    %8150 = vmatpush1.msra.mxu0 %v8112
    %8151 = vmatprep.subr.mxu0 0.0
    %8152 = vmatpush1.msra.mxu0 %v8111
    %8153 = vmatprep.subr.mxu0 0.0
    %8154 = vmatpush2.msra.mxu0 0.0
    %8155 = vmatprep.subr.mxu0 0.0
    %8156 = vmatpush2.msra.mxu0 0.0
    %8157 = vmatprep.subr.mxu0 0.0
    %8158 = vmatpush2.msra.mxu0 0.0
    %8159 = vmatprep.subr.mxu0 0.0
    %8160 = vmatpush2.msra.mxu0 0.0
    %8161 = vmatprep.subr.mxu0 0.0
    %8162 = vmatpush2.msra.mxu0 0.0
    %8163 = vmatprep.subr.mxu0 0.0
    %8164 = vmatpush2.msra.mxu0 0.0
    %8165 = vmatprep.subr.mxu0 0.0
    %8166 = vmatpush2.msra.mxu0 0.0
    %8167 = vmatprep.subr.mxu0 0.0
    %8168 = vmatpush2.msra.mxu0 0.0
    %8169 = vmatprep.subr.mxu0 0.0
    %8170 = vmatpush2.msra.mxu0 0.0
    %8171 = vmatprep.subr.mxu0 0.0
    %8172 = vmatpush2.msra.mxu0 0.0
    %8173 = vmatprep.subr.mxu0 0.0
    %8174 = vmatpush2.msra.mxu0 0.0
    %8175 = vmatprep.subr.mxu0 0.0
    %8176 = vmatpush2.msra.mxu0 0.0
    %8177 = vmatprep.subr.mxu0 0.0
    %8178 = vmatpush2.msra.mxu0 0.0
    %8179 = vmatprep.subr.mxu0 0.0
    %8180 = vmatpush2.msra.mxu0 0.0
    %8181 = vmatprep.subr.mxu0 0.0
    %8182 = vmatpush2.msra.mxu0 0.0
    %8183 = vmatprep.subr.mxu0 0.0
    %8184 = vmatpush2.msra.mxu0 0.0
    %8185 = vmatprep.mubr.f32.mxu0 0.0
    %8186 = vmatmul.mubr.f32.gmra.mxu0 %v8116
    %v8187 = vpop.f32.mrf.mxu0
    %v8188 = vadd.f32 0.0, %v8187
    %v8189 = vpop.f32.mrf.mxu0
    %8190 = vmatprep.mubr.f32.mxu0 0.0
    %8191 = vmatmul.mubr.f32.gmra.mxu0 %v8119
    %v8192 = vpop.f32.mrf.mxu0
    %v8193 = vadd.f32 0.0, %v8192
    %v8194 = vpop.f32.mrf.mxu0
    %8195 = vdwg.mxu0
    %8196 = vst [vmem:[%s61] sm:$0xff] %v8188
    %8197 = vst [vmem:[%s61 + $0x8] sm:$0xff] %v8193
    %v8198 = vld [vmem:[%s5] sm:$0xff]
    %v8199 = vld [vmem:[%s5 + $0x8] sm:$0xff]
    %v8200 = vlaneseq
    %v8201 = vand.u32 %v8200, 127
    %vm8202 = vcmp.lt.s32.totalorder %v8201, 64
    %v8203 = vsel %vm8202, %v8188, -1e+09
    %v8204 = vsel %vm8202, %v8193, -1e+09
    %8205 = vmax.xlane.f32.xlu0 %v8203
    %v8206 = vpop.xlane.xlu0 %8205
    %8207 = vmax.xlane.f32.xlu0 %v8204
    %v8208 = vpop.xlane.xlu0 %8207
    %v8209 = vsub.f32 %v8203, %v8206
    %v8210 = vsub.f32 %v8204, %v8208
    %v8211 = vmul.f32 %v8209, 1.442695
    %v8212 = vpow.pop %v8211
    %v8213 = vmul.f32 %v8210, 1.442695
    %v8214 = vpow.pop %v8213
    %8215 = vadd.xlane.f32.xlu0 %v8212
    %v8216 = vpop.xlane.xlu0 %8215
    %8217 = vadd.xlane.f32.xlu0 %v8214
    %v8218 = vpop.xlane.xlu0 %8217
    %v8219 = vlog2.pop %v8216
    %v8220 = vmul.f32 %v8219, 0.6931472
    %v8221 = vlog2.pop %v8218
    %v8222 = vmul.f32 %v8221, 0.6931472
    %v8223 = vadd.f32 %v8220, %v8206
    %v8224 = vadd.f32 %v8222, %v8208
    %8225 = vset.pattern.permute.xlu0 0
    %8226 = vperm.xlu0 %8225, %v8198
    %v8227 = vpop.permute.xlu0 %8226
    %8228 = vset.pattern.permute.xlu0 0
    %8229 = vperm.xlu0 %8228, %v8199
    %v8230 = vpop.permute.xlu0 %8229
    %vm8231 = vcmp.eq.s32.totalorder %v8201, %v8227
    %vm8232 = vcmp.eq.s32.totalorder %v8201, %v8230
    %v8233 = vsel %vm8231, %v8188, 0.0
    %v8234 = vsel %vm8232, %v8193, 0.0
    %8235 = vadd.xlane.f32.xlu0 %v8233
    %v8236 = vpop.xlane.xlu0 %8235
    %8237 = vadd.xlane.f32.xlu0 %v8234
    %v8238 = vpop.xlane.xlu0 %8237
    %vm8239 = vcmp.ne.s32.totalorder %v8198, 4294967196
    %vm8240 = vcmp.ne.s32.totalorder %v8199, 4294967196
    %v8241 = vsel %vm8239, 1, 0
    %v8242 = vsel %vm8240, 1, 0
    %v8243 = vcvt.s32.f32 %v8241
    %v8244 = vcvt.s32.f32 %v8242
    %v8245 = vsub.f32 %v8223, %v8236
    %v8246 = vsub.f32 %v8224, %v8238
    %v8247 = vmul.f32 %v8245, %v8243
    %v8248 = vmul.f32 %v8246, %v8244
    %vm8249 = vcmask 7168
    %v8250 = vsel %vm8249, %v8247, 0.0
    %v8251 = vsel %vm8249, %v8248, 0.0
    %v8252 = vadd.f32 %v8250, %v8251
    %8253 = vadd.xlane.f32.xlu0 %v8252
    %v8254 = vpop.xlane.xlu0 %8253
    %v8255 = vrot.slane %v8254, 4
    %v8256 = vadd.f32 %v8254, %v8255
    %v8257 = vrot.slane %v8256, 2
    %v8258 = vadd.f32 %v8256, %v8257
    %v8259 = vrot.slane %v8258, 1
    %v8260 = vadd.f32 %v8258, %v8259
    %s8261 = vtos %v8260
    %v8262 = vstv %s8261
    %v8263 = vsel %vm8249, %v8243, 0.0
    %v8264 = vsel %vm8249, %v8244, 0.0
    %v8265 = vadd.f32 %v8263, %v8264
    %8266 = vadd.xlane.f32.xlu0 %v8265
    %v8267 = vpop.xlane.xlu0 %8266
    %v8268 = vrot.slane %v8267, 4
    %v8269 = vadd.f32 %v8267, %v8268
    %v8270 = vrot.slane %v8269, 2
    %v8271 = vadd.f32 %v8269, %v8270
    %v8272 = vrot.slane %v8271, 1
    %v8273 = vadd.f32 %v8271, %v8272
    %s8274 = vtos %v8273
    %v8275 = vstv %s8274
    %v8276 = vmax.f32 %v8275, 1.0
    %v8277 = vrcp.pop %v8276
    %v8278 = vmul.f32 %v8262, %v8277
    %vm8279 = vcmask 0
    %8280 = vst.msk [vmem:[#allocation2] sm:$0x1] %vm8279, %v8278
    // Predicated region
    $region122: #{seq2seq_t5_forward.1} parent=1 // pred_check
      _
    $region123: #{seq2seq_t5_forward.1} parent=1 // pred_check_branch
      %8282 = sbr.rel (0) target = $region125
    $region124: #{seq2seq_t5_forward.1} parent=1 // pred_region
      _
    $region125: #{seq2seq_t5_forward.1} parent=1 // pred_fallthru
      _
    // Predicated region
    $region126: #{seq2seq_t5_forward.1} parent=1 // pred_check
      _
    $region127: #{seq2seq_t5_forward.1} parent=1 // pred_check_branch
      %8284 = sbr.rel (0) target = $region129
    $region128: #{seq2seq_t5_forward.1} parent=1 // pred_region
      %s8286 = ssub.s32 16, 16
      %8287 = vsyncadd [#allocation3], %s8286
      %s8289 = sshll.u32 [#allocation2], 4
      %s8290 = int_to_ptr.vmem [resolvable:$true] %s8289
      %8292 = dma.vmem_to_hbm [thread:$0]  %s8290, 16, %s63, [#allocation3]
    $region129: #{seq2seq_t5_forward.1} parent=1 // pred_fallthru
      _
    // Predicated region
    $region130: #{seq2seq_t5_forward.1} parent=1 // pred_check
      _
    $region131: #{seq2seq_t5_forward.1} parent=1 // pred_check_branch
      %8294 = sbr.rel (0) target = $region133
    $region132: #{seq2seq_t5_forward.1} parent=1 // pred_region
      _
    $region133: #{seq2seq_t5_forward.1} parent=1 // pred_fallthru
      _
    // Predicated region
    $region134: #{seq2seq_t5_forward.1} parent=1 // pred_check
      _
    $region135: #{seq2seq_t5_forward.1} parent=1 // pred_check_branch
      %8296 = sbr.rel (0) target = $region137
    $region136: #{seq2seq_t5_forward.1} parent=1 // pred_region
      %8297 = dma.done [#allocation3], 16
    $region137: #{seq2seq_t5_forward.1} parent=1 // pred_fallthru
      _
    %8298 = vsyncpa [#allocation3], 1

</llo_original>
